<compile_context>
chip_gen: v7x
topology: tpu7x:2x2x1
jax: 0.10.0
libtpu: 0.0.40
codegen_flags: <defaults>
</compile_context>

<pallas_src>
import functools

import jax
import jax.numpy as jnp
from jax.experimental import pallas as pl
from jax.experimental.pallas import tpu as pltpu


# Tile sizes over the node dimension (rows / contraction) and a cap on the
# output-feature tile width.  256/512 keeps double-buffered VMEM use at a few
# MiB on every chip (v5e/v6e/v7x); raise towards 512/512 for very large graphs.
TILE_NODES = 256
TILE_FEATS = 512


def _round_up(x, m):
    return ((x + m - 1) // m) * m


# --------------------------------------------------------------------------
# Kernel 1: dual feature transform  XW = [X @ W | X_a @ W]
# --------------------------------------------------------------------------

def _dual_xw_kernel(x_ref, xa_ref, w_ref, o_ref):
    w = w_ref[...]
    h = w.shape[1]
    o_ref[:, :h] = jnp.dot(x_ref[...], w,
                           preferred_element_type=jnp.float32).astype(o_ref.dtype)
    o_ref[:, h:] = jnp.dot(xa_ref[...], w,
                           preferred_element_type=jnp.float32).astype(o_ref.dtype)


def dual_feature_transform(x, xa, w, *, x_col=0, xa_col=0, tm=TILE_NODES):
    """Computes [x @ w | xa @ w] as an (N, 2H) bf16 matrix.

    x / xa may be the same array viewed at different H-wide column blocks
    (x_col / xa_col), which lets the second GCN layer consume the fused
    [z1 | z1_a] output of the first layer without slicing through HBM.
    """
    n = x.shape[0]
    f, h = w.shape
    assert n % tm == 0
    return pl.pallas_call(
        _dual_xw_kernel,
        out_shape=jax.ShapeDtypeStruct((n, 2 * h), jnp.bfloat16),
        grid=(n // tm,),
        in_specs=[
            pl.BlockSpec((tm, f), lambda i: (i, x_col)),
            pl.BlockSpec((tm, f), lambda i: (i, xa_col)),
            pl.BlockSpec((f, h), lambda i: (0, 0)),
        ],
        out_specs=pl.BlockSpec((tm, 2 * h), lambda i: (i, 0)),
        compiler_params=pltpu.CompilerParams(dimension_semantics=("parallel",)),
    )(x, xa, w)


# --------------------------------------------------------------------------
# Kernel 2: GCN propagation  out = D^-1/2 (A + I) D^-1/2 @ XW + b  (+ ReLU)
# --------------------------------------------------------------------------

def _gcn_propagate_kernel(adj_ref, drow_ref, dcol_ref, xw_ref, b_ref,
                          o_ref, acc_ref, *, relu):
    k = pl.program_id(2)

    @pl.when(k == 0)
    def _init():
        acc_ref[...] = jnp.zeros_like(acc_ref)

    # Build the normalized adjacency tile on the fly (VPU work hidden under
    # the MXU): a_hat_ij = d_i^-1/2 * (A + I)_ij * d_j^-1/2.
    tm, tk = adj_ref.shape
    i = pl.program_id(0)
    rows = i * tm + jax.lax.broadcasted_iota(jnp.int32, (tm, tk), 0)
    cols = k * tk + jax.lax.broadcasted_iota(jnp.int32, (tm, tk), 1)
    a = adj_ref[...].astype(jnp.float32) + (rows == cols).astype(jnp.float32)
    a_hat = (a * drow_ref[...] * dcol_ref[...]).astype(jnp.bfloat16)

    acc_ref[...] += jnp.dot(a_hat, xw_ref[...],
                            preferred_element_type=jnp.float32)

    @pl.when(k == pl.num_programs(2) - 1)
    def _finalize():
        out = acc_ref[...] + b_ref[...]
        if relu:
            out = jnp.maximum(out, 0.0)
        o_ref[...] = out.astype(o_ref.dtype)


def gcn_propagate(adj, drow, dcol, xw, bias, *, relu, out_dtype,
                  tm=TILE_NODES, tk=TILE_NODES):
    n = adj.shape[0]
    width = xw.shape[1]
    tn = width if width <= TILE_FEATS else TILE_FEATS
    assert width % tn == 0 and n % tm == 0 and n % tk == 0
    return pl.pallas_call(
        functools.partial(_gcn_propagate_kernel, relu=relu),
        out_shape=jax.ShapeDtypeStruct((n, width), out_dtype),
        grid=(n // tm, width // tn, n // tk),
        in_specs=[
            pl.BlockSpec((tm, tk), lambda i, j, k: (i, k)),   # raw adjacency (bf16)
            pl.BlockSpec((tm, 1), lambda i, j, k: (i, 0)),    # d^-1/2 (rows)
            pl.BlockSpec((1, tk), lambda i, j, k: (0, k)),    # d^-1/2 (cols)
            pl.BlockSpec((tk, tn), lambda i, j, k: (k, j)),   # XW (bf16)
            pl.BlockSpec((1, tn), lambda i, j, k: (0, j)),    # bias
        ],
        out_specs=pl.BlockSpec((tm, tn), lambda i, j, k: (i, j)),
        scratch_shapes=[pltpu.VMEM((tm, tn), jnp.float32)],
        compiler_params=pltpu.CompilerParams(
            dimension_semantics=("parallel", "parallel", "arbitrary")),
    )(adj, drow, dcol, xw, bias)


# --------------------------------------------------------------------------
# Kernel 3: fused AvgReadout + L2-normalize + sigmoid + Bilinear discriminator
#           (both branches in one pass over graph_neigh)
# --------------------------------------------------------------------------

def _readout_disc_kernel(mask_ref, embk_ref, embi_ref, w_ref, b_ref,
                         ret_ref, reta_ref, vsum_ref, rsum_ref):
    k = pl.program_id(1)

    @pl.when(k == 0)
    def _init():
        vsum_ref[...] = jnp.zeros_like(vsum_ref)
        rsum_ref[...] = jnp.zeros_like(rsum_ref)

    mask = mask_ref[...]                                        # (tm, tk) bf16
    vsum_ref[...] += jnp.dot(mask, embk_ref[...].astype(jnp.bfloat16),
                             preferred_element_type=jnp.float32)
    rsum_ref[...] += jnp.sum(mask.astype(jnp.float32), axis=1, keepdims=True)

    @pl.when(k == pl.num_programs(1) - 1)
    def _finalize():
        p = w_ref.shape[0]
        # AvgReadout: vsum / row_sum (guarded so zero / padded rows stay finite).
        inv_rs = pl.reciprocal(jnp.maximum(rsum_ref[...], 1e-30), approx=True)
        ge = vsum_ref[...] * inv_rs                             # (tm, 2p)

        def _normalize_sigmoid(x):
            # F.normalize(p=2, dim=1): x / max(||x||, 1e-12), then sigmoid.
            ss = jnp.sum(x * x, axis=1, keepdims=True)
            inv = jnp.minimum(jax.lax.rsqrt(ss), 1e12)
            return jax.nn.sigmoid(x * inv)

        g = _normalize_sigmoid(ge[:, :p])                       # branch on emb
        g_a = _normalize_sigmoid(ge[:, p:])                     # branch on emb_a

        h = embi_ref[:, :p]                                     # emb rows (f32)
        h_a = embi_ref[:, p:]                                   # emb_a rows
        w = w_ref[...]
        bias = b_ref[0]

        hw = jnp.dot(h, w, preferred_element_type=jnp.float32)
        haw = jnp.dot(h_a, w, preferred_element_type=jnp.float32)

        sc1 = jnp.sum(hw * g, axis=1, keepdims=True) + bias      # f_k(emb,   g)
        sc2 = jnp.sum(haw * g, axis=1, keepdims=True) + bias     # f_k(emb_a, g)
        sc1a = jnp.sum(haw * g_a, axis=1, keepdims=True) + bias  # f_k(emb_a, g_a)
        sc2a = jnp.sum(hw * g_a, axis=1, keepdims=True) + bias   # f_k(emb,   g_a)

        col = jax.lax.broadcasted_iota(jnp.int32, ret_ref.shape, 1)
        ret_ref[...] = jnp.where(col == 0, sc1, sc2)
        reta_ref[...] = jnp.where(col == 0, sc1a, sc2a)


def readout_discriminator(mask, emb_both, bil_w, bil_b, *,
                          tm=TILE_NODES, tk=TILE_NODES):
    n = mask.shape[0]
    width = emb_both.shape[1]
    p = bil_w.shape[0]
    assert width == 2 * p and n % tm == 0 and n % tk == 0
    return pl.pallas_call(
        _readout_disc_kernel,
        out_shape=(jax.ShapeDtypeStruct((n, 2), jnp.float32),
                   jax.ShapeDtypeStruct((n, 2), jnp.float32)),
        grid=(n // tm, n // tk),
        in_specs=[
            pl.BlockSpec((tm, tk), lambda i, k: (i, k)),        # graph_neigh mask
            pl.BlockSpec((tk, width), lambda i, k: (k, 0)),     # emb_both (reduction)
            pl.BlockSpec((tm, width), lambda i, k: (i, 0)),     # emb_both (bilinear rows)
            pl.BlockSpec((p, p), lambda i, k: (0, 0)),          # bilinear weight
            pl.BlockSpec(memory_space=pltpu.MemorySpace.SMEM),  # bilinear bias scalar
        ],
        out_specs=(
            pl.BlockSpec((tm, 2), lambda i, k: (i, 0)),
            pl.BlockSpec((tm, 2), lambda i, k: (i, 0)),
        ),
        scratch_shapes=[pltpu.VMEM((tm, width), jnp.float32),
                        pltpu.VMEM((tm, 1), jnp.float32)],
        compiler_params=pltpu.CompilerParams(
            dimension_semantics=("parallel", "arbitrary")),
    )(mask, emb_both, emb_both, bil_w, bil_b)


# ----------------------------- module wrapper -----------------------------

def init_params(key, input_dim, hidden_dim, out_dim):
    k1, k2, k3 = jax.random.split(key, 3)

    def glorot(k, fan_in, fan_out, shape):
        bound = (6.0 / (fan_in + fan_out)) ** 0.5
        return jax.random.uniform(k, shape, jnp.float32, -bound, bound)

    return {
        "w1": glorot(k1, input_dim, hidden_dim, (input_dim, hidden_dim)),
        "b1": jnp.zeros((hidden_dim,), jnp.float32),
        "w2": glorot(k2, hidden_dim, out_dim, (hidden_dim, out_dim)),
        "b2": jnp.zeros((out_dim,), jnp.float32),
        # nn.Bilinear(out_dim, out_dim, 1): weight (1, out, out), xavier-uniform
        # (fan_in = out*out, fan_out = out), bias 0.
        "bil_w": glorot(k3, out_dim * out_dim, out_dim, (out_dim, out_dim)),
        "bil_b": jnp.zeros((1,), jnp.float32),
    }


def omics1_encoder_forward(params, feat, feat_a, adj, graph_neigh):
    n, _ = feat.shape
    out_dim = params["w2"].shape[1]

    n_pad = _round_up(n, TILE_NODES)
    out_pad = _round_up(out_dim, 128)
    pad_n = n_pad - n

    # ---- glue (plain JAX): GCN normalization vector + tile-aligned padding ----
    # dense_to_sparse + GCNConv(add_self_loops=True) == the dense operator
    # D~^{-1/2} (A_bin + I) D~^{-1/2}; only d~^{-1/2} is materialized here,
    # normalized adjacency tiles are rebuilt on the fly inside the kernel.
    adj_bin = (adj != 0).astype(jnp.float32)
    deg = jnp.sum(adj_bin, axis=1) + 1.0                         # + self-loop
    d_inv_sqrt = jax.lax.rsqrt(deg)

    adj_p = jnp.pad(adj_bin, ((0, pad_n), (0, pad_n))).astype(jnp.bfloat16)
    mask_p = jnp.pad(graph_neigh.astype(jnp.float32),
                     ((0, pad_n), (0, pad_n))).astype(jnp.bfloat16)
    d_p = jnp.pad(d_inv_sqrt, (0, pad_n)).astype(jnp.float32)
    drow = d_p.reshape(n_pad, 1)
    dcol = d_p.reshape(1, n_pad)

    feat_p = jnp.pad(feat, ((0, pad_n), (0, 0))).astype(jnp.bfloat16)
    feat_a_p = jnp.pad(feat_a, ((0, pad_n), (0, 0))).astype(jnp.bfloat16)

    w1 = params["w1"].astype(jnp.bfloat16)
    w2 = jnp.pad(params["w2"],
                 ((0, 0), (0, out_pad - out_dim))).astype(jnp.bfloat16)
    b1_both = jnp.concatenate([params["b1"], params["b1"]]).reshape(1, -1)
    b2_p = jnp.pad(params["b2"], (0, out_pad - out_dim))
    b2_both = jnp.concatenate([b2_p, b2_p]).reshape(1, -1)
    bil_w = jnp.pad(params["bil_w"],
                    ((0, out_pad - out_dim), (0, out_pad - out_dim)))
    bil_b = params["bil_b"].astype(jnp.float32)

    # TODO(synk): nn.Dropout treated as eval-mode identity (no in-kernel RNG dropout).

    # ---- layer 1: z = relu(A_hat @ ([feat | feat_a] @ W1) + b1) ----
    xw1 = dual_feature_transform(feat_p, feat_a_p, w1)
    z1_both = gcn_propagate(adj_p, drow, dcol, xw1, b1_both,
                            relu=True, out_dtype=jnp.bfloat16)

    # ---- layer 2: emb = A_hat @ ([z1 | z1_a] @ W2) + b2 ----
    xw2 = dual_feature_transform(z1_both, z1_both, w2, x_col=0, xa_col=1)
    emb_both = gcn_propagate(adj_p, drow, dcol, xw2, b2_both,
                             relu=False, out_dtype=jnp.float32)

    # ---- fused AvgReadout + L2-normalize + sigmoid + discriminator ----
    ret_p, ret_a_p = readout_discriminator(mask_p, emb_both, bil_w, bil_b)

    emb = emb_both[:n, :out_dim]
    return emb, ret_p[:n], ret_a_p[:n]


# --------------------------------- main ------------------------------------

if __name__ == "__main__":
    N = 8           # number of graph nodes / spots
    INPUT_DIM = 16
    HIDDEN = 256    # hardcoded in omics1_encoder.__init__
    OUT_DIM = 32

    key = jax.random.PRNGKey(0)
    kp, kf, kfa, ka = jax.random.split(key, 4)

    params = init_params(kp, INPUT_DIM, HIDDEN, OUT_DIM)

    feat = jax.random.normal(kf, (N, INPUT_DIM), jnp.float32)
    feat_a = jax.random.normal(kfa, (N, INPUT_DIM), jnp.float32)

    # symmetric binary adjacency with zero diagonal
    raw = jax.random.uniform(ka, (N, N))
    adj = (raw + raw.T > 1.0).astype(jnp.float32)
    adj = adj * (1.0 - jnp.eye(N, dtype=jnp.float32))
    # graph_neigh: neighborhood mask incl. self (guarantees rowsum > 0)
    graph_neigh = adj + jnp.eye(N, dtype=jnp.float32)

    emb, ret, ret_a = jax.jit(omics1_encoder_forward)(
        params, feat, feat_a, adj, graph_neigh)
    jax.block_until_ready((emb, ret, ret_a))

    assert emb.shape == (N, OUT_DIM)
    assert ret.shape == (N, 2)
    assert ret_a.shape == (N, 2)
    assert bool(jnp.all(jnp.isfinite(emb)))
    assert bool(jnp.all(jnp.isfinite(ret))) and bool(jnp.all(jnp.isfinite(ret_a)))
    print("KERNEL_OK")
</pallas_src>

<mosaic_0001>
module attributes {stable_mosaic.version = 11 : i64} {
  func.func @_gcn_propagate_kernel(%arg0: i32, %arg1: i32, %arg2: i32, %arg3: memref<256x256xbf16, #tpu.memory_space<vmem>>, %arg4: memref<256x1xf32, #tpu.memory_space<vmem>>, %arg5: memref<1x256xf32, #tpu.memory_space<vmem>>, %arg6: memref<256x512xbf16, #tpu.memory_space<vmem>>, %arg7: memref<1x512xf32, #tpu.memory_space<vmem>>, %arg8: memref<256x512xbf16, #tpu.memory_space<vmem>>, %arg9: memref<256x512xf32, #tpu.memory_space<vmem>>) attributes {dimension_semantics = [#tpu.dimension_semantics<parallel>, #tpu.dimension_semantics<parallel>, #tpu.dimension_semantics<arbitrary>], iteration_bounds = array<i64: 1, 1, 1>, scalar_prefetch = 0 : i64, scratch_operands = 1 : i64, tpu.core_type = #tpu.core_type<tc>, window_params = [{transform_indices = @transform_0, window_bounds = array<i64: 256, 256>}, {transform_indices = @transform_1, window_bounds = array<i64: 256, 1>}, {transform_indices = @transform_2, window_bounds = array<i64: 1, 256>}, {transform_indices = @transform_3, window_bounds = array<i64: 256, 512>}, {transform_indices = @transform_4, window_bounds = array<i64: 1, 512>}, {transform_indices = @transform_5, window_bounds = array<i64: 256, 512>}]} {
    %c0_i32 = arith.constant 0 : i32
    %0 = arith.cmpi eq, %arg2, %c0_i32 : i32
    %1 = arith.extui %0 : i1 to i32
    %c0_i32_0 = arith.constant 0 : i32
    %2 = arith.cmpi ne, %1, %c0_i32_0 : i32
    scf.if %2 {
      %cst_15 = arith.constant 0.000000e+00 : f32
      %32 = vector.broadcast %cst_15 : f32 to vector<256x512xf32>
      %c0_16 = arith.constant 0 : index
      %c0_17 = arith.constant 0 : index
      %33 = vector.load %arg9[%c0_16, %c0_17] : memref<256x512xf32, #tpu.memory_space<vmem>>, vector<256x512xf32>
      tpu.vector_store %arg9[%c0_16, %c0_17], %32 {strides = array<i32>} : memref<256x512xf32, #tpu.memory_space<vmem>>, vector<256x512xf32>,
    } else {
    }
    %c256_i32 = arith.constant 256 : i32
    %3 = arith.muli %arg0, %c256_i32 : i32
    %4 = tpu.iota {dimensions = array<i32: 0>} : vector<256x256xi32>
    %5 = vector.broadcast %3 : i32 to vector<256x256xi32>
    %6 = arith.addi %5, %4 : vector<256x256xi32>
    %c256_i32_1 = arith.constant 256 : i32
    %7 = arith.muli %arg2, %c256_i32_1 : i32
    %8 = tpu.iota {dimensions = array<i32: 1>} : vector<256x256xi32>
    %9 = vector.broadcast %7 : i32 to vector<256x256xi32>
    %10 = arith.addi %9, %8 : vector<256x256xi32>
    %c0 = arith.constant 0 : index
    %c0_2 = arith.constant 0 : index
    %11 = vector.load %arg3[%c0, %c0_2] : memref<256x256xbf16, #tpu.memory_space<vmem>>, vector<256x256xbf16>
    %12 = arith.extf %11 : vector<256x256xbf16> to vector<256x256xf32>
    %13 = arith.cmpi eq, %6, %10 : vector<256x256xi32>
    %14 = arith.extui %13 : vector<256x256xi1> to vector<256x256xi32>
    %15 = arith.sitofp %14 : vector<256x256xi32> to vector<256x256xf32>
    %16 = arith.addf %12, %15 : vector<256x256xf32>
    %c0_3 = arith.constant 0 : index
    %c0_4 = arith.constant 0 : index
    %17 = vector.load %arg4[%c0_3, %c0_4] : memref<256x1xf32, #tpu.memory_space<vmem>>, vector<256x1xf32>
    %18 = vector.broadcast %17 : vector<256x1xf32> to vector<256x256xf32>
    %19 = arith.mulf %16, %18 : vector<256x256xf32>
    %c0_5 = arith.constant 0 : index
    %c0_6 = arith.constant 0 : index
    %20 = vector.load %arg5[%c0_5, %c0_6] : memref<1x256xf32, #tpu.memory_space<vmem>>, vector<1x256xf32>
    %21 = vector.broadcast %20 : vector<1x256xf32> to vector<256x256xf32>
    %22 = arith.mulf %19, %21 : vector<256x256xf32>
    %23 = arith.truncf %22 : vector<256x256xf32> to vector<256x256xbf16>
    %c0_7 = arith.constant 0 : index
    %c0_8 = arith.constant 0 : index
    %24 = vector.load %arg9[%c0_7, %c0_8] : memref<256x512xf32, #tpu.memory_space<vmem>>, vector<256x512xf32>
    %c0_9 = arith.constant 0 : index
    %c0_10 = arith.constant 0 : index
    %25 = vector.load %arg6[%c0_9, %c0_10] : memref<256x512xbf16, #tpu.memory_space<vmem>>, vector<256x512xbf16>
    %cst = arith.constant dense<0.000000e+00> : vector<256x512xf32>
    %26 = tpu.matmul %23, %25, %cst {dimension_numbers = #tpu.dot_dimension_numbers<[1], [0], [0], [1], [0, 0, 1, 1], [], []>} : vector<256x256xbf16>, vector<256x512xbf16>, vector<256x512xf32> -> vector<256x512xf32>
    %27 = arith.addf %24, %26 : vector<256x512xf32>
    %c0_11 = arith.constant 0 : index
    %c0_12 = arith.constant 0 : index
    %28 = vector.load %arg9[%c0_11, %c0_12] : memref<256x512xf32, #tpu.memory_space<vmem>>, vector<256x512xf32>
    tpu.vector_store %arg9[%c0_11, %c0_12], %27 {strides = array<i32>} : memref<256x512xf32, #tpu.memory_space<vmem>>, vector<256x512xf32>,
    %c0_i32_13 = arith.constant 0 : i32
    %29 = arith.cmpi eq, %arg2, %c0_i32_13 : i32
    %30 = arith.extui %29 : i1 to i32
    %c0_i32_14 = arith.constant 0 : i32
    %31 = arith.cmpi ne, %30, %c0_i32_14 : i32
    scf.if %31 {
      %c0_15 = arith.constant 0 : index
      %c0_16 = arith.constant 0 : index
      %32 = vector.load %arg9[%c0_15, %c0_16] : memref<256x512xf32, #tpu.memory_space<vmem>>, vector<256x512xf32>
      %c0_17 = arith.constant 0 : index
      %c0_18 = arith.constant 0 : index
      %33 = vector.load %arg7[%c0_17, %c0_18] : memref<1x512xf32, #tpu.memory_space<vmem>>, vector<1x512xf32>
      %34 = vector.broadcast %33 : vector<1x512xf32> to vector<256x512xf32>
      %35 = arith.addf %32, %34 : vector<256x512xf32>
      %cst_19 = arith.constant 0.000000e+00 : f32
      %36 = vector.broadcast %cst_19 : f32 to vector<256x512xf32>
      %37 = arith.maximumf %35, %36 : vector<256x512xf32>
      %38 = arith.truncf %37 : vector<256x512xf32> to vector<256x512xbf16>
      %c0_20 = arith.constant 0 : index
      %c0_21 = arith.constant 0 : index
      %39 = vector.load %arg8[%c0_20, %c0_21] : memref<256x512xbf16, #tpu.memory_space<vmem>>, vector<256x512xbf16>
      tpu.vector_store %arg8[%c0_20, %c0_21], %38 {strides = array<i32>} : memref<256x512xbf16, #tpu.memory_space<vmem>>, vector<256x512xbf16>,
    } else {
    }
    return
  }
  func.func @transform_0(%arg0: i32, %arg1: i32, %arg2: i32) -> (i32, i32) {
    %c0_i32 = arith.constant 0 : i32
    return %arg0, %arg2 : i32, i32
  }
  func.func @transform_1(%arg0: i32, %arg1: i32, %arg2: i32) -> (i32, i32) {
    %c0_i32 = arith.constant 0 : i32
    %c0_i32_0 = arith.constant 0 : i32
    return %arg0, %c0_i32 : i32, i32
  }
  func.func @transform_2(%arg0: i32, %arg1: i32, %arg2: i32) -> (i32, i32) {
    %c0_i32 = arith.constant 0 : i32
    %c0_i32_0 = arith.constant 0 : i32
    return %c0_i32, %arg2 : i32, i32
  }
  func.func @transform_3(%arg0: i32, %arg1: i32, %arg2: i32) -> (i32, i32) {
    %c0_i32 = arith.constant 0 : i32
    return %arg2, %arg1 : i32, i32
  }
  func.func @transform_4(%arg0: i32, %arg1: i32, %arg2: i32) -> (i32, i32) {
    %c0_i32 = arith.constant 0 : i32
    %c0_i32_0 = arith.constant 0 : i32
    return %c0_i32, %arg1 : i32, i32
  }
  func.func @transform_5(%arg0: i32, %arg1: i32, %arg2: i32) -> (i32, i32) {
    %c0_i32 = arith.constant 0 : i32
    return %arg0, %arg1 : i32, i32
  }
}

module attributes {stable_mosaic.version = 11 : i64} {
  func.func @_dual_xw_kernel(%arg0: i32, %arg1: memref<256x16xbf16, #tpu.memory_space<vmem>>, %arg2: memref<256x16xbf16, #tpu.memory_space<vmem>>, %arg3: memref<16x256xbf16, #tpu.memory_space<vmem>>, %arg4: memref<256x512xbf16, #tpu.memory_space<vmem>>) attributes {dimension_semantics = [#tpu.dimension_semantics<parallel>], iteration_bounds = array<i64: 1>, scalar_prefetch = 0 : i64, scratch_operands = 0 : i64, tpu.core_type = #tpu.core_type<tc>, window_params = [{transform_indices = @transform_0, window_bounds = array<i64: 256, 16>}, {transform_indices = @transform_1, window_bounds = array<i64: 256, 16>}, {pipeline_mode = #tpu.pipeline_mode<synchronous>, transform_indices = @transform_2, window_bounds = array<i64: 16, 256>}, {transform_indices = @transform_3, window_bounds = array<i64: 256, 512>}]} {
    %c0 = arith.constant 0 : index
    %c0_0 = arith.constant 0 : index
    %0 = vector.load %arg3[%c0, %c0_0] : memref<16x256xbf16, #tpu.memory_space<vmem>>, vector<16x256xbf16>
    %c0_1 = arith.constant 0 : index
    %c0_2 = arith.constant 0 : index
    %1 = vector.load %arg1[%c0_1, %c0_2] : memref<256x16xbf16, #tpu.memory_space<vmem>>, vector<256x16xbf16>
    %cst = arith.constant dense<0.000000e+00> : vector<256x256xf32>
    %2 = tpu.matmul %1, %0, %cst {dimension_numbers = #tpu.dot_dimension_numbers<[1], [0], [0], [1], [0, 0, 1, 1], [], []>} : vector<256x16xbf16>, vector<16x256xbf16>, vector<256x256xf32> -> vector<256x256xf32>
    %3 = arith.truncf %2 : vector<256x256xf32> to vector<256x256xbf16>
    %c0_3 = arith.constant 0 : index
    %c0_4 = arith.constant 0 : index
    %4 = vector.load %arg4[%c0_3, %c0_4] : memref<256x512xbf16, #tpu.memory_space<vmem>>, vector<256x256xbf16>
    tpu.vector_store %arg4[%c0_3, %c0_4], %3 {strides = array<i32>} : memref<256x512xbf16, #tpu.memory_space<vmem>>, vector<256x256xbf16>,
    %c0_5 = arith.constant 0 : index
    %c0_6 = arith.constant 0 : index
    %5 = vector.load %arg2[%c0_5, %c0_6] : memref<256x16xbf16, #tpu.memory_space<vmem>>, vector<256x16xbf16>
    %cst_7 = arith.constant dense<0.000000e+00> : vector<256x256xf32>
    %6 = tpu.matmul %5, %0, %cst_7 {dimension_numbers = #tpu.dot_dimension_numbers<[1], [0], [0], [1], [0, 0, 1, 1], [], []>} : vector<256x16xbf16>, vector<16x256xbf16>, vector<256x256xf32> -> vector<256x256xf32>
    %7 = arith.truncf %6 : vector<256x256xf32> to vector<256x256xbf16>
    %c0_8 = arith.constant 0 : index
    %c256 = arith.constant 256 : index
    %8 = vector.load %arg4[%c0_8, %c256] : memref<256x512xbf16, #tpu.memory_space<vmem>>, vector<256x256xbf16>
    tpu.vector_store %arg4[%c0_8, %c256], %7 {strides = array<i32>} : memref<256x512xbf16, #tpu.memory_space<vmem>>, vector<256x256xbf16>,
    return
  }
  func.func @transform_0(%arg0: i32) -> (i32, i32) {
    %c0_i32 = arith.constant 0 : i32
    %c0_i32_0 = arith.constant 0 : i32
    return %arg0, %c0_i32 : i32, i32
  }
  func.func @transform_1(%arg0: i32) -> (i32, i32) {
    %c0_i32 = arith.constant 0 : i32
    %c0_i32_0 = arith.constant 0 : i32
    return %arg0, %c0_i32 : i32, i32
  }
  func.func @transform_2(%arg0: i32) -> (i32, i32) {
    %c0_i32 = arith.constant 0 : i32
    %c0_i32_0 = arith.constant 0 : i32
    %c0_i32_1 = arith.constant 0 : i32
    return %c0_i32, %c0_i32_0 : i32, i32
  }
  func.func @transform_3(%arg0: i32) -> (i32, i32) {
    %c0_i32 = arith.constant 0 : i32
    %c0_i32_0 = arith.constant 0 : i32
    return %arg0, %c0_i32 : i32, i32
  }
}

module attributes {stable_mosaic.version = 11 : i64} {
  func.func @_dual_xw_kernel(%arg0: i32, %arg1: memref<256x256xbf16, #tpu.memory_space<vmem>>, %arg2: memref<256x256xbf16, #tpu.memory_space<vmem>>, %arg3: memref<256x128xbf16, #tpu.memory_space<vmem>>, %arg4: memref<256x256xbf16, #tpu.memory_space<vmem>>) attributes {dimension_semantics = [#tpu.dimension_semantics<parallel>], iteration_bounds = array<i64: 1>, scalar_prefetch = 0 : i64, scratch_operands = 0 : i64, tpu.core_type = #tpu.core_type<tc>, window_params = [{transform_indices = @transform_0, window_bounds = array<i64: 256, 256>}, {transform_indices = @transform_1, window_bounds = array<i64: 256, 256>}, {pipeline_mode = #tpu.pipeline_mode<synchronous>, transform_indices = @transform_2, window_bounds = array<i64: 256, 128>}, {transform_indices = @transform_3, window_bounds = array<i64: 256, 256>}]} {
    %c0 = arith.constant 0 : index
    %c0_0 = arith.constant 0 : index
    %0 = vector.load %arg3[%c0, %c0_0] : memref<256x128xbf16, #tpu.memory_space<vmem>>, vector<256x128xbf16>
    %c0_1 = arith.constant 0 : index
    %c0_2 = arith.constant 0 : index
    %1 = vector.load %arg1[%c0_1, %c0_2] : memref<256x256xbf16, #tpu.memory_space<vmem>>, vector<256x256xbf16>
    %cst = arith.constant dense<0.000000e+00> : vector<256x128xf32>
    %2 = tpu.matmul %1, %0, %cst {dimension_numbers = #tpu.dot_dimension_numbers<[1], [0], [0], [1], [0, 0, 1, 1], [], []>} : vector<256x256xbf16>, vector<256x128xbf16>, vector<256x128xf32> -> vector<256x128xf32>
    %3 = arith.truncf %2 : vector<256x128xf32> to vector<256x128xbf16>
    %c0_3 = arith.constant 0 : index
    %c0_4 = arith.constant 0 : index
    %4 = vector.load %arg4[%c0_3, %c0_4] : memref<256x256xbf16, #tpu.memory_space<vmem>>, vector<256x128xbf16>
    tpu.vector_store %arg4[%c0_3, %c0_4], %3 {strides = array<i32>} : memref<256x256xbf16, #tpu.memory_space<vmem>>, vector<256x128xbf16>,
    %c0_5 = arith.constant 0 : index
    %c0_6 = arith.constant 0 : index
    %5 = vector.load %arg2[%c0_5, %c0_6] : memref<256x256xbf16, #tpu.memory_space<vmem>>, vector<256x256xbf16>
    %cst_7 = arith.constant dense<0.000000e+00> : vector<256x128xf32>
    %6 = tpu.matmul %5, %0, %cst_7 {dimension_numbers = #tpu.dot_dimension_numbers<[1], [0], [0], [1], [0, 0, 1, 1], [], []>} : vector<256x256xbf16>, vector<256x128xbf16>, vector<256x128xf32> -> vector<256x128xf32>
    %7 = arith.truncf %6 : vector<256x128xf32> to vector<256x128xbf16>
    %c0_8 = arith.constant 0 : index
    %c128 = arith.constant 128 : index
    %8 = vector.load %arg4[%c0_8, %c128] : memref<256x256xbf16, #tpu.memory_space<vmem>>, vector<256x128xbf16>
    tpu.vector_store %arg4[%c0_8, %c128], %7 {strides = array<i32>} : memref<256x256xbf16, #tpu.memory_space<vmem>>, vector<256x128xbf16>,
    return
  }
  func.func @transform_0(%arg0: i32) -> (i32, i32) {
    %c0_i32 = arith.constant 0 : i32
    %c0_i32_0 = arith.constant 0 : i32
    return %arg0, %c0_i32 : i32, i32
  }
  func.func @transform_1(%arg0: i32) -> (i32, i32) {
    %c1_i32 = arith.constant 1 : i32
    %c0_i32 = arith.constant 0 : i32
    return %arg0, %c1_i32 : i32, i32
  }
  func.func @transform_2(%arg0: i32) -> (i32, i32) {
    %c0_i32 = arith.constant 0 : i32
    %c0_i32_0 = arith.constant 0 : i32
    %c0_i32_1 = arith.constant 0 : i32
    return %c0_i32, %c0_i32_0 : i32, i32
  }
  func.func @transform_3(%arg0: i32) -> (i32, i32) {
    %c0_i32 = arith.constant 0 : i32
    %c0_i32_0 = arith.constant 0 : i32
    return %arg0, %c0_i32 : i32, i32
  }
}

module attributes {stable_mosaic.version = 11 : i64} {
  func.func @_gcn_propagate_kernel(%arg0: i32, %arg1: i32, %arg2: i32, %arg3: memref<256x256xbf16, #tpu.memory_space<vmem>>, %arg4: memref<256x1xf32, #tpu.memory_space<vmem>>, %arg5: memref<1x256xf32, #tpu.memory_space<vmem>>, %arg6: memref<256x256xbf16, #tpu.memory_space<vmem>>, %arg7: memref<1x256xf32, #tpu.memory_space<vmem>>, %arg8: memref<256x256xf32, #tpu.memory_space<vmem>>, %arg9: memref<256x256xf32, #tpu.memory_space<vmem>>) attributes {dimension_semantics = [#tpu.dimension_semantics<parallel>, #tpu.dimension_semantics<parallel>, #tpu.dimension_semantics<arbitrary>], iteration_bounds = array<i64: 1, 1, 1>, scalar_prefetch = 0 : i64, scratch_operands = 1 : i64, tpu.core_type = #tpu.core_type<tc>, window_params = [{transform_indices = @transform_0, window_bounds = array<i64: 256, 256>}, {transform_indices = @transform_1, window_bounds = array<i64: 256, 1>}, {transform_indices = @transform_2, window_bounds = array<i64: 1, 256>}, {transform_indices = @transform_3, window_bounds = array<i64: 256, 256>}, {transform_indices = @transform_4, window_bounds = array<i64: 1, 256>}, {transform_indices = @transform_5, window_bounds = array<i64: 256, 256>}]} {
    %c0_i32 = arith.constant 0 : i32
    %0 = arith.cmpi eq, %arg2, %c0_i32 : i32
    %1 = arith.extui %0 : i1 to i32
    %c0_i32_0 = arith.constant 0 : i32
    %2 = arith.cmpi ne, %1, %c0_i32_0 : i32
    scf.if %2 {
      %cst_15 = arith.constant 0.000000e+00 : f32
      %32 = vector.broadcast %cst_15 : f32 to vector<256x256xf32>
      %c0_16 = arith.constant 0 : index
      %c0_17 = arith.constant 0 : index
      %33 = vector.load %arg9[%c0_16, %c0_17] : memref<256x256xf32, #tpu.memory_space<vmem>>, vector<256x256xf32>
      tpu.vector_store %arg9[%c0_16, %c0_17], %32 {strides = array<i32>} : memref<256x256xf32, #tpu.memory_space<vmem>>, vector<256x256xf32>,
    } else {
    }
    %c256_i32 = arith.constant 256 : i32
    %3 = arith.muli %arg0, %c256_i32 : i32
    %4 = tpu.iota {dimensions = array<i32: 0>} : vector<256x256xi32>
    %5 = vector.broadcast %3 : i32 to vector<256x256xi32>
    %6 = arith.addi %5, %4 : vector<256x256xi32>
    %c256_i32_1 = arith.constant 256 : i32
    %7 = arith.muli %arg2, %c256_i32_1 : i32
    %8 = tpu.iota {dimensions = array<i32: 1>} : vector<256x256xi32>
    %9 = vector.broadcast %7 : i32 to vector<256x256xi32>
    %10 = arith.addi %9, %8 : vector<256x256xi32>
    %c0 = arith.constant 0 : index
    %c0_2 = arith.constant 0 : index
    %11 = vector.load %arg3[%c0, %c0_2] : memref<256x256xbf16, #tpu.memory_space<vmem>>, vector<256x256xbf16>
    %12 = arith.extf %11 : vector<256x256xbf16> to vector<256x256xf32>
    %13 = arith.cmpi eq, %6, %10 : vector<256x256xi32>
    %14 = arith.extui %13 : vector<256x256xi1> to vector<256x256xi32>
    %15 = arith.sitofp %14 : vector<256x256xi32> to vector<256x256xf32>
    %16 = arith.addf %12, %15 : vector<256x256xf32>
    %c0_3 = arith.constant 0 : index
    %c0_4 = arith.constant 0 : index
    %17 = vector.load %arg4[%c0_3, %c0_4] : memref<256x1xf32, #tpu.memory_space<vmem>>, vector<256x1xf32>
    %18 = vector.broadcast %17 : vector<256x1xf32> to vector<256x256xf32>
    %19 = arith.mulf %16, %18 : vector<256x256xf32>
    %c0_5 = arith.constant 0 : index
    %c0_6 = arith.constant 0 : index
    %20 = vector.load %arg5[%c0_5, %c0_6] : memref<1x256xf32, #tpu.memory_space<vmem>>, vector<1x256xf32>
    %21 = vector.broadcast %20 : vector<1x256xf32> to vector<256x256xf32>
    %22 = arith.mulf %19, %21 : vector<256x256xf32>
    %23 = arith.truncf %22 : vector<256x256xf32> to vector<256x256xbf16>
    %c0_7 = arith.constant 0 : index
    %c0_8 = arith.constant 0 : index
    %24 = vector.load %arg9[%c0_7, %c0_8] : memref<256x256xf32, #tpu.memory_space<vmem>>, vector<256x256xf32>
    %c0_9 = arith.constant 0 : index
    %c0_10 = arith.constant 0 : index
    %25 = vector.load %arg6[%c0_9, %c0_10] : memref<256x256xbf16, #tpu.memory_space<vmem>>, vector<256x256xbf16>
    %cst = arith.constant dense<0.000000e+00> : vector<256x256xf32>
    %26 = tpu.matmul %23, %25, %cst {dimension_numbers = #tpu.dot_dimension_numbers<[1], [0], [0], [1], [0, 0, 1, 1], [], []>} : vector<256x256xbf16>, vector<256x256xbf16>, vector<256x256xf32> -> vector<256x256xf32>
    %27 = arith.addf %24, %26 : vector<256x256xf32>
    %c0_11 = arith.constant 0 : index
    %c0_12 = arith.constant 0 : index
    %28 = vector.load %arg9[%c0_11, %c0_12] : memref<256x256xf32, #tpu.memory_space<vmem>>, vector<256x256xf32>
    tpu.vector_store %arg9[%c0_11, %c0_12], %27 {strides = array<i32>} : memref<256x256xf32, #tpu.memory_space<vmem>>, vector<256x256xf32>,
    %c0_i32_13 = arith.constant 0 : i32
    %29 = arith.cmpi eq, %arg2, %c0_i32_13 : i32
    %30 = arith.extui %29 : i1 to i32
    %c0_i32_14 = arith.constant 0 : i32
    %31 = arith.cmpi ne, %30, %c0_i32_14 : i32
    scf.if %31 {
      %c0_15 = arith.constant 0 : index
      %c0_16 = arith.constant 0 : index
      %32 = vector.load %arg9[%c0_15, %c0_16] : memref<256x256xf32, #tpu.memory_space<vmem>>, vector<256x256xf32>
      %c0_17 = arith.constant 0 : index
      %c0_18 = arith.constant 0 : index
      %33 = vector.load %arg7[%c0_17, %c0_18] : memref<1x256xf32, #tpu.memory_space<vmem>>, vector<1x256xf32>
      %34 = vector.broadcast %33 : vector<1x256xf32> to vector<256x256xf32>
      %35 = arith.addf %32, %34 : vector<256x256xf32>
      %c0_19 = arith.constant 0 : index
      %c0_20 = arith.constant 0 : index
      %36 = vector.load %arg8[%c0_19, %c0_20] : memref<256x256xf32, #tpu.memory_space<vmem>>, vector<256x256xf32>
      tpu.vector_store %arg8[%c0_19, %c0_20], %35 {strides = array<i32>} : memref<256x256xf32, #tpu.memory_space<vmem>>, vector<256x256xf32>,
    } else {
    }
    return
  }
  func.func @transform_0(%arg0: i32, %arg1: i32, %arg2: i32) -> (i32, i32) {
    %c0_i32 = arith.constant 0 : i32
    return %arg0, %arg2 : i32, i32
  }
  func.func @transform_1(%arg0: i32, %arg1: i32, %arg2: i32) -> (i32, i32) {
    %c0_i32 = arith.constant 0 : i32
    %c0_i32_0 = arith.constant 0 : i32
    return %arg0, %c0_i32 : i32, i32
  }
  func.func @transform_2(%arg0: i32, %arg1: i32, %arg2: i32) -> (i32, i32) {
    %c0_i32 = arith.constant 0 : i32
    %c0_i32_0 = arith.constant 0 : i32
    return %c0_i32, %arg2 : i32, i32
  }
  func.func @transform_3(%arg0: i32, %arg1: i32, %arg2: i32) -> (i32, i32) {
    %c0_i32 = arith.constant 0 : i32
    return %arg2, %arg1 : i32, i32
  }
  func.func @transform_4(%arg0: i32, %arg1: i32, %arg2: i32) -> (i32, i32) {
    %c0_i32 = arith.constant 0 : i32
    %c0_i32_0 = arith.constant 0 : i32
    return %c0_i32, %arg1 : i32, i32
  }
  func.func @transform_5(%arg0: i32, %arg1: i32, %arg2: i32) -> (i32, i32) {
    %c0_i32 = arith.constant 0 : i32
    return %arg0, %arg1 : i32, i32
  }
}

module attributes {stable_mosaic.version = 11 : i64} {
  func.func @_readout_disc_kernel(%arg0: i32, %arg1: i32, %arg2: memref<256x256xbf16, #tpu.memory_space<vmem>>, %arg3: memref<256x256xf32, #tpu.memory_space<vmem>>, %arg4: memref<256x256xf32, #tpu.memory_space<vmem>>, %arg5: memref<128x128xf32, #tpu.memory_space<vmem>>, %arg6: memref<1xf32, #tpu.memory_space<smem>>, %arg7: memref<256x2xf32, #tpu.memory_space<vmem>>, %arg8: memref<256x2xf32, #tpu.memory_space<vmem>>, %arg9: memref<256x256xf32, #tpu.memory_space<vmem>>, %arg10: memref<256x1xf32, #tpu.memory_space<vmem>>) attributes {dimension_semantics = [#tpu.dimension_semantics<parallel>, #tpu.dimension_semantics<arbitrary>], iteration_bounds = array<i64: 1, 1>, scalar_prefetch = 0 : i64, scratch_operands = 2 : i64, tpu.core_type = #tpu.core_type<tc>, window_params = [{transform_indices = @transform_0, window_bounds = array<i64: 256, 256>}, {transform_indices = @transform_1, window_bounds = array<i64: 256, 256>}, {transform_indices = @transform_2, window_bounds = array<i64: 256, 256>}, {pipeline_mode = #tpu.pipeline_mode<synchronous>, transform_indices = @transform_3, window_bounds = array<i64: 128, 128>}, {transform_indices = @transform_4, window_bounds = array<i64: 1>}, {transform_indices = @transform_5, window_bounds = array<i64: 256, 2>}, {transform_indices = @transform_6, window_bounds = array<i64: 256, 2>}]} {
    %c0_i32 = arith.constant 0 : i32
    %0 = arith.cmpi eq, %arg1, %c0_i32 : i32
    %1 = arith.extui %0 : i1 to i32
    %c0_i32_0 = arith.constant 0 : i32
    %2 = arith.cmpi ne, %1, %c0_i32_0 : i32
    scf.if %2 {
      %cst_15 = arith.constant 0.000000e+00 : f32
      %19 = vector.broadcast %cst_15 : f32 to vector<256x256xf32>
      %c0_16 = arith.constant 0 : index
      %c0_17 = arith.constant 0 : index
      %20 = vector.load %arg9[%c0_16, %c0_17] : memref<256x256xf32, #tpu.memory_space<vmem>>, vector<256x256xf32>
      tpu.vector_store %arg9[%c0_16, %c0_17], %19 {strides = array<i32>} : memref<256x256xf32, #tpu.memory_space<vmem>>, vector<256x256xf32>,
      %cst_18 = arith.constant 0.000000e+00 : f32
      %21 = vector.broadcast %cst_18 : f32 to vector<256x1xf32>
      %c0_19 = arith.constant 0 : index
      %c0_20 = arith.constant 0 : index
      %22 = vector.load %arg10[%c0_19, %c0_20] : memref<256x1xf32, #tpu.memory_space<vmem>>, vector<256x1xf32>
      tpu.vector_store %arg10[%c0_19, %c0_20], %21 {strides = array<i32>} : memref<256x1xf32, #tpu.memory_space<vmem>>, vector<256x1xf32>,
    } else {
    }
    %c0 = arith.constant 0 : index
    %c0_1 = arith.constant 0 : index
    %3 = vector.load %arg2[%c0, %c0_1] : memref<256x256xbf16, #tpu.memory_space<vmem>>, vector<256x256xbf16>
    %c0_2 = arith.constant 0 : index
    %c0_3 = arith.constant 0 : index
    %4 = vector.load %arg9[%c0_2, %c0_3] : memref<256x256xf32, #tpu.memory_space<vmem>>, vector<256x256xf32>
    %c0_4 = arith.constant 0 : index
    %c0_5 = arith.constant 0 : index
    %5 = vector.load %arg3[%c0_4, %c0_5] : memref<256x256xf32, #tpu.memory_space<vmem>>, vector<256x256xf32>
    %6 = arith.truncf %5 : vector<256x256xf32> to vector<256x256xbf16>
    %cst = arith.constant dense<0.000000e+00> : vector<256x256xf32>
    %7 = tpu.matmul %3, %6, %cst {dimension_numbers = #tpu.dot_dimension_numbers<[1], [0], [0], [1], [0, 0, 1, 1], [], []>} : vector<256x256xbf16>, vector<256x256xbf16>, vector<256x256xf32> -> vector<256x256xf32>
    %8 = arith.addf %4, %7 : vector<256x256xf32>
    %c0_6 = arith.constant 0 : index
    %c0_7 = arith.constant 0 : index
    %9 = vector.load %arg9[%c0_6, %c0_7] : memref<256x256xf32, #tpu.memory_space<vmem>>, vector<256x256xf32>
    tpu.vector_store %arg9[%c0_6, %c0_7], %8 {strides = array<i32>} : memref<256x256xf32, #tpu.memory_space<vmem>>, vector<256x256xf32>,
    %c0_8 = arith.constant 0 : index
    %c0_9 = arith.constant 0 : index
    %10 = vector.load %arg10[%c0_8, %c0_9] : memref<256x1xf32, #tpu.memory_space<vmem>>, vector<256x1xf32>
    %11 = arith.extf %3 : vector<256x256xbf16> to vector<256x256xf32>
    %cst_10 = arith.constant dense<0.000000e+00> : vector<256xf32>
    %12 = vector.multi_reduction <add>, %11, %cst_10 [1] : vector<256x256xf32> to vector<256xf32>
    %13 = vector.shape_cast %12 : vector<256xf32> to vector<256x1xf32>
    %14 = arith.addf %10, %13 : vector<256x1xf32>
    %c0_11 = arith.constant 0 : index
    %c0_12 = arith.constant 0 : index
    %15 = vector.load %arg10[%c0_11, %c0_12] : memref<256x1xf32, #tpu.memory_space<vmem>>, vector<256x1xf32>
    tpu.vector_store %arg10[%c0_11, %c0_12], %14 {strides = array<i32>} : memref<256x1xf32, #tpu.memory_space<vmem>>, vector<256x1xf32>,
    %c0_i32_13 = arith.constant 0 : i32
    %16 = arith.cmpi eq, %arg1, %c0_i32_13 : i32
    %17 = arith.extui %16 : i1 to i32
    %c0_i32_14 = arith.constant 0 : i32
    %18 = arith.cmpi ne, %17, %c0_i32_14 : i32
    scf.if %18 {
      %c0_15 = arith.constant 0 : index
      %c0_16 = arith.constant 0 : index
      %19 = vector.load %arg10[%c0_15, %c0_16] : memref<256x1xf32, #tpu.memory_space<vmem>>, vector<256x1xf32>
      %cst_17 = arith.constant 1.000000e-30 : f32
      %20 = vector.broadcast %cst_17 : f32 to vector<256x1xf32>
      %21 = arith.maximumf %19, %20 : vector<256x1xf32>
      %22 = tpu.reciprocal %21 {approx = true} : vector<256x1xf32> -> vector<256x1xf32>
      %c0_18 = arith.constant 0 : index
      %c0_19 = arith.constant 0 : index
      %23 = vector.load %arg9[%c0_18, %c0_19] : memref<256x256xf32, #tpu.memory_space<vmem>>, vector<256x256xf32>
      %24 = vector.broadcast %22 : vector<256x1xf32> to vector<256x256xf32>
      %25 = arith.mulf %23, %24 : vector<256x256xf32>
      %26 = vector.extract_strided_slice %25 {offsets = [0, 0], sizes = [256, 128], strides = [1, 1]} : vector<256x256xf32> to vector<256x128xf32>
      %27 = arith.mulf %26, %26 : vector<256x128xf32>
      %cst_20 = arith.constant dense<0.000000e+00> : vector<256xf32>
      %28 = vector.multi_reduction <add>, %27, %cst_20 [1] : vector<256x128xf32> to vector<256xf32>
      %29 = vector.shape_cast %28 : vector<256xf32> to vector<256x1xf32>
      %30 = math.rsqrt %29 : vector<256x1xf32>
      %cst_21 = arith.constant 9.99999995E+11 : f32
      %31 = vector.broadcast %cst_21 : f32 to vector<256x1xf32>
      %32 = arith.minimumf %30, %31 : vector<256x1xf32>
      %33 = vector.broadcast %32 : vector<256x1xf32> to vector<256x128xf32>
      %34 = arith.mulf %26, %33 : vector<256x128xf32>
      %35 = arith.negf %34 : vector<256x128xf32>
      %36 = math.exp %35 : vector<256x128xf32>
      %cst_22 = arith.constant 1.000000e+00 : f32
      %37 = vector.broadcast %cst_22 : f32 to vector<256x128xf32>
      %38 = arith.addf %37, %36 : vector<256x128xf32>
      %39 = arith.divf %37, %38 : vector<256x128xf32>
      %40 = vector.extract_strided_slice %25 {offsets = [0, 128], sizes = [256, 128], strides = [1, 1]} : vector<256x256xf32> to vector<256x128xf32>
      %41 = arith.mulf %40, %40 : vector<256x128xf32>
      %cst_23 = arith.constant dense<0.000000e+00> : vector<256xf32>
      %42 = vector.multi_reduction <add>, %41, %cst_23 [1] : vector<256x128xf32> to vector<256xf32>
      %43 = vector.shape_cast %42 : vector<256xf32> to vector<256x1xf32>
      %44 = math.rsqrt %43 : vector<256x1xf32>
      %cst_24 = arith.constant 9.99999995E+11 : f32
      %45 = vector.broadcast %cst_24 : f32 to vector<256x1xf32>
      %46 = arith.minimumf %44, %45 : vector<256x1xf32>
      %47 = vector.broadcast %46 : vector<256x1xf32> to vector<256x128xf32>
      %48 = arith.mulf %40, %47 : vector<256x128xf32>
      %49 = arith.negf %48 : vector<256x128xf32>
      %50 = math.exp %49 : vector<256x128xf32>
      %cst_25 = arith.constant 1.000000e+00 : f32
      %51 = vector.broadcast %cst_25 : f32 to vector<256x128xf32>
      %52 = arith.addf %51, %50 : vector<256x128xf32>
      %53 = arith.divf %51, %52 : vector<256x128xf32>
      %c0_26 = arith.constant 0 : index
      %c0_27 = arith.constant 0 : index
      %54 = vector.load %arg4[%c0_26, %c0_27] : memref<256x256xf32, #tpu.memory_space<vmem>>, vector<256x128xf32>
      %c0_28 = arith.constant 0 : index
      %c128 = arith.constant 128 : index
      %55 = vector.load %arg4[%c0_28, %c128] : memref<256x256xf32, #tpu.memory_space<vmem>>, vector<256x128xf32>
      %c0_29 = arith.constant 0 : index
      %c0_30 = arith.constant 0 : index
      %56 = vector.load %arg5[%c0_29, %c0_30] : memref<128x128xf32, #tpu.memory_space<vmem>>, vector<128x128xf32>
      %c0_31 = arith.constant 0 : index
      %57 = memref.load %arg6[%c0_31] : memref<1xf32, #tpu.memory_space<smem>>
      %cst_32 = arith.constant dense<0.000000e+00> : vector<256x128xf32>
      %58 = tpu.matmul %54, %56, %cst_32 {dimension_numbers = #tpu.dot_dimension_numbers<[1], [0], [0], [1], [0, 0, 1, 1], [], []>} : vector<256x128xf32>, vector<128x128xf32>, vector<256x128xf32> -> vector<256x128xf32>
      %cst_33 = arith.constant dense<0.000000e+00> : vector<256x128xf32>
      %59 = tpu.matmul %55, %56, %cst_33 {dimension_numbers = #tpu.dot_dimension_numbers<[1], [0], [0], [1], [0, 0, 1, 1], [], []>} : vector<256x128xf32>, vector<128x128xf32>, vector<256x128xf32> -> vector<256x128xf32>
      %60 = arith.mulf %58, %39 : vector<256x128xf32>
      %cst_34 = arith.constant dense<0.000000e+00> : vector<256xf32>
      %61 = vector.multi_reduction <add>, %60, %cst_34 [1] : vector<256x128xf32> to vector<256xf32>
      %62 = vector.shape_cast %61 : vector<256xf32> to vector<256x1xf32>
      %63 = vector.broadcast %57 : f32 to vector<256x1xf32>
      %64 = arith.addf %62, %63 : vector<256x1xf32>
      %65 = arith.mulf %59, %39 : vector<256x128xf32>
      %cst_35 = arith.constant dense<0.000000e+00> : vector<256xf32>
      %66 = vector.multi_reduction <add>, %65, %cst_35 [1] : vector<256x128xf32> to vector<256xf32>
      %67 = vector.shape_cast %66 : vector<256xf32> to vector<256x1xf32>
      %68 = vector.broadcast %57 : f32 to vector<256x1xf32>
      %69 = arith.addf %67, %68 : vector<256x1xf32>
      %70 = arith.mulf %59, %53 : vector<256x128xf32>
      %cst_36 = arith.constant dense<0.000000e+00> : vector<256xf32>
      %71 = vector.multi_reduction <add>, %70, %cst_36 [1] : vector<256x128xf32> to vector<256xf32>
      %72 = vector.shape_cast %71 : vector<256xf32> to vector<256x1xf32>
      %73 = vector.broadcast %57 : f32 to vector<256x1xf32>
      %74 = arith.addf %72, %73 : vector<256x1xf32>
      %75 = arith.mulf %58, %53 : vector<256x128xf32>
      %cst_37 = arith.constant dense<0.000000e+00> : vector<256xf32>
      %76 = vector.multi_reduction <add>, %75, %cst_37 [1] : vector<256x128xf32> to vector<256xf32>
      %77 = vector.shape_cast %76 : vector<256xf32> to vector<256x1xf32>
      %78 = vector.broadcast %57 : f32 to vector<256x1xf32>
      %79 = arith.addf %77, %78 : vector<256x1xf32>
      %80 = tpu.iota {dimensions = array<i32: 1>} : vector<256x2xi32>
      %c0_i32_38 = arith.constant 0 : i32
      %81 = vector.broadcast %c0_i32_38 : i32 to vector<256x2xi32>
      %82 = arith.cmpi eq, %80, %81 : vector<256x2xi32>
      %83 = vector.shape_cast %64 : vector<256x1xf32> to vector<256x1xf32>
      %84 = vector.broadcast %83 : vector<256x1xf32> to vector<256x2xf32>
      %85 = vector.shape_cast %69 : vector<256x1xf32> to vector<256x1xf32>
      %86 = vector.broadcast %85 : vector<256x1xf32> to vector<256x2xf32>
      %87 = arith.select %82, %84, %86 : vector<256x2xi1>, vector<256x2xf32>
      %c0_39 = arith.constant 0 : index
      %c0_40 = arith.constant 0 : index
      %88 = vector.load %arg7[%c0_39, %c0_40] : memref<256x2xf32, #tpu.memory_space<vmem>>, vector<256x2xf32>
      tpu.vector_store %arg7[%c0_39, %c0_40], %87 {strides = array<i32>} : memref<256x2xf32, #tpu.memory_space<vmem>>, vector<256x2xf32>,
      %c0_i32_41 = arith.constant 0 : i32
      %89 = vector.broadcast %c0_i32_41 : i32 to vector<256x2xi32>
      %90 = arith.cmpi eq, %80, %89 : vector<256x2xi32>
      %91 = vector.shape_cast %74 : vector<256x1xf32> to vector<256x1xf32>
      %92 = vector.broadcast %91 : vector<256x1xf32> to vector<256x2xf32>
      %93 = vector.shape_cast %79 : vector<256x1xf32> to vector<256x1xf32>
      %94 = vector.broadcast %93 : vector<256x1xf32> to vector<256x2xf32>
      %95 = arith.select %90, %92, %94 : vector<256x2xi1>, vector<256x2xf32>
      %c0_42 = arith.constant 0 : index
      %c0_43 = arith.constant 0 : index
      %96 = vector.load %arg8[%c0_42, %c0_43] : memref<256x2xf32, #tpu.memory_space<vmem>>, vector<256x2xf32>
      tpu.vector_store %arg8[%c0_42, %c0_43], %95 {strides = array<i32>} : memref<256x2xf32, #tpu.memory_space<vmem>>, vector<256x2xf32>,
    } else {
    }
    return
  }
  func.func @transform_0(%arg0: i32, %arg1: i32) -> (i32, i32) {
    %c0_i32 = arith.constant 0 : i32
    return %arg0, %arg1 : i32, i32
  }
  func.func @transform_1(%arg0: i32, %arg1: i32) -> (i32, i32) {
    %c0_i32 = arith.constant 0 : i32
    %c0_i32_0 = arith.constant 0 : i32
    return %arg1, %c0_i32 : i32, i32
  }
  func.func @transform_2(%arg0: i32, %arg1: i32) -> (i32, i32) {
    %c0_i32 = arith.constant 0 : i32
    %c0_i32_0 = arith.constant 0 : i32
    return %arg0, %c0_i32 : i32, i32
  }
  func.func @transform_3(%arg0: i32, %arg1: i32) -> (i32, i32) {
    %c0_i32 = arith.constant 0 : i32
    %c0_i32_0 = arith.constant 0 : i32
    %c0_i32_1 = arith.constant 0 : i32
    return %c0_i32, %c0_i32_0 : i32, i32
  }
  func.func @transform_4(%arg0: i32, %arg1: i32) -> i32 {
    %c0_i32 = arith.constant 0 : i32
    %c0_i32_0 = arith.constant 0 : i32
    return %c0_i32 : i32
  }
  func.func @transform_5(%arg0: i32, %arg1: i32) -> (i32, i32) {
    %c0_i32 = arith.constant 0 : i32
    %c0_i32_0 = arith.constant 0 : i32
    return %arg0, %c0_i32 : i32, i32
  }
  func.func @transform_6(%arg0: i32, %arg1: i32) -> (i32, i32) {
    %c0_i32 = arith.constant 0 : i32
    %c0_i32_0 = arith.constant 0 : i32
    return %arg0, %c0_i32 : i32, i32
  }
}

</mosaic_0001>

<llo_original>
// kernel: omics1_encoder_forward.5
$region0: #{omics1_encoder_forward.5}
  #allocation0 [shape = 'u32[]', space=smem, size = 0x4, offset = 0x4, fixed_abs, tag = 'smem constant byte address 0x4 - core index']
  #allocation1 [shape = 'u32[144,128]{1,0:T(1,128)}', space=vmem, size = 0x12000, scoped, tag = 'internal scratch']
  %s0 = inlined_call_operand.vmem [shape: bf16[256,16], index: 0, kind: input, shape index: {}]
  %s1 = inlined_call_operand.vmem [shape: bf16[256,16], index: 1, kind: input, shape index: {}]
  %s2 = inlined_call_operand.vmem [shape: bf16[16,256], index: 2, kind: input, shape index: {}]
  %s3 = inlined_call_operand.vmem [shape: bf16[256,512], index: 3, kind: output, shape index: {}]
  %s4 = sld [smem:[#allocation0]]
  $region22: #{omics1_encoder_forward.5} parent=0
    _
  %s6 = ssub.s32 1, %s4
  %s7 = scalar_select 0, %s6, %s4
  // Predicated region
  $region2: #{omics1_encoder_forward.5} parent=0 // pred_check
    _
  $region3: #{omics1_encoder_forward.5} parent=0 // pred_check_branch
    %9 = sbr.rel (0) target = $region5
  $region4: #{omics1_encoder_forward.5} parent=0 // pred_region
    _
  $region5: #{omics1_encoder_forward.5} parent=0 // pred_fallthru
    _
  // Predicated region
  $region6: #{omics1_encoder_forward.5} parent=0 // pred_check
    _
  $region7: #{omics1_encoder_forward.5} parent=0 // pred_check_branch
    %11 = sbr.rel (0) target = $region9
  $region8: #{omics1_encoder_forward.5} parent=0 // pred_region
    _
  $region9: #{omics1_encoder_forward.5} parent=0 // pred_fallthru
    _
  // Predicated region
  $region10: #{omics1_encoder_forward.5} parent=0 // pred_check
    _
  $region11: #{omics1_encoder_forward.5} parent=0 // pred_check_branch
    %13 = sbr.rel (0) target = $region13
  $region12: #{omics1_encoder_forward.5} parent=0 // pred_region
    _
  $region13: #{omics1_encoder_forward.5} parent=0 // pred_fallthru
    _
  %v15 = vld [vmem:[%s2] sm:$0xff]
  %v16 = vld [vmem:[%s2 + $0x8] sm:$0xff]
  %v17 = vld [vmem:[%s0] sm:$0xf]
  %v18 = vld [vmem:[%s0 + $0x4] sm:$0xf]
  %v19 = vld [vmem:[%s0 + $0x8] sm:$0xf]
  %v20 = vld [vmem:[%s0 + $0xc] sm:$0xf]
  %v21 = vld [vmem:[%s0 + $0x10] sm:$0xf]
  %v22 = vld [vmem:[%s0 + $0x14] sm:$0xf]
  %v23 = vld [vmem:[%s0 + $0x18] sm:$0xf]
  %v24 = vld [vmem:[%s0 + $0x1c] sm:$0xf]
  %v25 = vld [vmem:[%s0 + $0x20] sm:$0xf]
  %v26 = vld [vmem:[%s0 + $0x24] sm:$0xf]
  %v27 = vld [vmem:[%s0 + $0x28] sm:$0xf]
  %v28 = vld [vmem:[%s0 + $0x2c] sm:$0xf]
  %v29 = vld [vmem:[%s0 + $0x30] sm:$0xf]
  %v30 = vld [vmem:[%s0 + $0x34] sm:$0xf]
  %v31 = vld [vmem:[%s0 + $0x38] sm:$0xf]
  %v32 = vld [vmem:[%s0 + $0x3c] sm:$0xf]
  %v33 = vld [vmem:[%s0 + $0x40] sm:$0xf]
  %v34 = vld [vmem:[%s0 + $0x44] sm:$0xf]
  %v35 = vld [vmem:[%s0 + $0x48] sm:$0xf]
  %v36 = vld [vmem:[%s0 + $0x4c] sm:$0xf]
  %v37 = vld [vmem:[%s0 + $0x50] sm:$0xf]
  %v38 = vld [vmem:[%s0 + $0x54] sm:$0xf]
  %v39 = vld [vmem:[%s0 + $0x58] sm:$0xf]
  %v40 = vld [vmem:[%s0 + $0x5c] sm:$0xf]
  %v41 = vld [vmem:[%s0 + $0x60] sm:$0xf]
  %v42 = vld [vmem:[%s0 + $0x64] sm:$0xf]
  %v43 = vld [vmem:[%s0 + $0x68] sm:$0xf]
  %v44 = vld [vmem:[%s0 + $0x6c] sm:$0xf]
  %v45 = vld [vmem:[%s0 + $0x70] sm:$0xf]
  %v46 = vld [vmem:[%s0 + $0x74] sm:$0xf]
  %v47 = vld [vmem:[%s0 + $0x78] sm:$0xf]
  %v48 = vld [vmem:[%s0 + $0x7c] sm:$0xf]
  %v81 = vunpack.c.l.b16 %v17
  %v82 = vunpack.c.l.b16 %v18
  %v83 = vunpack.c.l.b16 %v19
  %v84 = vunpack.c.l.b16 %v20
  %v85 = vunpack.c.l.b16 %v21
  %v86 = vunpack.c.l.b16 %v22
  %v87 = vunpack.c.l.b16 %v23
  %v88 = vunpack.c.l.b16 %v24
  %v89 = vunpack.c.l.b16 %v25
  %v90 = vunpack.c.l.b16 %v26
  %v91 = vunpack.c.l.b16 %v27
  %v92 = vunpack.c.l.b16 %v28
  %v93 = vunpack.c.l.b16 %v29
  %v94 = vunpack.c.l.b16 %v30
  %v95 = vunpack.c.l.b16 %v31
  %v96 = vunpack.c.l.b16 %v32
  %v97 = vunpack.c.l.b16 %v33
  %v98 = vunpack.c.l.b16 %v34
  %v99 = vunpack.c.l.b16 %v35
  %v100 = vunpack.c.l.b16 %v36
  %v101 = vunpack.c.l.b16 %v37
  %v102 = vunpack.c.l.b16 %v38
  %v103 = vunpack.c.l.b16 %v39
  %v104 = vunpack.c.l.b16 %v40
  %v105 = vunpack.c.l.b16 %v41
  %v106 = vunpack.c.l.b16 %v42
  %v107 = vunpack.c.l.b16 %v43
  %v108 = vunpack.c.l.b16 %v44
  %v109 = vunpack.c.l.b16 %v45
  %v110 = vunpack.c.l.b16 %v46
  %v111 = vunpack.c.l.b16 %v47
  %v112 = vunpack.c.l.b16 %v48
  %v113 = vpack.c.b16 %v82, %v81
  %v114 = vpack.c.b16 %v84, %v83
  %v115 = vpack.c.b16 %v86, %v85
  %v116 = vpack.c.b16 %v88, %v87
  %v117 = vpack.c.b16 %v90, %v89
  %v118 = vpack.c.b16 %v92, %v91
  %v119 = vpack.c.b16 %v94, %v93
  %v120 = vpack.c.b16 %v96, %v95
  %v121 = vpack.c.b16 %v98, %v97
  %v122 = vpack.c.b16 %v100, %v99
  %v123 = vpack.c.b16 %v102, %v101
  %v124 = vpack.c.b16 %v104, %v103
  %v125 = vpack.c.b16 %v106, %v105
  %v126 = vpack.c.b16 %v108, %v107
  %v127 = vpack.c.b16 %v110, %v109
  %v128 = vpack.c.b16 %v112, %v111
  %v131 = vunpack.c.l.b16 %v15
  %v132 = vunpack.c.h.b16 %v15
  %v133 = vunpack.c.l.b16 %v16
  %v134 = vunpack.c.h.b16 %v16
  %v135 = vpack.c.b16 %v133, %v131
  %v136 = vpack.c.b16 %v134, %v132
  %vm139 = vcmask 130048
  %v141 = vsel %vm139, %v113, 0
  %v144 = vsel %vm139, %v114, 0
  %v147 = vsel %vm139, %v115, 0
  %v150 = vsel %vm139, %v116, 0
  %v153 = vsel %vm139, %v117, 0
  %v156 = vsel %vm139, %v118, 0
  %v159 = vsel %vm139, %v119, 0
  %v162 = vsel %vm139, %v120, 0
  %v165 = vsel %vm139, %v121, 0
  %v168 = vsel %vm139, %v122, 0
  %v171 = vsel %vm139, %v123, 0
  %v174 = vsel %vm139, %v124, 0
  %v177 = vsel %vm139, %v125, 0
  %v180 = vsel %vm139, %v126, 0
  %v183 = vsel %vm139, %v127, 0
  %v186 = vsel %vm139, %v128, 0
  %188 = vmatprep.subr.bf16.mxu0 %v136
  %189 = vmatpush1.bf16.msra.mxu0 %v135
  %190 = vmatprep.subr.bf16.mxu0 0
  %191 = vmatpush1.bf16.msra.mxu0 0
  %192 = vmatprep.subr.bf16.mxu0 0
  %193 = vmatpush1.bf16.msra.mxu0 0
  %194 = vmatprep.subr.bf16.mxu0 0
  %195 = vmatpush1.bf16.msra.mxu0 0
  %196 = vmatprep.subr.bf16.mxu0 0
  %197 = vmatpush1.bf16.msra.mxu0 0
  %198 = vmatprep.subr.bf16.mxu0 0
  %199 = vmatpush1.bf16.msra.mxu0 0
  %200 = vmatprep.subr.bf16.mxu0 0
  %201 = vmatpush1.bf16.msra.mxu0 0
  %202 = vmatprep.subr.bf16.mxu0 0
  %203 = vmatpush1.bf16.msra.mxu0 0
  %204 = vmatprep.subr.bf16.mxu0 0
  %205 = vmatpush1.bf16.msra.mxu0 0
  %206 = vmatprep.subr.bf16.mxu0 0
  %207 = vmatpush1.bf16.msra.mxu0 0
  %208 = vmatprep.subr.bf16.mxu0 0
  %209 = vmatpush1.bf16.msra.mxu0 0
  %210 = vmatprep.subr.bf16.mxu0 0
  %211 = vmatpush1.bf16.msra.mxu0 0
  %212 = vmatprep.subr.bf16.mxu0 0
  %213 = vmatpush1.bf16.msra.mxu0 0
  %214 = vmatprep.subr.bf16.mxu0 0
  %215 = vmatpush1.bf16.msra.mxu0 0
  %216 = vmatprep.subr.bf16.mxu0 0
  %217 = vmatpush1.bf16.msra.mxu0 0
  %218 = vmatprep.subr.bf16.mxu0 0
  %219 = vmatpush1.bf16.msra.mxu0 0
  %220 = vmatprep.mubr.bf16.mxu0 0
  %221 = vmatmul.mubr.bf16.gmra.mrb[0].mxu0 %v141
  %v222 = vpop.f32.mrb[0].mxu0
  %v223 = vadd.f32 0.0, %v222
  %v224 = vpop.f32.mrb[0].mxu0
  %v225 = vadd.f32 0.0, %v224
  %v226 = vpop.f32.mrb[0].mxu0
  %v227 = vadd.f32 0.0, %v226
  %v228 = vpop.f32.mrb[0].mxu0
  %v229 = vadd.f32 0.0, %v228
  %230 = vmatprep.mubr.bf16.mxu0 0
  %231 = vmatmul.mubr.bf16.gmra.mrb[0].mxu0 %v144
  %v232 = vpop.f32.mrb[0].mxu0
  %v233 = vadd.f32 0.0, %v232
  %v234 = vpop.f32.mrb[0].mxu0
  %v235 = vadd.f32 0.0, %v234
  %v236 = vpop.f32.mrb[0].mxu0
  %v237 = vadd.f32 0.0, %v236
  %v238 = vpop.f32.mrb[0].mxu0
  %v239 = vadd.f32 0.0, %v238
  %240 = vmatprep.mubr.bf16.mxu0 0
  %241 = vmatmul.mubr.bf16.gmra.mrb[0].mxu0 %v147
  %v242 = vpop.f32.mrb[0].mxu0
  %v243 = vadd.f32 0.0, %v242
  %v244 = vpop.f32.mrb[0].mxu0
  %v245 = vadd.f32 0.0, %v244
  %v246 = vpop.f32.mrb[0].mxu0
  %v247 = vadd.f32 0.0, %v246
  %v248 = vpop.f32.mrb[0].mxu0
  %v249 = vadd.f32 0.0, %v248
  %250 = vmatprep.mubr.bf16.mxu0 0
  %251 = vmatmul.mubr.bf16.gmra.mrb[0].mxu0 %v150
  %v252 = vpop.f32.mrb[0].mxu0
  %v253 = vadd.f32 0.0, %v252
  %v254 = vpop.f32.mrb[0].mxu0
  %v255 = vadd.f32 0.0, %v254
  %v256 = vpop.f32.mrb[0].mxu0
  %v257 = vadd.f32 0.0, %v256
  %v258 = vpop.f32.mrb[0].mxu0
  %v259 = vadd.f32 0.0, %v258
  %260 = vmatprep.mubr.bf16.mxu0 0
  %261 = vmatmul.mubr.bf16.gmra.mrb[0].mxu0 %v153
  %v262 = vpop.f32.mrb[0].mxu0
  %v263 = vadd.f32 0.0, %v262
  %v264 = vpop.f32.mrb[0].mxu0
  %v265 = vadd.f32 0.0, %v264
  %v266 = vpop.f32.mrb[0].mxu0
  %v267 = vadd.f32 0.0, %v266
  %v268 = vpop.f32.mrb[0].mxu0
  %v269 = vadd.f32 0.0, %v268
  %270 = vmatprep.mubr.bf16.mxu0 0
  %271 = vmatmul.mubr.bf16.gmra.mrb[0].mxu0 %v156
  %v272 = vpop.f32.mrb[0].mxu0
  %v273 = vadd.f32 0.0, %v272
  %v274 = vpop.f32.mrb[0].mxu0
  %v275 = vadd.f32 0.0, %v274
  %v276 = vpop.f32.mrb[0].mxu0
  %v277 = vadd.f32 0.0, %v276
  %v278 = vpop.f32.mrb[0].mxu0
  %v279 = vadd.f32 0.0, %v278
  %280 = vmatprep.mubr.bf16.mxu0 0
  %281 = vmatmul.mubr.bf16.gmra.mrb[0].mxu0 %v159
  %v282 = vpop.f32.mrb[0].mxu0
  %v283 = vadd.f32 0.0, %v282
  %v284 = vpop.f32.mrb[0].mxu0
  %v285 = vadd.f32 0.0, %v284
  %v286 = vpop.f32.mrb[0].mxu0
  %v287 = vadd.f32 0.0, %v286
  %v288 = vpop.f32.mrb[0].mxu0
  %v289 = vadd.f32 0.0, %v288
  %290 = vmatprep.mubr.bf16.mxu0 0
  %291 = vmatmul.mubr.bf16.gmra.mrb[0].mxu0 %v162
  %v292 = vpop.f32.mrb[0].mxu0
  %v293 = vadd.f32 0.0, %v292
  %v294 = vpop.f32.mrb[0].mxu0
  %v295 = vadd.f32 0.0, %v294
  %v296 = vpop.f32.mrb[0].mxu0
  %v297 = vadd.f32 0.0, %v296
  %v298 = vpop.f32.mrb[0].mxu0
  %v299 = vadd.f32 0.0, %v298
  %300 = vmatprep.mubr.bf16.mxu0 0
  %301 = vmatmul.mubr.bf16.gmra.mrb[0].mxu0 %v165
  %v302 = vpop.f32.mrb[0].mxu0
  %v303 = vadd.f32 0.0, %v302
  %v304 = vpop.f32.mrb[0].mxu0
  %v305 = vadd.f32 0.0, %v304
  %v306 = vpop.f32.mrb[0].mxu0
  %v307 = vadd.f32 0.0, %v306
  %v308 = vpop.f32.mrb[0].mxu0
  %v309 = vadd.f32 0.0, %v308
  %310 = vmatprep.mubr.bf16.mxu0 0
  %311 = vmatmul.mubr.bf16.gmra.mrb[0].mxu0 %v168
  %v312 = vpop.f32.mrb[0].mxu0
  %v313 = vadd.f32 0.0, %v312
  %v314 = vpop.f32.mrb[0].mxu0
  %v315 = vadd.f32 0.0, %v314
  %v316 = vpop.f32.mrb[0].mxu0
  %v317 = vadd.f32 0.0, %v316
  %v318 = vpop.f32.mrb[0].mxu0
  %v319 = vadd.f32 0.0, %v318
  %320 = vmatprep.mubr.bf16.mxu0 0
  %321 = vmatmul.mubr.bf16.gmra.mrb[0].mxu0 %v171
  %v322 = vpop.f32.mrb[0].mxu0
  %v323 = vadd.f32 0.0, %v322
  %v324 = vpop.f32.mrb[0].mxu0
  %v325 = vadd.f32 0.0, %v324
  %v326 = vpop.f32.mrb[0].mxu0
  %v327 = vadd.f32 0.0, %v326
  %v328 = vpop.f32.mrb[0].mxu0
  %v329 = vadd.f32 0.0, %v328
  %330 = vmatprep.mubr.bf16.mxu0 0
  %331 = vmatmul.mubr.bf16.gmra.mrb[0].mxu0 %v174
  %v332 = vpop.f32.mrb[0].mxu0
  %v333 = vadd.f32 0.0, %v332
  %v334 = vpop.f32.mrb[0].mxu0
  %v335 = vadd.f32 0.0, %v334
  %v336 = vpop.f32.mrb[0].mxu0
  %v337 = vadd.f32 0.0, %v336
  %v338 = vpop.f32.mrb[0].mxu0
  %v339 = vadd.f32 0.0, %v338
  %340 = vmatprep.mubr.bf16.mxu0 0
  %341 = vmatmul.mubr.bf16.gmra.mrb[0].mxu0 %v177
  %v342 = vpop.f32.mrb[0].mxu0
  %v343 = vadd.f32 0.0, %v342
  %v344 = vpop.f32.mrb[0].mxu0
  %v345 = vadd.f32 0.0, %v344
  %v346 = vpop.f32.mrb[0].mxu0
  %v347 = vadd.f32 0.0, %v346
  %v348 = vpop.f32.mrb[0].mxu0
  %v349 = vadd.f32 0.0, %v348
  %350 = vmatprep.mubr.bf16.mxu0 0
  %351 = vmatmul.mubr.bf16.gmra.mrb[0].mxu0 %v180
  %v352 = vpop.f32.mrb[0].mxu0
  %v353 = vadd.f32 0.0, %v352
  %v354 = vpop.f32.mrb[0].mxu0
  %v355 = vadd.f32 0.0, %v354
  %v356 = vpop.f32.mrb[0].mxu0
  %v357 = vadd.f32 0.0, %v356
  %v358 = vpop.f32.mrb[0].mxu0
  %v359 = vadd.f32 0.0, %v358
  %360 = vmatprep.mubr.bf16.mxu0 0
  %361 = vmatmul.mubr.bf16.gmra.mrb[0].mxu0 %v183
  %v362 = vpop.f32.mrb[0].mxu0
  %v363 = vadd.f32 0.0, %v362
  %v364 = vpop.f32.mrb[0].mxu0
  %v365 = vadd.f32 0.0, %v364
  %v366 = vpop.f32.mrb[0].mxu0
  %v367 = vadd.f32 0.0, %v366
  %v368 = vpop.f32.mrb[0].mxu0
  %v369 = vadd.f32 0.0, %v368
  %370 = vmatprep.mubr.bf16.mxu0 0
  %371 = vmatmul.mubr.bf16.gmra.mrb[0].mxu0 %v186
  %v372 = vpop.f32.mrb[0].mxu0
  %v373 = vadd.f32 0.0, %v372
  %v374 = vpop.f32.mrb[0].mxu0
  %v375 = vadd.f32 0.0, %v374
  %v376 = vpop.f32.mrb[0].mxu0
  %v377 = vadd.f32 0.0, %v376
  %v378 = vpop.f32.mrb[0].mxu0
  %v379 = vadd.f32 0.0, %v378
  %380 = vdwg.mxu0
  %v381 = vpack.c.bf16 %v227, %v223
  %v382 = vpack.c.bf16 %v229, %v225
  %v383 = vpack.c.bf16 %v237, %v233
  %v384 = vpack.c.bf16 %v239, %v235
  %v385 = vpack.c.bf16 %v247, %v243
  %v386 = vpack.c.bf16 %v249, %v245
  %v387 = vpack.c.bf16 %v257, %v253
  %v388 = vpack.c.bf16 %v259, %v255
  %v389 = vpack.c.bf16 %v267, %v263
  %v390 = vpack.c.bf16 %v269, %v265
  %v391 = vpack.c.bf16 %v277, %v273
  %v392 = vpack.c.bf16 %v279, %v275
  %v393 = vpack.c.bf16 %v287, %v283
  %v394 = vpack.c.bf16 %v289, %v285
  %v395 = vpack.c.bf16 %v297, %v293
  %v396 = vpack.c.bf16 %v299, %v295
  %v397 = vpack.c.bf16 %v307, %v303
  %v398 = vpack.c.bf16 %v309, %v305
  %v399 = vpack.c.bf16 %v317, %v313
  %v400 = vpack.c.bf16 %v319, %v315
  %v401 = vpack.c.bf16 %v327, %v323
  %v402 = vpack.c.bf16 %v329, %v325
  %v403 = vpack.c.bf16 %v337, %v333
  %v404 = vpack.c.bf16 %v339, %v335
  %v405 = vpack.c.bf16 %v347, %v343
  %v406 = vpack.c.bf16 %v349, %v345
  %v407 = vpack.c.bf16 %v357, %v353
  %v408 = vpack.c.bf16 %v359, %v355
  %v409 = vpack.c.bf16 %v367, %v363
  %v410 = vpack.c.bf16 %v369, %v365
  %v411 = vpack.c.bf16 %v377, %v373
  %v412 = vpack.c.bf16 %v379, %v375
  %v445 = vunpack.c.l.b16 %v381
  %v446 = vunpack.c.l.b16 %v382
  %v447 = vunpack.c.h.b16 %v381
  %v448 = vunpack.c.h.b16 %v382
  %v449 = vunpack.c.l.b16 %v383
  %v450 = vunpack.c.l.b16 %v384
  %v451 = vunpack.c.h.b16 %v383
  %v452 = vunpack.c.h.b16 %v384
  %v453 = vunpack.c.l.b16 %v385
  %v454 = vunpack.c.l.b16 %v386
  %v455 = vunpack.c.h.b16 %v385
  %v456 = vunpack.c.h.b16 %v386
  %v457 = vunpack.c.l.b16 %v387
  %v458 = vunpack.c.l.b16 %v388
  %v459 = vunpack.c.h.b16 %v387
  %v460 = vunpack.c.h.b16 %v388
  %v461 = vunpack.c.l.b16 %v389
  %v462 = vunpack.c.l.b16 %v390
  %v463 = vunpack.c.h.b16 %v389
  %v464 = vunpack.c.h.b16 %v390
  %v465 = vunpack.c.l.b16 %v391
  %v466 = vunpack.c.l.b16 %v392
  %v467 = vunpack.c.h.b16 %v391
  %v468 = vunpack.c.h.b16 %v392
  %v469 = vunpack.c.l.b16 %v393
  %v470 = vunpack.c.l.b16 %v394
  %v471 = vunpack.c.h.b16 %v393
  %v472 = vunpack.c.h.b16 %v394
  %v473 = vunpack.c.l.b16 %v395
  %v474 = vunpack.c.l.b16 %v396
  %v475 = vunpack.c.h.b16 %v395
  %v476 = vunpack.c.h.b16 %v396
  %v477 = vunpack.c.l.b16 %v397
  %v478 = vunpack.c.l.b16 %v398
  %v479 = vunpack.c.h.b16 %v397
  %v480 = vunpack.c.h.b16 %v398
  %v481 = vunpack.c.l.b16 %v399
  %v482 = vunpack.c.l.b16 %v400
  %v483 = vunpack.c.h.b16 %v399
  %v484 = vunpack.c.h.b16 %v400
  %v485 = vunpack.c.l.b16 %v401
  %v486 = vunpack.c.l.b16 %v402
  %v487 = vunpack.c.h.b16 %v401
  %v488 = vunpack.c.h.b16 %v402
  %v489 = vunpack.c.l.b16 %v403
  %v490 = vunpack.c.l.b16 %v404
  %v491 = vunpack.c.h.b16 %v403
  %v492 = vunpack.c.h.b16 %v404
  %v493 = vunpack.c.l.b16 %v405
  %v494 = vunpack.c.l.b16 %v406
  %v495 = vunpack.c.h.b16 %v405
  %v496 = vunpack.c.h.b16 %v406
  %v497 = vunpack.c.l.b16 %v407
  %v498 = vunpack.c.l.b16 %v408
  %v499 = vunpack.c.h.b16 %v407
  %v500 = vunpack.c.h.b16 %v408
  %v501 = vunpack.c.l.b16 %v409
  %v502 = vunpack.c.l.b16 %v410
  %v503 = vunpack.c.h.b16 %v409
  %v504 = vunpack.c.h.b16 %v410
  %v505 = vunpack.c.l.b16 %v411
  %v506 = vunpack.c.l.b16 %v412
  %v507 = vunpack.c.h.b16 %v411
  %v508 = vunpack.c.h.b16 %v412
  %v509 = vpack.c.b16 %v446, %v445
  %v510 = vpack.c.b16 %v448, %v447
  %v511 = vpack.c.b16 %v450, %v449
  %v512 = vpack.c.b16 %v452, %v451
  %v513 = vpack.c.b16 %v454, %v453
  %v514 = vpack.c.b16 %v456, %v455
  %v515 = vpack.c.b16 %v458, %v457
  %v516 = vpack.c.b16 %v460, %v459
  %v517 = vpack.c.b16 %v462, %v461
  %v518 = vpack.c.b16 %v464, %v463
  %v519 = vpack.c.b16 %v466, %v465
  %v520 = vpack.c.b16 %v468, %v467
  %v521 = vpack.c.b16 %v470, %v469
  %v522 = vpack.c.b16 %v472, %v471
  %v523 = vpack.c.b16 %v474, %v473
  %v524 = vpack.c.b16 %v476, %v475
  %v525 = vpack.c.b16 %v478, %v477
  %v526 = vpack.c.b16 %v480, %v479
  %v527 = vpack.c.b16 %v482, %v481
  %v528 = vpack.c.b16 %v484, %v483
  %v529 = vpack.c.b16 %v486, %v485
  %v530 = vpack.c.b16 %v488, %v487
  %v531 = vpack.c.b16 %v490, %v489
  %v532 = vpack.c.b16 %v492, %v491
  %v533 = vpack.c.b16 %v494, %v493
  %v534 = vpack.c.b16 %v496, %v495
  %v535 = vpack.c.b16 %v498, %v497
  %v536 = vpack.c.b16 %v500, %v499
  %v537 = vpack.c.b16 %v502, %v501
  %v538 = vpack.c.b16 %v504, %v503
  %v539 = vpack.c.b16 %v506, %v505
  %v540 = vpack.c.b16 %v508, %v507
  %573 = vst [vmem:[%s3] sm:$0xff] %v509
  %574 = vst [vmem:[%s3 + $0x10] sm:$0xff] %v510
  %575 = vst [vmem:[%s3 + $0x20] sm:$0xff] %v511
  %576 = vst [vmem:[%s3 + $0x30] sm:$0xff] %v512
  %577 = vst [vmem:[%s3 + $0x40] sm:$0xff] %v513
  %578 = vst [vmem:[%s3 + $0x50] sm:$0xff] %v514
  %579 = vst [vmem:[%s3 + $0x60] sm:$0xff] %v515
  %580 = vst [vmem:[%s3 + $0x70] sm:$0xff] %v516
  %581 = vst [vmem:[%s3 + $0x80] sm:$0xff] %v517
  %582 = vst [vmem:[%s3 + $0x90] sm:$0xff] %v518
  %583 = vst [vmem:[%s3 + $0xa0] sm:$0xff] %v519
  %584 = vst [vmem:[%s3 + $0xb0] sm:$0xff] %v520
  %585 = vst [vmem:[%s3 + $0xc0] sm:$0xff] %v521
  %586 = vst [vmem:[%s3 + $0xd0] sm:$0xff] %v522
  %587 = vst [vmem:[%s3 + $0xe0] sm:$0xff] %v523
  %588 = vst [vmem:[%s3 + $0xf0] sm:$0xff] %v524
  %589 = vst [vmem:[%s3 + $0x100] sm:$0xff] %v525
  %590 = vst [vmem:[%s3 + $0x110] sm:$0xff] %v526
  %591 = vst [vmem:[%s3 + $0x120] sm:$0xff] %v527
  %592 = vst [vmem:[%s3 + $0x130] sm:$0xff] %v528
  %593 = vst [vmem:[%s3 + $0x140] sm:$0xff] %v529
  %594 = vst [vmem:[%s3 + $0x150] sm:$0xff] %v530
  %595 = vst [vmem:[%s3 + $0x160] sm:$0xff] %v531
  %596 = vst [vmem:[%s3 + $0x170] sm:$0xff] %v532
  %597 = vst [vmem:[%s3 + $0x180] sm:$0xff] %v533
  %598 = vst [vmem:[%s3 + $0x190] sm:$0xff] %v534
  %599 = vst [vmem:[%s3 + $0x1a0] sm:$0xff] %v535
  %600 = vst [vmem:[%s3 + $0x1b0] sm:$0xff] %v536
  %601 = vst [vmem:[%s3 + $0x1c0] sm:$0xff] %v537
  %602 = vst [vmem:[%s3 + $0x1d0] sm:$0xff] %v538
  %603 = vst [vmem:[%s3 + $0x1e0] sm:$0xff] %v539
  %604 = vst [vmem:[%s3 + $0x1f0] sm:$0xff] %v540
  %v605 = vld [vmem:[%s1] sm:$0xf]
  %v606 = vld [vmem:[%s1 + $0x4] sm:$0xf]
  %v607 = vld [vmem:[%s1 + $0x8] sm:$0xf]
  %v608 = vld [vmem:[%s1 + $0xc] sm:$0xf]
  %v609 = vld [vmem:[%s1 + $0x10] sm:$0xf]
  %v610 = vld [vmem:[%s1 + $0x14] sm:$0xf]
  %v611 = vld [vmem:[%s1 + $0x18] sm:$0xf]
  %v612 = vld [vmem:[%s1 + $0x1c] sm:$0xf]
  %v613 = vld [vmem:[%s1 + $0x20] sm:$0xf]
  %v614 = vld [vmem:[%s1 + $0x24] sm:$0xf]
  %v615 = vld [vmem:[%s1 + $0x28] sm:$0xf]
  %v616 = vld [vmem:[%s1 + $0x2c] sm:$0xf]
  %v617 = vld [vmem:[%s1 + $0x30] sm:$0xf]
  %v618 = vld [vmem:[%s1 + $0x34] sm:$0xf]
  %v619 = vld [vmem:[%s1 + $0x38] sm:$0xf]
  %v620 = vld [vmem:[%s1 + $0x3c] sm:$0xf]
  %v621 = vld [vmem:[%s1 + $0x40] sm:$0xf]
  %v622 = vld [vmem:[%s1 + $0x44] sm:$0xf]
  %v623 = vld [vmem:[%s1 + $0x48] sm:$0xf]
  %v624 = vld [vmem:[%s1 + $0x4c] sm:$0xf]
  %v625 = vld [vmem:[%s1 + $0x50] sm:$0xf]
  %v626 = vld [vmem:[%s1 + $0x54] sm:$0xf]
  %v627 = vld [vmem:[%s1 + $0x58] sm:$0xf]
  %v628 = vld [vmem:[%s1 + $0x5c] sm:$0xf]
  %v629 = vld [vmem:[%s1 + $0x60] sm:$0xf]
  %v630 = vld [vmem:[%s1 + $0x64] sm:$0xf]
  %v631 = vld [vmem:[%s1 + $0x68] sm:$0xf]
  %v632 = vld [vmem:[%s1 + $0x6c] sm:$0xf]
  %v633 = vld [vmem:[%s1 + $0x70] sm:$0xf]
  %v634 = vld [vmem:[%s1 + $0x74] sm:$0xf]
  %v635 = vld [vmem:[%s1 + $0x78] sm:$0xf]
  %v636 = vld [vmem:[%s1 + $0x7c] sm:$0xf]
  %v669 = vunpack.c.l.b16 %v605
  %v670 = vunpack.c.l.b16 %v606
  %v671 = vunpack.c.l.b16 %v607
  %v672 = vunpack.c.l.b16 %v608
  %v673 = vunpack.c.l.b16 %v609
  %v674 = vunpack.c.l.b16 %v610
  %v675 = vunpack.c.l.b16 %v611
  %v676 = vunpack.c.l.b16 %v612
  %v677 = vunpack.c.l.b16 %v613
  %v678 = vunpack.c.l.b16 %v614
  %v679 = vunpack.c.l.b16 %v615
  %v680 = vunpack.c.l.b16 %v616
  %v681 = vunpack.c.l.b16 %v617
  %v682 = vunpack.c.l.b16 %v618
  %v683 = vunpack.c.l.b16 %v619
  %v684 = vunpack.c.l.b16 %v620
  %v685 = vunpack.c.l.b16 %v621
  %v686 = vunpack.c.l.b16 %v622
  %v687 = vunpack.c.l.b16 %v623
  %v688 = vunpack.c.l.b16 %v624
  %v689 = vunpack.c.l.b16 %v625
  %v690 = vunpack.c.l.b16 %v626
  %v691 = vunpack.c.l.b16 %v627
  %v692 = vunpack.c.l.b16 %v628
  %v693 = vunpack.c.l.b16 %v629
  %v694 = vunpack.c.l.b16 %v630
  %v695 = vunpack.c.l.b16 %v631
  %v696 = vunpack.c.l.b16 %v632
  %v697 = vunpack.c.l.b16 %v633
  %v698 = vunpack.c.l.b16 %v634
  %v699 = vunpack.c.l.b16 %v635
  %v700 = vunpack.c.l.b16 %v636
  %v701 = vpack.c.b16 %v670, %v669
  %v702 = vpack.c.b16 %v672, %v671
  %v703 = vpack.c.b16 %v674, %v673
  %v704 = vpack.c.b16 %v676, %v675
  %v705 = vpack.c.b16 %v678, %v677
  %v706 = vpack.c.b16 %v680, %v679
  %v707 = vpack.c.b16 %v682, %v681
  %v708 = vpack.c.b16 %v684, %v683
  %v709 = vpack.c.b16 %v686, %v685
  %v710 = vpack.c.b16 %v688, %v687
  %v711 = vpack.c.b16 %v690, %v689
  %v712 = vpack.c.b16 %v692, %v691
  %v713 = vpack.c.b16 %v694, %v693
  %v714 = vpack.c.b16 %v696, %v695
  %v715 = vpack.c.b16 %v698, %v697
  %v716 = vpack.c.b16 %v700, %v699
  %v718 = vsel %vm139, %v701, 0
  %v721 = vsel %vm139, %v702, 0
  %v724 = vsel %vm139, %v703, 0
  %v727 = vsel %vm139, %v704, 0
  %v730 = vsel %vm139, %v705, 0
  %v733 = vsel %vm139, %v706, 0
  %v736 = vsel %vm139, %v707, 0
  %v739 = vsel %vm139, %v708, 0
  %v742 = vsel %vm139, %v709, 0
  %v745 = vsel %vm139, %v710, 0
  %v748 = vsel %vm139, %v711, 0
  %v751 = vsel %vm139, %v712, 0
  %v754 = vsel %vm139, %v713, 0
  %v757 = vsel %vm139, %v714, 0
  %v760 = vsel %vm139, %v715, 0
  %v763 = vsel %vm139, %v716, 0
  %765 = vmatprep.subr.bf16.mxu0 %v136
  %766 = vmatpush1.bf16.msra.mxu0 %v135
  %767 = vmatprep.subr.bf16.mxu0 0
  %768 = vmatpush1.bf16.msra.mxu0 0
  %769 = vmatprep.subr.bf16.mxu0 0
  %770 = vmatpush1.bf16.msra.mxu0 0
  %771 = vmatprep.subr.bf16.mxu0 0
  %772 = vmatpush1.bf16.msra.mxu0 0
  %773 = vmatprep.subr.bf16.mxu0 0
  %774 = vmatpush1.bf16.msra.mxu0 0
  %775 = vmatprep.subr.bf16.mxu0 0
  %776 = vmatpush1.bf16.msra.mxu0 0
  %777 = vmatprep.subr.bf16.mxu0 0
  %778 = vmatpush1.bf16.msra.mxu0 0
  %779 = vmatprep.subr.bf16.mxu0 0
  %780 = vmatpush1.bf16.msra.mxu0 0
  %781 = vmatprep.subr.bf16.mxu0 0
  %782 = vmatpush1.bf16.msra.mxu0 0
  %783 = vmatprep.subr.bf16.mxu0 0
  %784 = vmatpush1.bf16.msra.mxu0 0
  %785 = vmatprep.subr.bf16.mxu0 0
  %786 = vmatpush1.bf16.msra.mxu0 0
  %787 = vmatprep.subr.bf16.mxu0 0
  %788 = vmatpush1.bf16.msra.mxu0 0
  %789 = vmatprep.subr.bf16.mxu0 0
  %790 = vmatpush1.bf16.msra.mxu0 0
  %791 = vmatprep.subr.bf16.mxu0 0
  %792 = vmatpush1.bf16.msra.mxu0 0
  %793 = vmatprep.subr.bf16.mxu0 0
  %794 = vmatpush1.bf16.msra.mxu0 0
  %795 = vmatprep.subr.bf16.mxu0 0
  %796 = vmatpush1.bf16.msra.mxu0 0
  %797 = vmatprep.mubr.bf16.mxu0 0
  %798 = vmatmul.mubr.bf16.gmra.mrb[0].mxu0 %v718
  %v799 = vpop.f32.mrb[0].mxu0
  %v800 = vadd.f32 0.0, %v799
  %v801 = vpop.f32.mrb[0].mxu0
  %v802 = vadd.f32 0.0, %v801
  %v803 = vpop.f32.mrb[0].mxu0
  %v804 = vadd.f32 0.0, %v803
  %v805 = vpop.f32.mrb[0].mxu0
  %v806 = vadd.f32 0.0, %v805
  %807 = vmatprep.mubr.bf16.mxu0 0
  %808 = vmatmul.mubr.bf16.gmra.mrb[0].mxu0 %v721
  %v809 = vpop.f32.mrb[0].mxu0
  %v810 = vadd.f32 0.0, %v809
  %v811 = vpop.f32.mrb[0].mxu0
  %v812 = vadd.f32 0.0, %v811
  %v813 = vpop.f32.mrb[0].mxu0
  %v814 = vadd.f32 0.0, %v813
  %v815 = vpop.f32.mrb[0].mxu0
  %v816 = vadd.f32 0.0, %v815
  %817 = vmatprep.mubr.bf16.mxu0 0
  %818 = vmatmul.mubr.bf16.gmra.mrb[0].mxu0 %v724
  %v819 = vpop.f32.mrb[0].mxu0
  %v820 = vadd.f32 0.0, %v819
  %v821 = vpop.f32.mrb[0].mxu0
  %v822 = vadd.f32 0.0, %v821
  %v823 = vpop.f32.mrb[0].mxu0
  %v824 = vadd.f32 0.0, %v823
  %v825 = vpop.f32.mrb[0].mxu0
  %v826 = vadd.f32 0.0, %v825
  %827 = vmatprep.mubr.bf16.mxu0 0
  %828 = vmatmul.mubr.bf16.gmra.mrb[0].mxu0 %v727
  %v829 = vpop.f32.mrb[0].mxu0
  %v830 = vadd.f32 0.0, %v829
  %v831 = vpop.f32.mrb[0].mxu0
  %v832 = vadd.f32 0.0, %v831
  %v833 = vpop.f32.mrb[0].mxu0
  %v834 = vadd.f32 0.0, %v833
  %v835 = vpop.f32.mrb[0].mxu0
  %v836 = vadd.f32 0.0, %v835
  %837 = vmatprep.mubr.bf16.mxu0 0
  %838 = vmatmul.mubr.bf16.gmra.mrb[0].mxu0 %v730
  %v839 = vpop.f32.mrb[0].mxu0
  %v840 = vadd.f32 0.0, %v839
  %v841 = vpop.f32.mrb[0].mxu0
  %v842 = vadd.f32 0.0, %v841
  %v843 = vpop.f32.mrb[0].mxu0
  %v844 = vadd.f32 0.0, %v843
  %v845 = vpop.f32.mrb[0].mxu0
  %v846 = vadd.f32 0.0, %v845
  %847 = vmatprep.mubr.bf16.mxu0 0
  %848 = vmatmul.mubr.bf16.gmra.mrb[0].mxu0 %v733
  %v849 = vpop.f32.mrb[0].mxu0
  %v850 = vadd.f32 0.0, %v849
  %v851 = vpop.f32.mrb[0].mxu0
  %v852 = vadd.f32 0.0, %v851
  %v853 = vpop.f32.mrb[0].mxu0
  %v854 = vadd.f32 0.0, %v853
  %v855 = vpop.f32.mrb[0].mxu0
  %v856 = vadd.f32 0.0, %v855
  %857 = vmatprep.mubr.bf16.mxu0 0
  %858 = vmatmul.mubr.bf16.gmra.mrb[0].mxu0 %v736
  %v859 = vpop.f32.mrb[0].mxu0
  %v860 = vadd.f32 0.0, %v859
  %v861 = vpop.f32.mrb[0].mxu0
  %v862 = vadd.f32 0.0, %v861
  %v863 = vpop.f32.mrb[0].mxu0
  %v864 = vadd.f32 0.0, %v863
  %v865 = vpop.f32.mrb[0].mxu0
  %v866 = vadd.f32 0.0, %v865
  %867 = vmatprep.mubr.bf16.mxu0 0
  %868 = vmatmul.mubr.bf16.gmra.mrb[0].mxu0 %v739
  %v869 = vpop.f32.mrb[0].mxu0
  %v870 = vadd.f32 0.0, %v869
  %v871 = vpop.f32.mrb[0].mxu0
  %v872 = vadd.f32 0.0, %v871
  %v873 = vpop.f32.mrb[0].mxu0
  %v874 = vadd.f32 0.0, %v873
  %v875 = vpop.f32.mrb[0].mxu0
  %v876 = vadd.f32 0.0, %v875
  %877 = vmatprep.mubr.bf16.mxu0 0
  %878 = vmatmul.mubr.bf16.gmra.mrb[0].mxu0 %v742
  %v879 = vpop.f32.mrb[0].mxu0
  %v880 = vadd.f32 0.0, %v879
  %v881 = vpop.f32.mrb[0].mxu0
  %v882 = vadd.f32 0.0, %v881
  %v883 = vpop.f32.mrb[0].mxu0
  %v884 = vadd.f32 0.0, %v883
  %v885 = vpop.f32.mrb[0].mxu0
  %v886 = vadd.f32 0.0, %v885
  %887 = vmatprep.mubr.bf16.mxu0 0
  %888 = vmatmul.mubr.bf16.gmra.mrb[0].mxu0 %v745
  %v889 = vpop.f32.mrb[0].mxu0
  %v890 = vadd.f32 0.0, %v889
  %v891 = vpop.f32.mrb[0].mxu0
  %v892 = vadd.f32 0.0, %v891
  %v893 = vpop.f32.mrb[0].mxu0
  %v894 = vadd.f32 0.0, %v893
  %v895 = vpop.f32.mrb[0].mxu0
  %v896 = vadd.f32 0.0, %v895
  %897 = vmatprep.mubr.bf16.mxu0 0
  %898 = vmatmul.mubr.bf16.gmra.mrb[0].mxu0 %v748
  %v899 = vpop.f32.mrb[0].mxu0
  %v900 = vadd.f32 0.0, %v899
  %v901 = vpop.f32.mrb[0].mxu0
  %v902 = vadd.f32 0.0, %v901
  %v903 = vpop.f32.mrb[0].mxu0
  %v904 = vadd.f32 0.0, %v903
  %v905 = vpop.f32.mrb[0].mxu0
  %v906 = vadd.f32 0.0, %v905
  %907 = vmatprep.mubr.bf16.mxu0 0
  %908 = vmatmul.mubr.bf16.gmra.mrb[0].mxu0 %v751
  %v909 = vpop.f32.mrb[0].mxu0
  %v910 = vadd.f32 0.0, %v909
  %v911 = vpop.f32.mrb[0].mxu0
  %v912 = vadd.f32 0.0, %v911
  %v913 = vpop.f32.mrb[0].mxu0
  %v914 = vadd.f32 0.0, %v913
  %v915 = vpop.f32.mrb[0].mxu0
  %v916 = vadd.f32 0.0, %v915
  %917 = vmatprep.mubr.bf16.mxu0 0
  %918 = vmatmul.mubr.bf16.gmra.mrb[0].mxu0 %v754
  %v919 = vpop.f32.mrb[0].mxu0
  %v920 = vadd.f32 0.0, %v919
  %v921 = vpop.f32.mrb[0].mxu0
  %v922 = vadd.f32 0.0, %v921
  %v923 = vpop.f32.mrb[0].mxu0
  %v924 = vadd.f32 0.0, %v923
  %v925 = vpop.f32.mrb[0].mxu0
  %v926 = vadd.f32 0.0, %v925
  %927 = vmatprep.mubr.bf16.mxu0 0
  %928 = vmatmul.mubr.bf16.gmra.mrb[0].mxu0 %v757
  %v929 = vpop.f32.mrb[0].mxu0
  %v930 = vadd.f32 0.0, %v929
  %v931 = vpop.f32.mrb[0].mxu0
  %v932 = vadd.f32 0.0, %v931
  %v933 = vpop.f32.mrb[0].mxu0
  %v934 = vadd.f32 0.0, %v933
  %v935 = vpop.f32.mrb[0].mxu0
  %v936 = vadd.f32 0.0, %v935
  %937 = vmatprep.mubr.bf16.mxu0 0
  %938 = vmatmul.mubr.bf16.gmra.mrb[0].mxu0 %v760
  %v939 = vpop.f32.mrb[0].mxu0
  %v940 = vadd.f32 0.0, %v939
  %v941 = vpop.f32.mrb[0].mxu0
  %v942 = vadd.f32 0.0, %v941
  %v943 = vpop.f32.mrb[0].mxu0
  %v944 = vadd.f32 0.0, %v943
  %v945 = vpop.f32.mrb[0].mxu0
  %v946 = vadd.f32 0.0, %v945
  %947 = vmatprep.mubr.bf16.mxu0 0
  %948 = vmatmul.mubr.bf16.gmra.mrb[0].mxu0 %v763
  %v949 = vpop.f32.mrb[0].mxu0
  %v950 = vadd.f32 0.0, %v949
  %v951 = vpop.f32.mrb[0].mxu0
  %v952 = vadd.f32 0.0, %v951
  %v953 = vpop.f32.mrb[0].mxu0
  %v954 = vadd.f32 0.0, %v953
  %v955 = vpop.f32.mrb[0].mxu0
  %v956 = vadd.f32 0.0, %v955
  %957 = vdwg.mxu0
  %v958 = vpack.c.bf16 %v804, %v800
  %v959 = vpack.c.bf16 %v806, %v802
  %v960 = vpack.c.bf16 %v814, %v810
  %v961 = vpack.c.bf16 %v816, %v812
  %v962 = vpack.c.bf16 %v824, %v820
  %v963 = vpack.c.bf16 %v826, %v822
  %v964 = vpack.c.bf16 %v834, %v830
  %v965 = vpack.c.bf16 %v836, %v832
  %v966 = vpack.c.bf16 %v844, %v840
  %v967 = vpack.c.bf16 %v846, %v842
  %v968 = vpack.c.bf16 %v854, %v850
  %v969 = vpack.c.bf16 %v856, %v852
  %v970 = vpack.c.bf16 %v864, %v860
  %v971 = vpack.c.bf16 %v866, %v862
  %v972 = vpack.c.bf16 %v874, %v870
  %v973 = vpack.c.bf16 %v876, %v872
  %v974 = vpack.c.bf16 %v884, %v880
  %v975 = vpack.c.bf16 %v886, %v882
  %v976 = vpack.c.bf16 %v894, %v890
  %v977 = vpack.c.bf16 %v896, %v892
  %v978 = vpack.c.bf16 %v904, %v900
  %v979 = vpack.c.bf16 %v906, %v902
  %v980 = vpack.c.bf16 %v914, %v910
  %v981 = vpack.c.bf16 %v916, %v912
  %v982 = vpack.c.bf16 %v924, %v920
  %v983 = vpack.c.bf16 %v926, %v922
  %v984 = vpack.c.bf16 %v934, %v930
  %v985 = vpack.c.bf16 %v936, %v932
  %v986 = vpack.c.bf16 %v944, %v940
  %v987 = vpack.c.bf16 %v946, %v942
  %v988 = vpack.c.bf16 %v954, %v950
  %v989 = vpack.c.bf16 %v956, %v952
  %v1022 = vunpack.c.l.b16 %v958
  %v1023 = vunpack.c.l.b16 %v959
  %v1024 = vunpack.c.h.b16 %v958
  %v1025 = vunpack.c.h.b16 %v959
  %v1026 = vunpack.c.l.b16 %v960
  %v1027 = vunpack.c.l.b16 %v961
  %v1028 = vunpack.c.h.b16 %v960
  %v1029 = vunpack.c.h.b16 %v961
  %v1030 = vunpack.c.l.b16 %v962
  %v1031 = vunpack.c.l.b16 %v963
  %v1032 = vunpack.c.h.b16 %v962
  %v1033 = vunpack.c.h.b16 %v963
  %v1034 = vunpack.c.l.b16 %v964
  %v1035 = vunpack.c.l.b16 %v965
  %v1036 = vunpack.c.h.b16 %v964
  %v1037 = vunpack.c.h.b16 %v965
  %v1038 = vunpack.c.l.b16 %v966
  %v1039 = vunpack.c.l.b16 %v967
  %v1040 = vunpack.c.h.b16 %v966
  %v1041 = vunpack.c.h.b16 %v967
  %v1042 = vunpack.c.l.b16 %v968
  %v1043 = vunpack.c.l.b16 %v969
  %v1044 = vunpack.c.h.b16 %v968
  %v1045 = vunpack.c.h.b16 %v969
  %v1046 = vunpack.c.l.b16 %v970
  %v1047 = vunpack.c.l.b16 %v971
  %v1048 = vunpack.c.h.b16 %v970
  %v1049 = vunpack.c.h.b16 %v971
  %v1050 = vunpack.c.l.b16 %v972
  %v1051 = vunpack.c.l.b16 %v973
  %v1052 = vunpack.c.h.b16 %v972
  %v1053 = vunpack.c.h.b16 %v973
  %v1054 = vunpack.c.l.b16 %v974
  %v1055 = vunpack.c.l.b16 %v975
  %v1056 = vunpack.c.h.b16 %v974
  %v1057 = vunpack.c.h.b16 %v975
  %v1058 = vunpack.c.l.b16 %v976
  %v1059 = vunpack.c.l.b16 %v977
  %v1060 = vunpack.c.h.b16 %v976
  %v1061 = vunpack.c.h.b16 %v977
  %v1062 = vunpack.c.l.b16 %v978
  %v1063 = vunpack.c.l.b16 %v979
  %v1064 = vunpack.c.h.b16 %v978
  %v1065 = vunpack.c.h.b16 %v979
  %v1066 = vunpack.c.l.b16 %v980
  %v1067 = vunpack.c.l.b16 %v981
  %v1068 = vunpack.c.h.b16 %v980
  %v1069 = vunpack.c.h.b16 %v981
  %v1070 = vunpack.c.l.b16 %v982
  %v1071 = vunpack.c.l.b16 %v983
  %v1072 = vunpack.c.h.b16 %v982
  %v1073 = vunpack.c.h.b16 %v983
  %v1074 = vunpack.c.l.b16 %v984
  %v1075 = vunpack.c.l.b16 %v985
  %v1076 = vunpack.c.h.b16 %v984
  %v1077 = vunpack.c.h.b16 %v985
  %v1078 = vunpack.c.l.b16 %v986
  %v1079 = vunpack.c.l.b16 %v987
  %v1080 = vunpack.c.h.b16 %v986
  %v1081 = vunpack.c.h.b16 %v987
  %v1082 = vunpack.c.l.b16 %v988
  %v1083 = vunpack.c.l.b16 %v989
  %v1084 = vunpack.c.h.b16 %v988
  %v1085 = vunpack.c.h.b16 %v989
  %v1086 = vpack.c.b16 %v1023, %v1022
  %v1087 = vpack.c.b16 %v1025, %v1024
  %v1088 = vpack.c.b16 %v1027, %v1026
  %v1089 = vpack.c.b16 %v1029, %v1028
  %v1090 = vpack.c.b16 %v1031, %v1030
  %v1091 = vpack.c.b16 %v1033, %v1032
  %v1092 = vpack.c.b16 %v1035, %v1034
  %v1093 = vpack.c.b16 %v1037, %v1036
  %v1094 = vpack.c.b16 %v1039, %v1038
  %v1095 = vpack.c.b16 %v1041, %v1040
  %v1096 = vpack.c.b16 %v1043, %v1042
  %v1097 = vpack.c.b16 %v1045, %v1044
  %v1098 = vpack.c.b16 %v1047, %v1046
  %v1099 = vpack.c.b16 %v1049, %v1048
  %v1100 = vpack.c.b16 %v1051, %v1050
  %v1101 = vpack.c.b16 %v1053, %v1052
  %v1102 = vpack.c.b16 %v1055, %v1054
  %v1103 = vpack.c.b16 %v1057, %v1056
  %v1104 = vpack.c.b16 %v1059, %v1058
  %v1105 = vpack.c.b16 %v1061, %v1060
  %v1106 = vpack.c.b16 %v1063, %v1062
  %v1107 = vpack.c.b16 %v1065, %v1064
  %v1108 = vpack.c.b16 %v1067, %v1066
  %v1109 = vpack.c.b16 %v1069, %v1068
  %v1110 = vpack.c.b16 %v1071, %v1070
  %v1111 = vpack.c.b16 %v1073, %v1072
  %v1112 = vpack.c.b16 %v1075, %v1074
  %v1113 = vpack.c.b16 %v1077, %v1076
  %v1114 = vpack.c.b16 %v1079, %v1078
  %v1115 = vpack.c.b16 %v1081, %v1080
  %v1116 = vpack.c.b16 %v1083, %v1082
  %v1117 = vpack.c.b16 %v1085, %v1084
  %1150 = vst [vmem:[%s3 + $0x8] sm:$0xff] %v1086
  %1151 = vst [vmem:[%s3 + $0x18] sm:$0xff] %v1087
  %1152 = vst [vmem:[%s3 + $0x28] sm:$0xff] %v1088
  %1153 = vst [vmem:[%s3 + $0x38] sm:$0xff] %v1089
  %1154 = vst [vmem:[%s3 + $0x48] sm:$0xff] %v1090
  %1155 = vst [vmem:[%s3 + $0x58] sm:$0xff] %v1091
  %1156 = vst [vmem:[%s3 + $0x68] sm:$0xff] %v1092
  %1157 = vst [vmem:[%s3 + $0x78] sm:$0xff] %v1093
  %1158 = vst [vmem:[%s3 + $0x88] sm:$0xff] %v1094
  %1159 = vst [vmem:[%s3 + $0x98] sm:$0xff] %v1095
  %1160 = vst [vmem:[%s3 + $0xa8] sm:$0xff] %v1096
  %1161 = vst [vmem:[%s3 + $0xb8] sm:$0xff] %v1097
  %1162 = vst [vmem:[%s3 + $0xc8] sm:$0xff] %v1098
  %1163 = vst [vmem:[%s3 + $0xd8] sm:$0xff] %v1099
  %1164 = vst [vmem:[%s3 + $0xe8] sm:$0xff] %v1100
  %1165 = vst [vmem:[%s3 + $0xf8] sm:$0xff] %v1101
  %1166 = vst [vmem:[%s3 + $0x108] sm:$0xff] %v1102
  %1167 = vst [vmem:[%s3 + $0x118] sm:$0xff] %v1103
  %1168 = vst [vmem:[%s3 + $0x128] sm:$0xff] %v1104
  %1169 = vst [vmem:[%s3 + $0x138] sm:$0xff] %v1105
  %1170 = vst [vmem:[%s3 + $0x148] sm:$0xff] %v1106
  %1171 = vst [vmem:[%s3 + $0x158] sm:$0xff] %v1107
  %1172 = vst [vmem:[%s3 + $0x168] sm:$0xff] %v1108
  %1173 = vst [vmem:[%s3 + $0x178] sm:$0xff] %v1109
  %1174 = vst [vmem:[%s3 + $0x188] sm:$0xff] %v1110
  %1175 = vst [vmem:[%s3 + $0x198] sm:$0xff] %v1111
  %1176 = vst [vmem:[%s3 + $0x1a8] sm:$0xff] %v1112
  %1177 = vst [vmem:[%s3 + $0x1b8] sm:$0xff] %v1113
  %1178 = vst [vmem:[%s3 + $0x1c8] sm:$0xff] %v1114
  %1179 = vst [vmem:[%s3 + $0x1d8] sm:$0xff] %v1115
  %1180 = vst [vmem:[%s3 + $0x1e8] sm:$0xff] %v1116
  %1181 = vst [vmem:[%s3 + $0x1f8] sm:$0xff] %v1117
  // Predicated region
  $region14: #{omics1_encoder_forward.5} parent=0 // pred_check
    _
  $region15: #{omics1_encoder_forward.5} parent=0 // pred_check_branch
    %1183 = sbr.rel (0) target = $region17
  $region16: #{omics1_encoder_forward.5} parent=0 // pred_region
    _
  $region17: #{omics1_encoder_forward.5} parent=0 // pred_fallthru
    _
  // Predicated region
  $region18: #{omics1_encoder_forward.5} parent=0 // pred_check
    _
  $region19: #{omics1_encoder_forward.5} parent=0 // pred_check_branch
    %1185 = sbr.rel (0) target = $region21
  $region20: #{omics1_encoder_forward.5} parent=0 // pred_region
    _
  $region21: #{omics1_encoder_forward.5} parent=0 // pred_fallthru
    _

// kernel: omics1_encoder_forward.7
$region0: #{omics1_encoder_forward.7}
  #allocation0 [shape = 'u32[]', space=smem, size = 0x4, offset = 0x4, fixed_abs, tag = 'smem constant byte address 0x4 - core index']
  #allocation1 [shape = 'u32[144,128]{1,0:T(1,128)}', space=vmem, size = 0x12000, scoped, tag = 'internal scratch']
  %s0 = inlined_call_operand.vmem [shape: bf16[256,512], index: 0, kind: input, shape index: {}, may-alias: {0,1}]
  %s1 = inlined_call_operand.vmem [shape: bf16[256,512], index: 1, kind: input, shape index: {}, may-alias: {0,1}]
  %s2 = inlined_call_operand.vmem [shape: bf16[256,128], index: 2, kind: input, shape index: {}]
  %s3 = inlined_call_operand.vmem [shape: bf16[256,256], index: 3, kind: output, shape index: {}]
  %s4 = sld [smem:[#allocation0]]
  $region98: #{omics1_encoder_forward.7} parent=0
    _
  %s6 = ssub.s32 1, %s4
  %s7 = scalar_select 0, %s6, %s4
  $region1: #{omics1_encoder_forward.7} parent=0
    #allocation2 [shape = 'u8[131072]{0}', space=vmem, size = 0x20000, scoped, tag = 'input window, operand 0, single buffered']
    #allocation3 [shape = 'u8[131072]{0}', space=vmem, size = 0x20000, scoped, tag = 'input window, operand 1, single buffered']
    // Predicated region
    $region2: #{omics1_encoder_forward.7} parent=1 // pred_check
      _
    $region3: #{omics1_encoder_forward.7} parent=1 // pred_check_branch
      %9 = sbr.rel (0) target = $region5
    $region4: #{omics1_encoder_forward.7} parent=1 // pred_region
      // Predicated region
      $region6: #{omics1_encoder_forward.7} parent=4 // pred_check
        _
      $region7: #{omics1_encoder_forward.7} parent=4 // pred_check_branch
        %11 = sbr.rel (0) target = $region9
      $region8: #{omics1_encoder_forward.7} parent=4 // pred_region
        // Predicated region
        $region10: #{omics1_encoder_forward.7} parent=8 // pred_check
          _
        $region11: #{omics1_encoder_forward.7} parent=8 // pred_check_branch
          %13 = sbr.rel (0) target = $region13
        $region12: #{omics1_encoder_forward.7} parent=8 // pred_region
          // Predicated region
          $region25: #{omics1_encoder_forward.7} parent=12 // pred_check
            _
          $region26: #{omics1_encoder_forward.7} parent=12 // pred_check_branch
            %90 = sbr.rel (0) target = $region28
          $region27: #{omics1_encoder_forward.7} parent=12 // pred_region
            loop: start=0, step=1, limit=1
            $region29: #{omics1_encoder_forward.7} parent=27 // loop_pre_header
              _
            $region30: #{omics1_encoder_forward.7} parent=27 // loop_header
              %s92 = sphi 0, %s96
              %p93 = scmp.ge.s32.totalorder %s92, 1
              %s97 = sphi %s0, %s0
              %s98 = sphi [#allocation2], [#allocation2]
            $region31: #{omics1_encoder_forward.7} parent=27 // loop_header_branch
              %95 = sbr.rel (%p93) target = $region35
            $region32: #{omics1_encoder_forward.7} parent=27 // loop_body
              %v99 = vld [vmem:[%s97] sm:$0xff]
              %100 = vst [vmem:[%s98] sm:$0xff] %v99
              %v101 = vld [vmem:[%s97 + $0x10] sm:$0xff]
              %102 = vst [vmem:[%s98 + $0x8] sm:$0xff] %v101
              %v103 = vld [vmem:[%s97 + $0x20] sm:$0xff]
              %104 = vst [vmem:[%s98 + $0x10] sm:$0xff] %v103
              %v105 = vld [vmem:[%s97 + $0x30] sm:$0xff]
              %106 = vst [vmem:[%s98 + $0x18] sm:$0xff] %v105
              %v107 = vld [vmem:[%s97 + $0x40] sm:$0xff]
              %108 = vst [vmem:[%s98 + $0x20] sm:$0xff] %v107
              %v109 = vld [vmem:[%s97 + $0x50] sm:$0xff]
              %110 = vst [vmem:[%s98 + $0x28] sm:$0xff] %v109
              %v111 = vld [vmem:[%s97 + $0x60] sm:$0xff]
              %112 = vst [vmem:[%s98 + $0x30] sm:$0xff] %v111
              %v113 = vld [vmem:[%s97 + $0x70] sm:$0xff]
              %114 = vst [vmem:[%s98 + $0x38] sm:$0xff] %v113
              %v115 = vld [vmem:[%s97 + $0x80] sm:$0xff]
              %116 = vst [vmem:[%s98 + $0x40] sm:$0xff] %v115
              %v117 = vld [vmem:[%s97 + $0x90] sm:$0xff]
              %118 = vst [vmem:[%s98 + $0x48] sm:$0xff] %v117
              %v119 = vld [vmem:[%s97 + $0xa0] sm:$0xff]
              %120 = vst [vmem:[%s98 + $0x50] sm:$0xff] %v119
              %v121 = vld [vmem:[%s97 + $0xb0] sm:$0xff]
              %122 = vst [vmem:[%s98 + $0x58] sm:$0xff] %v121
              %v123 = vld [vmem:[%s97 + $0xc0] sm:$0xff]
              %124 = vst [vmem:[%s98 + $0x60] sm:$0xff] %v123
              %v125 = vld [vmem:[%s97 + $0xd0] sm:$0xff]
              %126 = vst [vmem:[%s98 + $0x68] sm:$0xff] %v125
              %v127 = vld [vmem:[%s97 + $0xe0] sm:$0xff]
              %128 = vst [vmem:[%s98 + $0x70] sm:$0xff] %v127
              %v129 = vld [vmem:[%s97 + $0xf0] sm:$0xff]
              %130 = vst [vmem:[%s98 + $0x78] sm:$0xff] %v129
              %v131 = vld [vmem:[%s97 + $0x100] sm:$0xff]
              %132 = vst [vmem:[%s98 + $0x80] sm:$0xff] %v131
              %v133 = vld [vmem:[%s97 + $0x110] sm:$0xff]
              %134 = vst [vmem:[%s98 + $0x88] sm:$0xff] %v133
              %v135 = vld [vmem:[%s97 + $0x120] sm:$0xff]
              %136 = vst [vmem:[%s98 + $0x90] sm:$0xff] %v135
              %v137 = vld [vmem:[%s97 + $0x130] sm:$0xff]
              %138 = vst [vmem:[%s98 + $0x98] sm:$0xff] %v137
              %v139 = vld [vmem:[%s97 + $0x140] sm:$0xff]
              %140 = vst [vmem:[%s98 + $0xa0] sm:$0xff] %v139
              %v141 = vld [vmem:[%s97 + $0x150] sm:$0xff]
              %142 = vst [vmem:[%s98 + $0xa8] sm:$0xff] %v141
              %v143 = vld [vmem:[%s97 + $0x160] sm:$0xff]
              %144 = vst [vmem:[%s98 + $0xb0] sm:$0xff] %v143
              %v145 = vld [vmem:[%s97 + $0x170] sm:$0xff]
              %146 = vst [vmem:[%s98 + $0xb8] sm:$0xff] %v145
              %v147 = vld [vmem:[%s97 + $0x180] sm:$0xff]
              %148 = vst [vmem:[%s98 + $0xc0] sm:$0xff] %v147
              %v149 = vld [vmem:[%s97 + $0x190] sm:$0xff]
              %150 = vst [vmem:[%s98 + $0xc8] sm:$0xff] %v149
              %v151 = vld [vmem:[%s97 + $0x1a0] sm:$0xff]
              %152 = vst [vmem:[%s98 + $0xd0] sm:$0xff] %v151
              %v153 = vld [vmem:[%s97 + $0x1b0] sm:$0xff]
              %154 = vst [vmem:[%s98 + $0xd8] sm:$0xff] %v153
              %v155 = vld [vmem:[%s97 + $0x1c0] sm:$0xff]
              %156 = vst [vmem:[%s98 + $0xe0] sm:$0xff] %v155
              %v157 = vld [vmem:[%s97 + $0x1d0] sm:$0xff]
              %158 = vst [vmem:[%s98 + $0xe8] sm:$0xff] %v157
              %v159 = vld [vmem:[%s97 + $0x1e0] sm:$0xff]
              %160 = vst [vmem:[%s98 + $0xf0] sm:$0xff] %v159
              %v161 = vld [vmem:[%s97 + $0x1f0] sm:$0xff]
              %162 = vst [vmem:[%s98 + $0xf8] sm:$0xff] %v161
            $region33: #{omics1_encoder_forward.7} parent=27 // loop_footer
              %s96 = sadd.s32 1, %s92
            $region34: #{omics1_encoder_forward.7} parent=27 // loop_footer_branch
              %91 = sbr.rel target = $region30
            $region35: #{omics1_encoder_forward.7} parent=27 // loop_exit
              _
          $region28: #{omics1_encoder_forward.7} parent=12 // pred_fallthru
            _
          // Predicated region
          $region36: #{omics1_encoder_forward.7} parent=12 // pred_check
            _
          $region37: #{omics1_encoder_forward.7} parent=12 // pred_check_branch
            %164 = sbr.rel target = $region39
          $region38: #{omics1_encoder_forward.7} parent=12 // pred_region
            _
          $region39: #{omics1_encoder_forward.7} parent=12 // pred_fallthru
            _
        $region13: #{omics1_encoder_forward.7} parent=8 // pred_fallthru
          _
        // Predicated region
        $region14: #{omics1_encoder_forward.7} parent=8 // pred_check
          _
        $region15: #{omics1_encoder_forward.7} parent=8 // pred_check_branch
          %15 = sbr.rel target = $region17
        $region16: #{omics1_encoder_forward.7} parent=8 // pred_region
          loop: start=0, step=1, limit=1
          $region18: #{omics1_encoder_forward.7} parent=16 // loop_pre_header
            _
          $region19: #{omics1_encoder_forward.7} parent=16 // loop_header
            %s18 = sphi 0, %s22
            %p19 = scmp.ge.s32.totalorder %s18, 1
            %s23 = sphi %s0, %s0
            %s24 = sphi [#allocation2], [#allocation2]
          $region20: #{omics1_encoder_forward.7} parent=16 // loop_header_branch
            %21 = sbr.rel (%p19) target = $region24
          $region21: #{omics1_encoder_forward.7} parent=16 // loop_body
            %v25 = vld [vmem:[%s23] sm:$0xff]
            %26 = vst [vmem:[%s24] sm:$0xff] %v25
            %v27 = vld [vmem:[%s23 + $0x10] sm:$0xff]
            %28 = vst [vmem:[%s24 + $0x8] sm:$0xff] %v27
            %v29 = vld [vmem:[%s23 + $0x20] sm:$0xff]
            %30 = vst [vmem:[%s24 + $0x10] sm:$0xff] %v29
            %v31 = vld [vmem:[%s23 + $0x30] sm:$0xff]
            %32 = vst [vmem:[%s24 + $0x18] sm:$0xff] %v31
            %v33 = vld [vmem:[%s23 + $0x40] sm:$0xff]
            %34 = vst [vmem:[%s24 + $0x20] sm:$0xff] %v33
            %v35 = vld [vmem:[%s23 + $0x50] sm:$0xff]
            %36 = vst [vmem:[%s24 + $0x28] sm:$0xff] %v35
            %v37 = vld [vmem:[%s23 + $0x60] sm:$0xff]
            %38 = vst [vmem:[%s24 + $0x30] sm:$0xff] %v37
            %v39 = vld [vmem:[%s23 + $0x70] sm:$0xff]
            %40 = vst [vmem:[%s24 + $0x38] sm:$0xff] %v39
            %v41 = vld [vmem:[%s23 + $0x80] sm:$0xff]
            %42 = vst [vmem:[%s24 + $0x40] sm:$0xff] %v41
            %v43 = vld [vmem:[%s23 + $0x90] sm:$0xff]
            %44 = vst [vmem:[%s24 + $0x48] sm:$0xff] %v43
            %v45 = vld [vmem:[%s23 + $0xa0] sm:$0xff]
            %46 = vst [vmem:[%s24 + $0x50] sm:$0xff] %v45
            %v47 = vld [vmem:[%s23 + $0xb0] sm:$0xff]
            %48 = vst [vmem:[%s24 + $0x58] sm:$0xff] %v47
            %v49 = vld [vmem:[%s23 + $0xc0] sm:$0xff]
            %50 = vst [vmem:[%s24 + $0x60] sm:$0xff] %v49
            %v51 = vld [vmem:[%s23 + $0xd0] sm:$0xff]
            %52 = vst [vmem:[%s24 + $0x68] sm:$0xff] %v51
            %v53 = vld [vmem:[%s23 + $0xe0] sm:$0xff]
            %54 = vst [vmem:[%s24 + $0x70] sm:$0xff] %v53
            %v55 = vld [vmem:[%s23 + $0xf0] sm:$0xff]
            %56 = vst [vmem:[%s24 + $0x78] sm:$0xff] %v55
            %v57 = vld [vmem:[%s23 + $0x100] sm:$0xff]
            %58 = vst [vmem:[%s24 + $0x80] sm:$0xff] %v57
            %v59 = vld [vmem:[%s23 + $0x110] sm:$0xff]
            %60 = vst [vmem:[%s24 + $0x88] sm:$0xff] %v59
            %v61 = vld [vmem:[%s23 + $0x120] sm:$0xff]
            %62 = vst [vmem:[%s24 + $0x90] sm:$0xff] %v61
            %v63 = vld [vmem:[%s23 + $0x130] sm:$0xff]
            %64 = vst [vmem:[%s24 + $0x98] sm:$0xff] %v63
            %v65 = vld [vmem:[%s23 + $0x140] sm:$0xff]
            %66 = vst [vmem:[%s24 + $0xa0] sm:$0xff] %v65
            %v67 = vld [vmem:[%s23 + $0x150] sm:$0xff]
            %68 = vst [vmem:[%s24 + $0xa8] sm:$0xff] %v67
            %v69 = vld [vmem:[%s23 + $0x160] sm:$0xff]
            %70 = vst [vmem:[%s24 + $0xb0] sm:$0xff] %v69
            %v71 = vld [vmem:[%s23 + $0x170] sm:$0xff]
            %72 = vst [vmem:[%s24 + $0xb8] sm:$0xff] %v71
            %v73 = vld [vmem:[%s23 + $0x180] sm:$0xff]
            %74 = vst [vmem:[%s24 + $0xc0] sm:$0xff] %v73
            %v75 = vld [vmem:[%s23 + $0x190] sm:$0xff]
            %76 = vst [vmem:[%s24 + $0xc8] sm:$0xff] %v75
            %v77 = vld [vmem:[%s23 + $0x1a0] sm:$0xff]
            %78 = vst [vmem:[%s24 + $0xd0] sm:$0xff] %v77
            %v79 = vld [vmem:[%s23 + $0x1b0] sm:$0xff]
            %80 = vst [vmem:[%s24 + $0xd8] sm:$0xff] %v79
            %v81 = vld [vmem:[%s23 + $0x1c0] sm:$0xff]
            %82 = vst [vmem:[%s24 + $0xe0] sm:$0xff] %v81
            %v83 = vld [vmem:[%s23 + $0x1d0] sm:$0xff]
            %84 = vst [vmem:[%s24 + $0xe8] sm:$0xff] %v83
            %v85 = vld [vmem:[%s23 + $0x1e0] sm:$0xff]
            %86 = vst [vmem:[%s24 + $0xf0] sm:$0xff] %v85
            %v87 = vld [vmem:[%s23 + $0x1f0] sm:$0xff]
            %88 = vst [vmem:[%s24 + $0xf8] sm:$0xff] %v87
          $region22: #{omics1_encoder_forward.7} parent=16 // loop_footer
            %s22 = sadd.s32 1, %s18
          $region23: #{omics1_encoder_forward.7} parent=16 // loop_footer_branch
            %17 = sbr.rel target = $region19
          $region24: #{omics1_encoder_forward.7} parent=16 // loop_exit
            _
        $region17: #{omics1_encoder_forward.7} parent=8 // pred_fallthru
          _
      $region9: #{omics1_encoder_forward.7} parent=4 // pred_fallthru
        _
      %165 = vnop
    $region5: #{omics1_encoder_forward.7} parent=1 // pred_fallthru
      _
    // Predicated region
    $region40: #{omics1_encoder_forward.7} parent=1 // pred_check
      _
    $region41: #{omics1_encoder_forward.7} parent=1 // pred_check_branch
      %167 = sbr.rel (0) target = $region43
    $region42: #{omics1_encoder_forward.7} parent=1 // pred_region
      %s168 = scalar_lea.vmem %s1, 8
      // Predicated region
      $region44: #{omics1_encoder_forward.7} parent=42 // pred_check
        _
      $region45: #{omics1_encoder_forward.7} parent=42 // pred_check_branch
        %170 = sbr.rel (0) target = $region47
      $region46: #{omics1_encoder_forward.7} parent=42 // pred_region
        // Predicated region
        $region48: #{omics1_encoder_forward.7} parent=46 // pred_check
          _
        $region49: #{omics1_encoder_forward.7} parent=46 // pred_check_branch
          %172 = sbr.rel (0) target = $region51
        $region50: #{omics1_encoder_forward.7} parent=46 // pred_region
          // Predicated region
          $region63: #{omics1_encoder_forward.7} parent=50 // pred_check
            _
          $region64: #{omics1_encoder_forward.7} parent=50 // pred_check_branch
            %249 = sbr.rel (0) target = $region66
          $region65: #{omics1_encoder_forward.7} parent=50 // pred_region
            loop: start=0, step=1, limit=1
            $region67: #{omics1_encoder_forward.7} parent=65 // loop_pre_header
              _
            $region68: #{omics1_encoder_forward.7} parent=65 // loop_header
              %s251 = sphi 0, %s255
              %p252 = scmp.ge.s32.totalorder %s251, 1
              %s256 = sphi %s168, %s168
              %s257 = sphi [#allocation3], [#allocation3]
            $region69: #{omics1_encoder_forward.7} parent=65 // loop_header_branch
              %254 = sbr.rel (%p252) target = $region73
            $region70: #{omics1_encoder_forward.7} parent=65 // loop_body
              %v258 = vld [vmem:[%s256] sm:$0xff]
              %259 = vst [vmem:[%s257] sm:$0xff] %v258
              %v260 = vld [vmem:[%s256 + $0x10] sm:$0xff]
              %261 = vst [vmem:[%s257 + $0x8] sm:$0xff] %v260
              %v262 = vld [vmem:[%s256 + $0x20] sm:$0xff]
              %263 = vst [vmem:[%s257 + $0x10] sm:$0xff] %v262
              %v264 = vld [vmem:[%s256 + $0x30] sm:$0xff]
              %265 = vst [vmem:[%s257 + $0x18] sm:$0xff] %v264
              %v266 = vld [vmem:[%s256 + $0x40] sm:$0xff]
              %267 = vst [vmem:[%s257 + $0x20] sm:$0xff] %v266
              %v268 = vld [vmem:[%s256 + $0x50] sm:$0xff]
              %269 = vst [vmem:[%s257 + $0x28] sm:$0xff] %v268
              %v270 = vld [vmem:[%s256 + $0x60] sm:$0xff]
              %271 = vst [vmem:[%s257 + $0x30] sm:$0xff] %v270
              %v272 = vld [vmem:[%s256 + $0x70] sm:$0xff]
              %273 = vst [vmem:[%s257 + $0x38] sm:$0xff] %v272
              %v274 = vld [vmem:[%s256 + $0x80] sm:$0xff]
              %275 = vst [vmem:[%s257 + $0x40] sm:$0xff] %v274
              %v276 = vld [vmem:[%s256 + $0x90] sm:$0xff]
              %277 = vst [vmem:[%s257 + $0x48] sm:$0xff] %v276
              %v278 = vld [vmem:[%s256 + $0xa0] sm:$0xff]
              %279 = vst [vmem:[%s257 + $0x50] sm:$0xff] %v278
              %v280 = vld [vmem:[%s256 + $0xb0] sm:$0xff]
              %281 = vst [vmem:[%s257 + $0x58] sm:$0xff] %v280
              %v282 = vld [vmem:[%s256 + $0xc0] sm:$0xff]
              %283 = vst [vmem:[%s257 + $0x60] sm:$0xff] %v282
              %v284 = vld [vmem:[%s256 + $0xd0] sm:$0xff]
              %285 = vst [vmem:[%s257 + $0x68] sm:$0xff] %v284
              %v286 = vld [vmem:[%s256 + $0xe0] sm:$0xff]
              %287 = vst [vmem:[%s257 + $0x70] sm:$0xff] %v286
              %v288 = vld [vmem:[%s256 + $0xf0] sm:$0xff]
              %289 = vst [vmem:[%s257 + $0x78] sm:$0xff] %v288
              %v290 = vld [vmem:[%s256 + $0x100] sm:$0xff]
              %291 = vst [vmem:[%s257 + $0x80] sm:$0xff] %v290
              %v292 = vld [vmem:[%s256 + $0x110] sm:$0xff]
              %293 = vst [vmem:[%s257 + $0x88] sm:$0xff] %v292
              %v294 = vld [vmem:[%s256 + $0x120] sm:$0xff]
              %295 = vst [vmem:[%s257 + $0x90] sm:$0xff] %v294
              %v296 = vld [vmem:[%s256 + $0x130] sm:$0xff]
              %297 = vst [vmem:[%s257 + $0x98] sm:$0xff] %v296
              %v298 = vld [vmem:[%s256 + $0x140] sm:$0xff]
              %299 = vst [vmem:[%s257 + $0xa0] sm:$0xff] %v298
              %v300 = vld [vmem:[%s256 + $0x150] sm:$0xff]
              %301 = vst [vmem:[%s257 + $0xa8] sm:$0xff] %v300
              %v302 = vld [vmem:[%s256 + $0x160] sm:$0xff]
              %303 = vst [vmem:[%s257 + $0xb0] sm:$0xff] %v302
              %v304 = vld [vmem:[%s256 + $0x170] sm:$0xff]
              %305 = vst [vmem:[%s257 + $0xb8] sm:$0xff] %v304
              %v306 = vld [vmem:[%s256 + $0x180] sm:$0xff]
              %307 = vst [vmem:[%s257 + $0xc0] sm:$0xff] %v306
              %v308 = vld [vmem:[%s256 + $0x190] sm:$0xff]
              %309 = vst [vmem:[%s257 + $0xc8] sm:$0xff] %v308
              %v310 = vld [vmem:[%s256 + $0x1a0] sm:$0xff]
              %311 = vst [vmem:[%s257 + $0xd0] sm:$0xff] %v310
              %v312 = vld [vmem:[%s256 + $0x1b0] sm:$0xff]
              %313 = vst [vmem:[%s257 + $0xd8] sm:$0xff] %v312
              %v314 = vld [vmem:[%s256 + $0x1c0] sm:$0xff]
              %315 = vst [vmem:[%s257 + $0xe0] sm:$0xff] %v314
              %v316 = vld [vmem:[%s256 + $0x1d0] sm:$0xff]
              %317 = vst [vmem:[%s257 + $0xe8] sm:$0xff] %v316
              %v318 = vld [vmem:[%s256 + $0x1e0] sm:$0xff]
              %319 = vst [vmem:[%s257 + $0xf0] sm:$0xff] %v318
              %v320 = vld [vmem:[%s256 + $0x1f0] sm:$0xff]
              %321 = vst [vmem:[%s257 + $0xf8] sm:$0xff] %v320
            $region71: #{omics1_encoder_forward.7} parent=65 // loop_footer
              %s255 = sadd.s32 1, %s251
            $region72: #{omics1_encoder_forward.7} parent=65 // loop_footer_branch
              %250 = sbr.rel target = $region68
            $region73: #{omics1_encoder_forward.7} parent=65 // loop_exit
              _
          $region66: #{omics1_encoder_forward.7} parent=50 // pred_fallthru
            _
          // Predicated region
          $region74: #{omics1_encoder_forward.7} parent=50 // pred_check
            _
          $region75: #{omics1_encoder_forward.7} parent=50 // pred_check_branch
            %323 = sbr.rel target = $region77
          $region76: #{omics1_encoder_forward.7} parent=50 // pred_region
            _
          $region77: #{omics1_encoder_forward.7} parent=50 // pred_fallthru
            _
        $region51: #{omics1_encoder_forward.7} parent=46 // pred_fallthru
          _
        // Predicated region
        $region52: #{omics1_encoder_forward.7} parent=46 // pred_check
          _
        $region53: #{omics1_encoder_forward.7} parent=46 // pred_check_branch
          %174 = sbr.rel target = $region55
        $region54: #{omics1_encoder_forward.7} parent=46 // pred_region
          loop: start=0, step=1, limit=1
          $region56: #{omics1_encoder_forward.7} parent=54 // loop_pre_header
            _
          $region57: #{omics1_encoder_forward.7} parent=54 // loop_header
            %s177 = sphi 0, %s181
            %p178 = scmp.ge.s32.totalorder %s177, 1
            %s182 = sphi %s168, %s168
            %s183 = sphi [#allocation3], [#allocation3]
          $region58: #{omics1_encoder_forward.7} parent=54 // loop_header_branch
            %180 = sbr.rel (%p178) target = $region62
          $region59: #{omics1_encoder_forward.7} parent=54 // loop_body
            %v184 = vld [vmem:[%s182] sm:$0xff]
            %185 = vst [vmem:[%s183] sm:$0xff] %v184
            %v186 = vld [vmem:[%s182 + $0x10] sm:$0xff]
            %187 = vst [vmem:[%s183 + $0x8] sm:$0xff] %v186
            %v188 = vld [vmem:[%s182 + $0x20] sm:$0xff]
            %189 = vst [vmem:[%s183 + $0x10] sm:$0xff] %v188
            %v190 = vld [vmem:[%s182 + $0x30] sm:$0xff]
            %191 = vst [vmem:[%s183 + $0x18] sm:$0xff] %v190
            %v192 = vld [vmem:[%s182 + $0x40] sm:$0xff]
            %193 = vst [vmem:[%s183 + $0x20] sm:$0xff] %v192
            %v194 = vld [vmem:[%s182 + $0x50] sm:$0xff]
            %195 = vst [vmem:[%s183 + $0x28] sm:$0xff] %v194
            %v196 = vld [vmem:[%s182 + $0x60] sm:$0xff]
            %197 = vst [vmem:[%s183 + $0x30] sm:$0xff] %v196
            %v198 = vld [vmem:[%s182 + $0x70] sm:$0xff]
            %199 = vst [vmem:[%s183 + $0x38] sm:$0xff] %v198
            %v200 = vld [vmem:[%s182 + $0x80] sm:$0xff]
            %201 = vst [vmem:[%s183 + $0x40] sm:$0xff] %v200
            %v202 = vld [vmem:[%s182 + $0x90] sm:$0xff]
            %203 = vst [vmem:[%s183 + $0x48] sm:$0xff] %v202
            %v204 = vld [vmem:[%s182 + $0xa0] sm:$0xff]
            %205 = vst [vmem:[%s183 + $0x50] sm:$0xff] %v204
            %v206 = vld [vmem:[%s182 + $0xb0] sm:$0xff]
            %207 = vst [vmem:[%s183 + $0x58] sm:$0xff] %v206
            %v208 = vld [vmem:[%s182 + $0xc0] sm:$0xff]
            %209 = vst [vmem:[%s183 + $0x60] sm:$0xff] %v208
            %v210 = vld [vmem:[%s182 + $0xd0] sm:$0xff]
            %211 = vst [vmem:[%s183 + $0x68] sm:$0xff] %v210
            %v212 = vld [vmem:[%s182 + $0xe0] sm:$0xff]
            %213 = vst [vmem:[%s183 + $0x70] sm:$0xff] %v212
            %v214 = vld [vmem:[%s182 + $0xf0] sm:$0xff]
            %215 = vst [vmem:[%s183 + $0x78] sm:$0xff] %v214
            %v216 = vld [vmem:[%s182 + $0x100] sm:$0xff]
            %217 = vst [vmem:[%s183 + $0x80] sm:$0xff] %v216
            %v218 = vld [vmem:[%s182 + $0x110] sm:$0xff]
            %219 = vst [vmem:[%s183 + $0x88] sm:$0xff] %v218
            %v220 = vld [vmem:[%s182 + $0x120] sm:$0xff]
            %221 = vst [vmem:[%s183 + $0x90] sm:$0xff] %v220
            %v222 = vld [vmem:[%s182 + $0x130] sm:$0xff]
            %223 = vst [vmem:[%s183 + $0x98] sm:$0xff] %v222
            %v224 = vld [vmem:[%s182 + $0x140] sm:$0xff]
            %225 = vst [vmem:[%s183 + $0xa0] sm:$0xff] %v224
            %v226 = vld [vmem:[%s182 + $0x150] sm:$0xff]
            %227 = vst [vmem:[%s183 + $0xa8] sm:$0xff] %v226
            %v228 = vld [vmem:[%s182 + $0x160] sm:$0xff]
            %229 = vst [vmem:[%s183 + $0xb0] sm:$0xff] %v228
            %v230 = vld [vmem:[%s182 + $0x170] sm:$0xff]
            %231 = vst [vmem:[%s183 + $0xb8] sm:$0xff] %v230
            %v232 = vld [vmem:[%s182 + $0x180] sm:$0xff]
            %233 = vst [vmem:[%s183 + $0xc0] sm:$0xff] %v232
            %v234 = vld [vmem:[%s182 + $0x190] sm:$0xff]
            %235 = vst [vmem:[%s183 + $0xc8] sm:$0xff] %v234
            %v236 = vld [vmem:[%s182 + $0x1a0] sm:$0xff]
            %237 = vst [vmem:[%s183 + $0xd0] sm:$0xff] %v236
            %v238 = vld [vmem:[%s182 + $0x1b0] sm:$0xff]
            %239 = vst [vmem:[%s183 + $0xd8] sm:$0xff] %v238
            %v240 = vld [vmem:[%s182 + $0x1c0] sm:$0xff]
            %241 = vst [vmem:[%s183 + $0xe0] sm:$0xff] %v240
            %v242 = vld [vmem:[%s182 + $0x1d0] sm:$0xff]
            %243 = vst [vmem:[%s183 + $0xe8] sm:$0xff] %v242
            %v244 = vld [vmem:[%s182 + $0x1e0] sm:$0xff]
            %245 = vst [vmem:[%s183 + $0xf0] sm:$0xff] %v244
            %v246 = vld [vmem:[%s182 + $0x1f0] sm:$0xff]
            %247 = vst [vmem:[%s183 + $0xf8] sm:$0xff] %v246
          $region60: #{omics1_encoder_forward.7} parent=54 // loop_footer
            %s181 = sadd.s32 1, %s177
          $region61: #{omics1_encoder_forward.7} parent=54 // loop_footer_branch
            %176 = sbr.rel target = $region57
          $region62: #{omics1_encoder_forward.7} parent=54 // loop_exit
            _
        $region55: #{omics1_encoder_forward.7} parent=46 // pred_fallthru
          _
      $region47: #{omics1_encoder_forward.7} parent=42 // pred_fallthru
        _
      %324 = vnop
    $region43: #{omics1_encoder_forward.7} parent=1 // pred_fallthru
      _
    // Predicated region
    $region78: #{omics1_encoder_forward.7} parent=1 // pred_check
      _
    $region79: #{omics1_encoder_forward.7} parent=1 // pred_check_branch
      %326 = sbr.rel (0) target = $region81
    $region80: #{omics1_encoder_forward.7} parent=1 // pred_region
      _
    $region81: #{omics1_encoder_forward.7} parent=1 // pred_fallthru
      _
    // Predicated region
    $region82: #{omics1_encoder_forward.7} parent=1 // pred_check
      _
    $region83: #{omics1_encoder_forward.7} parent=1 // pred_check_branch
      %328 = sbr.rel (0) target = $region85
    $region84: #{omics1_encoder_forward.7} parent=1 // pred_region
      _
    $region85: #{omics1_encoder_forward.7} parent=1 // pred_fallthru
      _
    // Predicated region
    $region86: #{omics1_encoder_forward.7} parent=1 // pred_check
      _
    $region87: #{omics1_encoder_forward.7} parent=1 // pred_check_branch
      %330 = sbr.rel (0) target = $region89
    $region88: #{omics1_encoder_forward.7} parent=1 // pred_region
      _
    $region89: #{omics1_encoder_forward.7} parent=1 // pred_fallthru
      _
    %v332 = vld [vmem:[%s2] sm:$0xf]
    %v333 = vld [vmem:[%s2 + $0x4] sm:$0xf]
    %v334 = vld [vmem:[%s2 + $0x8] sm:$0xf]
    %v335 = vld [vmem:[%s2 + $0xc] sm:$0xf]
    %v336 = vld [vmem:[%s2 + $0x10] sm:$0xf]
    %v337 = vld [vmem:[%s2 + $0x14] sm:$0xf]
    %v338 = vld [vmem:[%s2 + $0x18] sm:$0xf]
    %v339 = vld [vmem:[%s2 + $0x1c] sm:$0xf]
    %v340 = vld [vmem:[%s2 + $0x20] sm:$0xf]
    %v341 = vld [vmem:[%s2 + $0x24] sm:$0xf]
    %v342 = vld [vmem:[%s2 + $0x28] sm:$0xf]
    %v343 = vld [vmem:[%s2 + $0x2c] sm:$0xf]
    %v344 = vld [vmem:[%s2 + $0x30] sm:$0xf]
    %v345 = vld [vmem:[%s2 + $0x34] sm:$0xf]
    %v346 = vld [vmem:[%s2 + $0x38] sm:$0xf]
    %v347 = vld [vmem:[%s2 + $0x3c] sm:$0xf]
    %v348 = vld [vmem:[%s2 + $0x40] sm:$0xf]
    %v349 = vld [vmem:[%s2 + $0x44] sm:$0xf]
    %v350 = vld [vmem:[%s2 + $0x48] sm:$0xf]
    %v351 = vld [vmem:[%s2 + $0x4c] sm:$0xf]
    %v352 = vld [vmem:[%s2 + $0x50] sm:$0xf]
    %v353 = vld [vmem:[%s2 + $0x54] sm:$0xf]
    %v354 = vld [vmem:[%s2 + $0x58] sm:$0xf]
    %v355 = vld [vmem:[%s2 + $0x5c] sm:$0xf]
    %v356 = vld [vmem:[%s2 + $0x60] sm:$0xf]
    %v357 = vld [vmem:[%s2 + $0x64] sm:$0xf]
    %v358 = vld [vmem:[%s2 + $0x68] sm:$0xf]
    %v359 = vld [vmem:[%s2 + $0x6c] sm:$0xf]
    %v360 = vld [vmem:[%s2 + $0x70] sm:$0xf]
    %v361 = vld [vmem:[%s2 + $0x74] sm:$0xf]
    %v362 = vld [vmem:[%s2 + $0x78] sm:$0xf]
    %v363 = vld [vmem:[%s2 + $0x7c] sm:$0xf]
    %v364 = vld [vmem:[#allocation2] sm:$0xff]
    %v365 = vld [vmem:[#allocation2 + $0x8] sm:$0xff]
    %v366 = vld [vmem:[#allocation2 + $0x10] sm:$0xff]
    %v367 = vld [vmem:[#allocation2 + $0x18] sm:$0xff]
    %v368 = vld [vmem:[#allocation2 + $0x20] sm:$0xff]
    %v369 = vld [vmem:[#allocation2 + $0x28] sm:$0xff]
    %v370 = vld [vmem:[#allocation2 + $0x30] sm:$0xff]
    %v371 = vld [vmem:[#allocation2 + $0x38] sm:$0xff]
    %v372 = vld [vmem:[#allocation2 + $0x40] sm:$0xff]
    %v373 = vld [vmem:[#allocation2 + $0x48] sm:$0xff]
    %v374 = vld [vmem:[#allocation2 + $0x50] sm:$0xff]
    %v375 = vld [vmem:[#allocation2 + $0x58] sm:$0xff]
    %v376 = vld [vmem:[#allocation2 + $0x60] sm:$0xff]
    %v377 = vld [vmem:[#allocation2 + $0x68] sm:$0xff]
    %v378 = vld [vmem:[#allocation2 + $0x70] sm:$0xff]
    %v379 = vld [vmem:[#allocation2 + $0x78] sm:$0xff]
    %v380 = vld [vmem:[#allocation2 + $0x80] sm:$0xff]
    %v381 = vld [vmem:[#allocation2 + $0x88] sm:$0xff]
    %v382 = vld [vmem:[#allocation2 + $0x90] sm:$0xff]
    %v383 = vld [vmem:[#allocation2 + $0x98] sm:$0xff]
    %v384 = vld [vmem:[#allocation2 + $0xa0] sm:$0xff]
    %v385 = vld [vmem:[#allocation2 + $0xa8] sm:$0xff]
    %v386 = vld [vmem:[#allocation2 + $0xb0] sm:$0xff]
    %v387 = vld [vmem:[#allocation2 + $0xb8] sm:$0xff]
    %v388 = vld [vmem:[#allocation2 + $0xc0] sm:$0xff]
    %v389 = vld [vmem:[#allocation2 + $0xc8] sm:$0xff]
    %v390 = vld [vmem:[#allocation2 + $0xd0] sm:$0xff]
    %v391 = vld [vmem:[#allocation2 + $0xd8] sm:$0xff]
    %v392 = vld [vmem:[#allocation2 + $0xe0] sm:$0xff]
    %v393 = vld [vmem:[#allocation2 + $0xe8] sm:$0xff]
    %v394 = vld [vmem:[#allocation2 + $0xf0] sm:$0xff]
    %v395 = vld [vmem:[#allocation2 + $0xf8] sm:$0xff]
    %v428 = vunpack.c.l.b16 %v364
    %v429 = vunpack.c.h.b16 %v364
    %v430 = vunpack.c.l.b16 %v365
    %v431 = vunpack.c.h.b16 %v365
    %v432 = vunpack.c.l.b16 %v366
    %v433 = vunpack.c.h.b16 %v366
    %v434 = vunpack.c.l.b16 %v367
    %v435 = vunpack.c.h.b16 %v367
    %v436 = vunpack.c.l.b16 %v368
    %v437 = vunpack.c.h.b16 %v368
    %v438 = vunpack.c.l.b16 %v369
    %v439 = vunpack.c.h.b16 %v369
    %v440 = vunpack.c.l.b16 %v370
    %v441 = vunpack.c.h.b16 %v370
    %v442 = vunpack.c.l.b16 %v371
    %v443 = vunpack.c.h.b16 %v371
    %v444 = vunpack.c.l.b16 %v372
    %v445 = vunpack.c.h.b16 %v372
    %v446 = vunpack.c.l.b16 %v373
    %v447 = vunpack.c.h.b16 %v373
    %v448 = vunpack.c.l.b16 %v374
    %v449 = vunpack.c.h.b16 %v374
    %v450 = vunpack.c.l.b16 %v375
    %v451 = vunpack.c.h.b16 %v375
    %v452 = vunpack.c.l.b16 %v376
    %v453 = vunpack.c.h.b16 %v376
    %v454 = vunpack.c.l.b16 %v377
    %v455 = vunpack.c.h.b16 %v377
    %v456 = vunpack.c.l.b16 %v378
    %v457 = vunpack.c.h.b16 %v378
    %v458 = vunpack.c.l.b16 %v379
    %v459 = vunpack.c.h.b16 %v379
    %v460 = vunpack.c.l.b16 %v380
    %v461 = vunpack.c.h.b16 %v380
    %v462 = vunpack.c.l.b16 %v381
    %v463 = vunpack.c.h.b16 %v381
    %v464 = vunpack.c.l.b16 %v382
    %v465 = vunpack.c.h.b16 %v382
    %v466 = vunpack.c.l.b16 %v383
    %v467 = vunpack.c.h.b16 %v383
    %v468 = vunpack.c.l.b16 %v384
    %v469 = vunpack.c.h.b16 %v384
    %v470 = vunpack.c.l.b16 %v385
    %v471 = vunpack.c.h.b16 %v385
    %v472 = vunpack.c.l.b16 %v386
    %v473 = vunpack.c.h.b16 %v386
    %v474 = vunpack.c.l.b16 %v387
    %v475 = vunpack.c.h.b16 %v387
    %v476 = vunpack.c.l.b16 %v388
    %v477 = vunpack.c.h.b16 %v388
    %v478 = vunpack.c.l.b16 %v389
    %v479 = vunpack.c.h.b16 %v389
    %v480 = vunpack.c.l.b16 %v390
    %v481 = vunpack.c.h.b16 %v390
    %v482 = vunpack.c.l.b16 %v391
    %v483 = vunpack.c.h.b16 %v391
    %v484 = vunpack.c.l.b16 %v392
    %v485 = vunpack.c.h.b16 %v392
    %v486 = vunpack.c.l.b16 %v393
    %v487 = vunpack.c.h.b16 %v393
    %v488 = vunpack.c.l.b16 %v394
    %v489 = vunpack.c.h.b16 %v394
    %v490 = vunpack.c.l.b16 %v395
    %v491 = vunpack.c.h.b16 %v395
    %v492 = vpack.c.b16 %v430, %v428
    %v493 = vpack.c.b16 %v431, %v429
    %v494 = vpack.c.b16 %v434, %v432
    %v495 = vpack.c.b16 %v435, %v433
    %v496 = vpack.c.b16 %v438, %v436
    %v497 = vpack.c.b16 %v439, %v437
    %v498 = vpack.c.b16 %v442, %v440
    %v499 = vpack.c.b16 %v443, %v441
    %v500 = vpack.c.b16 %v446, %v444
    %v501 = vpack.c.b16 %v447, %v445
    %v502 = vpack.c.b16 %v450, %v448
    %v503 = vpack.c.b16 %v451, %v449
    %v504 = vpack.c.b16 %v454, %v452
    %v505 = vpack.c.b16 %v455, %v453
    %v506 = vpack.c.b16 %v458, %v456
    %v507 = vpack.c.b16 %v459, %v457
    %v508 = vpack.c.b16 %v462, %v460
    %v509 = vpack.c.b16 %v463, %v461
    %v510 = vpack.c.b16 %v466, %v464
    %v511 = vpack.c.b16 %v467, %v465
    %v512 = vpack.c.b16 %v470, %v468
    %v513 = vpack.c.b16 %v471, %v469
    %v514 = vpack.c.b16 %v474, %v472
    %v515 = vpack.c.b16 %v475, %v473
    %v516 = vpack.c.b16 %v478, %v476
    %v517 = vpack.c.b16 %v479, %v477
    %v518 = vpack.c.b16 %v482, %v480
    %v519 = vpack.c.b16 %v483, %v481
    %v520 = vpack.c.b16 %v486, %v484
    %v521 = vpack.c.b16 %v487, %v485
    %v522 = vpack.c.b16 %v490, %v488
    %v523 = vpack.c.b16 %v491, %v489
    %v588 = vunpack.c.l.b16 %v332
    %v589 = vunpack.c.l.b16 %v333
    %v590 = vunpack.c.l.b16 %v334
    %v591 = vunpack.c.l.b16 %v335
    %v592 = vunpack.c.l.b16 %v336
    %v593 = vunpack.c.l.b16 %v337
    %v594 = vunpack.c.l.b16 %v338
    %v595 = vunpack.c.l.b16 %v339
    %v596 = vunpack.c.l.b16 %v340
    %v597 = vunpack.c.l.b16 %v341
    %v598 = vunpack.c.l.b16 %v342
    %v599 = vunpack.c.l.b16 %v343
    %v600 = vunpack.c.l.b16 %v344
    %v601 = vunpack.c.l.b16 %v345
    %v602 = vunpack.c.l.b16 %v346
    %v603 = vunpack.c.l.b16 %v347
    %v604 = vunpack.c.l.b16 %v348
    %v605 = vunpack.c.l.b16 %v349
    %v606 = vunpack.c.l.b16 %v350
    %v607 = vunpack.c.l.b16 %v351
    %v608 = vunpack.c.l.b16 %v352
    %v609 = vunpack.c.l.b16 %v353
    %v610 = vunpack.c.l.b16 %v354
    %v611 = vunpack.c.l.b16 %v355
    %v612 = vunpack.c.l.b16 %v356
    %v613 = vunpack.c.l.b16 %v357
    %v614 = vunpack.c.l.b16 %v358
    %v615 = vunpack.c.l.b16 %v359
    %v616 = vunpack.c.l.b16 %v360
    %v617 = vunpack.c.l.b16 %v361
    %v618 = vunpack.c.l.b16 %v362
    %v619 = vunpack.c.l.b16 %v363
    %v620 = vpack.c.b16 %v589, %v588
    %v621 = vpack.c.b16 %v591, %v590
    %v622 = vpack.c.b16 %v593, %v592
    %v623 = vpack.c.b16 %v595, %v594
    %v624 = vpack.c.b16 %v597, %v596
    %v625 = vpack.c.b16 %v599, %v598
    %v626 = vpack.c.b16 %v601, %v600
    %v627 = vpack.c.b16 %v603, %v602
    %v628 = vpack.c.b16 %v605, %v604
    %v629 = vpack.c.b16 %v607, %v606
    %v630 = vpack.c.b16 %v609, %v608
    %v631 = vpack.c.b16 %v611, %v610
    %v632 = vpack.c.b16 %v613, %v612
    %v633 = vpack.c.b16 %v615, %v614
    %v634 = vpack.c.b16 %v617, %v616
    %v635 = vpack.c.b16 %v619, %v618
    %652 = vmatprep.subr.bf16.mxu0 0
    %653 = vmatpush1.bf16.msra.mxu0 %v620
    %654 = vmatprep.subr.bf16.mxu0 0
    %655 = vmatpush1.bf16.msra.mxu0 %v621
    %656 = vmatprep.subr.bf16.mxu0 0
    %657 = vmatpush1.bf16.msra.mxu0 %v622
    %658 = vmatprep.subr.bf16.mxu0 0
    %659 = vmatpush1.bf16.msra.mxu0 %v623
    %660 = vmatprep.subr.bf16.mxu0 0
    %661 = vmatpush1.bf16.msra.mxu0 %v624
    %662 = vmatprep.subr.bf16.mxu0 0
    %663 = vmatpush1.bf16.msra.mxu0 %v625
    %664 = vmatprep.subr.bf16.mxu0 0
    %665 = vmatpush1.bf16.msra.mxu0 %v626
    %666 = vmatprep.subr.bf16.mxu0 0
    %667 = vmatpush1.bf16.msra.mxu0 %v627
    %668 = vmatprep.subr.bf16.mxu0 0
    %669 = vmatpush1.bf16.msra.mxu0 %v628
    %670 = vmatprep.subr.bf16.mxu0 0
    %671 = vmatpush1.bf16.msra.mxu0 %v629
    %672 = vmatprep.subr.bf16.mxu0 0
    %673 = vmatpush1.bf16.msra.mxu0 %v630
    %674 = vmatprep.subr.bf16.mxu0 0
    %675 = vmatpush1.bf16.msra.mxu0 %v631
    %676 = vmatprep.subr.bf16.mxu0 0
    %677 = vmatpush1.bf16.msra.mxu0 %v632
    %678 = vmatprep.subr.bf16.mxu0 0
    %679 = vmatpush1.bf16.msra.mxu0 %v633
    %680 = vmatprep.subr.bf16.mxu0 0
    %681 = vmatpush1.bf16.msra.mxu0 %v634
    %682 = vmatprep.subr.bf16.mxu0 0
    %683 = vmatpush1.bf16.msra.mxu0 %v635
    %684 = vmatprep.mubr.bf16.mxu0 %v493
    %685 = vmatmul.mubr.bf16.gmra.mrb[0].mxu0 %v492
    %v686 = vpop.f32.mrb[0].mxu0
    %v687 = vadd.f32 0.0, %v686
    %v688 = vpop.f32.mrb[0].mxu0
    %v689 = vpop.f32.mrb[0].mxu0
    %v690 = vadd.f32 0.0, %v689
    %v691 = vpop.f32.mrb[0].mxu0
    %692 = vmatprep.mubr.bf16.mxu0 %v495
    %693 = vmatmul.mubr.bf16.gmra.mrb[0].mxu0 %v494
    %v694 = vpop.f32.mrb[0].mxu0
    %v695 = vadd.f32 0.0, %v694
    %v696 = vpop.f32.mrb[0].mxu0
    %v697 = vpop.f32.mrb[0].mxu0
    %v698 = vadd.f32 0.0, %v697
    %v699 = vpop.f32.mrb[0].mxu0
    %700 = vmatprep.mubr.bf16.mxu0 %v497
    %701 = vmatmul.mubr.bf16.gmra.mrb[0].mxu0 %v496
    %v702 = vpop.f32.mrb[0].mxu0
    %v703 = vadd.f32 0.0, %v702
    %v704 = vpop.f32.mrb[0].mxu0
    %v705 = vpop.f32.mrb[0].mxu0
    %v706 = vadd.f32 0.0, %v705
    %v707 = vpop.f32.mrb[0].mxu0
    %708 = vmatprep.mubr.bf16.mxu0 %v499
    %709 = vmatmul.mubr.bf16.gmra.mrb[0].mxu0 %v498
    %v710 = vpop.f32.mrb[0].mxu0
    %v711 = vadd.f32 0.0, %v710
    %v712 = vpop.f32.mrb[0].mxu0
    %v713 = vpop.f32.mrb[0].mxu0
    %v714 = vadd.f32 0.0, %v713
    %v715 = vpop.f32.mrb[0].mxu0
    %716 = vmatprep.mubr.bf16.mxu0 %v501
    %717 = vmatmul.mubr.bf16.gmra.mrb[0].mxu0 %v500
    %v718 = vpop.f32.mrb[0].mxu0
    %v719 = vadd.f32 0.0, %v718
    %v720 = vpop.f32.mrb[0].mxu0
    %v721 = vpop.f32.mrb[0].mxu0
    %v722 = vadd.f32 0.0, %v721
    %v723 = vpop.f32.mrb[0].mxu0
    %724 = vmatprep.mubr.bf16.mxu0 %v503
    %725 = vmatmul.mubr.bf16.gmra.mrb[0].mxu0 %v502
    %v726 = vpop.f32.mrb[0].mxu0
    %v727 = vadd.f32 0.0, %v726
    %v728 = vpop.f32.mrb[0].mxu0
    %v729 = vpop.f32.mrb[0].mxu0
    %v730 = vadd.f32 0.0, %v729
    %v731 = vpop.f32.mrb[0].mxu0
    %732 = vmatprep.mubr.bf16.mxu0 %v505
    %733 = vmatmul.mubr.bf16.gmra.mrb[0].mxu0 %v504
    %v734 = vpop.f32.mrb[0].mxu0
    %v735 = vadd.f32 0.0, %v734
    %v736 = vpop.f32.mrb[0].mxu0
    %v737 = vpop.f32.mrb[0].mxu0
    %v738 = vadd.f32 0.0, %v737
    %v739 = vpop.f32.mrb[0].mxu0
    %740 = vmatprep.mubr.bf16.mxu0 %v507
    %741 = vmatmul.mubr.bf16.gmra.mrb[0].mxu0 %v506
    %v742 = vpop.f32.mrb[0].mxu0
    %v743 = vadd.f32 0.0, %v742
    %v744 = vpop.f32.mrb[0].mxu0
    %v745 = vpop.f32.mrb[0].mxu0
    %v746 = vadd.f32 0.0, %v745
    %v747 = vpop.f32.mrb[0].mxu0
    %748 = vmatprep.mubr.bf16.mxu0 %v509
    %749 = vmatmul.mubr.bf16.gmra.mrb[0].mxu0 %v508
    %v750 = vpop.f32.mrb[0].mxu0
    %v751 = vadd.f32 0.0, %v750
    %v752 = vpop.f32.mrb[0].mxu0
    %v753 = vpop.f32.mrb[0].mxu0
    %v754 = vadd.f32 0.0, %v753
    %v755 = vpop.f32.mrb[0].mxu0
    %756 = vmatprep.mubr.bf16.mxu0 %v511
    %757 = vmatmul.mubr.bf16.gmra.mrb[0].mxu0 %v510
    %v758 = vpop.f32.mrb[0].mxu0
    %v759 = vadd.f32 0.0, %v758
    %v760 = vpop.f32.mrb[0].mxu0
    %v761 = vpop.f32.mrb[0].mxu0
    %v762 = vadd.f32 0.0, %v761
    %v763 = vpop.f32.mrb[0].mxu0
    %764 = vmatprep.mubr.bf16.mxu0 %v513
    %765 = vmatmul.mubr.bf16.gmra.mrb[0].mxu0 %v512
    %v766 = vpop.f32.mrb[0].mxu0
    %v767 = vadd.f32 0.0, %v766
    %v768 = vpop.f32.mrb[0].mxu0
    %v769 = vpop.f32.mrb[0].mxu0
    %v770 = vadd.f32 0.0, %v769
    %v771 = vpop.f32.mrb[0].mxu0
    %772 = vmatprep.mubr.bf16.mxu0 %v515
    %773 = vmatmul.mubr.bf16.gmra.mrb[0].mxu0 %v514
    %v774 = vpop.f32.mrb[0].mxu0
    %v775 = vadd.f32 0.0, %v774
    %v776 = vpop.f32.mrb[0].mxu0
    %v777 = vpop.f32.mrb[0].mxu0
    %v778 = vadd.f32 0.0, %v777
    %v779 = vpop.f32.mrb[0].mxu0
    %780 = vmatprep.mubr.bf16.mxu0 %v517
    %781 = vmatmul.mubr.bf16.gmra.mrb[0].mxu0 %v516
    %v782 = vpop.f32.mrb[0].mxu0
    %v783 = vadd.f32 0.0, %v782
    %v784 = vpop.f32.mrb[0].mxu0
    %v785 = vpop.f32.mrb[0].mxu0
    %v786 = vadd.f32 0.0, %v785
    %v787 = vpop.f32.mrb[0].mxu0
    %788 = vmatprep.mubr.bf16.mxu0 %v519
    %789 = vmatmul.mubr.bf16.gmra.mrb[0].mxu0 %v518
    %v790 = vpop.f32.mrb[0].mxu0
    %v791 = vadd.f32 0.0, %v790
    %v792 = vpop.f32.mrb[0].mxu0
    %v793 = vpop.f32.mrb[0].mxu0
    %v794 = vadd.f32 0.0, %v793
    %v795 = vpop.f32.mrb[0].mxu0
    %796 = vmatprep.mubr.bf16.mxu0 %v521
    %797 = vmatmul.mubr.bf16.gmra.mrb[0].mxu0 %v520
    %v798 = vpop.f32.mrb[0].mxu0
    %v799 = vadd.f32 0.0, %v798
    %v800 = vpop.f32.mrb[0].mxu0
    %v801 = vpop.f32.mrb[0].mxu0
    %v802 = vadd.f32 0.0, %v801
    %v803 = vpop.f32.mrb[0].mxu0
    %804 = vmatprep.mubr.bf16.mxu0 %v523
    %805 = vmatmul.mubr.bf16.gmra.mrb[0].mxu0 %v522
    %v806 = vpop.f32.mrb[0].mxu0
    %v807 = vadd.f32 0.0, %v806
    %v808 = vpop.f32.mrb[0].mxu0
    %v809 = vpop.f32.mrb[0].mxu0
    %v810 = vadd.f32 0.0, %v809
    %v811 = vpop.f32.mrb[0].mxu0
    %812 = vdwg.mxu0
    %v813 = vpack.c.bf16 %v690, %v687
    %v814 = vpack.c.bf16 %v698, %v695
    %v815 = vpack.c.bf16 %v706, %v703
    %v816 = vpack.c.bf16 %v714, %v711
    %v817 = vpack.c.bf16 %v722, %v719
    %v818 = vpack.c.bf16 %v730, %v727
    %v819 = vpack.c.bf16 %v738, %v735
    %v820 = vpack.c.bf16 %v746, %v743
    %v821 = vpack.c.bf16 %v754, %v751
    %v822 = vpack.c.bf16 %v762, %v759
    %v823 = vpack.c.bf16 %v770, %v767
    %v824 = vpack.c.bf16 %v778, %v775
    %v825 = vpack.c.bf16 %v786, %v783
    %v826 = vpack.c.bf16 %v794, %v791
    %v827 = vpack.c.bf16 %v802, %v799
    %v828 = vpack.c.bf16 %v810, %v807
    %v845 = vunpack.c.l.b16 %v813
    %v846 = vunpack.c.h.b16 %v813
    %v847 = vunpack.c.l.b16 %v814
    %v848 = vunpack.c.h.b16 %v814
    %v849 = vunpack.c.l.b16 %v815
    %v850 = vunpack.c.h.b16 %v815
    %v851 = vunpack.c.l.b16 %v816
    %v852 = vunpack.c.h.b16 %v816
    %v853 = vunpack.c.l.b16 %v817
    %v854 = vunpack.c.h.b16 %v817
    %v855 = vunpack.c.l.b16 %v818
    %v856 = vunpack.c.h.b16 %v818
    %v857 = vunpack.c.l.b16 %v819
    %v858 = vunpack.c.h.b16 %v819
    %v859 = vunpack.c.l.b16 %v820
    %v860 = vunpack.c.h.b16 %v820
    %v861 = vunpack.c.l.b16 %v821
    %v862 = vunpack.c.h.b16 %v821
    %v863 = vunpack.c.l.b16 %v822
    %v864 = vunpack.c.h.b16 %v822
    %v865 = vunpack.c.l.b16 %v823
    %v866 = vunpack.c.h.b16 %v823
    %v867 = vunpack.c.l.b16 %v824
    %v868 = vunpack.c.h.b16 %v824
    %v869 = vunpack.c.l.b16 %v825
    %v870 = vunpack.c.h.b16 %v825
    %v871 = vunpack.c.l.b16 %v826
    %v872 = vunpack.c.h.b16 %v826
    %v873 = vunpack.c.l.b16 %v827
    %v874 = vunpack.c.h.b16 %v827
    %v875 = vunpack.c.l.b16 %v828
    %v876 = vunpack.c.h.b16 %v828
    %v877 = vpack.c.b16 %v845, %v845
    %v878 = vpack.c.b16 %v846, %v846
    %v879 = vpack.c.b16 %v847, %v847
    %v880 = vpack.c.b16 %v848, %v848
    %v881 = vpack.c.b16 %v849, %v849
    %v882 = vpack.c.b16 %v850, %v850
    %v883 = vpack.c.b16 %v851, %v851
    %v884 = vpack.c.b16 %v852, %v852
    %v885 = vpack.c.b16 %v853, %v853
    %v886 = vpack.c.b16 %v854, %v854
    %v887 = vpack.c.b16 %v855, %v855
    %v888 = vpack.c.b16 %v856, %v856
    %v889 = vpack.c.b16 %v857, %v857
    %v890 = vpack.c.b16 %v858, %v858
    %v891 = vpack.c.b16 %v859, %v859
    %v892 = vpack.c.b16 %v860, %v860
    %v893 = vpack.c.b16 %v861, %v861
    %v894 = vpack.c.b16 %v862, %v862
    %v895 = vpack.c.b16 %v863, %v863
    %v896 = vpack.c.b16 %v864, %v864
    %v897 = vpack.c.b16 %v865, %v865
    %v898 = vpack.c.b16 %v866, %v866
    %v899 = vpack.c.b16 %v867, %v867
    %v900 = vpack.c.b16 %v868, %v868
    %v901 = vpack.c.b16 %v869, %v869
    %v902 = vpack.c.b16 %v870, %v870
    %v903 = vpack.c.b16 %v871, %v871
    %v904 = vpack.c.b16 %v872, %v872
    %v905 = vpack.c.b16 %v873, %v873
    %v906 = vpack.c.b16 %v874, %v874
    %v907 = vpack.c.b16 %v875, %v875
    %v908 = vpack.c.b16 %v876, %v876
    %941 = vst [vmem:[%s3] sm:$0xf] %v877
    %942 = vst [vmem:[%s3 + $0x8] sm:$0xf] %v878
    %943 = vst [vmem:[%s3 + $0x10] sm:$0xf] %v879
    %944 = vst [vmem:[%s3 + $0x18] sm:$0xf] %v880
    %945 = vst [vmem:[%s3 + $0x20] sm:$0xf] %v881
    %946 = vst [vmem:[%s3 + $0x28] sm:$0xf] %v882
    %947 = vst [vmem:[%s3 + $0x30] sm:$0xf] %v883
    %948 = vst [vmem:[%s3 + $0x38] sm:$0xf] %v884
    %949 = vst [vmem:[%s3 + $0x40] sm:$0xf] %v885
    %950 = vst [vmem:[%s3 + $0x48] sm:$0xf] %v886
    %951 = vst [vmem:[%s3 + $0x50] sm:$0xf] %v887
    %952 = vst [vmem:[%s3 + $0x58] sm:$0xf] %v888
    %953 = vst [vmem:[%s3 + $0x60] sm:$0xf] %v889
    %954 = vst [vmem:[%s3 + $0x68] sm:$0xf] %v890
    %955 = vst [vmem:[%s3 + $0x70] sm:$0xf] %v891
    %956 = vst [vmem:[%s3 + $0x78] sm:$0xf] %v892
    %957 = vst [vmem:[%s3 + $0x80] sm:$0xf] %v893
    %958 = vst [vmem:[%s3 + $0x88] sm:$0xf] %v894
    %959 = vst [vmem:[%s3 + $0x90] sm:$0xf] %v895
    %960 = vst [vmem:[%s3 + $0x98] sm:$0xf] %v896
    %961 = vst [vmem:[%s3 + $0xa0] sm:$0xf] %v897
    %962 = vst [vmem:[%s3 + $0xa8] sm:$0xf] %v898
    %963 = vst [vmem:[%s3 + $0xb0] sm:$0xf] %v899
    %964 = vst [vmem:[%s3 + $0xb8] sm:$0xf] %v900
    %965 = vst [vmem:[%s3 + $0xc0] sm:$0xf] %v901
    %966 = vst [vmem:[%s3 + $0xc8] sm:$0xf] %v902
    %967 = vst [vmem:[%s3 + $0xd0] sm:$0xf] %v903
    %968 = vst [vmem:[%s3 + $0xd8] sm:$0xf] %v904
    %969 = vst [vmem:[%s3 + $0xe0] sm:$0xf] %v905
    %970 = vst [vmem:[%s3 + $0xe8] sm:$0xf] %v906
    %971 = vst [vmem:[%s3 + $0xf0] sm:$0xf] %v907
    %972 = vst [vmem:[%s3 + $0xf8] sm:$0xf] %v908
    %v973 = vld [vmem:[#allocation3] sm:$0xff]
    %v974 = vld [vmem:[#allocation3 + $0x8] sm:$0xff]
    %v975 = vld [vmem:[#allocation3 + $0x10] sm:$0xff]
    %v976 = vld [vmem:[#allocation3 + $0x18] sm:$0xff]
    %v977 = vld [vmem:[#allocation3 + $0x20] sm:$0xff]
    %v978 = vld [vmem:[#allocation3 + $0x28] sm:$0xff]
    %v979 = vld [vmem:[#allocation3 + $0x30] sm:$0xff]
    %v980 = vld [vmem:[#allocation3 + $0x38] sm:$0xff]
    %v981 = vld [vmem:[#allocation3 + $0x40] sm:$0xff]
    %v982 = vld [vmem:[#allocation3 + $0x48] sm:$0xff]
    %v983 = vld [vmem:[#allocation3 + $0x50] sm:$0xff]
    %v984 = vld [vmem:[#allocation3 + $0x58] sm:$0xff]
    %v985 = vld [vmem:[#allocation3 + $0x60] sm:$0xff]
    %v986 = vld [vmem:[#allocation3 + $0x68] sm:$0xff]
    %v987 = vld [vmem:[#allocation3 + $0x70] sm:$0xff]
    %v988 = vld [vmem:[#allocation3 + $0x78] sm:$0xff]
    %v989 = vld [vmem:[#allocation3 + $0x80] sm:$0xff]
    %v990 = vld [vmem:[#allocation3 + $0x88] sm:$0xff]
    %v991 = vld [vmem:[#allocation3 + $0x90] sm:$0xff]
    %v992 = vld [vmem:[#allocation3 + $0x98] sm:$0xff]
    %v993 = vld [vmem:[#allocation3 + $0xa0] sm:$0xff]
    %v994 = vld [vmem:[#allocation3 + $0xa8] sm:$0xff]
    %v995 = vld [vmem:[#allocation3 + $0xb0] sm:$0xff]
    %v996 = vld [vmem:[#allocation3 + $0xb8] sm:$0xff]
    %v997 = vld [vmem:[#allocation3 + $0xc0] sm:$0xff]
    %v998 = vld [vmem:[#allocation3 + $0xc8] sm:$0xff]
    %v999 = vld [vmem:[#allocation3 + $0xd0] sm:$0xff]
    %v1000 = vld [vmem:[#allocation3 + $0xd8] sm:$0xff]
    %v1001 = vld [vmem:[#allocation3 + $0xe0] sm:$0xff]
    %v1002 = vld [vmem:[#allocation3 + $0xe8] sm:$0xff]
    %v1003 = vld [vmem:[#allocation3 + $0xf0] sm:$0xff]
    %v1004 = vld [vmem:[#allocation3 + $0xf8] sm:$0xff]
    %v1037 = vunpack.c.l.b16 %v973
    %v1038 = vunpack.c.h.b16 %v973
    %v1039 = vunpack.c.l.b16 %v974
    %v1040 = vunpack.c.h.b16 %v974
    %v1041 = vunpack.c.l.b16 %v975
    %v1042 = vunpack.c.h.b16 %v975
    %v1043 = vunpack.c.l.b16 %v976
    %v1044 = vunpack.c.h.b16 %v976
    %v1045 = vunpack.c.l.b16 %v977
    %v1046 = vunpack.c.h.b16 %v977
    %v1047 = vunpack.c.l.b16 %v978
    %v1048 = vunpack.c.h.b16 %v978
    %v1049 = vunpack.c.l.b16 %v979
    %v1050 = vunpack.c.h.b16 %v979
    %v1051 = vunpack.c.l.b16 %v980
    %v1052 = vunpack.c.h.b16 %v980
    %v1053 = vunpack.c.l.b16 %v981
    %v1054 = vunpack.c.h.b16 %v981
    %v1055 = vunpack.c.l.b16 %v982
    %v1056 = vunpack.c.h.b16 %v982
    %v1057 = vunpack.c.l.b16 %v983
    %v1058 = vunpack.c.h.b16 %v983
    %v1059 = vunpack.c.l.b16 %v984
    %v1060 = vunpack.c.h.b16 %v984
    %v1061 = vunpack.c.l.b16 %v985
    %v1062 = vunpack.c.h.b16 %v985
    %v1063 = vunpack.c.l.b16 %v986
    %v1064 = vunpack.c.h.b16 %v986
    %v1065 = vunpack.c.l.b16 %v987
    %v1066 = vunpack.c.h.b16 %v987
    %v1067 = vunpack.c.l.b16 %v988
    %v1068 = vunpack.c.h.b16 %v988
    %v1069 = vunpack.c.l.b16 %v989
    %v1070 = vunpack.c.h.b16 %v989
    %v1071 = vunpack.c.l.b16 %v990
    %v1072 = vunpack.c.h.b16 %v990
    %v1073 = vunpack.c.l.b16 %v991
    %v1074 = vunpack.c.h.b16 %v991
    %v1075 = vunpack.c.l.b16 %v992
    %v1076 = vunpack.c.h.b16 %v992
    %v1077 = vunpack.c.l.b16 %v993
    %v1078 = vunpack.c.h.b16 %v993
    %v1079 = vunpack.c.l.b16 %v994
    %v1080 = vunpack.c.h.b16 %v994
    %v1081 = vunpack.c.l.b16 %v995
    %v1082 = vunpack.c.h.b16 %v995
    %v1083 = vunpack.c.l.b16 %v996
    %v1084 = vunpack.c.h.b16 %v996
    %v1085 = vunpack.c.l.b16 %v997
    %v1086 = vunpack.c.h.b16 %v997
    %v1087 = vunpack.c.l.b16 %v998
    %v1088 = vunpack.c.h.b16 %v998
    %v1089 = vunpack.c.l.b16 %v999
    %v1090 = vunpack.c.h.b16 %v999
    %v1091 = vunpack.c.l.b16 %v1000
    %v1092 = vunpack.c.h.b16 %v1000
    %v1093 = vunpack.c.l.b16 %v1001
    %v1094 = vunpack.c.h.b16 %v1001
    %v1095 = vunpack.c.l.b16 %v1002
    %v1096 = vunpack.c.h.b16 %v1002
    %v1097 = vunpack.c.l.b16 %v1003
    %v1098 = vunpack.c.h.b16 %v1003
    %v1099 = vunpack.c.l.b16 %v1004
    %v1100 = vunpack.c.h.b16 %v1004
    %v1101 = vpack.c.b16 %v1039, %v1037
    %v1102 = vpack.c.b16 %v1040, %v1038
    %v1103 = vpack.c.b16 %v1043, %v1041
    %v1104 = vpack.c.b16 %v1044, %v1042
    %v1105 = vpack.c.b16 %v1047, %v1045
    %v1106 = vpack.c.b16 %v1048, %v1046
    %v1107 = vpack.c.b16 %v1051, %v1049
    %v1108 = vpack.c.b16 %v1052, %v1050
    %v1109 = vpack.c.b16 %v1055, %v1053
    %v1110 = vpack.c.b16 %v1056, %v1054
    %v1111 = vpack.c.b16 %v1059, %v1057
    %v1112 = vpack.c.b16 %v1060, %v1058
    %v1113 = vpack.c.b16 %v1063, %v1061
    %v1114 = vpack.c.b16 %v1064, %v1062
    %v1115 = vpack.c.b16 %v1067, %v1065
    %v1116 = vpack.c.b16 %v1068, %v1066
    %v1117 = vpack.c.b16 %v1071, %v1069
    %v1118 = vpack.c.b16 %v1072, %v1070
    %v1119 = vpack.c.b16 %v1075, %v1073
    %v1120 = vpack.c.b16 %v1076, %v1074
    %v1121 = vpack.c.b16 %v1079, %v1077
    %v1122 = vpack.c.b16 %v1080, %v1078
    %v1123 = vpack.c.b16 %v1083, %v1081
    %v1124 = vpack.c.b16 %v1084, %v1082
    %v1125 = vpack.c.b16 %v1087, %v1085
    %v1126 = vpack.c.b16 %v1088, %v1086
    %v1127 = vpack.c.b16 %v1091, %v1089
    %v1128 = vpack.c.b16 %v1092, %v1090
    %v1129 = vpack.c.b16 %v1095, %v1093
    %v1130 = vpack.c.b16 %v1096, %v1094
    %v1131 = vpack.c.b16 %v1099, %v1097
    %v1132 = vpack.c.b16 %v1100, %v1098
    %1165 = vmatprep.subr.bf16.mxu0 0
    %1166 = vmatpush1.bf16.msra.mxu0 %v620
    %1167 = vmatprep.subr.bf16.mxu0 0
    %1168 = vmatpush1.bf16.msra.mxu0 %v621
    %1169 = vmatprep.subr.bf16.mxu0 0
    %1170 = vmatpush1.bf16.msra.mxu0 %v622
    %1171 = vmatprep.subr.bf16.mxu0 0
    %1172 = vmatpush1.bf16.msra.mxu0 %v623
    %1173 = vmatprep.subr.bf16.mxu0 0
    %1174 = vmatpush1.bf16.msra.mxu0 %v624
    %1175 = vmatprep.subr.bf16.mxu0 0
    %1176 = vmatpush1.bf16.msra.mxu0 %v625
    %1177 = vmatprep.subr.bf16.mxu0 0
    %1178 = vmatpush1.bf16.msra.mxu0 %v626
    %1179 = vmatprep.subr.bf16.mxu0 0
    %1180 = vmatpush1.bf16.msra.mxu0 %v627
    %1181 = vmatprep.subr.bf16.mxu0 0
    %1182 = vmatpush1.bf16.msra.mxu0 %v628
    %1183 = vmatprep.subr.bf16.mxu0 0
    %1184 = vmatpush1.bf16.msra.mxu0 %v629
    %1185 = vmatprep.subr.bf16.mxu0 0
    %1186 = vmatpush1.bf16.msra.mxu0 %v630
    %1187 = vmatprep.subr.bf16.mxu0 0
    %1188 = vmatpush1.bf16.msra.mxu0 %v631
    %1189 = vmatprep.subr.bf16.mxu0 0
    %1190 = vmatpush1.bf16.msra.mxu0 %v632
    %1191 = vmatprep.subr.bf16.mxu0 0
    %1192 = vmatpush1.bf16.msra.mxu0 %v633
    %1193 = vmatprep.subr.bf16.mxu0 0
    %1194 = vmatpush1.bf16.msra.mxu0 %v634
    %1195 = vmatprep.subr.bf16.mxu0 0
    %1196 = vmatpush1.bf16.msra.mxu0 %v635
    %1197 = vmatprep.mubr.bf16.mxu0 %v1102
    %1198 = vmatmul.mubr.bf16.gmra.mrb[0].mxu0 %v1101
    %v1199 = vpop.f32.mrb[0].mxu0
    %v1200 = vadd.f32 0.0, %v1199
    %v1201 = vpop.f32.mrb[0].mxu0
    %v1202 = vpop.f32.mrb[0].mxu0
    %v1203 = vadd.f32 0.0, %v1202
    %v1204 = vpop.f32.mrb[0].mxu0
    %1205 = vmatprep.mubr.bf16.mxu0 %v1104
    %1206 = vmatmul.mubr.bf16.gmra.mrb[0].mxu0 %v1103
    %v1207 = vpop.f32.mrb[0].mxu0
    %v1208 = vadd.f32 0.0, %v1207
    %v1209 = vpop.f32.mrb[0].mxu0
    %v1210 = vpop.f32.mrb[0].mxu0
    %v1211 = vadd.f32 0.0, %v1210
    %v1212 = vpop.f32.mrb[0].mxu0
    %1213 = vmatprep.mubr.bf16.mxu0 %v1106
    %1214 = vmatmul.mubr.bf16.gmra.mrb[0].mxu0 %v1105
    %v1215 = vpop.f32.mrb[0].mxu0
    %v1216 = vadd.f32 0.0, %v1215
    %v1217 = vpop.f32.mrb[0].mxu0
    %v1218 = vpop.f32.mrb[0].mxu0
    %v1219 = vadd.f32 0.0, %v1218
    %v1220 = vpop.f32.mrb[0].mxu0
    %1221 = vmatprep.mubr.bf16.mxu0 %v1108
    %1222 = vmatmul.mubr.bf16.gmra.mrb[0].mxu0 %v1107
    %v1223 = vpop.f32.mrb[0].mxu0
    %v1224 = vadd.f32 0.0, %v1223
    %v1225 = vpop.f32.mrb[0].mxu0
    %v1226 = vpop.f32.mrb[0].mxu0
    %v1227 = vadd.f32 0.0, %v1226
    %v1228 = vpop.f32.mrb[0].mxu0
    %1229 = vmatprep.mubr.bf16.mxu0 %v1110
    %1230 = vmatmul.mubr.bf16.gmra.mrb[0].mxu0 %v1109
    %v1231 = vpop.f32.mrb[0].mxu0
    %v1232 = vadd.f32 0.0, %v1231
    %v1233 = vpop.f32.mrb[0].mxu0
    %v1234 = vpop.f32.mrb[0].mxu0
    %v1235 = vadd.f32 0.0, %v1234
    %v1236 = vpop.f32.mrb[0].mxu0
    %1237 = vmatprep.mubr.bf16.mxu0 %v1112
    %1238 = vmatmul.mubr.bf16.gmra.mrb[0].mxu0 %v1111
    %v1239 = vpop.f32.mrb[0].mxu0
    %v1240 = vadd.f32 0.0, %v1239
    %v1241 = vpop.f32.mrb[0].mxu0
    %v1242 = vpop.f32.mrb[0].mxu0
    %v1243 = vadd.f32 0.0, %v1242
    %v1244 = vpop.f32.mrb[0].mxu0
    %1245 = vmatprep.mubr.bf16.mxu0 %v1114
    %1246 = vmatmul.mubr.bf16.gmra.mrb[0].mxu0 %v1113
    %v1247 = vpop.f32.mrb[0].mxu0
    %v1248 = vadd.f32 0.0, %v1247
    %v1249 = vpop.f32.mrb[0].mxu0
    %v1250 = vpop.f32.mrb[0].mxu0
    %v1251 = vadd.f32 0.0, %v1250
    %v1252 = vpop.f32.mrb[0].mxu0
    %1253 = vmatprep.mubr.bf16.mxu0 %v1116
    %1254 = vmatmul.mubr.bf16.gmra.mrb[0].mxu0 %v1115
    %v1255 = vpop.f32.mrb[0].mxu0
    %v1256 = vadd.f32 0.0, %v1255
    %v1257 = vpop.f32.mrb[0].mxu0
    %v1258 = vpop.f32.mrb[0].mxu0
    %v1259 = vadd.f32 0.0, %v1258
    %v1260 = vpop.f32.mrb[0].mxu0
    %1261 = vmatprep.mubr.bf16.mxu0 %v1118
    %1262 = vmatmul.mubr.bf16.gmra.mrb[0].mxu0 %v1117
    %v1263 = vpop.f32.mrb[0].mxu0
    %v1264 = vadd.f32 0.0, %v1263
    %v1265 = vpop.f32.mrb[0].mxu0
    %v1266 = vpop.f32.mrb[0].mxu0
    %v1267 = vadd.f32 0.0, %v1266
    %v1268 = vpop.f32.mrb[0].mxu0
    %1269 = vmatprep.mubr.bf16.mxu0 %v1120
    %1270 = vmatmul.mubr.bf16.gmra.mrb[0].mxu0 %v1119
    %v1271 = vpop.f32.mrb[0].mxu0
    %v1272 = vadd.f32 0.0, %v1271
    %v1273 = vpop.f32.mrb[0].mxu0
    %v1274 = vpop.f32.mrb[0].mxu0
    %v1275 = vadd.f32 0.0, %v1274
    %v1276 = vpop.f32.mrb[0].mxu0
    %1277 = vmatprep.mubr.bf16.mxu0 %v1122
    %1278 = vmatmul.mubr.bf16.gmra.mrb[0].mxu0 %v1121
    %v1279 = vpop.f32.mrb[0].mxu0
    %v1280 = vadd.f32 0.0, %v1279
    %v1281 = vpop.f32.mrb[0].mxu0
    %v1282 = vpop.f32.mrb[0].mxu0
    %v1283 = vadd.f32 0.0, %v1282
    %v1284 = vpop.f32.mrb[0].mxu0
    %1285 = vmatprep.mubr.bf16.mxu0 %v1124
    %1286 = vmatmul.mubr.bf16.gmra.mrb[0].mxu0 %v1123
    %v1287 = vpop.f32.mrb[0].mxu0
    %v1288 = vadd.f32 0.0, %v1287
    %v1289 = vpop.f32.mrb[0].mxu0
    %v1290 = vpop.f32.mrb[0].mxu0
    %v1291 = vadd.f32 0.0, %v1290
    %v1292 = vpop.f32.mrb[0].mxu0
    %1293 = vmatprep.mubr.bf16.mxu0 %v1126
    %1294 = vmatmul.mubr.bf16.gmra.mrb[0].mxu0 %v1125
    %v1295 = vpop.f32.mrb[0].mxu0
    %v1296 = vadd.f32 0.0, %v1295
    %v1297 = vpop.f32.mrb[0].mxu0
    %v1298 = vpop.f32.mrb[0].mxu0
    %v1299 = vadd.f32 0.0, %v1298
    %v1300 = vpop.f32.mrb[0].mxu0
    %1301 = vmatprep.mubr.bf16.mxu0 %v1128
    %1302 = vmatmul.mubr.bf16.gmra.mrb[0].mxu0 %v1127
    %v1303 = vpop.f32.mrb[0].mxu0
    %v1304 = vadd.f32 0.0, %v1303
    %v1305 = vpop.f32.mrb[0].mxu0
    %v1306 = vpop.f32.mrb[0].mxu0
    %v1307 = vadd.f32 0.0, %v1306
    %v1308 = vpop.f32.mrb[0].mxu0
    %1309 = vmatprep.mubr.bf16.mxu0 %v1130
    %1310 = vmatmul.mubr.bf16.gmra.mrb[0].mxu0 %v1129
    %v1311 = vpop.f32.mrb[0].mxu0
    %v1312 = vadd.f32 0.0, %v1311
    %v1313 = vpop.f32.mrb[0].mxu0
    %v1314 = vpop.f32.mrb[0].mxu0
    %v1315 = vadd.f32 0.0, %v1314
    %v1316 = vpop.f32.mrb[0].mxu0
    %1317 = vmatprep.mubr.bf16.mxu0 %v1132
    %1318 = vmatmul.mubr.bf16.gmra.mrb[0].mxu0 %v1131
    %v1319 = vpop.f32.mrb[0].mxu0
    %v1320 = vadd.f32 0.0, %v1319
    %v1321 = vpop.f32.mrb[0].mxu0
    %v1322 = vpop.f32.mrb[0].mxu0
    %v1323 = vadd.f32 0.0, %v1322
    %v1324 = vpop.f32.mrb[0].mxu0
    %1325 = vdwg.mxu0
    %v1326 = vpack.c.bf16 %v1203, %v1200
    %v1327 = vpack.c.bf16 %v1211, %v1208
    %v1328 = vpack.c.bf16 %v1219, %v1216
    %v1329 = vpack.c.bf16 %v1227, %v1224
    %v1330 = vpack.c.bf16 %v1235, %v1232
    %v1331 = vpack.c.bf16 %v1243, %v1240
    %v1332 = vpack.c.bf16 %v1251, %v1248
    %v1333 = vpack.c.bf16 %v1259, %v1256
    %v1334 = vpack.c.bf16 %v1267, %v1264
    %v1335 = vpack.c.bf16 %v1275, %v1272
    %v1336 = vpack.c.bf16 %v1283, %v1280
    %v1337 = vpack.c.bf16 %v1291, %v1288
    %v1338 = vpack.c.bf16 %v1299, %v1296
    %v1339 = vpack.c.bf16 %v1307, %v1304
    %v1340 = vpack.c.bf16 %v1315, %v1312
    %v1341 = vpack.c.bf16 %v1323, %v1320
    %v1358 = vunpack.c.l.b16 %v1326
    %v1359 = vunpack.c.h.b16 %v1326
    %v1360 = vunpack.c.l.b16 %v1327
    %v1361 = vunpack.c.h.b16 %v1327
    %v1362 = vunpack.c.l.b16 %v1328
    %v1363 = vunpack.c.h.b16 %v1328
    %v1364 = vunpack.c.l.b16 %v1329
    %v1365 = vunpack.c.h.b16 %v1329
    %v1366 = vunpack.c.l.b16 %v1330
    %v1367 = vunpack.c.h.b16 %v1330
    %v1368 = vunpack.c.l.b16 %v1331
    %v1369 = vunpack.c.h.b16 %v1331
    %v1370 = vunpack.c.l.b16 %v1332
    %v1371 = vunpack.c.h.b16 %v1332
    %v1372 = vunpack.c.l.b16 %v1333
    %v1373 = vunpack.c.h.b16 %v1333
    %v1374 = vunpack.c.l.b16 %v1334
    %v1375 = vunpack.c.h.b16 %v1334
    %v1376 = vunpack.c.l.b16 %v1335
    %v1377 = vunpack.c.h.b16 %v1335
    %v1378 = vunpack.c.l.b16 %v1336
    %v1379 = vunpack.c.h.b16 %v1336
    %v1380 = vunpack.c.l.b16 %v1337
    %v1381 = vunpack.c.h.b16 %v1337
    %v1382 = vunpack.c.l.b16 %v1338
    %v1383 = vunpack.c.h.b16 %v1338
    %v1384 = vunpack.c.l.b16 %v1339
    %v1385 = vunpack.c.h.b16 %v1339
    %v1386 = vunpack.c.l.b16 %v1340
    %v1387 = vunpack.c.h.b16 %v1340
    %v1388 = vunpack.c.l.b16 %v1341
    %v1389 = vunpack.c.h.b16 %v1341
    %v1390 = vpack.c.b16 %v1358, %v1358
    %v1391 = vpack.c.b16 %v1359, %v1359
    %v1392 = vpack.c.b16 %v1360, %v1360
    %v1393 = vpack.c.b16 %v1361, %v1361
    %v1394 = vpack.c.b16 %v1362, %v1362
    %v1395 = vpack.c.b16 %v1363, %v1363
    %v1396 = vpack.c.b16 %v1364, %v1364
    %v1397 = vpack.c.b16 %v1365, %v1365
    %v1398 = vpack.c.b16 %v1366, %v1366
    %v1399 = vpack.c.b16 %v1367, %v1367
    %v1400 = vpack.c.b16 %v1368, %v1368
    %v1401 = vpack.c.b16 %v1369, %v1369
    %v1402 = vpack.c.b16 %v1370, %v1370
    %v1403 = vpack.c.b16 %v1371, %v1371
    %v1404 = vpack.c.b16 %v1372, %v1372
    %v1405 = vpack.c.b16 %v1373, %v1373
    %v1406 = vpack.c.b16 %v1374, %v1374
    %v1407 = vpack.c.b16 %v1375, %v1375
    %v1408 = vpack.c.b16 %v1376, %v1376
    %v1409 = vpack.c.b16 %v1377, %v1377
    %v1410 = vpack.c.b16 %v1378, %v1378
    %v1411 = vpack.c.b16 %v1379, %v1379
    %v1412 = vpack.c.b16 %v1380, %v1380
    %v1413 = vpack.c.b16 %v1381, %v1381
    %v1414 = vpack.c.b16 %v1382, %v1382
    %v1415 = vpack.c.b16 %v1383, %v1383
    %v1416 = vpack.c.b16 %v1384, %v1384
    %v1417 = vpack.c.b16 %v1385, %v1385
    %v1418 = vpack.c.b16 %v1386, %v1386
    %v1419 = vpack.c.b16 %v1387, %v1387
    %v1420 = vpack.c.b16 %v1388, %v1388
    %v1421 = vpack.c.b16 %v1389, %v1389
    %1454 = vst [vmem:[%s3 + $0x4] sm:$0xf] %v1390
    %1455 = vst [vmem:[%s3 + $0xc] sm:$0xf] %v1391
    %1456 = vst [vmem:[%s3 + $0x14] sm:$0xf] %v1392
    %1457 = vst [vmem:[%s3 + $0x1c] sm:$0xf] %v1393
    %1458 = vst [vmem:[%s3 + $0x24] sm:$0xf] %v1394
    %1459 = vst [vmem:[%s3 + $0x2c] sm:$0xf] %v1395
    %1460 = vst [vmem:[%s3 + $0x34] sm:$0xf] %v1396
    %1461 = vst [vmem:[%s3 + $0x3c] sm:$0xf] %v1397
    %1462 = vst [vmem:[%s3 + $0x44] sm:$0xf] %v1398
    %1463 = vst [vmem:[%s3 + $0x4c] sm:$0xf] %v1399
    %1464 = vst [vmem:[%s3 + $0x54] sm:$0xf] %v1400
    %1465 = vst [vmem:[%s3 + $0x5c] sm:$0xf] %v1401
    %1466 = vst [vmem:[%s3 + $0x64] sm:$0xf] %v1402
    %1467 = vst [vmem:[%s3 + $0x6c] sm:$0xf] %v1403
    %1468 = vst [vmem:[%s3 + $0x74] sm:$0xf] %v1404
    %1469 = vst [vmem:[%s3 + $0x7c] sm:$0xf] %v1405
    %1470 = vst [vmem:[%s3 + $0x84] sm:$0xf] %v1406
    %1471 = vst [vmem:[%s3 + $0x8c] sm:$0xf] %v1407
    %1472 = vst [vmem:[%s3 + $0x94] sm:$0xf] %v1408
    %1473 = vst [vmem:[%s3 + $0x9c] sm:$0xf] %v1409
    %1474 = vst [vmem:[%s3 + $0xa4] sm:$0xf] %v1410
    %1475 = vst [vmem:[%s3 + $0xac] sm:$0xf] %v1411
    %1476 = vst [vmem:[%s3 + $0xb4] sm:$0xf] %v1412
    %1477 = vst [vmem:[%s3 + $0xbc] sm:$0xf] %v1413
    %1478 = vst [vmem:[%s3 + $0xc4] sm:$0xf] %v1414
    %1479 = vst [vmem:[%s3 + $0xcc] sm:$0xf] %v1415
    %1480 = vst [vmem:[%s3 + $0xd4] sm:$0xf] %v1416
    %1481 = vst [vmem:[%s3 + $0xdc] sm:$0xf] %v1417
    %1482 = vst [vmem:[%s3 + $0xe4] sm:$0xf] %v1418
    %1483 = vst [vmem:[%s3 + $0xec] sm:$0xf] %v1419
    %1484 = vst [vmem:[%s3 + $0xf4] sm:$0xf] %v1420
    %1485 = vst [vmem:[%s3 + $0xfc] sm:$0xf] %v1421
    // Predicated region
    $region90: #{omics1_encoder_forward.7} parent=1 // pred_check
      _
    $region91: #{omics1_encoder_forward.7} parent=1 // pred_check_branch
      %1487 = sbr.rel (0) target = $region93
    $region92: #{omics1_encoder_forward.7} parent=1 // pred_region
      _
    $region93: #{omics1_encoder_forward.7} parent=1 // pred_fallthru
      _
    // Predicated region
    $region94: #{omics1_encoder_forward.7} parent=1 // pred_check
      _
    $region95: #{omics1_encoder_forward.7} parent=1 // pred_check_branch
      %1489 = sbr.rel (0) target = $region97
    $region96: #{omics1_encoder_forward.7} parent=1 // pred_region
      _
    $region97: #{omics1_encoder_forward.7} parent=1 // pred_fallthru
      _

// kernel: omics1_encoder_forward.8
$region0: #{omics1_encoder_forward.8}
  #allocation0 [shape = 'u32[]', space=smem, size = 0x4, offset = 0x4, fixed_abs, tag = 'smem constant byte address 0x4 - core index']
  #allocation1 [shape = 'u32[144,128]{1,0:T(1,128)}', space=vmem, size = 0x12000, scoped, tag = 'internal scratch']
  #allocation2 [shape = 'f32[256,256]{1,0:T(8,128)}', space=vmem, size = 0x40000, scoped, tag = 'scratch operand']
  %s0 = inlined_call_operand.vmem [shape: bf16[256,256], index: 0, kind: input, shape index: {}]
  %s1 = inlined_call_operand.vmem [shape: f32[256,1], index: 1, kind: input, shape index: {}]
  %s2 = inlined_call_operand.vmem [shape: f32[1,256], index: 2, kind: input, shape index: {}]
  %s3 = inlined_call_operand.vmem [shape: bf16[256,256], index: 3, kind: input, shape index: {}]
  %s4 = inlined_call_operand.vmem [shape: f32[1,256], index: 4, kind: input, shape index: {}]
  %s5 = inlined_call_operand.vmem [shape: f32[256,256], index: 5, kind: output, shape index: {}]
  %s6 = sld [smem:[#allocation0]]
  $region38: #{omics1_encoder_forward.8} parent=0
    _
  %s8 = ssub.s32 1, %s6
  %s9 = scalar_select 0, %s8, %s6
  // Predicated region
  $region2: #{omics1_encoder_forward.8} parent=0 // pred_check
    _
  $region3: #{omics1_encoder_forward.8} parent=0 // pred_check_branch
    %11 = sbr.rel (0) target = $region5
  $region4: #{omics1_encoder_forward.8} parent=0 // pred_region
    _
  $region5: #{omics1_encoder_forward.8} parent=0 // pred_fallthru
    _
  // Predicated region
  $region6: #{omics1_encoder_forward.8} parent=0 // pred_check
    _
  $region7: #{omics1_encoder_forward.8} parent=0 // pred_check_branch
    %13 = sbr.rel (0) target = $region9
  $region8: #{omics1_encoder_forward.8} parent=0 // pred_region
    _
  $region9: #{omics1_encoder_forward.8} parent=0 // pred_fallthru
    _
  // Predicated region
  $region10: #{omics1_encoder_forward.8} parent=0 // pred_check
    _
  $region11: #{omics1_encoder_forward.8} parent=0 // pred_check_branch
    %15 = sbr.rel (0) target = $region13
  $region12: #{omics1_encoder_forward.8} parent=0 // pred_region
    _
  $region13: #{omics1_encoder_forward.8} parent=0 // pred_fallthru
    _
  // Predicated region
  $region14: #{omics1_encoder_forward.8} parent=0 // pred_check
    _
  $region15: #{omics1_encoder_forward.8} parent=0 // pred_check_branch
    %17 = sbr.rel (0) target = $region17
  $region16: #{omics1_encoder_forward.8} parent=0 // pred_region
    _
  $region17: #{omics1_encoder_forward.8} parent=0 // pred_fallthru
    _
  // Predicated region
  $region18: #{omics1_encoder_forward.8} parent=0 // pred_check
    _
  $region19: #{omics1_encoder_forward.8} parent=0 // pred_check_branch
    %19 = sbr.rel (0) target = $region21
  $region20: #{omics1_encoder_forward.8} parent=0 // pred_region
    _
  $region21: #{omics1_encoder_forward.8} parent=0 // pred_fallthru
    _
  %p20 = scmp.eq.s32.totalorder 0, 0
  // Predicated region
  $region22: #{omics1_encoder_forward.8} parent=0 // pred_check
    %p21 = pneg %p20
  $region23: #{omics1_encoder_forward.8} parent=0 // pred_check_branch
    %23 = sbr.rel (%p21) target = $region25
  $region24: #{omics1_encoder_forward.8} parent=0 // pred_region
    %24 = vst [vmem:[#allocation2] sm:$0xff] 0.0
    %25 = vst [vmem:[#allocation2 + $0x8] sm:$0xff] 0.0
    %26 = vst [vmem:[#allocation2 + $0x10] sm:$0xff] 0.0
    %27 = vst [vmem:[#allocation2 + $0x18] sm:$0xff] 0.0
    %28 = vst [vmem:[#allocation2 + $0x20] sm:$0xff] 0.0
    %29 = vst [vmem:[#allocation2 + $0x28] sm:$0xff] 0.0
    %30 = vst [vmem:[#allocation2 + $0x30] sm:$0xff] 0.0
    %31 = vst [vmem:[#allocation2 + $0x38] sm:$0xff] 0.0
    %32 = vst [vmem:[#allocation2 + $0x40] sm:$0xff] 0.0
    %33 = vst [vmem:[#allocation2 + $0x48] sm:$0xff] 0.0
    %34 = vst [vmem:[#allocation2 + $0x50] sm:$0xff] 0.0
    %35 = vst [vmem:[#allocation2 + $0x58] sm:$0xff] 0.0
    %36 = vst [vmem:[#allocation2 + $0x60] sm:$0xff] 0.0
    %37 = vst [vmem:[#allocation2 + $0x68] sm:$0xff] 0.0
    %38 = vst [vmem:[#allocation2 + $0x70] sm:$0xff] 0.0
    %39 = vst [vmem:[#allocation2 + $0x78] sm:$0xff] 0.0
    %40 = vst [vmem:[#allocation2 + $0x80] sm:$0xff] 0.0
    %41 = vst [vmem:[#allocation2 + $0x88] sm:$0xff] 0.0
    %42 = vst [vmem:[#allocation2 + $0x90] sm:$0xff] 0.0
    %43 = vst [vmem:[#allocation2 + $0x98] sm:$0xff] 0.0
    %44 = vst [vmem:[#allocation2 + $0xa0] sm:$0xff] 0.0
    %45 = vst [vmem:[#allocation2 + $0xa8] sm:$0xff] 0.0
    %46 = vst [vmem:[#allocation2 + $0xb0] sm:$0xff] 0.0
    %47 = vst [vmem:[#allocation2 + $0xb8] sm:$0xff] 0.0
    %48 = vst [vmem:[#allocation2 + $0xc0] sm:$0xff] 0.0
    %49 = vst [vmem:[#allocation2 + $0xc8] sm:$0xff] 0.0
    %50 = vst [vmem:[#allocation2 + $0xd0] sm:$0xff] 0.0
    %51 = vst [vmem:[#allocation2 + $0xd8] sm:$0xff] 0.0
    %52 = vst [vmem:[#allocation2 + $0xe0] sm:$0xff] 0.0
    %53 = vst [vmem:[#allocation2 + $0xe8] sm:$0xff] 0.0
    %54 = vst [vmem:[#allocation2 + $0xf0] sm:$0xff] 0.0
    %55 = vst [vmem:[#allocation2 + $0xf8] sm:$0xff] 0.0
    %56 = vst [vmem:[#allocation2 + $0x100] sm:$0xff] 0.0
    %57 = vst [vmem:[#allocation2 + $0x108] sm:$0xff] 0.0
    %58 = vst [vmem:[#allocation2 + $0x110] sm:$0xff] 0.0
    %59 = vst [vmem:[#allocation2 + $0x118] sm:$0xff] 0.0
    %60 = vst [vmem:[#allocation2 + $0x120] sm:$0xff] 0.0
    %61 = vst [vmem:[#allocation2 + $0x128] sm:$0xff] 0.0
    %62 = vst [vmem:[#allocation2 + $0x130] sm:$0xff] 0.0
    %63 = vst [vmem:[#allocation2 + $0x138] sm:$0xff] 0.0
    %64 = vst [vmem:[#allocation2 + $0x140] sm:$0xff] 0.0
    %65 = vst [vmem:[#allocation2 + $0x148] sm:$0xff] 0.0
    %66 = vst [vmem:[#allocation2 + $0x150] sm:$0xff] 0.0
    %67 = vst [vmem:[#allocation2 + $0x158] sm:$0xff] 0.0
    %68 = vst [vmem:[#allocation2 + $0x160] sm:$0xff] 0.0
    %69 = vst [vmem:[#allocation2 + $0x168] sm:$0xff] 0.0
    %70 = vst [vmem:[#allocation2 + $0x170] sm:$0xff] 0.0
    %71 = vst [vmem:[#allocation2 + $0x178] sm:$0xff] 0.0
    %72 = vst [vmem:[#allocation2 + $0x180] sm:$0xff] 0.0
    %73 = vst [vmem:[#allocation2 + $0x188] sm:$0xff] 0.0
    %74 = vst [vmem:[#allocation2 + $0x190] sm:$0xff] 0.0
    %75 = vst [vmem:[#allocation2 + $0x198] sm:$0xff] 0.0
    %76 = vst [vmem:[#allocation2 + $0x1a0] sm:$0xff] 0.0
    %77 = vst [vmem:[#allocation2 + $0x1a8] sm:$0xff] 0.0
    %78 = vst [vmem:[#allocation2 + $0x1b0] sm:$0xff] 0.0
    %79 = vst [vmem:[#allocation2 + $0x1b8] sm:$0xff] 0.0
    %80 = vst [vmem:[#allocation2 + $0x1c0] sm:$0xff] 0.0
    %81 = vst [vmem:[#allocation2 + $0x1c8] sm:$0xff] 0.0
    %82 = vst [vmem:[#allocation2 + $0x1d0] sm:$0xff] 0.0
    %83 = vst [vmem:[#allocation2 + $0x1d8] sm:$0xff] 0.0
    %84 = vst [vmem:[#allocation2 + $0x1e0] sm:$0xff] 0.0
    %85 = vst [vmem:[#allocation2 + $0x1e8] sm:$0xff] 0.0
    %86 = vst [vmem:[#allocation2 + $0x1f0] sm:$0xff] 0.0
    %87 = vst [vmem:[#allocation2 + $0x1f8] sm:$0xff] 0.0
  $region25: #{omics1_encoder_forward.8} parent=0 // pred_fallthru
    _
  %s88 = smul.u32 0, 256
  %v89 = vlaneseq
  %v90 = vshrl.u32 %v89, 7
  %v91 = vadd.s32 %v90, 8
  %v92 = vadd.s32 %v90, 16
  %v93 = vadd.s32 %v90, 24
  %v94 = vadd.s32 %v90, 32
  %v95 = vadd.s32 %v90, 40
  %v96 = vadd.s32 %v90, 48
  %v97 = vadd.s32 %v90, 56
  %v98 = vadd.s32 %v90, 64
  %v99 = vadd.s32 %v90, 72
  %v100 = vadd.s32 %v90, 80
  %v101 = vadd.s32 %v90, 88
  %v102 = vadd.s32 %v90, 96
  %v103 = vadd.s32 %v90, 104
  %v104 = vadd.s32 %v90, 112
  %v105 = vadd.s32 %v90, 120
  %v106 = vadd.s32 %v90, 128
  %v107 = vadd.s32 %v90, 136
  %v108 = vadd.s32 %v90, 144
  %v109 = vadd.s32 %v90, 152
  %v110 = vadd.s32 %v90, 160
  %v111 = vadd.s32 %v90, 168
  %v112 = vadd.s32 %v90, 176
  %v113 = vadd.s32 %v90, 184
  %v114 = vadd.s32 %v90, 192
  %v115 = vadd.s32 %v90, 200
  %v116 = vadd.s32 %v90, 208
  %v117 = vadd.s32 %v90, 216
  %v118 = vadd.s32 %v90, 224
  %v119 = vadd.s32 %v90, 232
  %v120 = vadd.s32 %v90, 240
  %v121 = vadd.s32 %v90, 248
  %v122 = vstv %s88
  %v123 = vadd.s32 %v122, %v90
  %v124 = vadd.s32 %v122, %v91
  %v125 = vadd.s32 %v122, %v92
  %v126 = vadd.s32 %v122, %v93
  %v127 = vadd.s32 %v122, %v94
  %v128 = vadd.s32 %v122, %v95
  %v129 = vadd.s32 %v122, %v96
  %v130 = vadd.s32 %v122, %v97
  %v131 = vadd.s32 %v122, %v98
  %v132 = vadd.s32 %v122, %v99
  %v133 = vadd.s32 %v122, %v100
  %v134 = vadd.s32 %v122, %v101
  %v135 = vadd.s32 %v122, %v102
  %v136 = vadd.s32 %v122, %v103
  %v137 = vadd.s32 %v122, %v104
  %v138 = vadd.s32 %v122, %v105
  %v139 = vadd.s32 %v122, %v106
  %v140 = vadd.s32 %v122, %v107
  %v141 = vadd.s32 %v122, %v108
  %v142 = vadd.s32 %v122, %v109
  %v143 = vadd.s32 %v122, %v110
  %v144 = vadd.s32 %v122, %v111
  %v145 = vadd.s32 %v122, %v112
  %v146 = vadd.s32 %v122, %v113
  %v147 = vadd.s32 %v122, %v114
  %v148 = vadd.s32 %v122, %v115
  %v149 = vadd.s32 %v122, %v116
  %v150 = vadd.s32 %v122, %v117
  %v151 = vadd.s32 %v122, %v118
  %v152 = vadd.s32 %v122, %v119
  %v153 = vadd.s32 %v122, %v120
  %v154 = vadd.s32 %v122, %v121
  %s155 = smul.u32 0, 256
  %v156 = vlaneseq
  %v157 = vand.u32 %v156, 127
  %v158 = vadd.s32 %v157, 128
  %v159 = vstv %s155
  %v160 = vadd.s32 %v159, %v157
  %v161 = vadd.s32 %v159, %v158
  %v162 = vld [vmem:[%s0] sm:$0xff]
  %v163 = vld [vmem:[%s0 + $0x8] sm:$0xff]
  %v164 = vld [vmem:[%s0 + $0x10] sm:$0xff]
  %v165 = vld [vmem:[%s0 + $0x18] sm:$0xff]
  %v166 = vld [vmem:[%s0 + $0x20] sm:$0xff]
  %v167 = vld [vmem:[%s0 + $0x28] sm:$0xff]
  %v168 = vld [vmem:[%s0 + $0x30] sm:$0xff]
  %v169 = vld [vmem:[%s0 + $0x38] sm:$0xff]
  %v170 = vld [vmem:[%s0 + $0x40] sm:$0xff]
  %v171 = vld [vmem:[%s0 + $0x48] sm:$0xff]
  %v172 = vld [vmem:[%s0 + $0x50] sm:$0xff]
  %v173 = vld [vmem:[%s0 + $0x58] sm:$0xff]
  %v174 = vld [vmem:[%s0 + $0x60] sm:$0xff]
  %v175 = vld [vmem:[%s0 + $0x68] sm:$0xff]
  %v176 = vld [vmem:[%s0 + $0x70] sm:$0xff]
  %v177 = vld [vmem:[%s0 + $0x78] sm:$0xff]
  %v178 = vld [vmem:[%s0 + $0x80] sm:$0xff]
  %v179 = vld [vmem:[%s0 + $0x88] sm:$0xff]
  %v180 = vld [vmem:[%s0 + $0x90] sm:$0xff]
  %v181 = vld [vmem:[%s0 + $0x98] sm:$0xff]
  %v182 = vld [vmem:[%s0 + $0xa0] sm:$0xff]
  %v183 = vld [vmem:[%s0 + $0xa8] sm:$0xff]
  %v184 = vld [vmem:[%s0 + $0xb0] sm:$0xff]
  %v185 = vld [vmem:[%s0 + $0xb8] sm:$0xff]
  %v186 = vld [vmem:[%s0 + $0xc0] sm:$0xff]
  %v187 = vld [vmem:[%s0 + $0xc8] sm:$0xff]
  %v188 = vld [vmem:[%s0 + $0xd0] sm:$0xff]
  %v189 = vld [vmem:[%s0 + $0xd8] sm:$0xff]
  %v190 = vld [vmem:[%s0 + $0xe0] sm:$0xff]
  %v191 = vld [vmem:[%s0 + $0xe8] sm:$0xff]
  %v192 = vld [vmem:[%s0 + $0xf0] sm:$0xff]
  %v193 = vld [vmem:[%s0 + $0xf8] sm:$0xff]
  %v194 = vunpack.c.l.bf16 %v162
  %v195 = vunpack.c.h.bf16 %v162
  %v196 = vunpack.c.l.bf16 %v163
  %v197 = vunpack.c.h.bf16 %v163
  %v198 = vunpack.c.l.bf16 %v164
  %v199 = vunpack.c.h.bf16 %v164
  %v200 = vunpack.c.l.bf16 %v165
  %v201 = vunpack.c.h.bf16 %v165
  %v202 = vunpack.c.l.bf16 %v166
  %v203 = vunpack.c.h.bf16 %v166
  %v204 = vunpack.c.l.bf16 %v167
  %v205 = vunpack.c.h.bf16 %v167
  %v206 = vunpack.c.l.bf16 %v168
  %v207 = vunpack.c.h.bf16 %v168
  %v208 = vunpack.c.l.bf16 %v169
  %v209 = vunpack.c.h.bf16 %v169
  %v210 = vunpack.c.l.bf16 %v170
  %v211 = vunpack.c.h.bf16 %v170
  %v212 = vunpack.c.l.bf16 %v171
  %v213 = vunpack.c.h.bf16 %v171
  %v214 = vunpack.c.l.bf16 %v172
  %v215 = vunpack.c.h.bf16 %v172
  %v216 = vunpack.c.l.bf16 %v173
  %v217 = vunpack.c.h.bf16 %v173
  %v218 = vunpack.c.l.bf16 %v174
  %v219 = vunpack.c.h.bf16 %v174
  %v220 = vunpack.c.l.bf16 %v175
  %v221 = vunpack.c.h.bf16 %v175
  %v222 = vunpack.c.l.bf16 %v176
  %v223 = vunpack.c.h.bf16 %v176
  %v224 = vunpack.c.l.bf16 %v177
  %v225 = vunpack.c.h.bf16 %v177
  %v226 = vunpack.c.l.bf16 %v178
  %v227 = vunpack.c.h.bf16 %v178
  %v228 = vunpack.c.l.bf16 %v179
  %v229 = vunpack.c.h.bf16 %v179
  %v230 = vunpack.c.l.bf16 %v180
  %v231 = vunpack.c.h.bf16 %v180
  %v232 = vunpack.c.l.bf16 %v181
  %v233 = vunpack.c.h.bf16 %v181
  %v234 = vunpack.c.l.bf16 %v182
  %v235 = vunpack.c.h.bf16 %v182
  %v236 = vunpack.c.l.bf16 %v183
  %v237 = vunpack.c.h.bf16 %v183
  %v238 = vunpack.c.l.bf16 %v184
  %v239 = vunpack.c.h.bf16 %v184
  %v240 = vunpack.c.l.bf16 %v185
  %v241 = vunpack.c.h.bf16 %v185
  %v242 = vunpack.c.l.bf16 %v186
  %v243 = vunpack.c.h.bf16 %v186
  %v244 = vunpack.c.l.bf16 %v187
  %v245 = vunpack.c.h.bf16 %v187
  %v246 = vunpack.c.l.bf16 %v188
  %v247 = vunpack.c.h.bf16 %v188
  %v248 = vunpack.c.l.bf16 %v189
  %v249 = vunpack.c.h.bf16 %v189
  %v250 = vunpack.c.l.bf16 %v190
  %v251 = vunpack.c.h.bf16 %v190
  %v252 = vunpack.c.l.bf16 %v191
  %v253 = vunpack.c.h.bf16 %v191
  %v254 = vunpack.c.l.bf16 %v192
  %v255 = vunpack.c.h.bf16 %v192
  %v256 = vunpack.c.l.bf16 %v193
  %v257 = vunpack.c.h.bf16 %v193
  %vm258 = vcmp.eq.s32.totalorder %v123, %v160
  %vm259 = vcmp.eq.s32.totalorder %v123, %v161
  %vm260 = vcmp.eq.s32.totalorder %v124, %v160
  %vm261 = vcmp.eq.s32.totalorder %v124, %v161
  %vm262 = vcmp.eq.s32.totalorder %v125, %v160
  %vm263 = vcmp.eq.s32.totalorder %v125, %v161
  %vm264 = vcmp.eq.s32.totalorder %v126, %v160
  %vm265 = vcmp.eq.s32.totalorder %v126, %v161
  %vm266 = vcmp.eq.s32.totalorder %v127, %v160
  %vm267 = vcmp.eq.s32.totalorder %v127, %v161
  %vm268 = vcmp.eq.s32.totalorder %v128, %v160
  %vm269 = vcmp.eq.s32.totalorder %v128, %v161
  %vm270 = vcmp.eq.s32.totalorder %v129, %v160
  %vm271 = vcmp.eq.s32.totalorder %v129, %v161
  %vm272 = vcmp.eq.s32.totalorder %v130, %v160
  %vm273 = vcmp.eq.s32.totalorder %v130, %v161
  %vm274 = vcmp.eq.s32.totalorder %v131, %v160
  %vm275 = vcmp.eq.s32.totalorder %v131, %v161
  %vm276 = vcmp.eq.s32.totalorder %v132, %v160
  %vm277 = vcmp.eq.s32.totalorder %v132, %v161
  %vm278 = vcmp.eq.s32.totalorder %v133, %v160
  %vm279 = vcmp.eq.s32.totalorder %v133, %v161
  %vm280 = vcmp.eq.s32.totalorder %v134, %v160
  %vm281 = vcmp.eq.s32.totalorder %v134, %v161
  %vm282 = vcmp.eq.s32.totalorder %v135, %v160
  %vm283 = vcmp.eq.s32.totalorder %v135, %v161
  %vm284 = vcmp.eq.s32.totalorder %v136, %v160
  %vm285 = vcmp.eq.s32.totalorder %v136, %v161
  %vm286 = vcmp.eq.s32.totalorder %v137, %v160
  %vm287 = vcmp.eq.s32.totalorder %v137, %v161
  %vm288 = vcmp.eq.s32.totalorder %v138, %v160
  %vm289 = vcmp.eq.s32.totalorder %v138, %v161
  %vm290 = vcmp.eq.s32.totalorder %v139, %v160
  %vm291 = vcmp.eq.s32.totalorder %v139, %v161
  %vm292 = vcmp.eq.s32.totalorder %v140, %v160
  %vm293 = vcmp.eq.s32.totalorder %v140, %v161
  %vm294 = vcmp.eq.s32.totalorder %v141, %v160
  %vm295 = vcmp.eq.s32.totalorder %v141, %v161
  %vm296 = vcmp.eq.s32.totalorder %v142, %v160
  %vm297 = vcmp.eq.s32.totalorder %v142, %v161
  %vm298 = vcmp.eq.s32.totalorder %v143, %v160
  %vm299 = vcmp.eq.s32.totalorder %v143, %v161
  %vm300 = vcmp.eq.s32.totalorder %v144, %v160
  %vm301 = vcmp.eq.s32.totalorder %v144, %v161
  %vm302 = vcmp.eq.s32.totalorder %v145, %v160
  %vm303 = vcmp.eq.s32.totalorder %v145, %v161
  %vm304 = vcmp.eq.s32.totalorder %v146, %v160
  %vm305 = vcmp.eq.s32.totalorder %v146, %v161
  %vm306 = vcmp.eq.s32.totalorder %v147, %v160
  %vm307 = vcmp.eq.s32.totalorder %v147, %v161
  %vm308 = vcmp.eq.s32.totalorder %v148, %v160
  %vm309 = vcmp.eq.s32.totalorder %v148, %v161
  %vm310 = vcmp.eq.s32.totalorder %v149, %v160
  %vm311 = vcmp.eq.s32.totalorder %v149, %v161
  %vm312 = vcmp.eq.s32.totalorder %v150, %v160
  %vm313 = vcmp.eq.s32.totalorder %v150, %v161
  %vm314 = vcmp.eq.s32.totalorder %v151, %v160
  %vm315 = vcmp.eq.s32.totalorder %v151, %v161
  %vm316 = vcmp.eq.s32.totalorder %v152, %v160
  %vm317 = vcmp.eq.s32.totalorder %v152, %v161
  %vm318 = vcmp.eq.s32.totalorder %v153, %v160
  %vm319 = vcmp.eq.s32.totalorder %v153, %v161
  %vm320 = vcmp.eq.s32.totalorder %v154, %v160
  %vm321 = vcmp.eq.s32.totalorder %v154, %v161
  %v322 = vsel %vm258, 1, 0
  %v323 = vsel %vm259, 1, 0
  %v324 = vsel %vm260, 1, 0
  %v325 = vsel %vm261, 1, 0
  %v326 = vsel %vm262, 1, 0
  %v327 = vsel %vm263, 1, 0
  %v328 = vsel %vm264, 1, 0
  %v329 = vsel %vm265, 1, 0
  %v330 = vsel %vm266, 1, 0
  %v331 = vsel %vm267, 1, 0
  %v332 = vsel %vm268, 1, 0
  %v333 = vsel %vm269, 1, 0
  %v334 = vsel %vm270, 1, 0
  %v335 = vsel %vm271, 1, 0
  %v336 = vsel %vm272, 1, 0
  %v337 = vsel %vm273, 1, 0
  %v338 = vsel %vm274, 1, 0
  %v339 = vsel %vm275, 1, 0
  %v340 = vsel %vm276, 1, 0
  %v341 = vsel %vm277, 1, 0
  %v342 = vsel %vm278, 1, 0
  %v343 = vsel %vm279, 1, 0
  %v344 = vsel %vm280, 1, 0
  %v345 = vsel %vm281, 1, 0
  %v346 = vsel %vm282, 1, 0
  %v347 = vsel %vm283, 1, 0
  %v348 = vsel %vm284, 1, 0
  %v349 = vsel %vm285, 1, 0
  %v350 = vsel %vm286, 1, 0
  %v351 = vsel %vm287, 1, 0
  %v352 = vsel %vm288, 1, 0
  %v353 = vsel %vm289, 1, 0
  %v354 = vsel %vm290, 1, 0
  %v355 = vsel %vm291, 1, 0
  %v356 = vsel %vm292, 1, 0
  %v357 = vsel %vm293, 1, 0
  %v358 = vsel %vm294, 1, 0
  %v359 = vsel %vm295, 1, 0
  %v360 = vsel %vm296, 1, 0
  %v361 = vsel %vm297, 1, 0
  %v362 = vsel %vm298, 1, 0
  %v363 = vsel %vm299, 1, 0
  %v364 = vsel %vm300, 1, 0
  %v365 = vsel %vm301, 1, 0
  %v366 = vsel %vm302, 1, 0
  %v367 = vsel %vm303, 1, 0
  %v368 = vsel %vm304, 1, 0
  %v369 = vsel %vm305, 1, 0
  %v370 = vsel %vm306, 1, 0
  %v371 = vsel %vm307, 1, 0
  %v372 = vsel %vm308, 1, 0
  %v373 = vsel %vm309, 1, 0
  %v374 = vsel %vm310, 1, 0
  %v375 = vsel %vm311, 1, 0
  %v376 = vsel %vm312, 1, 0
  %v377 = vsel %vm313, 1, 0
  %v378 = vsel %vm314, 1, 0
  %v379 = vsel %vm315, 1, 0
  %v380 = vsel %vm316, 1, 0
  %v381 = vsel %vm317, 1, 0
  %v382 = vsel %vm318, 1, 0
  %v383 = vsel %vm319, 1, 0
  %v384 = vsel %vm320, 1, 0
  %v385 = vsel %vm321, 1, 0
  %v386 = vcvt.s32.f32 %v322
  %v387 = vcvt.s32.f32 %v323
  %v388 = vcvt.s32.f32 %v324
  %v389 = vcvt.s32.f32 %v325
  %v390 = vcvt.s32.f32 %v326
  %v391 = vcvt.s32.f32 %v327
  %v392 = vcvt.s32.f32 %v328
  %v393 = vcvt.s32.f32 %v329
  %v394 = vcvt.s32.f32 %v330
  %v395 = vcvt.s32.f32 %v331
  %v396 = vcvt.s32.f32 %v332
  %v397 = vcvt.s32.f32 %v333
  %v398 = vcvt.s32.f32 %v334
  %v399 = vcvt.s32.f32 %v335
  %v400 = vcvt.s32.f32 %v336
  %v401 = vcvt.s32.f32 %v337
  %v402 = vcvt.s32.f32 %v338
  %v403 = vcvt.s32.f32 %v339
  %v404 = vcvt.s32.f32 %v340
  %v405 = vcvt.s32.f32 %v341
  %v406 = vcvt.s32.f32 %v342
  %v407 = vcvt.s32.f32 %v343
  %v408 = vcvt.s32.f32 %v344
  %v409 = vcvt.s32.f32 %v345
  %v410 = vcvt.s32.f32 %v346
  %v411 = vcvt.s32.f32 %v347
  %v412 = vcvt.s32.f32 %v348
  %v413 = vcvt.s32.f32 %v349
  %v414 = vcvt.s32.f32 %v350
  %v415 = vcvt.s32.f32 %v351
  %v416 = vcvt.s32.f32 %v352
  %v417 = vcvt.s32.f32 %v353
  %v418 = vcvt.s32.f32 %v354
  %v419 = vcvt.s32.f32 %v355
  %v420 = vcvt.s32.f32 %v356
  %v421 = vcvt.s32.f32 %v357
  %v422 = vcvt.s32.f32 %v358
  %v423 = vcvt.s32.f32 %v359
  %v424 = vcvt.s32.f32 %v360
  %v425 = vcvt.s32.f32 %v361
  %v426 = vcvt.s32.f32 %v362
  %v427 = vcvt.s32.f32 %v363
  %v428 = vcvt.s32.f32 %v364
  %v429 = vcvt.s32.f32 %v365
  %v430 = vcvt.s32.f32 %v366
  %v431 = vcvt.s32.f32 %v367
  %v432 = vcvt.s32.f32 %v368
  %v433 = vcvt.s32.f32 %v369
  %v434 = vcvt.s32.f32 %v370
  %v435 = vcvt.s32.f32 %v371
  %v436 = vcvt.s32.f32 %v372
  %v437 = vcvt.s32.f32 %v373
  %v438 = vcvt.s32.f32 %v374
  %v439 = vcvt.s32.f32 %v375
  %v440 = vcvt.s32.f32 %v376
  %v441 = vcvt.s32.f32 %v377
  %v442 = vcvt.s32.f32 %v378
  %v443 = vcvt.s32.f32 %v379
  %v444 = vcvt.s32.f32 %v380
  %v445 = vcvt.s32.f32 %v381
  %v446 = vcvt.s32.f32 %v382
  %v447 = vcvt.s32.f32 %v383
  %v448 = vcvt.s32.f32 %v384
  %v449 = vcvt.s32.f32 %v385
  %v450 = vadd.f32 %v194, %v386
  %v451 = vadd.f32 %v195, %v387
  %v452 = vadd.f32 %v196, %v388
  %v453 = vadd.f32 %v197, %v389
  %v454 = vadd.f32 %v198, %v390
  %v455 = vadd.f32 %v199, %v391
  %v456 = vadd.f32 %v200, %v392
  %v457 = vadd.f32 %v201, %v393
  %v458 = vadd.f32 %v202, %v394
  %v459 = vadd.f32 %v203, %v395
  %v460 = vadd.f32 %v204, %v396
  %v461 = vadd.f32 %v205, %v397
  %v462 = vadd.f32 %v206, %v398
  %v463 = vadd.f32 %v207, %v399
  %v464 = vadd.f32 %v208, %v400
  %v465 = vadd.f32 %v209, %v401
  %v466 = vadd.f32 %v210, %v402
  %v467 = vadd.f32 %v211, %v403
  %v468 = vadd.f32 %v212, %v404
  %v469 = vadd.f32 %v213, %v405
  %v470 = vadd.f32 %v214, %v406
  %v471 = vadd.f32 %v215, %v407
  %v472 = vadd.f32 %v216, %v408
  %v473 = vadd.f32 %v217, %v409
  %v474 = vadd.f32 %v218, %v410
  %v475 = vadd.f32 %v219, %v411
  %v476 = vadd.f32 %v220, %v412
  %v477 = vadd.f32 %v221, %v413
  %v478 = vadd.f32 %v222, %v414
  %v479 = vadd.f32 %v223, %v415
  %v480 = vadd.f32 %v224, %v416
  %v481 = vadd.f32 %v225, %v417
  %v482 = vadd.f32 %v226, %v418
  %v483 = vadd.f32 %v227, %v419
  %v484 = vadd.f32 %v228, %v420
  %v485 = vadd.f32 %v229, %v421
  %v486 = vadd.f32 %v230, %v422
  %v487 = vadd.f32 %v231, %v423
  %v488 = vadd.f32 %v232, %v424
  %v489 = vadd.f32 %v233, %v425
  %v490 = vadd.f32 %v234, %v426
  %v491 = vadd.f32 %v235, %v427
  %v492 = vadd.f32 %v236, %v428
  %v493 = vadd.f32 %v237, %v429
  %v494 = vadd.f32 %v238, %v430
  %v495 = vadd.f32 %v239, %v431
  %v496 = vadd.f32 %v240, %v432
  %v497 = vadd.f32 %v241, %v433
  %v498 = vadd.f32 %v242, %v434
  %v499 = vadd.f32 %v243, %v435
  %v500 = vadd.f32 %v244, %v436
  %v501 = vadd.f32 %v245, %v437
  %v502 = vadd.f32 %v246, %v438
  %v503 = vadd.f32 %v247, %v439
  %v504 = vadd.f32 %v248, %v440
  %v505 = vadd.f32 %v249, %v441
  %v506 = vadd.f32 %v250, %v442
  %v507 = vadd.f32 %v251, %v443
  %v508 = vadd.f32 %v252, %v444
  %v509 = vadd.f32 %v253, %v445
  %v510 = vadd.f32 %v254, %v446
  %v511 = vadd.f32 %v255, %v447
  %v512 = vadd.f32 %v256, %v448
  %v513 = vadd.f32 %v257, %v449
  %v514 = vld [vmem:[%s1] sm:$0xff]
  %v515 = vld [vmem:[%s1 + $0x8] sm:$0xff]
  %v516 = vld [vmem:[%s1 + $0x10] sm:$0xff]
  %v517 = vld [vmem:[%s1 + $0x18] sm:$0xff]
  %v518 = vld [vmem:[%s1 + $0x20] sm:$0xff]
  %v519 = vld [vmem:[%s1 + $0x28] sm:$0xff]
  %v520 = vld [vmem:[%s1 + $0x30] sm:$0xff]
  %v521 = vld [vmem:[%s1 + $0x38] sm:$0xff]
  %v522 = vld [vmem:[%s1 + $0x40] sm:$0xff]
  %v523 = vld [vmem:[%s1 + $0x48] sm:$0xff]
  %v524 = vld [vmem:[%s1 + $0x50] sm:$0xff]
  %v525 = vld [vmem:[%s1 + $0x58] sm:$0xff]
  %v526 = vld [vmem:[%s1 + $0x60] sm:$0xff]
  %v527 = vld [vmem:[%s1 + $0x68] sm:$0xff]
  %v528 = vld [vmem:[%s1 + $0x70] sm:$0xff]
  %v529 = vld [vmem:[%s1 + $0x78] sm:$0xff]
  %v530 = vld [vmem:[%s1 + $0x80] sm:$0xff]
  %v531 = vld [vmem:[%s1 + $0x88] sm:$0xff]
  %v532 = vld [vmem:[%s1 + $0x90] sm:$0xff]
  %v533 = vld [vmem:[%s1 + $0x98] sm:$0xff]
  %v534 = vld [vmem:[%s1 + $0xa0] sm:$0xff]
  %v535 = vld [vmem:[%s1 + $0xa8] sm:$0xff]
  %v536 = vld [vmem:[%s1 + $0xb0] sm:$0xff]
  %v537 = vld [vmem:[%s1 + $0xb8] sm:$0xff]
  %v538 = vld [vmem:[%s1 + $0xc0] sm:$0xff]
  %v539 = vld [vmem:[%s1 + $0xc8] sm:$0xff]
  %v540 = vld [vmem:[%s1 + $0xd0] sm:$0xff]
  %v541 = vld [vmem:[%s1 + $0xd8] sm:$0xff]
  %v542 = vld [vmem:[%s1 + $0xe0] sm:$0xff]
  %v543 = vld [vmem:[%s1 + $0xe8] sm:$0xff]
  %v544 = vld [vmem:[%s1 + $0xf0] sm:$0xff]
  %v545 = vld [vmem:[%s1 + $0xf8] sm:$0xff]
  %547 = vset.pattern.permute.xlu0 0
  %548 = vperm.xlu0 %547, %v514
  %v549 = vpop.permute.xlu0 %548
  %552 = vset.pattern.permute.xlu0 0
  %553 = vperm.xlu0 %552, %v515
  %v554 = vpop.permute.xlu0 %553
  %557 = vset.pattern.permute.xlu0 0
  %558 = vperm.xlu0 %557, %v516
  %v559 = vpop.permute.xlu0 %558
  %562 = vset.pattern.permute.xlu0 0
  %563 = vperm.xlu0 %562, %v517
  %v564 = vpop.permute.xlu0 %563
  %567 = vset.pattern.permute.xlu0 0
  %568 = vperm.xlu0 %567, %v518
  %v569 = vpop.permute.xlu0 %568
  %572 = vset.pattern.permute.xlu0 0
  %573 = vperm.xlu0 %572, %v519
  %v574 = vpop.permute.xlu0 %573
  %577 = vset.pattern.permute.xlu0 0
  %578 = vperm.xlu0 %577, %v520
  %v579 = vpop.permute.xlu0 %578
  %582 = vset.pattern.permute.xlu0 0
  %583 = vperm.xlu0 %582, %v521
  %v584 = vpop.permute.xlu0 %583
  %587 = vset.pattern.permute.xlu0 0
  %588 = vperm.xlu0 %587, %v522
  %v589 = vpop.permute.xlu0 %588
  %592 = vset.pattern.permute.xlu0 0
  %593 = vperm.xlu0 %592, %v523
  %v594 = vpop.permute.xlu0 %593
  %597 = vset.pattern.permute.xlu0 0
  %598 = vperm.xlu0 %597, %v524
  %v599 = vpop.permute.xlu0 %598
  %602 = vset.pattern.permute.xlu0 0
  %603 = vperm.xlu0 %602, %v525
  %v604 = vpop.permute.xlu0 %603
  %607 = vset.pattern.permute.xlu0 0
  %608 = vperm.xlu0 %607, %v526
  %v609 = vpop.permute.xlu0 %608
  %612 = vset.pattern.permute.xlu0 0
  %613 = vperm.xlu0 %612, %v527
  %v614 = vpop.permute.xlu0 %613
  %617 = vset.pattern.permute.xlu0 0
  %618 = vperm.xlu0 %617, %v528
  %v619 = vpop.permute.xlu0 %618
  %622 = vset.pattern.permute.xlu0 0
  %623 = vperm.xlu0 %622, %v529
  %v624 = vpop.permute.xlu0 %623
  %627 = vset.pattern.permute.xlu0 0
  %628 = vperm.xlu0 %627, %v530
  %v629 = vpop.permute.xlu0 %628
  %632 = vset.pattern.permute.xlu0 0
  %633 = vperm.xlu0 %632, %v531
  %v634 = vpop.permute.xlu0 %633
  %637 = vset.pattern.permute.xlu0 0
  %638 = vperm.xlu0 %637, %v532
  %v639 = vpop.permute.xlu0 %638
  %642 = vset.pattern.permute.xlu0 0
  %643 = vperm.xlu0 %642, %v533
  %v644 = vpop.permute.xlu0 %643
  %647 = vset.pattern.permute.xlu0 0
  %648 = vperm.xlu0 %647, %v534
  %v649 = vpop.permute.xlu0 %648
  %652 = vset.pattern.permute.xlu0 0
  %653 = vperm.xlu0 %652, %v535
  %v654 = vpop.permute.xlu0 %653
  %657 = vset.pattern.permute.xlu0 0
  %658 = vperm.xlu0 %657, %v536
  %v659 = vpop.permute.xlu0 %658
  %662 = vset.pattern.permute.xlu0 0
  %663 = vperm.xlu0 %662, %v537
  %v664 = vpop.permute.xlu0 %663
  %667 = vset.pattern.permute.xlu0 0
  %668 = vperm.xlu0 %667, %v538
  %v669 = vpop.permute.xlu0 %668
  %672 = vset.pattern.permute.xlu0 0
  %673 = vperm.xlu0 %672, %v539
  %v674 = vpop.permute.xlu0 %673
  %677 = vset.pattern.permute.xlu0 0
  %678 = vperm.xlu0 %677, %v540
  %v679 = vpop.permute.xlu0 %678
  %682 = vset.pattern.permute.xlu0 0
  %683 = vperm.xlu0 %682, %v541
  %v684 = vpop.permute.xlu0 %683
  %687 = vset.pattern.permute.xlu0 0
  %688 = vperm.xlu0 %687, %v542
  %v689 = vpop.permute.xlu0 %688
  %692 = vset.pattern.permute.xlu0 0
  %693 = vperm.xlu0 %692, %v543
  %v694 = vpop.permute.xlu0 %693
  %697 = vset.pattern.permute.xlu0 0
  %698 = vperm.xlu0 %697, %v544
  %v699 = vpop.permute.xlu0 %698
  %702 = vset.pattern.permute.xlu0 0
  %703 = vperm.xlu0 %702, %v545
  %v704 = vpop.permute.xlu0 %703
  %v706 = vmul.f32 %v450, %v549
  %v707 = vmul.f32 %v451, %v549
  %v708 = vmul.f32 %v452, %v554
  %v709 = vmul.f32 %v453, %v554
  %v710 = vmul.f32 %v454, %v559
  %v711 = vmul.f32 %v455, %v559
  %v712 = vmul.f32 %v456, %v564
  %v713 = vmul.f32 %v457, %v564
  %v714 = vmul.f32 %v458, %v569
  %v715 = vmul.f32 %v459, %v569
  %v716 = vmul.f32 %v460, %v574
  %v717 = vmul.f32 %v461, %v574
  %v718 = vmul.f32 %v462, %v579
  %v719 = vmul.f32 %v463, %v579
  %v720 = vmul.f32 %v464, %v584
  %v721 = vmul.f32 %v465, %v584
  %v722 = vmul.f32 %v466, %v589
  %v723 = vmul.f32 %v467, %v589
  %v724 = vmul.f32 %v468, %v594
  %v725 = vmul.f32 %v469, %v594
  %v726 = vmul.f32 %v470, %v599
  %v727 = vmul.f32 %v471, %v599
  %v728 = vmul.f32 %v472, %v604
  %v729 = vmul.f32 %v473, %v604
  %v730 = vmul.f32 %v474, %v609
  %v731 = vmul.f32 %v475, %v609
  %v732 = vmul.f32 %v476, %v614
  %v733 = vmul.f32 %v477, %v614
  %v734 = vmul.f32 %v478, %v619
  %v735 = vmul.f32 %v479, %v619
  %v736 = vmul.f32 %v480, %v624
  %v737 = vmul.f32 %v481, %v624
  %v738 = vmul.f32 %v482, %v629
  %v739 = vmul.f32 %v483, %v629
  %v740 = vmul.f32 %v484, %v634
  %v741 = vmul.f32 %v485, %v634
  %v742 = vmul.f32 %v486, %v639
  %v743 = vmul.f32 %v487, %v639
  %v744 = vmul.f32 %v488, %v644
  %v745 = vmul.f32 %v489, %v644
  %v746 = vmul.f32 %v490, %v649
  %v747 = vmul.f32 %v491, %v649
  %v748 = vmul.f32 %v492, %v654
  %v749 = vmul.f32 %v493, %v654
  %v750 = vmul.f32 %v494, %v659
  %v751 = vmul.f32 %v495, %v659
  %v752 = vmul.f32 %v496, %v664
  %v753 = vmul.f32 %v497, %v664
  %v754 = vmul.f32 %v498, %v669
  %v755 = vmul.f32 %v499, %v669
  %v756 = vmul.f32 %v500, %v674
  %v757 = vmul.f32 %v501, %v674
  %v758 = vmul.f32 %v502, %v679
  %v759 = vmul.f32 %v503, %v679
  %v760 = vmul.f32 %v504, %v684
  %v761 = vmul.f32 %v505, %v684
  %v762 = vmul.f32 %v506, %v689
  %v763 = vmul.f32 %v507, %v689
  %v764 = vmul.f32 %v508, %v694
  %v765 = vmul.f32 %v509, %v694
  %v766 = vmul.f32 %v510, %v699
  %v767 = vmul.f32 %v511, %v699
  %v768 = vmul.f32 %v512, %v704
  %v769 = vmul.f32 %v513, %v704
  %v770 = vld [vmem:[%s2] sm:$0x3]
  %v772 = vlaneseq
  %v773 = vshrl.u32 %v772, 7
  %v774 = vsub.s32 0, %v773
  %v775 = vrot.slane %v770, %v774
  %v776 = vlaneseq
  %v777 = vshrl.u32 %v776, 7
  %v778 = vsub.s32 1, %v777
  %v779 = vrot.slane %v770, %v778
  %v782 = vmul.f32 %v706, %v775
  %v783 = vmul.f32 %v707, %v779
  %v784 = vmul.f32 %v708, %v775
  %v785 = vmul.f32 %v709, %v779
  %v786 = vmul.f32 %v710, %v775
  %v787 = vmul.f32 %v711, %v779
  %v788 = vmul.f32 %v712, %v775
  %v789 = vmul.f32 %v713, %v779
  %v790 = vmul.f32 %v714, %v775
  %v791 = vmul.f32 %v715, %v779
  %v792 = vmul.f32 %v716, %v775
  %v793 = vmul.f32 %v717, %v779
  %v794 = vmul.f32 %v718, %v775
  %v795 = vmul.f32 %v719, %v779
  %v796 = vmul.f32 %v720, %v775
  %v797 = vmul.f32 %v721, %v779
  %v798 = vmul.f32 %v722, %v775
  %v799 = vmul.f32 %v723, %v779
  %v800 = vmul.f32 %v724, %v775
  %v801 = vmul.f32 %v725, %v779
  %v802 = vmul.f32 %v726, %v775
  %v803 = vmul.f32 %v727, %v779
  %v804 = vmul.f32 %v728, %v775
  %v805 = vmul.f32 %v729, %v779
  %v806 = vmul.f32 %v730, %v775
  %v807 = vmul.f32 %v731, %v779
  %v808 = vmul.f32 %v732, %v775
  %v809 = vmul.f32 %v733, %v779
  %v810 = vmul.f32 %v734, %v775
  %v811 = vmul.f32 %v735, %v779
  %v812 = vmul.f32 %v736, %v775
  %v813 = vmul.f32 %v737, %v779
  %v814 = vmul.f32 %v738, %v775
  %v815 = vmul.f32 %v739, %v779
  %v816 = vmul.f32 %v740, %v775
  %v817 = vmul.f32 %v741, %v779
  %v818 = vmul.f32 %v742, %v775
  %v819 = vmul.f32 %v743, %v779
  %v820 = vmul.f32 %v744, %v775
  %v821 = vmul.f32 %v745, %v779
  %v822 = vmul.f32 %v746, %v775
  %v823 = vmul.f32 %v747, %v779
  %v824 = vmul.f32 %v748, %v775
  %v825 = vmul.f32 %v749, %v779
  %v826 = vmul.f32 %v750, %v775
  %v827 = vmul.f32 %v751, %v779
  %v828 = vmul.f32 %v752, %v775
  %v829 = vmul.f32 %v753, %v779
  %v830 = vmul.f32 %v754, %v775
  %v831 = vmul.f32 %v755, %v779
  %v832 = vmul.f32 %v756, %v775
  %v833 = vmul.f32 %v757, %v779
  %v834 = vmul.f32 %v758, %v775
  %v835 = vmul.f32 %v759, %v779
  %v836 = vmul.f32 %v760, %v775
  %v837 = vmul.f32 %v761, %v779
  %v838 = vmul.f32 %v762, %v775
  %v839 = vmul.f32 %v763, %v779
  %v840 = vmul.f32 %v764, %v775
  %v841 = vmul.f32 %v765, %v779
  %v842 = vmul.f32 %v766, %v775
  %v843 = vmul.f32 %v767, %v779
  %v844 = vmul.f32 %v768, %v775
  %v845 = vmul.f32 %v769, %v779
  %v846 = vpack.c.bf16 %v784, %v782
  %v847 = vpack.c.bf16 %v785, %v783
  %v848 = vpack.c.bf16 %v788, %v786
  %v849 = vpack.c.bf16 %v789, %v787
  %v850 = vpack.c.bf16 %v792, %v790
  %v851 = vpack.c.bf16 %v793, %v791
  %v852 = vpack.c.bf16 %v796, %v794
  %v853 = vpack.c.bf16 %v797, %v795
  %v854 = vpack.c.bf16 %v800, %v798
  %v855 = vpack.c.bf16 %v801, %v799
  %v856 = vpack.c.bf16 %v804, %v802
  %v857 = vpack.c.bf16 %v805, %v803
  %v858 = vpack.c.bf16 %v808, %v806
  %v859 = vpack.c.bf16 %v809, %v807
  %v860 = vpack.c.bf16 %v812, %v810
  %v861 = vpack.c.bf16 %v813, %v811
  %v862 = vpack.c.bf16 %v816, %v814
  %v863 = vpack.c.bf16 %v817, %v815
  %v864 = vpack.c.bf16 %v820, %v818
  %v865 = vpack.c.bf16 %v821, %v819
  %v866 = vpack.c.bf16 %v824, %v822
  %v867 = vpack.c.bf16 %v825, %v823
  %v868 = vpack.c.bf16 %v828, %v826
  %v869 = vpack.c.bf16 %v829, %v827
  %v870 = vpack.c.bf16 %v832, %v830
  %v871 = vpack.c.bf16 %v833, %v831
  %v872 = vpack.c.bf16 %v836, %v834
  %v873 = vpack.c.bf16 %v837, %v835
  %v874 = vpack.c.bf16 %v840, %v838
  %v875 = vpack.c.bf16 %v841, %v839
  %v876 = vpack.c.bf16 %v844, %v842
  %v877 = vpack.c.bf16 %v845, %v843
  %v878 = vld [vmem:[#allocation2] sm:$0xff]
  %v879 = vld [vmem:[#allocation2 + $0x8] sm:$0xff]
  %v880 = vld [vmem:[#allocation2 + $0x10] sm:$0xff]
  %v881 = vld [vmem:[#allocation2 + $0x18] sm:$0xff]
  %v882 = vld [vmem:[#allocation2 + $0x20] sm:$0xff]
  %v883 = vld [vmem:[#allocation2 + $0x28] sm:$0xff]
  %v884 = vld [vmem:[#allocation2 + $0x30] sm:$0xff]
  %v885 = vld [vmem:[#allocation2 + $0x38] sm:$0xff]
  %v886 = vld [vmem:[#allocation2 + $0x40] sm:$0xff]
  %v887 = vld [vmem:[#allocation2 + $0x48] sm:$0xff]
  %v888 = vld [vmem:[#allocation2 + $0x50] sm:$0xff]
  %v889 = vld [vmem:[#allocation2 + $0x58] sm:$0xff]
  %v890 = vld [vmem:[#allocation2 + $0x60] sm:$0xff]
  %v891 = vld [vmem:[#allocation2 + $0x68] sm:$0xff]
  %v892 = vld [vmem:[#allocation2 + $0x70] sm:$0xff]
  %v893 = vld [vmem:[#allocation2 + $0x78] sm:$0xff]
  %v894 = vld [vmem:[#allocation2 + $0x80] sm:$0xff]
  %v895 = vld [vmem:[#allocation2 + $0x88] sm:$0xff]
  %v896 = vld [vmem:[#allocation2 + $0x90] sm:$0xff]
  %v897 = vld [vmem:[#allocation2 + $0x98] sm:$0xff]
  %v898 = vld [vmem:[#allocation2 + $0xa0] sm:$0xff]
  %v899 = vld [vmem:[#allocation2 + $0xa8] sm:$0xff]
  %v900 = vld [vmem:[#allocation2 + $0xb0] sm:$0xff]
  %v901 = vld [vmem:[#allocation2 + $0xb8] sm:$0xff]
  %v902 = vld [vmem:[#allocation2 + $0xc0] sm:$0xff]
  %v903 = vld [vmem:[#allocation2 + $0xc8] sm:$0xff]
  %v904 = vld [vmem:[#allocation2 + $0xd0] sm:$0xff]
  %v905 = vld [vmem:[#allocation2 + $0xd8] sm:$0xff]
  %v906 = vld [vmem:[#allocation2 + $0xe0] sm:$0xff]
  %v907 = vld [vmem:[#allocation2 + $0xe8] sm:$0xff]
  %v908 = vld [vmem:[#allocation2 + $0xf0] sm:$0xff]
  %v909 = vld [vmem:[#allocation2 + $0xf8] sm:$0xff]
  %v910 = vld [vmem:[#allocation2 + $0x100] sm:$0xff]
  %v911 = vld [vmem:[#allocation2 + $0x108] sm:$0xff]
  %v912 = vld [vmem:[#allocation2 + $0x110] sm:$0xff]
  %v913 = vld [vmem:[#allocation2 + $0x118] sm:$0xff]
  %v914 = vld [vmem:[#allocation2 + $0x120] sm:$0xff]
  %v915 = vld [vmem:[#allocation2 + $0x128] sm:$0xff]
  %v916 = vld [vmem:[#allocation2 + $0x130] sm:$0xff]
  %v917 = vld [vmem:[#allocation2 + $0x138] sm:$0xff]
  %v918 = vld [vmem:[#allocation2 + $0x140] sm:$0xff]
  %v919 = vld [vmem:[#allocation2 + $0x148] sm:$0xff]
  %v920 = vld [vmem:[#allocation2 + $0x150] sm:$0xff]
  %v921 = vld [vmem:[#allocation2 + $0x158] sm:$0xff]
  %v922 = vld [vmem:[#allocation2 + $0x160] sm:$0xff]
  %v923 = vld [vmem:[#allocation2 + $0x168] sm:$0xff]
  %v924 = vld [vmem:[#allocation2 + $0x170] sm:$0xff]
  %v925 = vld [vmem:[#allocation2 + $0x178] sm:$0xff]
  %v926 = vld [vmem:[#allocation2 + $0x180] sm:$0xff]
  %v927 = vld [vmem:[#allocation2 + $0x188] sm:$0xff]
  %v928 = vld [vmem:[#allocation2 + $0x190] sm:$0xff]
  %v929 = vld [vmem:[#allocation2 + $0x198] sm:$0xff]
  %v930 = vld [vmem:[#allocation2 + $0x1a0] sm:$0xff]
  %v931 = vld [vmem:[#allocation2 + $0x1a8] sm:$0xff]
  %v932 = vld [vmem:[#allocation2 + $0x1b0] sm:$0xff]
  %v933 = vld [vmem:[#allocation2 + $0x1b8] sm:$0xff]
  %v934 = vld [vmem:[#allocation2 + $0x1c0] sm:$0xff]
  %v935 = vld [vmem:[#allocation2 + $0x1c8] sm:$0xff]
  %v936 = vld [vmem:[#allocation2 + $0x1d0] sm:$0xff]
  %v937 = vld [vmem:[#allocation2 + $0x1d8] sm:$0xff]
  %v938 = vld [vmem:[#allocation2 + $0x1e0] sm:$0xff]
  %v939 = vld [vmem:[#allocation2 + $0x1e8] sm:$0xff]
  %v940 = vld [vmem:[#allocation2 + $0x1f0] sm:$0xff]
  %v941 = vld [vmem:[#allocation2 + $0x1f8] sm:$0xff]
  %v942 = vld [vmem:[%s3] sm:$0xff]
  %v943 = vld [vmem:[%s3 + $0x8] sm:$0xff]
  %v944 = vld [vmem:[%s3 + $0x10] sm:$0xff]
  %v945 = vld [vmem:[%s3 + $0x18] sm:$0xff]
  %v946 = vld [vmem:[%s3 + $0x20] sm:$0xff]
  %v947 = vld [vmem:[%s3 + $0x28] sm:$0xff]
  %v948 = vld [vmem:[%s3 + $0x30] sm:$0xff]
  %v949 = vld [vmem:[%s3 + $0x38] sm:$0xff]
  %v950 = vld [vmem:[%s3 + $0x40] sm:$0xff]
  %v951 = vld [vmem:[%s3 + $0x48] sm:$0xff]
  %v952 = vld [vmem:[%s3 + $0x50] sm:$0xff]
  %v953 = vld [vmem:[%s3 + $0x58] sm:$0xff]
  %v954 = vld [vmem:[%s3 + $0x60] sm:$0xff]
  %v955 = vld [vmem:[%s3 + $0x68] sm:$0xff]
  %v956 = vld [vmem:[%s3 + $0x70] sm:$0xff]
  %v957 = vld [vmem:[%s3 + $0x78] sm:$0xff]
  %v958 = vld [vmem:[%s3 + $0x80] sm:$0xff]
  %v959 = vld [vmem:[%s3 + $0x88] sm:$0xff]
  %v960 = vld [vmem:[%s3 + $0x90] sm:$0xff]
  %v961 = vld [vmem:[%s3 + $0x98] sm:$0xff]
  %v962 = vld [vmem:[%s3 + $0xa0] sm:$0xff]
  %v963 = vld [vmem:[%s3 + $0xa8] sm:$0xff]
  %v964 = vld [vmem:[%s3 + $0xb0] sm:$0xff]
  %v965 = vld [vmem:[%s3 + $0xb8] sm:$0xff]
  %v966 = vld [vmem:[%s3 + $0xc0] sm:$0xff]
  %v967 = vld [vmem:[%s3 + $0xc8] sm:$0xff]
  %v968 = vld [vmem:[%s3 + $0xd0] sm:$0xff]
  %v969 = vld [vmem:[%s3 + $0xd8] sm:$0xff]
  %v970 = vld [vmem:[%s3 + $0xe0] sm:$0xff]
  %v971 = vld [vmem:[%s3 + $0xe8] sm:$0xff]
  %v972 = vld [vmem:[%s3 + $0xf0] sm:$0xff]
  %v973 = vld [vmem:[%s3 + $0xf8] sm:$0xff]
  %v1006 = vunpack.c.l.b16 %v942
  %v1007 = vunpack.c.h.b16 %v942
  %v1008 = vunpack.c.l.b16 %v943
  %v1009 = vunpack.c.h.b16 %v943
  %v1010 = vunpack.c.l.b16 %v944
  %v1011 = vunpack.c.h.b16 %v944
  %v1012 = vunpack.c.l.b16 %v945
  %v1013 = vunpack.c.h.b16 %v945
  %v1014 = vunpack.c.l.b16 %v946
  %v1015 = vunpack.c.h.b16 %v946
  %v1016 = vunpack.c.l.b16 %v947
  %v1017 = vunpack.c.h.b16 %v947
  %v1018 = vunpack.c.l.b16 %v948
  %v1019 = vunpack.c.h.b16 %v948
  %v1020 = vunpack.c.l.b16 %v949
  %v1021 = vunpack.c.h.b16 %v949
  %v1022 = vunpack.c.l.b16 %v950
  %v1023 = vunpack.c.h.b16 %v950
  %v1024 = vunpack.c.l.b16 %v951
  %v1025 = vunpack.c.h.b16 %v951
  %v1026 = vunpack.c.l.b16 %v952
  %v1027 = vunpack.c.h.b16 %v952
  %v1028 = vunpack.c.l.b16 %v953
  %v1029 = vunpack.c.h.b16 %v953
  %v1030 = vunpack.c.l.b16 %v954
  %v1031 = vunpack.c.h.b16 %v954
  %v1032 = vunpack.c.l.b16 %v955
  %v1033 = vunpack.c.h.b16 %v955
  %v1034 = vunpack.c.l.b16 %v956
  %v1035 = vunpack.c.h.b16 %v956
  %v1036 = vunpack.c.l.b16 %v957
  %v1037 = vunpack.c.h.b16 %v957
  %v1038 = vunpack.c.l.b16 %v958
  %v1039 = vunpack.c.h.b16 %v958
  %v1040 = vunpack.c.l.b16 %v959
  %v1041 = vunpack.c.h.b16 %v959
  %v1042 = vunpack.c.l.b16 %v960
  %v1043 = vunpack.c.h.b16 %v960
  %v1044 = vunpack.c.l.b16 %v961
  %v1045 = vunpack.c.h.b16 %v961
  %v1046 = vunpack.c.l.b16 %v962
  %v1047 = vunpack.c.h.b16 %v962
  %v1048 = vunpack.c.l.b16 %v963
  %v1049 = vunpack.c.h.b16 %v963
  %v1050 = vunpack.c.l.b16 %v964
  %v1051 = vunpack.c.h.b16 %v964
  %v1052 = vunpack.c.l.b16 %v965
  %v1053 = vunpack.c.h.b16 %v965
  %v1054 = vunpack.c.l.b16 %v966
  %v1055 = vunpack.c.h.b16 %v966
  %v1056 = vunpack.c.l.b16 %v967
  %v1057 = vunpack.c.h.b16 %v967
  %v1058 = vunpack.c.l.b16 %v968
  %v1059 = vunpack.c.h.b16 %v968
  %v1060 = vunpack.c.l.b16 %v969
  %v1061 = vunpack.c.h.b16 %v969
  %v1062 = vunpack.c.l.b16 %v970
  %v1063 = vunpack.c.h.b16 %v970
  %v1064 = vunpack.c.l.b16 %v971
  %v1065 = vunpack.c.h.b16 %v971
  %v1066 = vunpack.c.l.b16 %v972
  %v1067 = vunpack.c.h.b16 %v972
  %v1068 = vunpack.c.l.b16 %v973
  %v1069 = vunpack.c.h.b16 %v973
  %v1070 = vpack.c.b16 %v1008, %v1006
  %v1071 = vpack.c.b16 %v1009, %v1007
  %v1072 = vpack.c.b16 %v1012, %v1010
  %v1073 = vpack.c.b16 %v1013, %v1011
  %v1074 = vpack.c.b16 %v1016, %v1014
  %v1075 = vpack.c.b16 %v1017, %v1015
  %v1076 = vpack.c.b16 %v1020, %v1018
  %v1077 = vpack.c.b16 %v1021, %v1019
  %v1078 = vpack.c.b16 %v1024, %v1022
  %v1079 = vpack.c.b16 %v1025, %v1023
  %v1080 = vpack.c.b16 %v1028, %v1026
  %v1081 = vpack.c.b16 %v1029, %v1027
  %v1082 = vpack.c.b16 %v1032, %v1030
  %v1083 = vpack.c.b16 %v1033, %v1031
  %v1084 = vpack.c.b16 %v1036, %v1034
  %v1085 = vpack.c.b16 %v1037, %v1035
  %v1086 = vpack.c.b16 %v1040, %v1038
  %v1087 = vpack.c.b16 %v1041, %v1039
  %v1088 = vpack.c.b16 %v1044, %v1042
  %v1089 = vpack.c.b16 %v1045, %v1043
  %v1090 = vpack.c.b16 %v1048, %v1046
  %v1091 = vpack.c.b16 %v1049, %v1047
  %v1092 = vpack.c.b16 %v1052, %v1050
  %v1093 = vpack.c.b16 %v1053, %v1051
  %v1094 = vpack.c.b16 %v1056, %v1054
  %v1095 = vpack.c.b16 %v1057, %v1055
  %v1096 = vpack.c.b16 %v1060, %v1058
  %v1097 = vpack.c.b16 %v1061, %v1059
  %v1098 = vpack.c.b16 %v1064, %v1062
  %v1099 = vpack.c.b16 %v1065, %v1063
  %v1100 = vpack.c.b16 %v1068, %v1066
  %v1101 = vpack.c.b16 %v1069, %v1067
  %1134 = vmatprep.subr.bf16.mxu0 %v1071
  %1135 = vmatpush1.bf16.msra.mxu0 %v1070
  %1136 = vmatprep.subr.bf16.mxu0 %v1073
  %1137 = vmatpush1.bf16.msra.mxu0 %v1072
  %1138 = vmatprep.subr.bf16.mxu0 %v1075
  %1139 = vmatpush1.bf16.msra.mxu0 %v1074
  %1140 = vmatprep.subr.bf16.mxu0 %v1077
  %1141 = vmatpush1.bf16.msra.mxu0 %v1076
  %1142 = vmatprep.subr.bf16.mxu0 %v1079
  %1143 = vmatpush1.bf16.msra.mxu0 %v1078
  %1144 = vmatprep.subr.bf16.mxu0 %v1081
  %1145 = vmatpush1.bf16.msra.mxu0 %v1080
  %1146 = vmatprep.subr.bf16.mxu0 %v1083
  %1147 = vmatpush1.bf16.msra.mxu0 %v1082
  %1148 = vmatprep.subr.bf16.mxu0 %v1085
  %1149 = vmatpush1.bf16.msra.mxu0 %v1084
  %1150 = vmatprep.subr.bf16.mxu0 %v1087
  %1151 = vmatpush1.bf16.msra.mxu0 %v1086
  %1152 = vmatprep.subr.bf16.mxu0 %v1089
  %1153 = vmatpush1.bf16.msra.mxu0 %v1088
  %1154 = vmatprep.subr.bf16.mxu0 %v1091
  %1155 = vmatpush1.bf16.msra.mxu0 %v1090
  %1156 = vmatprep.subr.bf16.mxu0 %v1093
  %1157 = vmatpush1.bf16.msra.mxu0 %v1092
  %1158 = vmatprep.subr.bf16.mxu0 %v1095
  %1159 = vmatpush1.bf16.msra.mxu0 %v1094
  %1160 = vmatprep.subr.bf16.mxu0 %v1097
  %1161 = vmatpush1.bf16.msra.mxu0 %v1096
  %1162 = vmatprep.subr.bf16.mxu0 %v1099
  %1163 = vmatpush1.bf16.msra.mxu0 %v1098
  %1164 = vmatprep.subr.bf16.mxu0 %v1101
  %1165 = vmatpush1.bf16.msra.mxu0 %v1100
  %1166 = vmatprep.mubr.bf16.mxu0 %v847
  %1167 = vmatmul.mubr.bf16.gmra.mrb[0].mxu0 %v846
  %v1168 = vpop.f32.mrb[0].mxu0
  %v1169 = vadd.f32 0.0, %v1168
  %v1170 = vpop.f32.mrb[0].mxu0
  %v1171 = vadd.f32 0.0, %v1170
  %v1172 = vpop.f32.mrb[0].mxu0
  %v1173 = vadd.f32 0.0, %v1172
  %v1174 = vpop.f32.mrb[0].mxu0
  %v1175 = vadd.f32 0.0, %v1174
  %1176 = vmatprep.mubr.bf16.mxu0 %v849
  %1177 = vmatmul.mubr.bf16.gmra.mrb[0].mxu0 %v848
  %v1178 = vpop.f32.mrb[0].mxu0
  %v1179 = vadd.f32 0.0, %v1178
  %v1180 = vpop.f32.mrb[0].mxu0
  %v1181 = vadd.f32 0.0, %v1180
  %v1182 = vpop.f32.mrb[0].mxu0
  %v1183 = vadd.f32 0.0, %v1182
  %v1184 = vpop.f32.mrb[0].mxu0
  %v1185 = vadd.f32 0.0, %v1184
  %1186 = vmatprep.mubr.bf16.mxu0 %v851
  %1187 = vmatmul.mubr.bf16.gmra.mrb[0].mxu0 %v850
  %v1188 = vpop.f32.mrb[0].mxu0
  %v1189 = vadd.f32 0.0, %v1188
  %v1190 = vpop.f32.mrb[0].mxu0
  %v1191 = vadd.f32 0.0, %v1190
  %v1192 = vpop.f32.mrb[0].mxu0
  %v1193 = vadd.f32 0.0, %v1192
  %v1194 = vpop.f32.mrb[0].mxu0
  %v1195 = vadd.f32 0.0, %v1194
  %1196 = vmatprep.mubr.bf16.mxu0 %v853
  %1197 = vmatmul.mubr.bf16.gmra.mrb[0].mxu0 %v852
  %v1198 = vpop.f32.mrb[0].mxu0
  %v1199 = vadd.f32 0.0, %v1198
  %v1200 = vpop.f32.mrb[0].mxu0
  %v1201 = vadd.f32 0.0, %v1200
  %v1202 = vpop.f32.mrb[0].mxu0
  %v1203 = vadd.f32 0.0, %v1202
  %v1204 = vpop.f32.mrb[0].mxu0
  %v1205 = vadd.f32 0.0, %v1204
  %1206 = vmatprep.mubr.bf16.mxu0 %v855
  %1207 = vmatmul.mubr.bf16.gmra.mrb[0].mxu0 %v854
  %v1208 = vpop.f32.mrb[0].mxu0
  %v1209 = vadd.f32 0.0, %v1208
  %v1210 = vpop.f32.mrb[0].mxu0
  %v1211 = vadd.f32 0.0, %v1210
  %v1212 = vpop.f32.mrb[0].mxu0
  %v1213 = vadd.f32 0.0, %v1212
  %v1214 = vpop.f32.mrb[0].mxu0
  %v1215 = vadd.f32 0.0, %v1214
  %1216 = vmatprep.mubr.bf16.mxu0 %v857
  %1217 = vmatmul.mubr.bf16.gmra.mrb[0].mxu0 %v856
  %v1218 = vpop.f32.mrb[0].mxu0
  %v1219 = vadd.f32 0.0, %v1218
  %v1220 = vpop.f32.mrb[0].mxu0
  %v1221 = vadd.f32 0.0, %v1220
  %v1222 = vpop.f32.mrb[0].mxu0
  %v1223 = vadd.f32 0.0, %v1222
  %v1224 = vpop.f32.mrb[0].mxu0
  %v1225 = vadd.f32 0.0, %v1224
  %1226 = vmatprep.mubr.bf16.mxu0 %v859
  %1227 = vmatmul.mubr.bf16.gmra.mrb[0].mxu0 %v858
  %v1228 = vpop.f32.mrb[0].mxu0
  %v1229 = vadd.f32 0.0, %v1228
  %v1230 = vpop.f32.mrb[0].mxu0
  %v1231 = vadd.f32 0.0, %v1230
  %v1232 = vpop.f32.mrb[0].mxu0
  %v1233 = vadd.f32 0.0, %v1232
  %v1234 = vpop.f32.mrb[0].mxu0
  %v1235 = vadd.f32 0.0, %v1234
  %1236 = vmatprep.mubr.bf16.mxu0 %v861
  %1237 = vmatmul.mubr.bf16.gmra.mrb[0].mxu0 %v860
  %v1238 = vpop.f32.mrb[0].mxu0
  %v1239 = vadd.f32 0.0, %v1238
  %v1240 = vpop.f32.mrb[0].mxu0
  %v1241 = vadd.f32 0.0, %v1240
  %v1242 = vpop.f32.mrb[0].mxu0
  %v1243 = vadd.f32 0.0, %v1242
  %v1244 = vpop.f32.mrb[0].mxu0
  %v1245 = vadd.f32 0.0, %v1244
  %1246 = vmatprep.mubr.bf16.mxu0 %v863
  %1247 = vmatmul.mubr.bf16.gmra.mrb[0].mxu0 %v862
  %v1248 = vpop.f32.mrb[0].mxu0
  %v1249 = vadd.f32 0.0, %v1248
  %v1250 = vpop.f32.mrb[0].mxu0
  %v1251 = vadd.f32 0.0, %v1250
  %v1252 = vpop.f32.mrb[0].mxu0
  %v1253 = vadd.f32 0.0, %v1252
  %v1254 = vpop.f32.mrb[0].mxu0
  %v1255 = vadd.f32 0.0, %v1254
  %1256 = vmatprep.mubr.bf16.mxu0 %v865
  %1257 = vmatmul.mubr.bf16.gmra.mrb[0].mxu0 %v864
  %v1258 = vpop.f32.mrb[0].mxu0
  %v1259 = vadd.f32 0.0, %v1258
  %v1260 = vpop.f32.mrb[0].mxu0
  %v1261 = vadd.f32 0.0, %v1260
  %v1262 = vpop.f32.mrb[0].mxu0
  %v1263 = vadd.f32 0.0, %v1262
  %v1264 = vpop.f32.mrb[0].mxu0
  %v1265 = vadd.f32 0.0, %v1264
  %1266 = vmatprep.mubr.bf16.mxu0 %v867
  %1267 = vmatmul.mubr.bf16.gmra.mrb[0].mxu0 %v866
  %v1268 = vpop.f32.mrb[0].mxu0
  %v1269 = vadd.f32 0.0, %v1268
  %v1270 = vpop.f32.mrb[0].mxu0
  %v1271 = vadd.f32 0.0, %v1270
  %v1272 = vpop.f32.mrb[0].mxu0
  %v1273 = vadd.f32 0.0, %v1272
  %v1274 = vpop.f32.mrb[0].mxu0
  %v1275 = vadd.f32 0.0, %v1274
  %1276 = vmatprep.mubr.bf16.mxu0 %v869
  %1277 = vmatmul.mubr.bf16.gmra.mrb[0].mxu0 %v868
  %v1278 = vpop.f32.mrb[0].mxu0
  %v1279 = vadd.f32 0.0, %v1278
  %v1280 = vpop.f32.mrb[0].mxu0
  %v1281 = vadd.f32 0.0, %v1280
  %v1282 = vpop.f32.mrb[0].mxu0
  %v1283 = vadd.f32 0.0, %v1282
  %v1284 = vpop.f32.mrb[0].mxu0
  %v1285 = vadd.f32 0.0, %v1284
  %1286 = vmatprep.mubr.bf16.mxu0 %v871
  %1287 = vmatmul.mubr.bf16.gmra.mrb[0].mxu0 %v870
  %v1288 = vpop.f32.mrb[0].mxu0
  %v1289 = vadd.f32 0.0, %v1288
  %v1290 = vpop.f32.mrb[0].mxu0
  %v1291 = vadd.f32 0.0, %v1290
  %v1292 = vpop.f32.mrb[0].mxu0
  %v1293 = vadd.f32 0.0, %v1292
  %v1294 = vpop.f32.mrb[0].mxu0
  %v1295 = vadd.f32 0.0, %v1294
  %1296 = vmatprep.mubr.bf16.mxu0 %v873
  %1297 = vmatmul.mubr.bf16.gmra.mrb[0].mxu0 %v872
  %v1298 = vpop.f32.mrb[0].mxu0
  %v1299 = vadd.f32 0.0, %v1298
  %v1300 = vpop.f32.mrb[0].mxu0
  %v1301 = vadd.f32 0.0, %v1300
  %v1302 = vpop.f32.mrb[0].mxu0
  %v1303 = vadd.f32 0.0, %v1302
  %v1304 = vpop.f32.mrb[0].mxu0
  %v1305 = vadd.f32 0.0, %v1304
  %1306 = vmatprep.mubr.bf16.mxu0 %v875
  %1307 = vmatmul.mubr.bf16.gmra.mrb[0].mxu0 %v874
  %v1308 = vpop.f32.mrb[0].mxu0
  %v1309 = vadd.f32 0.0, %v1308
  %v1310 = vpop.f32.mrb[0].mxu0
  %v1311 = vadd.f32 0.0, %v1310
  %v1312 = vpop.f32.mrb[0].mxu0
  %v1313 = vadd.f32 0.0, %v1312
  %v1314 = vpop.f32.mrb[0].mxu0
  %v1315 = vadd.f32 0.0, %v1314
  %1316 = vmatprep.mubr.bf16.mxu0 %v877
  %1317 = vmatmul.mubr.bf16.gmra.mrb[0].mxu0 %v876
  %v1318 = vpop.f32.mrb[0].mxu0
  %v1319 = vadd.f32 0.0, %v1318
  %v1320 = vpop.f32.mrb[0].mxu0
  %v1321 = vadd.f32 0.0, %v1320
  %v1322 = vpop.f32.mrb[0].mxu0
  %v1323 = vadd.f32 0.0, %v1322
  %v1324 = vpop.f32.mrb[0].mxu0
  %v1325 = vadd.f32 0.0, %v1324
  %1326 = vdwg.mxu0
  %v1327 = vadd.f32 %v878, %v1169
  %v1328 = vadd.f32 %v879, %v1171
  %v1329 = vadd.f32 %v880, %v1173
  %v1330 = vadd.f32 %v881, %v1175
  %v1331 = vadd.f32 %v882, %v1179
  %v1332 = vadd.f32 %v883, %v1181
  %v1333 = vadd.f32 %v884, %v1183
  %v1334 = vadd.f32 %v885, %v1185
  %v1335 = vadd.f32 %v886, %v1189
  %v1336 = vadd.f32 %v887, %v1191
  %v1337 = vadd.f32 %v888, %v1193
  %v1338 = vadd.f32 %v889, %v1195
  %v1339 = vadd.f32 %v890, %v1199
  %v1340 = vadd.f32 %v891, %v1201
  %v1341 = vadd.f32 %v892, %v1203
  %v1342 = vadd.f32 %v893, %v1205
  %v1343 = vadd.f32 %v894, %v1209
  %v1344 = vadd.f32 %v895, %v1211
  %v1345 = vadd.f32 %v896, %v1213
  %v1346 = vadd.f32 %v897, %v1215
  %v1347 = vadd.f32 %v898, %v1219
  %v1348 = vadd.f32 %v899, %v1221
  %v1349 = vadd.f32 %v900, %v1223
  %v1350 = vadd.f32 %v901, %v1225
  %v1351 = vadd.f32 %v902, %v1229
  %v1352 = vadd.f32 %v903, %v1231
  %v1353 = vadd.f32 %v904, %v1233
  %v1354 = vadd.f32 %v905, %v1235
  %v1355 = vadd.f32 %v906, %v1239
  %v1356 = vadd.f32 %v907, %v1241
  %v1357 = vadd.f32 %v908, %v1243
  %v1358 = vadd.f32 %v909, %v1245
  %v1359 = vadd.f32 %v910, %v1249
  %v1360 = vadd.f32 %v911, %v1251
  %v1361 = vadd.f32 %v912, %v1253
  %v1362 = vadd.f32 %v913, %v1255
  %v1363 = vadd.f32 %v914, %v1259
  %v1364 = vadd.f32 %v915, %v1261
  %v1365 = vadd.f32 %v916, %v1263
  %v1366 = vadd.f32 %v917, %v1265
  %v1367 = vadd.f32 %v918, %v1269
  %v1368 = vadd.f32 %v919, %v1271
  %v1369 = vadd.f32 %v920, %v1273
  %v1370 = vadd.f32 %v921, %v1275
  %v1371 = vadd.f32 %v922, %v1279
  %v1372 = vadd.f32 %v923, %v1281
  %v1373 = vadd.f32 %v924, %v1283
  %v1374 = vadd.f32 %v925, %v1285
  %v1375 = vadd.f32 %v926, %v1289
  %v1376 = vadd.f32 %v927, %v1291
  %v1377 = vadd.f32 %v928, %v1293
  %v1378 = vadd.f32 %v929, %v1295
  %v1379 = vadd.f32 %v930, %v1299
  %v1380 = vadd.f32 %v931, %v1301
  %v1381 = vadd.f32 %v932, %v1303
  %v1382 = vadd.f32 %v933, %v1305
  %v1383 = vadd.f32 %v934, %v1309
  %v1384 = vadd.f32 %v935, %v1311
  %v1385 = vadd.f32 %v936, %v1313
  %v1386 = vadd.f32 %v937, %v1315
  %v1387 = vadd.f32 %v938, %v1319
  %v1388 = vadd.f32 %v939, %v1321
  %v1389 = vadd.f32 %v940, %v1323
  %v1390 = vadd.f32 %v941, %v1325
  %1391 = vst [vmem:[#allocation2] sm:$0xff] %v1327
  %1392 = vst [vmem:[#allocation2 + $0x8] sm:$0xff] %v1328
  %1393 = vst [vmem:[#allocation2 + $0x10] sm:$0xff] %v1329
  %1394 = vst [vmem:[#allocation2 + $0x18] sm:$0xff] %v1330
  %1395 = vst [vmem:[#allocation2 + $0x20] sm:$0xff] %v1331
  %1396 = vst [vmem:[#allocation2 + $0x28] sm:$0xff] %v1332
  %1397 = vst [vmem:[#allocation2 + $0x30] sm:$0xff] %v1333
  %1398 = vst [vmem:[#allocation2 + $0x38] sm:$0xff] %v1334
  %1399 = vst [vmem:[#allocation2 + $0x40] sm:$0xff] %v1335
  %1400 = vst [vmem:[#allocation2 + $0x48] sm:$0xff] %v1336
  %1401 = vst [vmem:[#allocation2 + $0x50] sm:$0xff] %v1337
  %1402 = vst [vmem:[#allocation2 + $0x58] sm:$0xff] %v1338
  %1403 = vst [vmem:[#allocation2 + $0x60] sm:$0xff] %v1339
  %1404 = vst [vmem:[#allocation2 + $0x68] sm:$0xff] %v1340
  %1405 = vst [vmem:[#allocation2 + $0x70] sm:$0xff] %v1341
  %1406 = vst [vmem:[#allocation2 + $0x78] sm:$0xff] %v1342
  %1407 = vst [vmem:[#allocation2 + $0x80] sm:$0xff] %v1343
  %1408 = vst [vmem:[#allocation2 + $0x88] sm:$0xff] %v1344
  %1409 = vst [vmem:[#allocation2 + $0x90] sm:$0xff] %v1345
  %1410 = vst [vmem:[#allocation2 + $0x98] sm:$0xff] %v1346
  %1411 = vst [vmem:[#allocation2 + $0xa0] sm:$0xff] %v1347
  %1412 = vst [vmem:[#allocation2 + $0xa8] sm:$0xff] %v1348
  %1413 = vst [vmem:[#allocation2 + $0xb0] sm:$0xff] %v1349
  %1414 = vst [vmem:[#allocation2 + $0xb8] sm:$0xff] %v1350
  %1415 = vst [vmem:[#allocation2 + $0xc0] sm:$0xff] %v1351
  %1416 = vst [vmem:[#allocation2 + $0xc8] sm:$0xff] %v1352
  %1417 = vst [vmem:[#allocation2 + $0xd0] sm:$0xff] %v1353
  %1418 = vst [vmem:[#allocation2 + $0xd8] sm:$0xff] %v1354
  %1419 = vst [vmem:[#allocation2 + $0xe0] sm:$0xff] %v1355
  %1420 = vst [vmem:[#allocation2 + $0xe8] sm:$0xff] %v1356
  %1421 = vst [vmem:[#allocation2 + $0xf0] sm:$0xff] %v1357
  %1422 = vst [vmem:[#allocation2 + $0xf8] sm:$0xff] %v1358
  %1423 = vst [vmem:[#allocation2 + $0x100] sm:$0xff] %v1359
  %1424 = vst [vmem:[#allocation2 + $0x108] sm:$0xff] %v1360
  %1425 = vst [vmem:[#allocation2 + $0x110] sm:$0xff] %v1361
  %1426 = vst [vmem:[#allocation2 + $0x118] sm:$0xff] %v1362
  %1427 = vst [vmem:[#allocation2 + $0x120] sm:$0xff] %v1363
  %1428 = vst [vmem:[#allocation2 + $0x128] sm:$0xff] %v1364
  %1429 = vst [vmem:[#allocation2 + $0x130] sm:$0xff] %v1365
  %1430 = vst [vmem:[#allocation2 + $0x138] sm:$0xff] %v1366
  %1431 = vst [vmem:[#allocation2 + $0x140] sm:$0xff] %v1367
  %1432 = vst [vmem:[#allocation2 + $0x148] sm:$0xff] %v1368
  %1433 = vst [vmem:[#allocation2 + $0x150] sm:$0xff] %v1369
  %1434 = vst [vmem:[#allocation2 + $0x158] sm:$0xff] %v1370
  %1435 = vst [vmem:[#allocation2 + $0x160] sm:$0xff] %v1371
  %1436 = vst [vmem:[#allocation2 + $0x168] sm:$0xff] %v1372
  %1437 = vst [vmem:[#allocation2 + $0x170] sm:$0xff] %v1373
  %1438 = vst [vmem:[#allocation2 + $0x178] sm:$0xff] %v1374
  %1439 = vst [vmem:[#allocation2 + $0x180] sm:$0xff] %v1375
  %1440 = vst [vmem:[#allocation2 + $0x188] sm:$0xff] %v1376
  %1441 = vst [vmem:[#allocation2 + $0x190] sm:$0xff] %v1377
  %1442 = vst [vmem:[#allocation2 + $0x198] sm:$0xff] %v1378
  %1443 = vst [vmem:[#allocation2 + $0x1a0] sm:$0xff] %v1379
  %1444 = vst [vmem:[#allocation2 + $0x1a8] sm:$0xff] %v1380
  %1445 = vst [vmem:[#allocation2 + $0x1b0] sm:$0xff] %v1381
  %1446 = vst [vmem:[#allocation2 + $0x1b8] sm:$0xff] %v1382
  %1447 = vst [vmem:[#allocation2 + $0x1c0] sm:$0xff] %v1383
  %1448 = vst [vmem:[#allocation2 + $0x1c8] sm:$0xff] %v1384
  %1449 = vst [vmem:[#allocation2 + $0x1d0] sm:$0xff] %v1385
  %1450 = vst [vmem:[#allocation2 + $0x1d8] sm:$0xff] %v1386
  %1451 = vst [vmem:[#allocation2 + $0x1e0] sm:$0xff] %v1387
  %1452 = vst [vmem:[#allocation2 + $0x1e8] sm:$0xff] %v1388
  %1453 = vst [vmem:[#allocation2 + $0x1f0] sm:$0xff] %v1389
  %1454 = vst [vmem:[#allocation2 + $0x1f8] sm:$0xff] %v1390
  // Predicated region
  $region26: #{omics1_encoder_forward.8} parent=0 // pred_check
    %p1455 = pneg %p20
  $region27: #{omics1_encoder_forward.8} parent=0 // pred_check_branch
    %1457 = sbr.rel (%p1455) target = $region29
  $region28: #{omics1_encoder_forward.8} parent=0 // pred_region
    %v1458 = vld [vmem:[#allocation2] sm:$0xff]
    %v1459 = vld [vmem:[#allocation2 + $0x8] sm:$0xff]
    %v1460 = vld [vmem:[#allocation2 + $0x10] sm:$0xff]
    %v1461 = vld [vmem:[#allocation2 + $0x18] sm:$0xff]
    %v1462 = vld [vmem:[#allocation2 + $0x20] sm:$0xff]
    %v1463 = vld [vmem:[#allocation2 + $0x28] sm:$0xff]
    %v1464 = vld [vmem:[#allocation2 + $0x30] sm:$0xff]
    %v1465 = vld [vmem:[#allocation2 + $0x38] sm:$0xff]
    %v1466 = vld [vmem:[#allocation2 + $0x40] sm:$0xff]
    %v1467 = vld [vmem:[#allocation2 + $0x48] sm:$0xff]
    %v1468 = vld [vmem:[#allocation2 + $0x50] sm:$0xff]
    %v1469 = vld [vmem:[#allocation2 + $0x58] sm:$0xff]
    %v1470 = vld [vmem:[#allocation2 + $0x60] sm:$0xff]
    %v1471 = vld [vmem:[#allocation2 + $0x68] sm:$0xff]
    %v1472 = vld [vmem:[#allocation2 + $0x70] sm:$0xff]
    %v1473 = vld [vmem:[#allocation2 + $0x78] sm:$0xff]
    %v1474 = vld [vmem:[#allocation2 + $0x80] sm:$0xff]
    %v1475 = vld [vmem:[#allocation2 + $0x88] sm:$0xff]
    %v1476 = vld [vmem:[#allocation2 + $0x90] sm:$0xff]
    %v1477 = vld [vmem:[#allocation2 + $0x98] sm:$0xff]
    %v1478 = vld [vmem:[#allocation2 + $0xa0] sm:$0xff]
    %v1479 = vld [vmem:[#allocation2 + $0xa8] sm:$0xff]
    %v1480 = vld [vmem:[#allocation2 + $0xb0] sm:$0xff]
    %v1481 = vld [vmem:[#allocation2 + $0xb8] sm:$0xff]
    %v1482 = vld [vmem:[#allocation2 + $0xc0] sm:$0xff]
    %v1483 = vld [vmem:[#allocation2 + $0xc8] sm:$0xff]
    %v1484 = vld [vmem:[#allocation2 + $0xd0] sm:$0xff]
    %v1485 = vld [vmem:[#allocation2 + $0xd8] sm:$0xff]
    %v1486 = vld [vmem:[#allocation2 + $0xe0] sm:$0xff]
    %v1487 = vld [vmem:[#allocation2 + $0xe8] sm:$0xff]
    %v1488 = vld [vmem:[#allocation2 + $0xf0] sm:$0xff]
    %v1489 = vld [vmem:[#allocation2 + $0xf8] sm:$0xff]
    %v1490 = vld [vmem:[#allocation2 + $0x100] sm:$0xff]
    %v1491 = vld [vmem:[#allocation2 + $0x108] sm:$0xff]
    %v1492 = vld [vmem:[#allocation2 + $0x110] sm:$0xff]
    %v1493 = vld [vmem:[#allocation2 + $0x118] sm:$0xff]
    %v1494 = vld [vmem:[#allocation2 + $0x120] sm:$0xff]
    %v1495 = vld [vmem:[#allocation2 + $0x128] sm:$0xff]
    %v1496 = vld [vmem:[#allocation2 + $0x130] sm:$0xff]
    %v1497 = vld [vmem:[#allocation2 + $0x138] sm:$0xff]
    %v1498 = vld [vmem:[#allocation2 + $0x140] sm:$0xff]
    %v1499 = vld [vmem:[#allocation2 + $0x148] sm:$0xff]
    %v1500 = vld [vmem:[#allocation2 + $0x150] sm:$0xff]
    %v1501 = vld [vmem:[#allocation2 + $0x158] sm:$0xff]
    %v1502 = vld [vmem:[#allocation2 + $0x160] sm:$0xff]
    %v1503 = vld [vmem:[#allocation2 + $0x168] sm:$0xff]
    %v1504 = vld [vmem:[#allocation2 + $0x170] sm:$0xff]
    %v1505 = vld [vmem:[#allocation2 + $0x178] sm:$0xff]
    %v1506 = vld [vmem:[#allocation2 + $0x180] sm:$0xff]
    %v1507 = vld [vmem:[#allocation2 + $0x188] sm:$0xff]
    %v1508 = vld [vmem:[#allocation2 + $0x190] sm:$0xff]
    %v1509 = vld [vmem:[#allocation2 + $0x198] sm:$0xff]
    %v1510 = vld [vmem:[#allocation2 + $0x1a0] sm:$0xff]
    %v1511 = vld [vmem:[#allocation2 + $0x1a8] sm:$0xff]
    %v1512 = vld [vmem:[#allocation2 + $0x1b0] sm:$0xff]
    %v1513 = vld [vmem:[#allocation2 + $0x1b8] sm:$0xff]
    %v1514 = vld [vmem:[#allocation2 + $0x1c0] sm:$0xff]
    %v1515 = vld [vmem:[#allocation2 + $0x1c8] sm:$0xff]
    %v1516 = vld [vmem:[#allocation2 + $0x1d0] sm:$0xff]
    %v1517 = vld [vmem:[#allocation2 + $0x1d8] sm:$0xff]
    %v1518 = vld [vmem:[#allocation2 + $0x1e0] sm:$0xff]
    %v1519 = vld [vmem:[#allocation2 + $0x1e8] sm:$0xff]
    %v1520 = vld [vmem:[#allocation2 + $0x1f0] sm:$0xff]
    %v1521 = vld [vmem:[#allocation2 + $0x1f8] sm:$0xff]
    %v1522 = vld [vmem:[%s4] sm:$0x3]
    %v1524 = vlaneseq
    %v1525 = vshrl.u32 %v1524, 7
    %v1526 = vsub.s32 0, %v1525
    %v1527 = vrot.slane %v1522, %v1526
    %v1528 = vlaneseq
    %v1529 = vshrl.u32 %v1528, 7
    %v1530 = vsub.s32 1, %v1529
    %v1531 = vrot.slane %v1522, %v1530
    %v1534 = vadd.f32 %v1458, %v1527
    %v1535 = vadd.f32 %v1459, %v1531
    %v1536 = vadd.f32 %v1460, %v1527
    %v1537 = vadd.f32 %v1461, %v1531
    %v1538 = vadd.f32 %v1462, %v1527
    %v1539 = vadd.f32 %v1463, %v1531
    %v1540 = vadd.f32 %v1464, %v1527
    %v1541 = vadd.f32 %v1465, %v1531
    %v1542 = vadd.f32 %v1466, %v1527
    %v1543 = vadd.f32 %v1467, %v1531
    %v1544 = vadd.f32 %v1468, %v1527
    %v1545 = vadd.f32 %v1469, %v1531
    %v1546 = vadd.f32 %v1470, %v1527
    %v1547 = vadd.f32 %v1471, %v1531
    %v1548 = vadd.f32 %v1472, %v1527
    %v1549 = vadd.f32 %v1473, %v1531
    %v1550 = vadd.f32 %v1474, %v1527
    %v1551 = vadd.f32 %v1475, %v1531
    %v1552 = vadd.f32 %v1476, %v1527
    %v1553 = vadd.f32 %v1477, %v1531
    %v1554 = vadd.f32 %v1478, %v1527
    %v1555 = vadd.f32 %v1479, %v1531
    %v1556 = vadd.f32 %v1480, %v1527
    %v1557 = vadd.f32 %v1481, %v1531
    %v1558 = vadd.f32 %v1482, %v1527
    %v1559 = vadd.f32 %v1483, %v1531
    %v1560 = vadd.f32 %v1484, %v1527
    %v1561 = vadd.f32 %v1485, %v1531
    %v1562 = vadd.f32 %v1486, %v1527
    %v1563 = vadd.f32 %v1487, %v1531
    %v1564 = vadd.f32 %v1488, %v1527
    %v1565 = vadd.f32 %v1489, %v1531
    %v1566 = vadd.f32 %v1490, %v1527
    %v1567 = vadd.f32 %v1491, %v1531
    %v1568 = vadd.f32 %v1492, %v1527
    %v1569 = vadd.f32 %v1493, %v1531
    %v1570 = vadd.f32 %v1494, %v1527
    %v1571 = vadd.f32 %v1495, %v1531
    %v1572 = vadd.f32 %v1496, %v1527
    %v1573 = vadd.f32 %v1497, %v1531
    %v1574 = vadd.f32 %v1498, %v1527
    %v1575 = vadd.f32 %v1499, %v1531
    %v1576 = vadd.f32 %v1500, %v1527
    %v1577 = vadd.f32 %v1501, %v1531
    %v1578 = vadd.f32 %v1502, %v1527
    %v1579 = vadd.f32 %v1503, %v1531
    %v1580 = vadd.f32 %v1504, %v1527
    %v1581 = vadd.f32 %v1505, %v1531
    %v1582 = vadd.f32 %v1506, %v1527
    %v1583 = vadd.f32 %v1507, %v1531
    %v1584 = vadd.f32 %v1508, %v1527
    %v1585 = vadd.f32 %v1509, %v1531
    %v1586 = vadd.f32 %v1510, %v1527
    %v1587 = vadd.f32 %v1511, %v1531
    %v1588 = vadd.f32 %v1512, %v1527
    %v1589 = vadd.f32 %v1513, %v1531
    %v1590 = vadd.f32 %v1514, %v1527
    %v1591 = vadd.f32 %v1515, %v1531
    %v1592 = vadd.f32 %v1516, %v1527
    %v1593 = vadd.f32 %v1517, %v1531
    %v1594 = vadd.f32 %v1518, %v1527
    %v1595 = vadd.f32 %v1519, %v1531
    %v1596 = vadd.f32 %v1520, %v1527
    %v1597 = vadd.f32 %v1521, %v1531
    %1598 = vst [vmem:[%s5] sm:$0xff] %v1534
    %1599 = vst [vmem:[%s5 + $0x8] sm:$0xff] %v1535
    %1600 = vst [vmem:[%s5 + $0x10] sm:$0xff] %v1536
    %1601 = vst [vmem:[%s5 + $0x18] sm:$0xff] %v1537
    %1602 = vst [vmem:[%s5 + $0x20] sm:$0xff] %v1538
    %1603 = vst [vmem:[%s5 + $0x28] sm:$0xff] %v1539
    %1604 = vst [vmem:[%s5 + $0x30] sm:$0xff] %v1540
    %1605 = vst [vmem:[%s5 + $0x38] sm:$0xff] %v1541
    %1606 = vst [vmem:[%s5 + $0x40] sm:$0xff] %v1542
    %1607 = vst [vmem:[%s5 + $0x48] sm:$0xff] %v1543
    %1608 = vst [vmem:[%s5 + $0x50] sm:$0xff] %v1544
    %1609 = vst [vmem:[%s5 + $0x58] sm:$0xff] %v1545
    %1610 = vst [vmem:[%s5 + $0x60] sm:$0xff] %v1546
    %1611 = vst [vmem:[%s5 + $0x68] sm:$0xff] %v1547
    %1612 = vst [vmem:[%s5 + $0x70] sm:$0xff] %v1548
    %1613 = vst [vmem:[%s5 + $0x78] sm:$0xff] %v1549
    %1614 = vst [vmem:[%s5 + $0x80] sm:$0xff] %v1550
    %1615 = vst [vmem:[%s5 + $0x88] sm:$0xff] %v1551
    %1616 = vst [vmem:[%s5 + $0x90] sm:$0xff] %v1552
    %1617 = vst [vmem:[%s5 + $0x98] sm:$0xff] %v1553
    %1618 = vst [vmem:[%s5 + $0xa0] sm:$0xff] %v1554
    %1619 = vst [vmem:[%s5 + $0xa8] sm:$0xff] %v1555
    %1620 = vst [vmem:[%s5 + $0xb0] sm:$0xff] %v1556
    %1621 = vst [vmem:[%s5 + $0xb8] sm:$0xff] %v1557
    %1622 = vst [vmem:[%s5 + $0xc0] sm:$0xff] %v1558
    %1623 = vst [vmem:[%s5 + $0xc8] sm:$0xff] %v1559
    %1624 = vst [vmem:[%s5 + $0xd0] sm:$0xff] %v1560
    %1625 = vst [vmem:[%s5 + $0xd8] sm:$0xff] %v1561
    %1626 = vst [vmem:[%s5 + $0xe0] sm:$0xff] %v1562
    %1627 = vst [vmem:[%s5 + $0xe8] sm:$0xff] %v1563
    %1628 = vst [vmem:[%s5 + $0xf0] sm:$0xff] %v1564
    %1629 = vst [vmem:[%s5 + $0xf8] sm:$0xff] %v1565
    %1630 = vst [vmem:[%s5 + $0x100] sm:$0xff] %v1566
    %1631 = vst [vmem:[%s5 + $0x108] sm:$0xff] %v1567
    %1632 = vst [vmem:[%s5 + $0x110] sm:$0xff] %v1568
    %1633 = vst [vmem:[%s5 + $0x118] sm:$0xff] %v1569
    %1634 = vst [vmem:[%s5 + $0x120] sm:$0xff] %v1570
    %1635 = vst [vmem:[%s5 + $0x128] sm:$0xff] %v1571
    %1636 = vst [vmem:[%s5 + $0x130] sm:$0xff] %v1572
    %1637 = vst [vmem:[%s5 + $0x138] sm:$0xff] %v1573
    %1638 = vst [vmem:[%s5 + $0x140] sm:$0xff] %v1574
    %1639 = vst [vmem:[%s5 + $0x148] sm:$0xff] %v1575
    %1640 = vst [vmem:[%s5 + $0x150] sm:$0xff] %v1576
    %1641 = vst [vmem:[%s5 + $0x158] sm:$0xff] %v1577
    %1642 = vst [vmem:[%s5 + $0x160] sm:$0xff] %v1578
    %1643 = vst [vmem:[%s5 + $0x168] sm:$0xff] %v1579
    %1644 = vst [vmem:[%s5 + $0x170] sm:$0xff] %v1580
    %1645 = vst [vmem:[%s5 + $0x178] sm:$0xff] %v1581
    %1646 = vst [vmem:[%s5 + $0x180] sm:$0xff] %v1582
    %1647 = vst [vmem:[%s5 + $0x188] sm:$0xff] %v1583
    %1648 = vst [vmem:[%s5 + $0x190] sm:$0xff] %v1584
    %1649 = vst [vmem:[%s5 + $0x198] sm:$0xff] %v1585
    %1650 = vst [vmem:[%s5 + $0x1a0] sm:$0xff] %v1586
    %1651 = vst [vmem:[%s5 + $0x1a8] sm:$0xff] %v1587
    %1652 = vst [vmem:[%s5 + $0x1b0] sm:$0xff] %v1588
    %1653 = vst [vmem:[%s5 + $0x1b8] sm:$0xff] %v1589
    %1654 = vst [vmem:[%s5 + $0x1c0] sm:$0xff] %v1590
    %1655 = vst [vmem:[%s5 + $0x1c8] sm:$0xff] %v1591
    %1656 = vst [vmem:[%s5 + $0x1d0] sm:$0xff] %v1592
    %1657 = vst [vmem:[%s5 + $0x1d8] sm:$0xff] %v1593
    %1658 = vst [vmem:[%s5 + $0x1e0] sm:$0xff] %v1594
    %1659 = vst [vmem:[%s5 + $0x1e8] sm:$0xff] %v1595
    %1660 = vst [vmem:[%s5 + $0x1f0] sm:$0xff] %v1596
    %1661 = vst [vmem:[%s5 + $0x1f8] sm:$0xff] %v1597
  $region29: #{omics1_encoder_forward.8} parent=0 // pred_fallthru
    _
  // Predicated region
  $region30: #{omics1_encoder_forward.8} parent=0 // pred_check
    _
  $region31: #{omics1_encoder_forward.8} parent=0 // pred_check_branch
    %1663 = sbr.rel (0) target = $region33
  $region32: #{omics1_encoder_forward.8} parent=0 // pred_region
    _
  $region33: #{omics1_encoder_forward.8} parent=0 // pred_fallthru
    _
  // Predicated region
  $region34: #{omics1_encoder_forward.8} parent=0 // pred_check
    _
  $region35: #{omics1_encoder_forward.8} parent=0 // pred_check_branch
    %1665 = sbr.rel (0) target = $region37
  $region36: #{omics1_encoder_forward.8} parent=0 // pred_region
    _
  $region37: #{omics1_encoder_forward.8} parent=0 // pred_fallthru
    _

// kernel: omics1_encoder_forward.6
$region0: #{omics1_encoder_forward.6}
  #allocation0 [shape = 'u32[]', space=smem, size = 0x4, offset = 0x4, fixed_abs, tag = 'smem constant byte address 0x4 - core index']
  #allocation1 [shape = 'u32[144,128]{1,0:T(1,128)}', space=vmem, size = 0x12000, scoped, tag = 'internal scratch']
  #allocation2 [shape = 'f32[256,512]{1,0:T(8,128)}', space=vmem, size = 0x80000, scoped, tag = 'scratch operand']
  %s0 = inlined_call_operand.vmem [shape: bf16[256,256], index: 0, kind: input, shape index: {}]
  %s1 = inlined_call_operand.vmem [shape: f32[256,1], index: 1, kind: input, shape index: {}]
  %s2 = inlined_call_operand.vmem [shape: f32[1,256], index: 2, kind: input, shape index: {}]
  %s3 = inlined_call_operand.vmem [shape: bf16[256,512], index: 3, kind: input, shape index: {}]
  %s4 = inlined_call_operand.vmem [shape: f32[1,512], index: 4, kind: input, shape index: {}]
  %s5 = inlined_call_operand.vmem [shape: bf16[256,512], index: 5, kind: output, shape index: {}]
  %s6 = sld [smem:[#allocation0]]
  $region38: #{omics1_encoder_forward.6} parent=0
    _
  %s8 = ssub.s32 1, %s6
  %s9 = scalar_select 0, %s8, %s6
  // Predicated region
  $region2: #{omics1_encoder_forward.6} parent=0 // pred_check
    _
  $region3: #{omics1_encoder_forward.6} parent=0 // pred_check_branch
    %11 = sbr.rel (0) target = $region5
  $region4: #{omics1_encoder_forward.6} parent=0 // pred_region
    _
  $region5: #{omics1_encoder_forward.6} parent=0 // pred_fallthru
    _
  // Predicated region
  $region6: #{omics1_encoder_forward.6} parent=0 // pred_check
    _
  $region7: #{omics1_encoder_forward.6} parent=0 // pred_check_branch
    %13 = sbr.rel (0) target = $region9
  $region8: #{omics1_encoder_forward.6} parent=0 // pred_region
    _
  $region9: #{omics1_encoder_forward.6} parent=0 // pred_fallthru
    _
  // Predicated region
  $region10: #{omics1_encoder_forward.6} parent=0 // pred_check
    _
  $region11: #{omics1_encoder_forward.6} parent=0 // pred_check_branch
    %15 = sbr.rel (0) target = $region13
  $region12: #{omics1_encoder_forward.6} parent=0 // pred_region
    _
  $region13: #{omics1_encoder_forward.6} parent=0 // pred_fallthru
    _
  // Predicated region
  $region14: #{omics1_encoder_forward.6} parent=0 // pred_check
    _
  $region15: #{omics1_encoder_forward.6} parent=0 // pred_check_branch
    %17 = sbr.rel (0) target = $region17
  $region16: #{omics1_encoder_forward.6} parent=0 // pred_region
    _
  $region17: #{omics1_encoder_forward.6} parent=0 // pred_fallthru
    _
  // Predicated region
  $region18: #{omics1_encoder_forward.6} parent=0 // pred_check
    _
  $region19: #{omics1_encoder_forward.6} parent=0 // pred_check_branch
    %19 = sbr.rel (0) target = $region21
  $region20: #{omics1_encoder_forward.6} parent=0 // pred_region
    _
  $region21: #{omics1_encoder_forward.6} parent=0 // pred_fallthru
    _
  %p20 = scmp.eq.s32.totalorder 0, 0
  // Predicated region
  $region22: #{omics1_encoder_forward.6} parent=0 // pred_check
    %p21 = pneg %p20
  $region23: #{omics1_encoder_forward.6} parent=0 // pred_check_branch
    %23 = sbr.rel (%p21) target = $region25
  $region24: #{omics1_encoder_forward.6} parent=0 // pred_region
    %24 = vst [vmem:[#allocation2] sm:$0xff] 0.0
    %25 = vst [vmem:[#allocation2 + $0x8] sm:$0xff] 0.0
    %26 = vst [vmem:[#allocation2 + $0x10] sm:$0xff] 0.0
    %27 = vst [vmem:[#allocation2 + $0x18] sm:$0xff] 0.0
    %28 = vst [vmem:[#allocation2 + $0x20] sm:$0xff] 0.0
    %29 = vst [vmem:[#allocation2 + $0x28] sm:$0xff] 0.0
    %30 = vst [vmem:[#allocation2 + $0x30] sm:$0xff] 0.0
    %31 = vst [vmem:[#allocation2 + $0x38] sm:$0xff] 0.0
    %32 = vst [vmem:[#allocation2 + $0x40] sm:$0xff] 0.0
    %33 = vst [vmem:[#allocation2 + $0x48] sm:$0xff] 0.0
    %34 = vst [vmem:[#allocation2 + $0x50] sm:$0xff] 0.0
    %35 = vst [vmem:[#allocation2 + $0x58] sm:$0xff] 0.0
    %36 = vst [vmem:[#allocation2 + $0x60] sm:$0xff] 0.0
    %37 = vst [vmem:[#allocation2 + $0x68] sm:$0xff] 0.0
    %38 = vst [vmem:[#allocation2 + $0x70] sm:$0xff] 0.0
    %39 = vst [vmem:[#allocation2 + $0x78] sm:$0xff] 0.0
    %40 = vst [vmem:[#allocation2 + $0x80] sm:$0xff] 0.0
    %41 = vst [vmem:[#allocation2 + $0x88] sm:$0xff] 0.0
    %42 = vst [vmem:[#allocation2 + $0x90] sm:$0xff] 0.0
    %43 = vst [vmem:[#allocation2 + $0x98] sm:$0xff] 0.0
    %44 = vst [vmem:[#allocation2 + $0xa0] sm:$0xff] 0.0
    %45 = vst [vmem:[#allocation2 + $0xa8] sm:$0xff] 0.0
    %46 = vst [vmem:[#allocation2 + $0xb0] sm:$0xff] 0.0
    %47 = vst [vmem:[#allocation2 + $0xb8] sm:$0xff] 0.0
    %48 = vst [vmem:[#allocation2 + $0xc0] sm:$0xff] 0.0
    %49 = vst [vmem:[#allocation2 + $0xc8] sm:$0xff] 0.0
    %50 = vst [vmem:[#allocation2 + $0xd0] sm:$0xff] 0.0
    %51 = vst [vmem:[#allocation2 + $0xd8] sm:$0xff] 0.0
    %52 = vst [vmem:[#allocation2 + $0xe0] sm:$0xff] 0.0
    %53 = vst [vmem:[#allocation2 + $0xe8] sm:$0xff] 0.0
    %54 = vst [vmem:[#allocation2 + $0xf0] sm:$0xff] 0.0
    %55 = vst [vmem:[#allocation2 + $0xf8] sm:$0xff] 0.0
    %56 = vst [vmem:[#allocation2 + $0x100] sm:$0xff] 0.0
    %57 = vst [vmem:[#allocation2 + $0x108] sm:$0xff] 0.0
    %58 = vst [vmem:[#allocation2 + $0x110] sm:$0xff] 0.0
    %59 = vst [vmem:[#allocation2 + $0x118] sm:$0xff] 0.0
    %60 = vst [vmem:[#allocation2 + $0x120] sm:$0xff] 0.0
    %61 = vst [vmem:[#allocation2 + $0x128] sm:$0xff] 0.0
    %62 = vst [vmem:[#allocation2 + $0x130] sm:$0xff] 0.0
    %63 = vst [vmem:[#allocation2 + $0x138] sm:$0xff] 0.0
    %64 = vst [vmem:[#allocation2 + $0x140] sm:$0xff] 0.0
    %65 = vst [vmem:[#allocation2 + $0x148] sm:$0xff] 0.0
    %66 = vst [vmem:[#allocation2 + $0x150] sm:$0xff] 0.0
    %67 = vst [vmem:[#allocation2 + $0x158] sm:$0xff] 0.0
    %68 = vst [vmem:[#allocation2 + $0x160] sm:$0xff] 0.0
    %69 = vst [vmem:[#allocation2 + $0x168] sm:$0xff] 0.0
    %70 = vst [vmem:[#allocation2 + $0x170] sm:$0xff] 0.0
    %71 = vst [vmem:[#allocation2 + $0x178] sm:$0xff] 0.0
    %72 = vst [vmem:[#allocation2 + $0x180] sm:$0xff] 0.0
    %73 = vst [vmem:[#allocation2 + $0x188] sm:$0xff] 0.0
    %74 = vst [vmem:[#allocation2 + $0x190] sm:$0xff] 0.0
    %75 = vst [vmem:[#allocation2 + $0x198] sm:$0xff] 0.0
    %76 = vst [vmem:[#allocation2 + $0x1a0] sm:$0xff] 0.0
    %77 = vst [vmem:[#allocation2 + $0x1a8] sm:$0xff] 0.0
    %78 = vst [vmem:[#allocation2 + $0x1b0] sm:$0xff] 0.0
    %79 = vst [vmem:[#allocation2 + $0x1b8] sm:$0xff] 0.0
    %80 = vst [vmem:[#allocation2 + $0x1c0] sm:$0xff] 0.0
    %81 = vst [vmem:[#allocation2 + $0x1c8] sm:$0xff] 0.0
    %82 = vst [vmem:[#allocation2 + $0x1d0] sm:$0xff] 0.0
    %83 = vst [vmem:[#allocation2 + $0x1d8] sm:$0xff] 0.0
    %84 = vst [vmem:[#allocation2 + $0x1e0] sm:$0xff] 0.0
    %85 = vst [vmem:[#allocation2 + $0x1e8] sm:$0xff] 0.0
    %86 = vst [vmem:[#allocation2 + $0x1f0] sm:$0xff] 0.0
    %87 = vst [vmem:[#allocation2 + $0x1f8] sm:$0xff] 0.0
    %88 = vst [vmem:[#allocation2 + $0x200] sm:$0xff] 0.0
    %89 = vst [vmem:[#allocation2 + $0x208] sm:$0xff] 0.0
    %90 = vst [vmem:[#allocation2 + $0x210] sm:$0xff] 0.0
    %91 = vst [vmem:[#allocation2 + $0x218] sm:$0xff] 0.0
    %92 = vst [vmem:[#allocation2 + $0x220] sm:$0xff] 0.0
    %93 = vst [vmem:[#allocation2 + $0x228] sm:$0xff] 0.0
    %94 = vst [vmem:[#allocation2 + $0x230] sm:$0xff] 0.0
    %95 = vst [vmem:[#allocation2 + $0x238] sm:$0xff] 0.0
    %96 = vst [vmem:[#allocation2 + $0x240] sm:$0xff] 0.0
    %97 = vst [vmem:[#allocation2 + $0x248] sm:$0xff] 0.0
    %98 = vst [vmem:[#allocation2 + $0x250] sm:$0xff] 0.0
    %99 = vst [vmem:[#allocation2 + $0x258] sm:$0xff] 0.0
    %100 = vst [vmem:[#allocation2 + $0x260] sm:$0xff] 0.0
    %101 = vst [vmem:[#allocation2 + $0x268] sm:$0xff] 0.0
    %102 = vst [vmem:[#allocation2 + $0x270] sm:$0xff] 0.0
    %103 = vst [vmem:[#allocation2 + $0x278] sm:$0xff] 0.0
    %104 = vst [vmem:[#allocation2 + $0x280] sm:$0xff] 0.0
    %105 = vst [vmem:[#allocation2 + $0x288] sm:$0xff] 0.0
    %106 = vst [vmem:[#allocation2 + $0x290] sm:$0xff] 0.0
    %107 = vst [vmem:[#allocation2 + $0x298] sm:$0xff] 0.0
    %108 = vst [vmem:[#allocation2 + $0x2a0] sm:$0xff] 0.0
    %109 = vst [vmem:[#allocation2 + $0x2a8] sm:$0xff] 0.0
    %110 = vst [vmem:[#allocation2 + $0x2b0] sm:$0xff] 0.0
    %111 = vst [vmem:[#allocation2 + $0x2b8] sm:$0xff] 0.0
    %112 = vst [vmem:[#allocation2 + $0x2c0] sm:$0xff] 0.0
    %113 = vst [vmem:[#allocation2 + $0x2c8] sm:$0xff] 0.0
    %114 = vst [vmem:[#allocation2 + $0x2d0] sm:$0xff] 0.0
    %115 = vst [vmem:[#allocation2 + $0x2d8] sm:$0xff] 0.0
    %116 = vst [vmem:[#allocation2 + $0x2e0] sm:$0xff] 0.0
    %117 = vst [vmem:[#allocation2 + $0x2e8] sm:$0xff] 0.0
    %118 = vst [vmem:[#allocation2 + $0x2f0] sm:$0xff] 0.0
    %119 = vst [vmem:[#allocation2 + $0x2f8] sm:$0xff] 0.0
    %120 = vst [vmem:[#allocation2 + $0x300] sm:$0xff] 0.0
    %121 = vst [vmem:[#allocation2 + $0x308] sm:$0xff] 0.0
    %122 = vst [vmem:[#allocation2 + $0x310] sm:$0xff] 0.0
    %123 = vst [vmem:[#allocation2 + $0x318] sm:$0xff] 0.0
    %124 = vst [vmem:[#allocation2 + $0x320] sm:$0xff] 0.0
    %125 = vst [vmem:[#allocation2 + $0x328] sm:$0xff] 0.0
    %126 = vst [vmem:[#allocation2 + $0x330] sm:$0xff] 0.0
    %127 = vst [vmem:[#allocation2 + $0x338] sm:$0xff] 0.0
    %128 = vst [vmem:[#allocation2 + $0x340] sm:$0xff] 0.0
    %129 = vst [vmem:[#allocation2 + $0x348] sm:$0xff] 0.0
    %130 = vst [vmem:[#allocation2 + $0x350] sm:$0xff] 0.0
    %131 = vst [vmem:[#allocation2 + $0x358] sm:$0xff] 0.0
    %132 = vst [vmem:[#allocation2 + $0x360] sm:$0xff] 0.0
    %133 = vst [vmem:[#allocation2 + $0x368] sm:$0xff] 0.0
    %134 = vst [vmem:[#allocation2 + $0x370] sm:$0xff] 0.0
    %135 = vst [vmem:[#allocation2 + $0x378] sm:$0xff] 0.0
    %136 = vst [vmem:[#allocation2 + $0x380] sm:$0xff] 0.0
    %137 = vst [vmem:[#allocation2 + $0x388] sm:$0xff] 0.0
    %138 = vst [vmem:[#allocation2 + $0x390] sm:$0xff] 0.0
    %139 = vst [vmem:[#allocation2 + $0x398] sm:$0xff] 0.0
    %140 = vst [vmem:[#allocation2 + $0x3a0] sm:$0xff] 0.0
    %141 = vst [vmem:[#allocation2 + $0x3a8] sm:$0xff] 0.0
    %142 = vst [vmem:[#allocation2 + $0x3b0] sm:$0xff] 0.0
    %143 = vst [vmem:[#allocation2 + $0x3b8] sm:$0xff] 0.0
    %144 = vst [vmem:[#allocation2 + $0x3c0] sm:$0xff] 0.0
    %145 = vst [vmem:[#allocation2 + $0x3c8] sm:$0xff] 0.0
    %146 = vst [vmem:[#allocation2 + $0x3d0] sm:$0xff] 0.0
    %147 = vst [vmem:[#allocation2 + $0x3d8] sm:$0xff] 0.0
    %148 = vst [vmem:[#allocation2 + $0x3e0] sm:$0xff] 0.0
    %149 = vst [vmem:[#allocation2 + $0x3e8] sm:$0xff] 0.0
    %150 = vst [vmem:[#allocation2 + $0x3f0] sm:$0xff] 0.0
    %151 = vst [vmem:[#allocation2 + $0x3f8] sm:$0xff] 0.0
  $region25: #{omics1_encoder_forward.6} parent=0 // pred_fallthru
    _
  %s152 = smul.u32 0, 256
  %v153 = vlaneseq
  %v154 = vshrl.u32 %v153, 7
  %v155 = vadd.s32 %v154, 8
  %v156 = vadd.s32 %v154, 16
  %v157 = vadd.s32 %v154, 24
  %v158 = vadd.s32 %v154, 32
  %v159 = vadd.s32 %v154, 40
  %v160 = vadd.s32 %v154, 48
  %v161 = vadd.s32 %v154, 56
  %v162 = vadd.s32 %v154, 64
  %v163 = vadd.s32 %v154, 72
  %v164 = vadd.s32 %v154, 80
  %v165 = vadd.s32 %v154, 88
  %v166 = vadd.s32 %v154, 96
  %v167 = vadd.s32 %v154, 104
  %v168 = vadd.s32 %v154, 112
  %v169 = vadd.s32 %v154, 120
  %v170 = vadd.s32 %v154, 128
  %v171 = vadd.s32 %v154, 136
  %v172 = vadd.s32 %v154, 144
  %v173 = vadd.s32 %v154, 152
  %v174 = vadd.s32 %v154, 160
  %v175 = vadd.s32 %v154, 168
  %v176 = vadd.s32 %v154, 176
  %v177 = vadd.s32 %v154, 184
  %v178 = vadd.s32 %v154, 192
  %v179 = vadd.s32 %v154, 200
  %v180 = vadd.s32 %v154, 208
  %v181 = vadd.s32 %v154, 216
  %v182 = vadd.s32 %v154, 224
  %v183 = vadd.s32 %v154, 232
  %v184 = vadd.s32 %v154, 240
  %v185 = vadd.s32 %v154, 248
  %v186 = vstv %s152
  %v187 = vadd.s32 %v186, %v154
  %v188 = vadd.s32 %v186, %v155
  %v189 = vadd.s32 %v186, %v156
  %v190 = vadd.s32 %v186, %v157
  %v191 = vadd.s32 %v186, %v158
  %v192 = vadd.s32 %v186, %v159
  %v193 = vadd.s32 %v186, %v160
  %v194 = vadd.s32 %v186, %v161
  %v195 = vadd.s32 %v186, %v162
  %v196 = vadd.s32 %v186, %v163
  %v197 = vadd.s32 %v186, %v164
  %v198 = vadd.s32 %v186, %v165
  %v199 = vadd.s32 %v186, %v166
  %v200 = vadd.s32 %v186, %v167
  %v201 = vadd.s32 %v186, %v168
  %v202 = vadd.s32 %v186, %v169
  %v203 = vadd.s32 %v186, %v170
  %v204 = vadd.s32 %v186, %v171
  %v205 = vadd.s32 %v186, %v172
  %v206 = vadd.s32 %v186, %v173
  %v207 = vadd.s32 %v186, %v174
  %v208 = vadd.s32 %v186, %v175
  %v209 = vadd.s32 %v186, %v176
  %v210 = vadd.s32 %v186, %v177
  %v211 = vadd.s32 %v186, %v178
  %v212 = vadd.s32 %v186, %v179
  %v213 = vadd.s32 %v186, %v180
  %v214 = vadd.s32 %v186, %v181
  %v215 = vadd.s32 %v186, %v182
  %v216 = vadd.s32 %v186, %v183
  %v217 = vadd.s32 %v186, %v184
  %v218 = vadd.s32 %v186, %v185
  %s219 = smul.u32 0, 256
  %v220 = vlaneseq
  %v221 = vand.u32 %v220, 127
  %v222 = vadd.s32 %v221, 128
  %v223 = vstv %s219
  %v224 = vadd.s32 %v223, %v221
  %v225 = vadd.s32 %v223, %v222
  %v226 = vld [vmem:[%s0] sm:$0xff]
  %v227 = vld [vmem:[%s0 + $0x8] sm:$0xff]
  %v228 = vld [vmem:[%s0 + $0x10] sm:$0xff]
  %v229 = vld [vmem:[%s0 + $0x18] sm:$0xff]
  %v230 = vld [vmem:[%s0 + $0x20] sm:$0xff]
  %v231 = vld [vmem:[%s0 + $0x28] sm:$0xff]
  %v232 = vld [vmem:[%s0 + $0x30] sm:$0xff]
  %v233 = vld [vmem:[%s0 + $0x38] sm:$0xff]
  %v234 = vld [vmem:[%s0 + $0x40] sm:$0xff]
  %v235 = vld [vmem:[%s0 + $0x48] sm:$0xff]
  %v236 = vld [vmem:[%s0 + $0x50] sm:$0xff]
  %v237 = vld [vmem:[%s0 + $0x58] sm:$0xff]
  %v238 = vld [vmem:[%s0 + $0x60] sm:$0xff]
  %v239 = vld [vmem:[%s0 + $0x68] sm:$0xff]
  %v240 = vld [vmem:[%s0 + $0x70] sm:$0xff]
  %v241 = vld [vmem:[%s0 + $0x78] sm:$0xff]
  %v242 = vld [vmem:[%s0 + $0x80] sm:$0xff]
  %v243 = vld [vmem:[%s0 + $0x88] sm:$0xff]
  %v244 = vld [vmem:[%s0 + $0x90] sm:$0xff]
  %v245 = vld [vmem:[%s0 + $0x98] sm:$0xff]
  %v246 = vld [vmem:[%s0 + $0xa0] sm:$0xff]
  %v247 = vld [vmem:[%s0 + $0xa8] sm:$0xff]
  %v248 = vld [vmem:[%s0 + $0xb0] sm:$0xff]
  %v249 = vld [vmem:[%s0 + $0xb8] sm:$0xff]
  %v250 = vld [vmem:[%s0 + $0xc0] sm:$0xff]
  %v251 = vld [vmem:[%s0 + $0xc8] sm:$0xff]
  %v252 = vld [vmem:[%s0 + $0xd0] sm:$0xff]
  %v253 = vld [vmem:[%s0 + $0xd8] sm:$0xff]
  %v254 = vld [vmem:[%s0 + $0xe0] sm:$0xff]
  %v255 = vld [vmem:[%s0 + $0xe8] sm:$0xff]
  %v256 = vld [vmem:[%s0 + $0xf0] sm:$0xff]
  %v257 = vld [vmem:[%s0 + $0xf8] sm:$0xff]
  %v258 = vunpack.c.l.bf16 %v226
  %v259 = vunpack.c.h.bf16 %v226
  %v260 = vunpack.c.l.bf16 %v227
  %v261 = vunpack.c.h.bf16 %v227
  %v262 = vunpack.c.l.bf16 %v228
  %v263 = vunpack.c.h.bf16 %v228
  %v264 = vunpack.c.l.bf16 %v229
  %v265 = vunpack.c.h.bf16 %v229
  %v266 = vunpack.c.l.bf16 %v230
  %v267 = vunpack.c.h.bf16 %v230
  %v268 = vunpack.c.l.bf16 %v231
  %v269 = vunpack.c.h.bf16 %v231
  %v270 = vunpack.c.l.bf16 %v232
  %v271 = vunpack.c.h.bf16 %v232
  %v272 = vunpack.c.l.bf16 %v233
  %v273 = vunpack.c.h.bf16 %v233
  %v274 = vunpack.c.l.bf16 %v234
  %v275 = vunpack.c.h.bf16 %v234
  %v276 = vunpack.c.l.bf16 %v235
  %v277 = vunpack.c.h.bf16 %v235
  %v278 = vunpack.c.l.bf16 %v236
  %v279 = vunpack.c.h.bf16 %v236
  %v280 = vunpack.c.l.bf16 %v237
  %v281 = vunpack.c.h.bf16 %v237
  %v282 = vunpack.c.l.bf16 %v238
  %v283 = vunpack.c.h.bf16 %v238
  %v284 = vunpack.c.l.bf16 %v239
  %v285 = vunpack.c.h.bf16 %v239
  %v286 = vunpack.c.l.bf16 %v240
  %v287 = vunpack.c.h.bf16 %v240
  %v288 = vunpack.c.l.bf16 %v241
  %v289 = vunpack.c.h.bf16 %v241
  %v290 = vunpack.c.l.bf16 %v242
  %v291 = vunpack.c.h.bf16 %v242
  %v292 = vunpack.c.l.bf16 %v243
  %v293 = vunpack.c.h.bf16 %v243
  %v294 = vunpack.c.l.bf16 %v244
  %v295 = vunpack.c.h.bf16 %v244
  %v296 = vunpack.c.l.bf16 %v245
  %v297 = vunpack.c.h.bf16 %v245
  %v298 = vunpack.c.l.bf16 %v246
  %v299 = vunpack.c.h.bf16 %v246
  %v300 = vunpack.c.l.bf16 %v247
  %v301 = vunpack.c.h.bf16 %v247
  %v302 = vunpack.c.l.bf16 %v248
  %v303 = vunpack.c.h.bf16 %v248
  %v304 = vunpack.c.l.bf16 %v249
  %v305 = vunpack.c.h.bf16 %v249
  %v306 = vunpack.c.l.bf16 %v250
  %v307 = vunpack.c.h.bf16 %v250
  %v308 = vunpack.c.l.bf16 %v251
  %v309 = vunpack.c.h.bf16 %v251
  %v310 = vunpack.c.l.bf16 %v252
  %v311 = vunpack.c.h.bf16 %v252
  %v312 = vunpack.c.l.bf16 %v253
  %v313 = vunpack.c.h.bf16 %v253
  %v314 = vunpack.c.l.bf16 %v254
  %v315 = vunpack.c.h.bf16 %v254
  %v316 = vunpack.c.l.bf16 %v255
  %v317 = vunpack.c.h.bf16 %v255
  %v318 = vunpack.c.l.bf16 %v256
  %v319 = vunpack.c.h.bf16 %v256
  %v320 = vunpack.c.l.bf16 %v257
  %v321 = vunpack.c.h.bf16 %v257
  %vm322 = vcmp.eq.s32.totalorder %v187, %v224
  %vm323 = vcmp.eq.s32.totalorder %v187, %v225
  %vm324 = vcmp.eq.s32.totalorder %v188, %v224
  %vm325 = vcmp.eq.s32.totalorder %v188, %v225
  %vm326 = vcmp.eq.s32.totalorder %v189, %v224
  %vm327 = vcmp.eq.s32.totalorder %v189, %v225
  %vm328 = vcmp.eq.s32.totalorder %v190, %v224
  %vm329 = vcmp.eq.s32.totalorder %v190, %v225
  %vm330 = vcmp.eq.s32.totalorder %v191, %v224
  %vm331 = vcmp.eq.s32.totalorder %v191, %v225
  %vm332 = vcmp.eq.s32.totalorder %v192, %v224
  %vm333 = vcmp.eq.s32.totalorder %v192, %v225
  %vm334 = vcmp.eq.s32.totalorder %v193, %v224
  %vm335 = vcmp.eq.s32.totalorder %v193, %v225
  %vm336 = vcmp.eq.s32.totalorder %v194, %v224
  %vm337 = vcmp.eq.s32.totalorder %v194, %v225
  %vm338 = vcmp.eq.s32.totalorder %v195, %v224
  %vm339 = vcmp.eq.s32.totalorder %v195, %v225
  %vm340 = vcmp.eq.s32.totalorder %v196, %v224
  %vm341 = vcmp.eq.s32.totalorder %v196, %v225
  %vm342 = vcmp.eq.s32.totalorder %v197, %v224
  %vm343 = vcmp.eq.s32.totalorder %v197, %v225
  %vm344 = vcmp.eq.s32.totalorder %v198, %v224
  %vm345 = vcmp.eq.s32.totalorder %v198, %v225
  %vm346 = vcmp.eq.s32.totalorder %v199, %v224
  %vm347 = vcmp.eq.s32.totalorder %v199, %v225
  %vm348 = vcmp.eq.s32.totalorder %v200, %v224
  %vm349 = vcmp.eq.s32.totalorder %v200, %v225
  %vm350 = vcmp.eq.s32.totalorder %v201, %v224
  %vm351 = vcmp.eq.s32.totalorder %v201, %v225
  %vm352 = vcmp.eq.s32.totalorder %v202, %v224
  %vm353 = vcmp.eq.s32.totalorder %v202, %v225
  %vm354 = vcmp.eq.s32.totalorder %v203, %v224
  %vm355 = vcmp.eq.s32.totalorder %v203, %v225
  %vm356 = vcmp.eq.s32.totalorder %v204, %v224
  %vm357 = vcmp.eq.s32.totalorder %v204, %v225
  %vm358 = vcmp.eq.s32.totalorder %v205, %v224
  %vm359 = vcmp.eq.s32.totalorder %v205, %v225
  %vm360 = vcmp.eq.s32.totalorder %v206, %v224
  %vm361 = vcmp.eq.s32.totalorder %v206, %v225
  %vm362 = vcmp.eq.s32.totalorder %v207, %v224
  %vm363 = vcmp.eq.s32.totalorder %v207, %v225
  %vm364 = vcmp.eq.s32.totalorder %v208, %v224
  %vm365 = vcmp.eq.s32.totalorder %v208, %v225
  %vm366 = vcmp.eq.s32.totalorder %v209, %v224
  %vm367 = vcmp.eq.s32.totalorder %v209, %v225
  %vm368 = vcmp.eq.s32.totalorder %v210, %v224
  %vm369 = vcmp.eq.s32.totalorder %v210, %v225
  %vm370 = vcmp.eq.s32.totalorder %v211, %v224
  %vm371 = vcmp.eq.s32.totalorder %v211, %v225
  %vm372 = vcmp.eq.s32.totalorder %v212, %v224
  %vm373 = vcmp.eq.s32.totalorder %v212, %v225
  %vm374 = vcmp.eq.s32.totalorder %v213, %v224
  %vm375 = vcmp.eq.s32.totalorder %v213, %v225
  %vm376 = vcmp.eq.s32.totalorder %v214, %v224
  %vm377 = vcmp.eq.s32.totalorder %v214, %v225
  %vm378 = vcmp.eq.s32.totalorder %v215, %v224
  %vm379 = vcmp.eq.s32.totalorder %v215, %v225
  %vm380 = vcmp.eq.s32.totalorder %v216, %v224
  %vm381 = vcmp.eq.s32.totalorder %v216, %v225
  %vm382 = vcmp.eq.s32.totalorder %v217, %v224
  %vm383 = vcmp.eq.s32.totalorder %v217, %v225
  %vm384 = vcmp.eq.s32.totalorder %v218, %v224
  %vm385 = vcmp.eq.s32.totalorder %v218, %v225
  %v386 = vsel %vm322, 1, 0
  %v387 = vsel %vm323, 1, 0
  %v388 = vsel %vm324, 1, 0
  %v389 = vsel %vm325, 1, 0
  %v390 = vsel %vm326, 1, 0
  %v391 = vsel %vm327, 1, 0
  %v392 = vsel %vm328, 1, 0
  %v393 = vsel %vm329, 1, 0
  %v394 = vsel %vm330, 1, 0
  %v395 = vsel %vm331, 1, 0
  %v396 = vsel %vm332, 1, 0
  %v397 = vsel %vm333, 1, 0
  %v398 = vsel %vm334, 1, 0
  %v399 = vsel %vm335, 1, 0
  %v400 = vsel %vm336, 1, 0
  %v401 = vsel %vm337, 1, 0
  %v402 = vsel %vm338, 1, 0
  %v403 = vsel %vm339, 1, 0
  %v404 = vsel %vm340, 1, 0
  %v405 = vsel %vm341, 1, 0
  %v406 = vsel %vm342, 1, 0
  %v407 = vsel %vm343, 1, 0
  %v408 = vsel %vm344, 1, 0
  %v409 = vsel %vm345, 1, 0
  %v410 = vsel %vm346, 1, 0
  %v411 = vsel %vm347, 1, 0
  %v412 = vsel %vm348, 1, 0
  %v413 = vsel %vm349, 1, 0
  %v414 = vsel %vm350, 1, 0
  %v415 = vsel %vm351, 1, 0
  %v416 = vsel %vm352, 1, 0
  %v417 = vsel %vm353, 1, 0
  %v418 = vsel %vm354, 1, 0
  %v419 = vsel %vm355, 1, 0
  %v420 = vsel %vm356, 1, 0
  %v421 = vsel %vm357, 1, 0
  %v422 = vsel %vm358, 1, 0
  %v423 = vsel %vm359, 1, 0
  %v424 = vsel %vm360, 1, 0
  %v425 = vsel %vm361, 1, 0
  %v426 = vsel %vm362, 1, 0
  %v427 = vsel %vm363, 1, 0
  %v428 = vsel %vm364, 1, 0
  %v429 = vsel %vm365, 1, 0
  %v430 = vsel %vm366, 1, 0
  %v431 = vsel %vm367, 1, 0
  %v432 = vsel %vm368, 1, 0
  %v433 = vsel %vm369, 1, 0
  %v434 = vsel %vm370, 1, 0
  %v435 = vsel %vm371, 1, 0
  %v436 = vsel %vm372, 1, 0
  %v437 = vsel %vm373, 1, 0
  %v438 = vsel %vm374, 1, 0
  %v439 = vsel %vm375, 1, 0
  %v440 = vsel %vm376, 1, 0
  %v441 = vsel %vm377, 1, 0
  %v442 = vsel %vm378, 1, 0
  %v443 = vsel %vm379, 1, 0
  %v444 = vsel %vm380, 1, 0
  %v445 = vsel %vm381, 1, 0
  %v446 = vsel %vm382, 1, 0
  %v447 = vsel %vm383, 1, 0
  %v448 = vsel %vm384, 1, 0
  %v449 = vsel %vm385, 1, 0
  %v450 = vcvt.s32.f32 %v386
  %v451 = vcvt.s32.f32 %v387
  %v452 = vcvt.s32.f32 %v388
  %v453 = vcvt.s32.f32 %v389
  %v454 = vcvt.s32.f32 %v390
  %v455 = vcvt.s32.f32 %v391
  %v456 = vcvt.s32.f32 %v392
  %v457 = vcvt.s32.f32 %v393
  %v458 = vcvt.s32.f32 %v394
  %v459 = vcvt.s32.f32 %v395
  %v460 = vcvt.s32.f32 %v396
  %v461 = vcvt.s32.f32 %v397
  %v462 = vcvt.s32.f32 %v398
  %v463 = vcvt.s32.f32 %v399
  %v464 = vcvt.s32.f32 %v400
  %v465 = vcvt.s32.f32 %v401
  %v466 = vcvt.s32.f32 %v402
  %v467 = vcvt.s32.f32 %v403
  %v468 = vcvt.s32.f32 %v404
  %v469 = vcvt.s32.f32 %v405
  %v470 = vcvt.s32.f32 %v406
  %v471 = vcvt.s32.f32 %v407
  %v472 = vcvt.s32.f32 %v408
  %v473 = vcvt.s32.f32 %v409
  %v474 = vcvt.s32.f32 %v410
  %v475 = vcvt.s32.f32 %v411
  %v476 = vcvt.s32.f32 %v412
  %v477 = vcvt.s32.f32 %v413
  %v478 = vcvt.s32.f32 %v414
  %v479 = vcvt.s32.f32 %v415
  %v480 = vcvt.s32.f32 %v416
  %v481 = vcvt.s32.f32 %v417
  %v482 = vcvt.s32.f32 %v418
  %v483 = vcvt.s32.f32 %v419
  %v484 = vcvt.s32.f32 %v420
  %v485 = vcvt.s32.f32 %v421
  %v486 = vcvt.s32.f32 %v422
  %v487 = vcvt.s32.f32 %v423
  %v488 = vcvt.s32.f32 %v424
  %v489 = vcvt.s32.f32 %v425
  %v490 = vcvt.s32.f32 %v426
  %v491 = vcvt.s32.f32 %v427
  %v492 = vcvt.s32.f32 %v428
  %v493 = vcvt.s32.f32 %v429
  %v494 = vcvt.s32.f32 %v430
  %v495 = vcvt.s32.f32 %v431
  %v496 = vcvt.s32.f32 %v432
  %v497 = vcvt.s32.f32 %v433
  %v498 = vcvt.s32.f32 %v434
  %v499 = vcvt.s32.f32 %v435
  %v500 = vcvt.s32.f32 %v436
  %v501 = vcvt.s32.f32 %v437
  %v502 = vcvt.s32.f32 %v438
  %v503 = vcvt.s32.f32 %v439
  %v504 = vcvt.s32.f32 %v440
  %v505 = vcvt.s32.f32 %v441
  %v506 = vcvt.s32.f32 %v442
  %v507 = vcvt.s32.f32 %v443
  %v508 = vcvt.s32.f32 %v444
  %v509 = vcvt.s32.f32 %v445
  %v510 = vcvt.s32.f32 %v446
  %v511 = vcvt.s32.f32 %v447
  %v512 = vcvt.s32.f32 %v448
  %v513 = vcvt.s32.f32 %v449
  %v514 = vadd.f32 %v258, %v450
  %v515 = vadd.f32 %v259, %v451
  %v516 = vadd.f32 %v260, %v452
  %v517 = vadd.f32 %v261, %v453
  %v518 = vadd.f32 %v262, %v454
  %v519 = vadd.f32 %v263, %v455
  %v520 = vadd.f32 %v264, %v456
  %v521 = vadd.f32 %v265, %v457
  %v522 = vadd.f32 %v266, %v458
  %v523 = vadd.f32 %v267, %v459
  %v524 = vadd.f32 %v268, %v460
  %v525 = vadd.f32 %v269, %v461
  %v526 = vadd.f32 %v270, %v462
  %v527 = vadd.f32 %v271, %v463
  %v528 = vadd.f32 %v272, %v464
  %v529 = vadd.f32 %v273, %v465
  %v530 = vadd.f32 %v274, %v466
  %v531 = vadd.f32 %v275, %v467
  %v532 = vadd.f32 %v276, %v468
  %v533 = vadd.f32 %v277, %v469
  %v534 = vadd.f32 %v278, %v470
  %v535 = vadd.f32 %v279, %v471
  %v536 = vadd.f32 %v280, %v472
  %v537 = vadd.f32 %v281, %v473
  %v538 = vadd.f32 %v282, %v474
  %v539 = vadd.f32 %v283, %v475
  %v540 = vadd.f32 %v284, %v476
  %v541 = vadd.f32 %v285, %v477
  %v542 = vadd.f32 %v286, %v478
  %v543 = vadd.f32 %v287, %v479
  %v544 = vadd.f32 %v288, %v480
  %v545 = vadd.f32 %v289, %v481
  %v546 = vadd.f32 %v290, %v482
  %v547 = vadd.f32 %v291, %v483
  %v548 = vadd.f32 %v292, %v484
  %v549 = vadd.f32 %v293, %v485
  %v550 = vadd.f32 %v294, %v486
  %v551 = vadd.f32 %v295, %v487
  %v552 = vadd.f32 %v296, %v488
  %v553 = vadd.f32 %v297, %v489
  %v554 = vadd.f32 %v298, %v490
  %v555 = vadd.f32 %v299, %v491
  %v556 = vadd.f32 %v300, %v492
  %v557 = vadd.f32 %v301, %v493
  %v558 = vadd.f32 %v302, %v494
  %v559 = vadd.f32 %v303, %v495
  %v560 = vadd.f32 %v304, %v496
  %v561 = vadd.f32 %v305, %v497
  %v562 = vadd.f32 %v306, %v498
  %v563 = vadd.f32 %v307, %v499
  %v564 = vadd.f32 %v308, %v500
  %v565 = vadd.f32 %v309, %v501
  %v566 = vadd.f32 %v310, %v502
  %v567 = vadd.f32 %v311, %v503
  %v568 = vadd.f32 %v312, %v504
  %v569 = vadd.f32 %v313, %v505
  %v570 = vadd.f32 %v314, %v506
  %v571 = vadd.f32 %v315, %v507
  %v572 = vadd.f32 %v316, %v508
  %v573 = vadd.f32 %v317, %v509
  %v574 = vadd.f32 %v318, %v510
  %v575 = vadd.f32 %v319, %v511
  %v576 = vadd.f32 %v320, %v512
  %v577 = vadd.f32 %v321, %v513
  %v578 = vld [vmem:[%s1] sm:$0xff]
  %v579 = vld [vmem:[%s1 + $0x8] sm:$0xff]
  %v580 = vld [vmem:[%s1 + $0x10] sm:$0xff]
  %v581 = vld [vmem:[%s1 + $0x18] sm:$0xff]
  %v582 = vld [vmem:[%s1 + $0x20] sm:$0xff]
  %v583 = vld [vmem:[%s1 + $0x28] sm:$0xff]
  %v584 = vld [vmem:[%s1 + $0x30] sm:$0xff]
  %v585 = vld [vmem:[%s1 + $0x38] sm:$0xff]
  %v586 = vld [vmem:[%s1 + $0x40] sm:$0xff]
  %v587 = vld [vmem:[%s1 + $0x48] sm:$0xff]
  %v588 = vld [vmem:[%s1 + $0x50] sm:$0xff]
  %v589 = vld [vmem:[%s1 + $0x58] sm:$0xff]
  %v590 = vld [vmem:[%s1 + $0x60] sm:$0xff]
  %v591 = vld [vmem:[%s1 + $0x68] sm:$0xff]
  %v592 = vld [vmem:[%s1 + $0x70] sm:$0xff]
  %v593 = vld [vmem:[%s1 + $0x78] sm:$0xff]
  %v594 = vld [vmem:[%s1 + $0x80] sm:$0xff]
  %v595 = vld [vmem:[%s1 + $0x88] sm:$0xff]
  %v596 = vld [vmem:[%s1 + $0x90] sm:$0xff]
  %v597 = vld [vmem:[%s1 + $0x98] sm:$0xff]
  %v598 = vld [vmem:[%s1 + $0xa0] sm:$0xff]
  %v599 = vld [vmem:[%s1 + $0xa8] sm:$0xff]
  %v600 = vld [vmem:[%s1 + $0xb0] sm:$0xff]
  %v601 = vld [vmem:[%s1 + $0xb8] sm:$0xff]
  %v602 = vld [vmem:[%s1 + $0xc0] sm:$0xff]
  %v603 = vld [vmem:[%s1 + $0xc8] sm:$0xff]
  %v604 = vld [vmem:[%s1 + $0xd0] sm:$0xff]
  %v605 = vld [vmem:[%s1 + $0xd8] sm:$0xff]
  %v606 = vld [vmem:[%s1 + $0xe0] sm:$0xff]
  %v607 = vld [vmem:[%s1 + $0xe8] sm:$0xff]
  %v608 = vld [vmem:[%s1 + $0xf0] sm:$0xff]
  %v609 = vld [vmem:[%s1 + $0xf8] sm:$0xff]
  %611 = vset.pattern.permute.xlu0 0
  %612 = vperm.xlu0 %611, %v578
  %v613 = vpop.permute.xlu0 %612
  %616 = vset.pattern.permute.xlu0 0
  %617 = vperm.xlu0 %616, %v579
  %v618 = vpop.permute.xlu0 %617
  %621 = vset.pattern.permute.xlu0 0
  %622 = vperm.xlu0 %621, %v580
  %v623 = vpop.permute.xlu0 %622
  %626 = vset.pattern.permute.xlu0 0
  %627 = vperm.xlu0 %626, %v581
  %v628 = vpop.permute.xlu0 %627
  %631 = vset.pattern.permute.xlu0 0
  %632 = vperm.xlu0 %631, %v582
  %v633 = vpop.permute.xlu0 %632
  %636 = vset.pattern.permute.xlu0 0
  %637 = vperm.xlu0 %636, %v583
  %v638 = vpop.permute.xlu0 %637
  %641 = vset.pattern.permute.xlu0 0
  %642 = vperm.xlu0 %641, %v584
  %v643 = vpop.permute.xlu0 %642
  %646 = vset.pattern.permute.xlu0 0
  %647 = vperm.xlu0 %646, %v585
  %v648 = vpop.permute.xlu0 %647
  %651 = vset.pattern.permute.xlu0 0
  %652 = vperm.xlu0 %651, %v586
  %v653 = vpop.permute.xlu0 %652
  %656 = vset.pattern.permute.xlu0 0
  %657 = vperm.xlu0 %656, %v587
  %v658 = vpop.permute.xlu0 %657
  %661 = vset.pattern.permute.xlu0 0
  %662 = vperm.xlu0 %661, %v588
  %v663 = vpop.permute.xlu0 %662
  %666 = vset.pattern.permute.xlu0 0
  %667 = vperm.xlu0 %666, %v589
  %v668 = vpop.permute.xlu0 %667
  %671 = vset.pattern.permute.xlu0 0
  %672 = vperm.xlu0 %671, %v590
  %v673 = vpop.permute.xlu0 %672
  %676 = vset.pattern.permute.xlu0 0
  %677 = vperm.xlu0 %676, %v591
  %v678 = vpop.permute.xlu0 %677
  %681 = vset.pattern.permute.xlu0 0
  %682 = vperm.xlu0 %681, %v592
  %v683 = vpop.permute.xlu0 %682
  %686 = vset.pattern.permute.xlu0 0
  %687 = vperm.xlu0 %686, %v593
  %v688 = vpop.permute.xlu0 %687
  %691 = vset.pattern.permute.xlu0 0
  %692 = vperm.xlu0 %691, %v594
  %v693 = vpop.permute.xlu0 %692
  %696 = vset.pattern.permute.xlu0 0
  %697 = vperm.xlu0 %696, %v595
  %v698 = vpop.permute.xlu0 %697
  %701 = vset.pattern.permute.xlu0 0
  %702 = vperm.xlu0 %701, %v596
  %v703 = vpop.permute.xlu0 %702
  %706 = vset.pattern.permute.xlu0 0
  %707 = vperm.xlu0 %706, %v597
  %v708 = vpop.permute.xlu0 %707
  %711 = vset.pattern.permute.xlu0 0
  %712 = vperm.xlu0 %711, %v598
  %v713 = vpop.permute.xlu0 %712
  %716 = vset.pattern.permute.xlu0 0
  %717 = vperm.xlu0 %716, %v599
  %v718 = vpop.permute.xlu0 %717
  %721 = vset.pattern.permute.xlu0 0
  %722 = vperm.xlu0 %721, %v600
  %v723 = vpop.permute.xlu0 %722
  %726 = vset.pattern.permute.xlu0 0
  %727 = vperm.xlu0 %726, %v601
  %v728 = vpop.permute.xlu0 %727
  %731 = vset.pattern.permute.xlu0 0
  %732 = vperm.xlu0 %731, %v602
  %v733 = vpop.permute.xlu0 %732
  %736 = vset.pattern.permute.xlu0 0
  %737 = vperm.xlu0 %736, %v603
  %v738 = vpop.permute.xlu0 %737
  %741 = vset.pattern.permute.xlu0 0
  %742 = vperm.xlu0 %741, %v604
  %v743 = vpop.permute.xlu0 %742
  %746 = vset.pattern.permute.xlu0 0
  %747 = vperm.xlu0 %746, %v605
  %v748 = vpop.permute.xlu0 %747
  %751 = vset.pattern.permute.xlu0 0
  %752 = vperm.xlu0 %751, %v606
  %v753 = vpop.permute.xlu0 %752
  %756 = vset.pattern.permute.xlu0 0
  %757 = vperm.xlu0 %756, %v607
  %v758 = vpop.permute.xlu0 %757
  %761 = vset.pattern.permute.xlu0 0
  %762 = vperm.xlu0 %761, %v608
  %v763 = vpop.permute.xlu0 %762
  %766 = vset.pattern.permute.xlu0 0
  %767 = vperm.xlu0 %766, %v609
  %v768 = vpop.permute.xlu0 %767
  %v770 = vmul.f32 %v514, %v613
  %v771 = vmul.f32 %v515, %v613
  %v772 = vmul.f32 %v516, %v618
  %v773 = vmul.f32 %v517, %v618
  %v774 = vmul.f32 %v518, %v623
  %v775 = vmul.f32 %v519, %v623
  %v776 = vmul.f32 %v520, %v628
  %v777 = vmul.f32 %v521, %v628
  %v778 = vmul.f32 %v522, %v633
  %v779 = vmul.f32 %v523, %v633
  %v780 = vmul.f32 %v524, %v638
  %v781 = vmul.f32 %v525, %v638
  %v782 = vmul.f32 %v526, %v643
  %v783 = vmul.f32 %v527, %v643
  %v784 = vmul.f32 %v528, %v648
  %v785 = vmul.f32 %v529, %v648
  %v786 = vmul.f32 %v530, %v653
  %v787 = vmul.f32 %v531, %v653
  %v788 = vmul.f32 %v532, %v658
  %v789 = vmul.f32 %v533, %v658
  %v790 = vmul.f32 %v534, %v663
  %v791 = vmul.f32 %v535, %v663
  %v792 = vmul.f32 %v536, %v668
  %v793 = vmul.f32 %v537, %v668
  %v794 = vmul.f32 %v538, %v673
  %v795 = vmul.f32 %v539, %v673
  %v796 = vmul.f32 %v540, %v678
  %v797 = vmul.f32 %v541, %v678
  %v798 = vmul.f32 %v542, %v683
  %v799 = vmul.f32 %v543, %v683
  %v800 = vmul.f32 %v544, %v688
  %v801 = vmul.f32 %v545, %v688
  %v802 = vmul.f32 %v546, %v693
  %v803 = vmul.f32 %v547, %v693
  %v804 = vmul.f32 %v548, %v698
  %v805 = vmul.f32 %v549, %v698
  %v806 = vmul.f32 %v550, %v703
  %v807 = vmul.f32 %v551, %v703
  %v808 = vmul.f32 %v552, %v708
  %v809 = vmul.f32 %v553, %v708
  %v810 = vmul.f32 %v554, %v713
  %v811 = vmul.f32 %v555, %v713
  %v812 = vmul.f32 %v556, %v718
  %v813 = vmul.f32 %v557, %v718
  %v814 = vmul.f32 %v558, %v723
  %v815 = vmul.f32 %v559, %v723
  %v816 = vmul.f32 %v560, %v728
  %v817 = vmul.f32 %v561, %v728
  %v818 = vmul.f32 %v562, %v733
  %v819 = vmul.f32 %v563, %v733
  %v820 = vmul.f32 %v564, %v738
  %v821 = vmul.f32 %v565, %v738
  %v822 = vmul.f32 %v566, %v743
  %v823 = vmul.f32 %v567, %v743
  %v824 = vmul.f32 %v568, %v748
  %v825 = vmul.f32 %v569, %v748
  %v826 = vmul.f32 %v570, %v753
  %v827 = vmul.f32 %v571, %v753
  %v828 = vmul.f32 %v572, %v758
  %v829 = vmul.f32 %v573, %v758
  %v830 = vmul.f32 %v574, %v763
  %v831 = vmul.f32 %v575, %v763
  %v832 = vmul.f32 %v576, %v768
  %v833 = vmul.f32 %v577, %v768
  %v834 = vld [vmem:[%s2] sm:$0x3]
  %v836 = vlaneseq
  %v837 = vshrl.u32 %v836, 7
  %v838 = vsub.s32 0, %v837
  %v839 = vrot.slane %v834, %v838
  %v840 = vlaneseq
  %v841 = vshrl.u32 %v840, 7
  %v842 = vsub.s32 1, %v841
  %v843 = vrot.slane %v834, %v842
  %v846 = vmul.f32 %v770, %v839
  %v847 = vmul.f32 %v771, %v843
  %v848 = vmul.f32 %v772, %v839
  %v849 = vmul.f32 %v773, %v843
  %v850 = vmul.f32 %v774, %v839
  %v851 = vmul.f32 %v775, %v843
  %v852 = vmul.f32 %v776, %v839
  %v853 = vmul.f32 %v777, %v843
  %v854 = vmul.f32 %v778, %v839
  %v855 = vmul.f32 %v779, %v843
  %v856 = vmul.f32 %v780, %v839
  %v857 = vmul.f32 %v781, %v843
  %v858 = vmul.f32 %v782, %v839
  %v859 = vmul.f32 %v783, %v843
  %v860 = vmul.f32 %v784, %v839
  %v861 = vmul.f32 %v785, %v843
  %v862 = vmul.f32 %v786, %v839
  %v863 = vmul.f32 %v787, %v843
  %v864 = vmul.f32 %v788, %v839
  %v865 = vmul.f32 %v789, %v843
  %v866 = vmul.f32 %v790, %v839
  %v867 = vmul.f32 %v791, %v843
  %v868 = vmul.f32 %v792, %v839
  %v869 = vmul.f32 %v793, %v843
  %v870 = vmul.f32 %v794, %v839
  %v871 = vmul.f32 %v795, %v843
  %v872 = vmul.f32 %v796, %v839
  %v873 = vmul.f32 %v797, %v843
  %v874 = vmul.f32 %v798, %v839
  %v875 = vmul.f32 %v799, %v843
  %v876 = vmul.f32 %v800, %v839
  %v877 = vmul.f32 %v801, %v843
  %v878 = vmul.f32 %v802, %v839
  %v879 = vmul.f32 %v803, %v843
  %v880 = vmul.f32 %v804, %v839
  %v881 = vmul.f32 %v805, %v843
  %v882 = vmul.f32 %v806, %v839
  %v883 = vmul.f32 %v807, %v843
  %v884 = vmul.f32 %v808, %v839
  %v885 = vmul.f32 %v809, %v843
  %v886 = vmul.f32 %v810, %v839
  %v887 = vmul.f32 %v811, %v843
  %v888 = vmul.f32 %v812, %v839
  %v889 = vmul.f32 %v813, %v843
  %v890 = vmul.f32 %v814, %v839
  %v891 = vmul.f32 %v815, %v843
  %v892 = vmul.f32 %v816, %v839
  %v893 = vmul.f32 %v817, %v843
  %v894 = vmul.f32 %v818, %v839
  %v895 = vmul.f32 %v819, %v843
  %v896 = vmul.f32 %v820, %v839
  %v897 = vmul.f32 %v821, %v843
  %v898 = vmul.f32 %v822, %v839
  %v899 = vmul.f32 %v823, %v843
  %v900 = vmul.f32 %v824, %v839
  %v901 = vmul.f32 %v825, %v843
  %v902 = vmul.f32 %v826, %v839
  %v903 = vmul.f32 %v827, %v843
  %v904 = vmul.f32 %v828, %v839
  %v905 = vmul.f32 %v829, %v843
  %v906 = vmul.f32 %v830, %v839
  %v907 = vmul.f32 %v831, %v843
  %v908 = vmul.f32 %v832, %v839
  %v909 = vmul.f32 %v833, %v843
  %v910 = vpack.c.bf16 %v848, %v846
  %v911 = vpack.c.bf16 %v849, %v847
  %v912 = vpack.c.bf16 %v852, %v850
  %v913 = vpack.c.bf16 %v853, %v851
  %v914 = vpack.c.bf16 %v856, %v854
  %v915 = vpack.c.bf16 %v857, %v855
  %v916 = vpack.c.bf16 %v860, %v858
  %v917 = vpack.c.bf16 %v861, %v859
  %v918 = vpack.c.bf16 %v864, %v862
  %v919 = vpack.c.bf16 %v865, %v863
  %v920 = vpack.c.bf16 %v868, %v866
  %v921 = vpack.c.bf16 %v869, %v867
  %v922 = vpack.c.bf16 %v872, %v870
  %v923 = vpack.c.bf16 %v873, %v871
  %v924 = vpack.c.bf16 %v876, %v874
  %v925 = vpack.c.bf16 %v877, %v875
  %v926 = vpack.c.bf16 %v880, %v878
  %v927 = vpack.c.bf16 %v881, %v879
  %v928 = vpack.c.bf16 %v884, %v882
  %v929 = vpack.c.bf16 %v885, %v883
  %v930 = vpack.c.bf16 %v888, %v886
  %v931 = vpack.c.bf16 %v889, %v887
  %v932 = vpack.c.bf16 %v892, %v890
  %v933 = vpack.c.bf16 %v893, %v891
  %v934 = vpack.c.bf16 %v896, %v894
  %v935 = vpack.c.bf16 %v897, %v895
  %v936 = vpack.c.bf16 %v900, %v898
  %v937 = vpack.c.bf16 %v901, %v899
  %v938 = vpack.c.bf16 %v904, %v902
  %v939 = vpack.c.bf16 %v905, %v903
  %v940 = vpack.c.bf16 %v908, %v906
  %v941 = vpack.c.bf16 %v909, %v907
  %v942 = vld [vmem:[#allocation2] sm:$0xff]
  %v943 = vld [vmem:[#allocation2 + $0x8] sm:$0xff]
  %v944 = vld [vmem:[#allocation2 + $0x10] sm:$0xff]
  %v945 = vld [vmem:[#allocation2 + $0x18] sm:$0xff]
  %v946 = vld [vmem:[#allocation2 + $0x20] sm:$0xff]
  %v947 = vld [vmem:[#allocation2 + $0x28] sm:$0xff]
  %v948 = vld [vmem:[#allocation2 + $0x30] sm:$0xff]
  %v949 = vld [vmem:[#allocation2 + $0x38] sm:$0xff]
  %v950 = vld [vmem:[#allocation2 + $0x40] sm:$0xff]
  %v951 = vld [vmem:[#allocation2 + $0x48] sm:$0xff]
  %v952 = vld [vmem:[#allocation2 + $0x50] sm:$0xff]
  %v953 = vld [vmem:[#allocation2 + $0x58] sm:$0xff]
  %v954 = vld [vmem:[#allocation2 + $0x60] sm:$0xff]
  %v955 = vld [vmem:[#allocation2 + $0x68] sm:$0xff]
  %v956 = vld [vmem:[#allocation2 + $0x70] sm:$0xff]
  %v957 = vld [vmem:[#allocation2 + $0x78] sm:$0xff]
  %v958 = vld [vmem:[#allocation2 + $0x80] sm:$0xff]
  %v959 = vld [vmem:[#allocation2 + $0x88] sm:$0xff]
  %v960 = vld [vmem:[#allocation2 + $0x90] sm:$0xff]
  %v961 = vld [vmem:[#allocation2 + $0x98] sm:$0xff]
  %v962 = vld [vmem:[#allocation2 + $0xa0] sm:$0xff]
  %v963 = vld [vmem:[#allocation2 + $0xa8] sm:$0xff]
  %v964 = vld [vmem:[#allocation2 + $0xb0] sm:$0xff]
  %v965 = vld [vmem:[#allocation2 + $0xb8] sm:$0xff]
  %v966 = vld [vmem:[#allocation2 + $0xc0] sm:$0xff]
  %v967 = vld [vmem:[#allocation2 + $0xc8] sm:$0xff]
  %v968 = vld [vmem:[#allocation2 + $0xd0] sm:$0xff]
  %v969 = vld [vmem:[#allocation2 + $0xd8] sm:$0xff]
  %v970 = vld [vmem:[#allocation2 + $0xe0] sm:$0xff]
  %v971 = vld [vmem:[#allocation2 + $0xe8] sm:$0xff]
  %v972 = vld [vmem:[#allocation2 + $0xf0] sm:$0xff]
  %v973 = vld [vmem:[#allocation2 + $0xf8] sm:$0xff]
  %v974 = vld [vmem:[#allocation2 + $0x100] sm:$0xff]
  %v975 = vld [vmem:[#allocation2 + $0x108] sm:$0xff]
  %v976 = vld [vmem:[#allocation2 + $0x110] sm:$0xff]
  %v977 = vld [vmem:[#allocation2 + $0x118] sm:$0xff]
  %v978 = vld [vmem:[#allocation2 + $0x120] sm:$0xff]
  %v979 = vld [vmem:[#allocation2 + $0x128] sm:$0xff]
  %v980 = vld [vmem:[#allocation2 + $0x130] sm:$0xff]
  %v981 = vld [vmem:[#allocation2 + $0x138] sm:$0xff]
  %v982 = vld [vmem:[#allocation2 + $0x140] sm:$0xff]
  %v983 = vld [vmem:[#allocation2 + $0x148] sm:$0xff]
  %v984 = vld [vmem:[#allocation2 + $0x150] sm:$0xff]
  %v985 = vld [vmem:[#allocation2 + $0x158] sm:$0xff]
  %v986 = vld [vmem:[#allocation2 + $0x160] sm:$0xff]
  %v987 = vld [vmem:[#allocation2 + $0x168] sm:$0xff]
  %v988 = vld [vmem:[#allocation2 + $0x170] sm:$0xff]
  %v989 = vld [vmem:[#allocation2 + $0x178] sm:$0xff]
  %v990 = vld [vmem:[#allocation2 + $0x180] sm:$0xff]
  %v991 = vld [vmem:[#allocation2 + $0x188] sm:$0xff]
  %v992 = vld [vmem:[#allocation2 + $0x190] sm:$0xff]
  %v993 = vld [vmem:[#allocation2 + $0x198] sm:$0xff]
  %v994 = vld [vmem:[#allocation2 + $0x1a0] sm:$0xff]
  %v995 = vld [vmem:[#allocation2 + $0x1a8] sm:$0xff]
  %v996 = vld [vmem:[#allocation2 + $0x1b0] sm:$0xff]
  %v997 = vld [vmem:[#allocation2 + $0x1b8] sm:$0xff]
  %v998 = vld [vmem:[#allocation2 + $0x1c0] sm:$0xff]
  %v999 = vld [vmem:[#allocation2 + $0x1c8] sm:$0xff]
  %v1000 = vld [vmem:[#allocation2 + $0x1d0] sm:$0xff]
  %v1001 = vld [vmem:[#allocation2 + $0x1d8] sm:$0xff]
  %v1002 = vld [vmem:[#allocation2 + $0x1e0] sm:$0xff]
  %v1003 = vld [vmem:[#allocation2 + $0x1e8] sm:$0xff]
  %v1004 = vld [vmem:[#allocation2 + $0x1f0] sm:$0xff]
  %v1005 = vld [vmem:[#allocation2 + $0x1f8] sm:$0xff]
  %v1006 = vld [vmem:[#allocation2 + $0x200] sm:$0xff]
  %v1007 = vld [vmem:[#allocation2 + $0x208] sm:$0xff]
  %v1008 = vld [vmem:[#allocation2 + $0x210] sm:$0xff]
  %v1009 = vld [vmem:[#allocation2 + $0x218] sm:$0xff]
  %v1010 = vld [vmem:[#allocation2 + $0x220] sm:$0xff]
  %v1011 = vld [vmem:[#allocation2 + $0x228] sm:$0xff]
  %v1012 = vld [vmem:[#allocation2 + $0x230] sm:$0xff]
  %v1013 = vld [vmem:[#allocation2 + $0x238] sm:$0xff]
  %v1014 = vld [vmem:[#allocation2 + $0x240] sm:$0xff]
  %v1015 = vld [vmem:[#allocation2 + $0x248] sm:$0xff]
  %v1016 = vld [vmem:[#allocation2 + $0x250] sm:$0xff]
  %v1017 = vld [vmem:[#allocation2 + $0x258] sm:$0xff]
  %v1018 = vld [vmem:[#allocation2 + $0x260] sm:$0xff]
  %v1019 = vld [vmem:[#allocation2 + $0x268] sm:$0xff]
  %v1020 = vld [vmem:[#allocation2 + $0x270] sm:$0xff]
  %v1021 = vld [vmem:[#allocation2 + $0x278] sm:$0xff]
  %v1022 = vld [vmem:[#allocation2 + $0x280] sm:$0xff]
  %v1023 = vld [vmem:[#allocation2 + $0x288] sm:$0xff]
  %v1024 = vld [vmem:[#allocation2 + $0x290] sm:$0xff]
  %v1025 = vld [vmem:[#allocation2 + $0x298] sm:$0xff]
  %v1026 = vld [vmem:[#allocation2 + $0x2a0] sm:$0xff]
  %v1027 = vld [vmem:[#allocation2 + $0x2a8] sm:$0xff]
  %v1028 = vld [vmem:[#allocation2 + $0x2b0] sm:$0xff]
  %v1029 = vld [vmem:[#allocation2 + $0x2b8] sm:$0xff]
  %v1030 = vld [vmem:[#allocation2 + $0x2c0] sm:$0xff]
  %v1031 = vld [vmem:[#allocation2 + $0x2c8] sm:$0xff]
  %v1032 = vld [vmem:[#allocation2 + $0x2d0] sm:$0xff]
  %v1033 = vld [vmem:[#allocation2 + $0x2d8] sm:$0xff]
  %v1034 = vld [vmem:[#allocation2 + $0x2e0] sm:$0xff]
  %v1035 = vld [vmem:[#allocation2 + $0x2e8] sm:$0xff]
  %v1036 = vld [vmem:[#allocation2 + $0x2f0] sm:$0xff]
  %v1037 = vld [vmem:[#allocation2 + $0x2f8] sm:$0xff]
  %v1038 = vld [vmem:[#allocation2 + $0x300] sm:$0xff]
  %v1039 = vld [vmem:[#allocation2 + $0x308] sm:$0xff]
  %v1040 = vld [vmem:[#allocation2 + $0x310] sm:$0xff]
  %v1041 = vld [vmem:[#allocation2 + $0x318] sm:$0xff]
  %v1042 = vld [vmem:[#allocation2 + $0x320] sm:$0xff]
  %v1043 = vld [vmem:[#allocation2 + $0x328] sm:$0xff]
  %v1044 = vld [vmem:[#allocation2 + $0x330] sm:$0xff]
  %v1045 = vld [vmem:[#allocation2 + $0x338] sm:$0xff]
  %v1046 = vld [vmem:[#allocation2 + $0x340] sm:$0xff]
  %v1047 = vld [vmem:[#allocation2 + $0x348] sm:$0xff]
  %v1048 = vld [vmem:[#allocation2 + $0x350] sm:$0xff]
  %v1049 = vld [vmem:[#allocation2 + $0x358] sm:$0xff]
  %v1050 = vld [vmem:[#allocation2 + $0x360] sm:$0xff]
  %v1051 = vld [vmem:[#allocation2 + $0x368] sm:$0xff]
  %v1052 = vld [vmem:[#allocation2 + $0x370] sm:$0xff]
  %v1053 = vld [vmem:[#allocation2 + $0x378] sm:$0xff]
  %v1054 = vld [vmem:[#allocation2 + $0x380] sm:$0xff]
  %v1055 = vld [vmem:[#allocation2 + $0x388] sm:$0xff]
  %v1056 = vld [vmem:[#allocation2 + $0x390] sm:$0xff]
  %v1057 = vld [vmem:[#allocation2 + $0x398] sm:$0xff]
  %v1058 = vld [vmem:[#allocation2 + $0x3a0] sm:$0xff]
  %v1059 = vld [vmem:[#allocation2 + $0x3a8] sm:$0xff]
  %v1060 = vld [vmem:[#allocation2 + $0x3b0] sm:$0xff]
  %v1061 = vld [vmem:[#allocation2 + $0x3b8] sm:$0xff]
  %v1062 = vld [vmem:[#allocation2 + $0x3c0] sm:$0xff]
  %v1063 = vld [vmem:[#allocation2 + $0x3c8] sm:$0xff]
  %v1064 = vld [vmem:[#allocation2 + $0x3d0] sm:$0xff]
  %v1065 = vld [vmem:[#allocation2 + $0x3d8] sm:$0xff]
  %v1066 = vld [vmem:[#allocation2 + $0x3e0] sm:$0xff]
  %v1067 = vld [vmem:[#allocation2 + $0x3e8] sm:$0xff]
  %v1068 = vld [vmem:[#allocation2 + $0x3f0] sm:$0xff]
  %v1069 = vld [vmem:[#allocation2 + $0x3f8] sm:$0xff]
  %v1070 = vld [vmem:[%s3] sm:$0xff]
  %v1071 = vld [vmem:[%s3 + $0x8] sm:$0xff]
  %v1072 = vld [vmem:[%s3 + $0x10] sm:$0xff]
  %v1073 = vld [vmem:[%s3 + $0x18] sm:$0xff]
  %v1074 = vld [vmem:[%s3 + $0x20] sm:$0xff]
  %v1075 = vld [vmem:[%s3 + $0x28] sm:$0xff]
  %v1076 = vld [vmem:[%s3 + $0x30] sm:$0xff]
  %v1077 = vld [vmem:[%s3 + $0x38] sm:$0xff]
  %v1078 = vld [vmem:[%s3 + $0x40] sm:$0xff]
  %v1079 = vld [vmem:[%s3 + $0x48] sm:$0xff]
  %v1080 = vld [vmem:[%s3 + $0x50] sm:$0xff]
  %v1081 = vld [vmem:[%s3 + $0x58] sm:$0xff]
  %v1082 = vld [vmem:[%s3 + $0x60] sm:$0xff]
  %v1083 = vld [vmem:[%s3 + $0x68] sm:$0xff]
  %v1084 = vld [vmem:[%s3 + $0x70] sm:$0xff]
  %v1085 = vld [vmem:[%s3 + $0x78] sm:$0xff]
  %v1086 = vld [vmem:[%s3 + $0x80] sm:$0xff]
  %v1087 = vld [vmem:[%s3 + $0x88] sm:$0xff]
  %v1088 = vld [vmem:[%s3 + $0x90] sm:$0xff]
  %v1089 = vld [vmem:[%s3 + $0x98] sm:$0xff]
  %v1090 = vld [vmem:[%s3 + $0xa0] sm:$0xff]
  %v1091 = vld [vmem:[%s3 + $0xa8] sm:$0xff]
  %v1092 = vld [vmem:[%s3 + $0xb0] sm:$0xff]
  %v1093 = vld [vmem:[%s3 + $0xb8] sm:$0xff]
  %v1094 = vld [vmem:[%s3 + $0xc0] sm:$0xff]
  %v1095 = vld [vmem:[%s3 + $0xc8] sm:$0xff]
  %v1096 = vld [vmem:[%s3 + $0xd0] sm:$0xff]
  %v1097 = vld [vmem:[%s3 + $0xd8] sm:$0xff]
  %v1098 = vld [vmem:[%s3 + $0xe0] sm:$0xff]
  %v1099 = vld [vmem:[%s3 + $0xe8] sm:$0xff]
  %v1100 = vld [vmem:[%s3 + $0xf0] sm:$0xff]
  %v1101 = vld [vmem:[%s3 + $0xf8] sm:$0xff]
  %v1102 = vld [vmem:[%s3 + $0x100] sm:$0xff]
  %v1103 = vld [vmem:[%s3 + $0x108] sm:$0xff]
  %v1104 = vld [vmem:[%s3 + $0x110] sm:$0xff]
  %v1105 = vld [vmem:[%s3 + $0x118] sm:$0xff]
  %v1106 = vld [vmem:[%s3 + $0x120] sm:$0xff]
  %v1107 = vld [vmem:[%s3 + $0x128] sm:$0xff]
  %v1108 = vld [vmem:[%s3 + $0x130] sm:$0xff]
  %v1109 = vld [vmem:[%s3 + $0x138] sm:$0xff]
  %v1110 = vld [vmem:[%s3 + $0x140] sm:$0xff]
  %v1111 = vld [vmem:[%s3 + $0x148] sm:$0xff]
  %v1112 = vld [vmem:[%s3 + $0x150] sm:$0xff]
  %v1113 = vld [vmem:[%s3 + $0x158] sm:$0xff]
  %v1114 = vld [vmem:[%s3 + $0x160] sm:$0xff]
  %v1115 = vld [vmem:[%s3 + $0x168] sm:$0xff]
  %v1116 = vld [vmem:[%s3 + $0x170] sm:$0xff]
  %v1117 = vld [vmem:[%s3 + $0x178] sm:$0xff]
  %v1118 = vld [vmem:[%s3 + $0x180] sm:$0xff]
  %v1119 = vld [vmem:[%s3 + $0x188] sm:$0xff]
  %v1120 = vld [vmem:[%s3 + $0x190] sm:$0xff]
  %v1121 = vld [vmem:[%s3 + $0x198] sm:$0xff]
  %v1122 = vld [vmem:[%s3 + $0x1a0] sm:$0xff]
  %v1123 = vld [vmem:[%s3 + $0x1a8] sm:$0xff]
  %v1124 = vld [vmem:[%s3 + $0x1b0] sm:$0xff]
  %v1125 = vld [vmem:[%s3 + $0x1b8] sm:$0xff]
  %v1126 = vld [vmem:[%s3 + $0x1c0] sm:$0xff]
  %v1127 = vld [vmem:[%s3 + $0x1c8] sm:$0xff]
  %v1128 = vld [vmem:[%s3 + $0x1d0] sm:$0xff]
  %v1129 = vld [vmem:[%s3 + $0x1d8] sm:$0xff]
  %v1130 = vld [vmem:[%s3 + $0x1e0] sm:$0xff]
  %v1131 = vld [vmem:[%s3 + $0x1e8] sm:$0xff]
  %v1132 = vld [vmem:[%s3 + $0x1f0] sm:$0xff]
  %v1133 = vld [vmem:[%s3 + $0x1f8] sm:$0xff]
  %v1198 = vunpack.c.l.b16 %v1070
  %v1199 = vunpack.c.h.b16 %v1070
  %v1200 = vunpack.c.l.b16 %v1071
  %v1201 = vunpack.c.h.b16 %v1071
  %v1202 = vunpack.c.l.b16 %v1072
  %v1203 = vunpack.c.h.b16 %v1072
  %v1204 = vunpack.c.l.b16 %v1073
  %v1205 = vunpack.c.h.b16 %v1073
  %v1206 = vunpack.c.l.b16 %v1074
  %v1207 = vunpack.c.h.b16 %v1074
  %v1208 = vunpack.c.l.b16 %v1075
  %v1209 = vunpack.c.h.b16 %v1075
  %v1210 = vunpack.c.l.b16 %v1076
  %v1211 = vunpack.c.h.b16 %v1076
  %v1212 = vunpack.c.l.b16 %v1077
  %v1213 = vunpack.c.h.b16 %v1077
  %v1214 = vunpack.c.l.b16 %v1078
  %v1215 = vunpack.c.h.b16 %v1078
  %v1216 = vunpack.c.l.b16 %v1079
  %v1217 = vunpack.c.h.b16 %v1079
  %v1218 = vunpack.c.l.b16 %v1080
  %v1219 = vunpack.c.h.b16 %v1080
  %v1220 = vunpack.c.l.b16 %v1081
  %v1221 = vunpack.c.h.b16 %v1081
  %v1222 = vunpack.c.l.b16 %v1082
  %v1223 = vunpack.c.h.b16 %v1082
  %v1224 = vunpack.c.l.b16 %v1083
  %v1225 = vunpack.c.h.b16 %v1083
  %v1226 = vunpack.c.l.b16 %v1084
  %v1227 = vunpack.c.h.b16 %v1084
  %v1228 = vunpack.c.l.b16 %v1085
  %v1229 = vunpack.c.h.b16 %v1085
  %v1230 = vunpack.c.l.b16 %v1086
  %v1231 = vunpack.c.h.b16 %v1086
  %v1232 = vunpack.c.l.b16 %v1087
  %v1233 = vunpack.c.h.b16 %v1087
  %v1234 = vunpack.c.l.b16 %v1088
  %v1235 = vunpack.c.h.b16 %v1088
  %v1236 = vunpack.c.l.b16 %v1089
  %v1237 = vunpack.c.h.b16 %v1089
  %v1238 = vunpack.c.l.b16 %v1090
  %v1239 = vunpack.c.h.b16 %v1090
  %v1240 = vunpack.c.l.b16 %v1091
  %v1241 = vunpack.c.h.b16 %v1091
  %v1242 = vunpack.c.l.b16 %v1092
  %v1243 = vunpack.c.h.b16 %v1092
  %v1244 = vunpack.c.l.b16 %v1093
  %v1245 = vunpack.c.h.b16 %v1093
  %v1246 = vunpack.c.l.b16 %v1094
  %v1247 = vunpack.c.h.b16 %v1094
  %v1248 = vunpack.c.l.b16 %v1095
  %v1249 = vunpack.c.h.b16 %v1095
  %v1250 = vunpack.c.l.b16 %v1096
  %v1251 = vunpack.c.h.b16 %v1096
  %v1252 = vunpack.c.l.b16 %v1097
  %v1253 = vunpack.c.h.b16 %v1097
  %v1254 = vunpack.c.l.b16 %v1098
  %v1255 = vunpack.c.h.b16 %v1098
  %v1256 = vunpack.c.l.b16 %v1099
  %v1257 = vunpack.c.h.b16 %v1099
  %v1258 = vunpack.c.l.b16 %v1100
  %v1259 = vunpack.c.h.b16 %v1100
  %v1260 = vunpack.c.l.b16 %v1101
  %v1261 = vunpack.c.h.b16 %v1101
  %v1262 = vunpack.c.l.b16 %v1102
  %v1263 = vunpack.c.h.b16 %v1102
  %v1264 = vunpack.c.l.b16 %v1103
  %v1265 = vunpack.c.h.b16 %v1103
  %v1266 = vunpack.c.l.b16 %v1104
  %v1267 = vunpack.c.h.b16 %v1104
  %v1268 = vunpack.c.l.b16 %v1105
  %v1269 = vunpack.c.h.b16 %v1105
  %v1270 = vunpack.c.l.b16 %v1106
  %v1271 = vunpack.c.h.b16 %v1106
  %v1272 = vunpack.c.l.b16 %v1107
  %v1273 = vunpack.c.h.b16 %v1107
  %v1274 = vunpack.c.l.b16 %v1108
  %v1275 = vunpack.c.h.b16 %v1108
  %v1276 = vunpack.c.l.b16 %v1109
  %v1277 = vunpack.c.h.b16 %v1109
  %v1278 = vunpack.c.l.b16 %v1110
  %v1279 = vunpack.c.h.b16 %v1110
  %v1280 = vunpack.c.l.b16 %v1111
  %v1281 = vunpack.c.h.b16 %v1111
  %v1282 = vunpack.c.l.b16 %v1112
  %v1283 = vunpack.c.h.b16 %v1112
  %v1284 = vunpack.c.l.b16 %v1113
  %v1285 = vunpack.c.h.b16 %v1113
  %v1286 = vunpack.c.l.b16 %v1114
  %v1287 = vunpack.c.h.b16 %v1114
  %v1288 = vunpack.c.l.b16 %v1115
  %v1289 = vunpack.c.h.b16 %v1115
  %v1290 = vunpack.c.l.b16 %v1116
  %v1291 = vunpack.c.h.b16 %v1116
  %v1292 = vunpack.c.l.b16 %v1117
  %v1293 = vunpack.c.h.b16 %v1117
  %v1294 = vunpack.c.l.b16 %v1118
  %v1295 = vunpack.c.h.b16 %v1118
  %v1296 = vunpack.c.l.b16 %v1119
  %v1297 = vunpack.c.h.b16 %v1119
  %v1298 = vunpack.c.l.b16 %v1120
  %v1299 = vunpack.c.h.b16 %v1120
  %v1300 = vunpack.c.l.b16 %v1121
  %v1301 = vunpack.c.h.b16 %v1121
  %v1302 = vunpack.c.l.b16 %v1122
  %v1303 = vunpack.c.h.b16 %v1122
  %v1304 = vunpack.c.l.b16 %v1123
  %v1305 = vunpack.c.h.b16 %v1123
  %v1306 = vunpack.c.l.b16 %v1124
  %v1307 = vunpack.c.h.b16 %v1124
  %v1308 = vunpack.c.l.b16 %v1125
  %v1309 = vunpack.c.h.b16 %v1125
  %v1310 = vunpack.c.l.b16 %v1126
  %v1311 = vunpack.c.h.b16 %v1126
  %v1312 = vunpack.c.l.b16 %v1127
  %v1313 = vunpack.c.h.b16 %v1127
  %v1314 = vunpack.c.l.b16 %v1128
  %v1315 = vunpack.c.h.b16 %v1128
  %v1316 = vunpack.c.l.b16 %v1129
  %v1317 = vunpack.c.h.b16 %v1129
  %v1318 = vunpack.c.l.b16 %v1130
  %v1319 = vunpack.c.h.b16 %v1130
  %v1320 = vunpack.c.l.b16 %v1131
  %v1321 = vunpack.c.h.b16 %v1131
  %v1322 = vunpack.c.l.b16 %v1132
  %v1323 = vunpack.c.h.b16 %v1132
  %v1324 = vunpack.c.l.b16 %v1133
  %v1325 = vunpack.c.h.b16 %v1133
  %v1326 = vpack.c.b16 %v1202, %v1198
  %v1327 = vpack.c.b16 %v1203, %v1199
  %v1328 = vpack.c.b16 %v1204, %v1200
  %v1329 = vpack.c.b16 %v1205, %v1201
  %v1330 = vpack.c.b16 %v1210, %v1206
  %v1331 = vpack.c.b16 %v1211, %v1207
  %v1332 = vpack.c.b16 %v1212, %v1208
  %v1333 = vpack.c.b16 %v1213, %v1209
  %v1334 = vpack.c.b16 %v1218, %v1214
  %v1335 = vpack.c.b16 %v1219, %v1215
  %v1336 = vpack.c.b16 %v1220, %v1216
  %v1337 = vpack.c.b16 %v1221, %v1217
  %v1338 = vpack.c.b16 %v1226, %v1222
  %v1339 = vpack.c.b16 %v1227, %v1223
  %v1340 = vpack.c.b16 %v1228, %v1224
  %v1341 = vpack.c.b16 %v1229, %v1225
  %v1342 = vpack.c.b16 %v1234, %v1230
  %v1343 = vpack.c.b16 %v1235, %v1231
  %v1344 = vpack.c.b16 %v1236, %v1232
  %v1345 = vpack.c.b16 %v1237, %v1233
  %v1346 = vpack.c.b16 %v1242, %v1238
  %v1347 = vpack.c.b16 %v1243, %v1239
  %v1348 = vpack.c.b16 %v1244, %v1240
  %v1349 = vpack.c.b16 %v1245, %v1241
  %v1350 = vpack.c.b16 %v1250, %v1246
  %v1351 = vpack.c.b16 %v1251, %v1247
  %v1352 = vpack.c.b16 %v1252, %v1248
  %v1353 = vpack.c.b16 %v1253, %v1249
  %v1354 = vpack.c.b16 %v1258, %v1254
  %v1355 = vpack.c.b16 %v1259, %v1255
  %v1356 = vpack.c.b16 %v1260, %v1256
  %v1357 = vpack.c.b16 %v1261, %v1257
  %v1358 = vpack.c.b16 %v1266, %v1262
  %v1359 = vpack.c.b16 %v1267, %v1263
  %v1360 = vpack.c.b16 %v1268, %v1264
  %v1361 = vpack.c.b16 %v1269, %v1265
  %v1362 = vpack.c.b16 %v1274, %v1270
  %v1363 = vpack.c.b16 %v1275, %v1271
  %v1364 = vpack.c.b16 %v1276, %v1272
  %v1365 = vpack.c.b16 %v1277, %v1273
  %v1366 = vpack.c.b16 %v1282, %v1278
  %v1367 = vpack.c.b16 %v1283, %v1279
  %v1368 = vpack.c.b16 %v1284, %v1280
  %v1369 = vpack.c.b16 %v1285, %v1281
  %v1370 = vpack.c.b16 %v1290, %v1286
  %v1371 = vpack.c.b16 %v1291, %v1287
  %v1372 = vpack.c.b16 %v1292, %v1288
  %v1373 = vpack.c.b16 %v1293, %v1289
  %v1374 = vpack.c.b16 %v1298, %v1294
  %v1375 = vpack.c.b16 %v1299, %v1295
  %v1376 = vpack.c.b16 %v1300, %v1296
  %v1377 = vpack.c.b16 %v1301, %v1297
  %v1378 = vpack.c.b16 %v1306, %v1302
  %v1379 = vpack.c.b16 %v1307, %v1303
  %v1380 = vpack.c.b16 %v1308, %v1304
  %v1381 = vpack.c.b16 %v1309, %v1305
  %v1382 = vpack.c.b16 %v1314, %v1310
  %v1383 = vpack.c.b16 %v1315, %v1311
  %v1384 = vpack.c.b16 %v1316, %v1312
  %v1385 = vpack.c.b16 %v1317, %v1313
  %v1386 = vpack.c.b16 %v1322, %v1318
  %v1387 = vpack.c.b16 %v1323, %v1319
  %v1388 = vpack.c.b16 %v1324, %v1320
  %v1389 = vpack.c.b16 %v1325, %v1321
  %1454 = vmatprep.subr.bf16.mxu0 %v1327
  %1455 = vmatpush1.bf16.msra.mxu0 %v1326
  %1456 = vmatprep.subr.bf16.mxu0 %v1331
  %1457 = vmatpush1.bf16.msra.mxu0 %v1330
  %1458 = vmatprep.subr.bf16.mxu0 %v1335
  %1459 = vmatpush1.bf16.msra.mxu0 %v1334
  %1460 = vmatprep.subr.bf16.mxu0 %v1339
  %1461 = vmatpush1.bf16.msra.mxu0 %v1338
  %1462 = vmatprep.subr.bf16.mxu0 %v1343
  %1463 = vmatpush1.bf16.msra.mxu0 %v1342
  %1464 = vmatprep.subr.bf16.mxu0 %v1347
  %1465 = vmatpush1.bf16.msra.mxu0 %v1346
  %1466 = vmatprep.subr.bf16.mxu0 %v1351
  %1467 = vmatpush1.bf16.msra.mxu0 %v1350
  %1468 = vmatprep.subr.bf16.mxu0 %v1355
  %1469 = vmatpush1.bf16.msra.mxu0 %v1354
  %1470 = vmatprep.subr.bf16.mxu0 %v1359
  %1471 = vmatpush1.bf16.msra.mxu0 %v1358
  %1472 = vmatprep.subr.bf16.mxu0 %v1363
  %1473 = vmatpush1.bf16.msra.mxu0 %v1362
  %1474 = vmatprep.subr.bf16.mxu0 %v1367
  %1475 = vmatpush1.bf16.msra.mxu0 %v1366
  %1476 = vmatprep.subr.bf16.mxu0 %v1371
  %1477 = vmatpush1.bf16.msra.mxu0 %v1370
  %1478 = vmatprep.subr.bf16.mxu0 %v1375
  %1479 = vmatpush1.bf16.msra.mxu0 %v1374
  %1480 = vmatprep.subr.bf16.mxu0 %v1379
  %1481 = vmatpush1.bf16.msra.mxu0 %v1378
  %1482 = vmatprep.subr.bf16.mxu0 %v1383
  %1483 = vmatpush1.bf16.msra.mxu0 %v1382
  %1484 = vmatprep.subr.bf16.mxu0 %v1387
  %1485 = vmatpush1.bf16.msra.mxu0 %v1386
  %1486 = vmatprep.mubr.bf16.mxu0 %v911
  %1487 = vmatmul.mubr.bf16.gmra.mrb[0].mxu0 %v910
  %v1488 = vpop.f32.mrb[0].mxu0
  %v1489 = vadd.f32 0.0, %v1488
  %v1490 = vpop.f32.mrb[0].mxu0
  %v1491 = vadd.f32 0.0, %v1490
  %v1492 = vpop.f32.mrb[0].mxu0
  %v1493 = vadd.f32 0.0, %v1492
  %v1494 = vpop.f32.mrb[0].mxu0
  %v1495 = vadd.f32 0.0, %v1494
  %1496 = vmatprep.mubr.bf16.mxu0 %v913
  %1497 = vmatmul.mubr.bf16.gmra.mrb[0].mxu0 %v912
  %v1498 = vpop.f32.mrb[0].mxu0
  %v1499 = vadd.f32 0.0, %v1498
  %v1500 = vpop.f32.mrb[0].mxu0
  %v1501 = vadd.f32 0.0, %v1500
  %v1502 = vpop.f32.mrb[0].mxu0
  %v1503 = vadd.f32 0.0, %v1502
  %v1504 = vpop.f32.mrb[0].mxu0
  %v1505 = vadd.f32 0.0, %v1504
  %1506 = vmatprep.mubr.bf16.mxu0 %v915
  %1507 = vmatmul.mubr.bf16.gmra.mrb[0].mxu0 %v914
  %v1508 = vpop.f32.mrb[0].mxu0
  %v1509 = vadd.f32 0.0, %v1508
  %v1510 = vpop.f32.mrb[0].mxu0
  %v1511 = vadd.f32 0.0, %v1510
  %v1512 = vpop.f32.mrb[0].mxu0
  %v1513 = vadd.f32 0.0, %v1512
  %v1514 = vpop.f32.mrb[0].mxu0
  %v1515 = vadd.f32 0.0, %v1514
  %1516 = vmatprep.mubr.bf16.mxu0 %v917
  %1517 = vmatmul.mubr.bf16.gmra.mrb[0].mxu0 %v916
  %v1518 = vpop.f32.mrb[0].mxu0
  %v1519 = vadd.f32 0.0, %v1518
  %v1520 = vpop.f32.mrb[0].mxu0
  %v1521 = vadd.f32 0.0, %v1520
  %v1522 = vpop.f32.mrb[0].mxu0
  %v1523 = vadd.f32 0.0, %v1522
  %v1524 = vpop.f32.mrb[0].mxu0
  %v1525 = vadd.f32 0.0, %v1524
  %1526 = vmatprep.mubr.bf16.mxu0 %v919
  %1527 = vmatmul.mubr.bf16.gmra.mrb[0].mxu0 %v918
  %v1528 = vpop.f32.mrb[0].mxu0
  %v1529 = vadd.f32 0.0, %v1528
  %v1530 = vpop.f32.mrb[0].mxu0
  %v1531 = vadd.f32 0.0, %v1530
  %v1532 = vpop.f32.mrb[0].mxu0
  %v1533 = vadd.f32 0.0, %v1532
  %v1534 = vpop.f32.mrb[0].mxu0
  %v1535 = vadd.f32 0.0, %v1534
  %1536 = vmatprep.mubr.bf16.mxu0 %v921
  %1537 = vmatmul.mubr.bf16.gmra.mrb[0].mxu0 %v920
  %v1538 = vpop.f32.mrb[0].mxu0
  %v1539 = vadd.f32 0.0, %v1538
  %v1540 = vpop.f32.mrb[0].mxu0
  %v1541 = vadd.f32 0.0, %v1540
  %v1542 = vpop.f32.mrb[0].mxu0
  %v1543 = vadd.f32 0.0, %v1542
  %v1544 = vpop.f32.mrb[0].mxu0
  %v1545 = vadd.f32 0.0, %v1544
  %1546 = vmatprep.mubr.bf16.mxu0 %v923
  %1547 = vmatmul.mubr.bf16.gmra.mrb[0].mxu0 %v922
  %v1548 = vpop.f32.mrb[0].mxu0
  %v1549 = vadd.f32 0.0, %v1548
  %v1550 = vpop.f32.mrb[0].mxu0
  %v1551 = vadd.f32 0.0, %v1550
  %v1552 = vpop.f32.mrb[0].mxu0
  %v1553 = vadd.f32 0.0, %v1552
  %v1554 = vpop.f32.mrb[0].mxu0
  %v1555 = vadd.f32 0.0, %v1554
  %1556 = vmatprep.mubr.bf16.mxu0 %v925
  %1557 = vmatmul.mubr.bf16.gmra.mrb[0].mxu0 %v924
  %v1558 = vpop.f32.mrb[0].mxu0
  %v1559 = vadd.f32 0.0, %v1558
  %v1560 = vpop.f32.mrb[0].mxu0
  %v1561 = vadd.f32 0.0, %v1560
  %v1562 = vpop.f32.mrb[0].mxu0
  %v1563 = vadd.f32 0.0, %v1562
  %v1564 = vpop.f32.mrb[0].mxu0
  %v1565 = vadd.f32 0.0, %v1564
  %1566 = vmatprep.mubr.bf16.mxu0 %v927
  %1567 = vmatmul.mubr.bf16.gmra.mrb[0].mxu0 %v926
  %v1568 = vpop.f32.mrb[0].mxu0
  %v1569 = vadd.f32 0.0, %v1568
  %v1570 = vpop.f32.mrb[0].mxu0
  %v1571 = vadd.f32 0.0, %v1570
  %v1572 = vpop.f32.mrb[0].mxu0
  %v1573 = vadd.f32 0.0, %v1572
  %v1574 = vpop.f32.mrb[0].mxu0
  %v1575 = vadd.f32 0.0, %v1574
  %1576 = vmatprep.mubr.bf16.mxu0 %v929
  %1577 = vmatmul.mubr.bf16.gmra.mrb[0].mxu0 %v928
  %v1578 = vpop.f32.mrb[0].mxu0
  %v1579 = vadd.f32 0.0, %v1578
  %v1580 = vpop.f32.mrb[0].mxu0
  %v1581 = vadd.f32 0.0, %v1580
  %v1582 = vpop.f32.mrb[0].mxu0
  %v1583 = vadd.f32 0.0, %v1582
  %v1584 = vpop.f32.mrb[0].mxu0
  %v1585 = vadd.f32 0.0, %v1584
  %1586 = vmatprep.mubr.bf16.mxu0 %v931
  %1587 = vmatmul.mubr.bf16.gmra.mrb[0].mxu0 %v930
  %v1588 = vpop.f32.mrb[0].mxu0
  %v1589 = vadd.f32 0.0, %v1588
  %v1590 = vpop.f32.mrb[0].mxu0
  %v1591 = vadd.f32 0.0, %v1590
  %v1592 = vpop.f32.mrb[0].mxu0
  %v1593 = vadd.f32 0.0, %v1592
  %v1594 = vpop.f32.mrb[0].mxu0
  %v1595 = vadd.f32 0.0, %v1594
  %1596 = vmatprep.mubr.bf16.mxu0 %v933
  %1597 = vmatmul.mubr.bf16.gmra.mrb[0].mxu0 %v932
  %v1598 = vpop.f32.mrb[0].mxu0
  %v1599 = vadd.f32 0.0, %v1598
  %v1600 = vpop.f32.mrb[0].mxu0
  %v1601 = vadd.f32 0.0, %v1600
  %v1602 = vpop.f32.mrb[0].mxu0
  %v1603 = vadd.f32 0.0, %v1602
  %v1604 = vpop.f32.mrb[0].mxu0
  %v1605 = vadd.f32 0.0, %v1604
  %1606 = vmatprep.mubr.bf16.mxu0 %v935
  %1607 = vmatmul.mubr.bf16.gmra.mrb[0].mxu0 %v934
  %v1608 = vpop.f32.mrb[0].mxu0
  %v1609 = vadd.f32 0.0, %v1608
  %v1610 = vpop.f32.mrb[0].mxu0
  %v1611 = vadd.f32 0.0, %v1610
  %v1612 = vpop.f32.mrb[0].mxu0
  %v1613 = vadd.f32 0.0, %v1612
  %v1614 = vpop.f32.mrb[0].mxu0
  %v1615 = vadd.f32 0.0, %v1614
  %1616 = vmatprep.mubr.bf16.mxu0 %v937
  %1617 = vmatmul.mubr.bf16.gmra.mrb[0].mxu0 %v936
  %v1618 = vpop.f32.mrb[0].mxu0
  %v1619 = vadd.f32 0.0, %v1618
  %v1620 = vpop.f32.mrb[0].mxu0
  %v1621 = vadd.f32 0.0, %v1620
  %v1622 = vpop.f32.mrb[0].mxu0
  %v1623 = vadd.f32 0.0, %v1622
  %v1624 = vpop.f32.mrb[0].mxu0
  %v1625 = vadd.f32 0.0, %v1624
  %1626 = vmatprep.mubr.bf16.mxu0 %v939
  %1627 = vmatmul.mubr.bf16.gmra.mrb[0].mxu0 %v938
  %v1628 = vpop.f32.mrb[0].mxu0
  %v1629 = vadd.f32 0.0, %v1628
  %v1630 = vpop.f32.mrb[0].mxu0
  %v1631 = vadd.f32 0.0, %v1630
  %v1632 = vpop.f32.mrb[0].mxu0
  %v1633 = vadd.f32 0.0, %v1632
  %v1634 = vpop.f32.mrb[0].mxu0
  %v1635 = vadd.f32 0.0, %v1634
  %1636 = vmatprep.mubr.bf16.mxu0 %v941
  %1637 = vmatmul.mubr.bf16.gmra.mrb[0].mxu0 %v940
  %v1638 = vpop.f32.mrb[0].mxu0
  %v1639 = vadd.f32 0.0, %v1638
  %v1640 = vpop.f32.mrb[0].mxu0
  %v1641 = vadd.f32 0.0, %v1640
  %v1642 = vpop.f32.mrb[0].mxu0
  %v1643 = vadd.f32 0.0, %v1642
  %v1644 = vpop.f32.mrb[0].mxu0
  %v1645 = vadd.f32 0.0, %v1644
  %1646 = vdwg.mxu0
  %1647 = vmatprep.subr.bf16.mxu0 %v1329
  %1648 = vmatpush1.bf16.msra.mxu0 %v1328
  %1649 = vmatprep.subr.bf16.mxu0 %v1333
  %1650 = vmatpush1.bf16.msra.mxu0 %v1332
  %1651 = vmatprep.subr.bf16.mxu0 %v1337
  %1652 = vmatpush1.bf16.msra.mxu0 %v1336
  %1653 = vmatprep.subr.bf16.mxu0 %v1341
  %1654 = vmatpush1.bf16.msra.mxu0 %v1340
  %1655 = vmatprep.subr.bf16.mxu0 %v1345
  %1656 = vmatpush1.bf16.msra.mxu0 %v1344
  %1657 = vmatprep.subr.bf16.mxu0 %v1349
  %1658 = vmatpush1.bf16.msra.mxu0 %v1348
  %1659 = vmatprep.subr.bf16.mxu0 %v1353
  %1660 = vmatpush1.bf16.msra.mxu0 %v1352
  %1661 = vmatprep.subr.bf16.mxu0 %v1357
  %1662 = vmatpush1.bf16.msra.mxu0 %v1356
  %1663 = vmatprep.subr.bf16.mxu0 %v1361
  %1664 = vmatpush1.bf16.msra.mxu0 %v1360
  %1665 = vmatprep.subr.bf16.mxu0 %v1365
  %1666 = vmatpush1.bf16.msra.mxu0 %v1364
  %1667 = vmatprep.subr.bf16.mxu0 %v1369
  %1668 = vmatpush1.bf16.msra.mxu0 %v1368
  %1669 = vmatprep.subr.bf16.mxu0 %v1373
  %1670 = vmatpush1.bf16.msra.mxu0 %v1372
  %1671 = vmatprep.subr.bf16.mxu0 %v1377
  %1672 = vmatpush1.bf16.msra.mxu0 %v1376
  %1673 = vmatprep.subr.bf16.mxu0 %v1381
  %1674 = vmatpush1.bf16.msra.mxu0 %v1380
  %1675 = vmatprep.subr.bf16.mxu0 %v1385
  %1676 = vmatpush1.bf16.msra.mxu0 %v1384
  %1677 = vmatprep.subr.bf16.mxu0 %v1389
  %1678 = vmatpush1.bf16.msra.mxu0 %v1388
  %1679 = vmatprep.mubr.bf16.mxu0 %v911
  %1680 = vmatmul.mubr.bf16.gmra.mrb[0].mxu0 %v910
  %v1681 = vpop.f32.mrb[0].mxu0
  %v1682 = vadd.f32 0.0, %v1681
  %v1683 = vpop.f32.mrb[0].mxu0
  %v1684 = vadd.f32 0.0, %v1683
  %v1685 = vpop.f32.mrb[0].mxu0
  %v1686 = vadd.f32 0.0, %v1685
  %v1687 = vpop.f32.mrb[0].mxu0
  %v1688 = vadd.f32 0.0, %v1687
  %1689 = vmatprep.mubr.bf16.mxu0 %v913
  %1690 = vmatmul.mubr.bf16.gmra.mrb[0].mxu0 %v912
  %v1691 = vpop.f32.mrb[0].mxu0
  %v1692 = vadd.f32 0.0, %v1691
  %v1693 = vpop.f32.mrb[0].mxu0
  %v1694 = vadd.f32 0.0, %v1693
  %v1695 = vpop.f32.mrb[0].mxu0
  %v1696 = vadd.f32 0.0, %v1695
  %v1697 = vpop.f32.mrb[0].mxu0
  %v1698 = vadd.f32 0.0, %v1697
  %1699 = vmatprep.mubr.bf16.mxu0 %v915
  %1700 = vmatmul.mubr.bf16.gmra.mrb[0].mxu0 %v914
  %v1701 = vpop.f32.mrb[0].mxu0
  %v1702 = vadd.f32 0.0, %v1701
  %v1703 = vpop.f32.mrb[0].mxu0
  %v1704 = vadd.f32 0.0, %v1703
  %v1705 = vpop.f32.mrb[0].mxu0
  %v1706 = vadd.f32 0.0, %v1705
  %v1707 = vpop.f32.mrb[0].mxu0
  %v1708 = vadd.f32 0.0, %v1707
  %1709 = vmatprep.mubr.bf16.mxu0 %v917
  %1710 = vmatmul.mubr.bf16.gmra.mrb[0].mxu0 %v916
  %v1711 = vpop.f32.mrb[0].mxu0
  %v1712 = vadd.f32 0.0, %v1711
  %v1713 = vpop.f32.mrb[0].mxu0
  %v1714 = vadd.f32 0.0, %v1713
  %v1715 = vpop.f32.mrb[0].mxu0
  %v1716 = vadd.f32 0.0, %v1715
  %v1717 = vpop.f32.mrb[0].mxu0
  %v1718 = vadd.f32 0.0, %v1717
  %1719 = vmatprep.mubr.bf16.mxu0 %v919
  %1720 = vmatmul.mubr.bf16.gmra.mrb[0].mxu0 %v918
  %v1721 = vpop.f32.mrb[0].mxu0
  %v1722 = vadd.f32 0.0, %v1721
  %v1723 = vpop.f32.mrb[0].mxu0
  %v1724 = vadd.f32 0.0, %v1723
  %v1725 = vpop.f32.mrb[0].mxu0
  %v1726 = vadd.f32 0.0, %v1725
  %v1727 = vpop.f32.mrb[0].mxu0
  %v1728 = vadd.f32 0.0, %v1727
  %1729 = vmatprep.mubr.bf16.mxu0 %v921
  %1730 = vmatmul.mubr.bf16.gmra.mrb[0].mxu0 %v920
  %v1731 = vpop.f32.mrb[0].mxu0
  %v1732 = vadd.f32 0.0, %v1731
  %v1733 = vpop.f32.mrb[0].mxu0
  %v1734 = vadd.f32 0.0, %v1733
  %v1735 = vpop.f32.mrb[0].mxu0
  %v1736 = vadd.f32 0.0, %v1735
  %v1737 = vpop.f32.mrb[0].mxu0
  %v1738 = vadd.f32 0.0, %v1737
  %1739 = vmatprep.mubr.bf16.mxu0 %v923
  %1740 = vmatmul.mubr.bf16.gmra.mrb[0].mxu0 %v922
  %v1741 = vpop.f32.mrb[0].mxu0
  %v1742 = vadd.f32 0.0, %v1741
  %v1743 = vpop.f32.mrb[0].mxu0
  %v1744 = vadd.f32 0.0, %v1743
  %v1745 = vpop.f32.mrb[0].mxu0
  %v1746 = vadd.f32 0.0, %v1745
  %v1747 = vpop.f32.mrb[0].mxu0
  %v1748 = vadd.f32 0.0, %v1747
  %1749 = vmatprep.mubr.bf16.mxu0 %v925
  %1750 = vmatmul.mubr.bf16.gmra.mrb[0].mxu0 %v924
  %v1751 = vpop.f32.mrb[0].mxu0
  %v1752 = vadd.f32 0.0, %v1751
  %v1753 = vpop.f32.mrb[0].mxu0
  %v1754 = vadd.f32 0.0, %v1753
  %v1755 = vpop.f32.mrb[0].mxu0
  %v1756 = vadd.f32 0.0, %v1755
  %v1757 = vpop.f32.mrb[0].mxu0
  %v1758 = vadd.f32 0.0, %v1757
  %1759 = vmatprep.mubr.bf16.mxu0 %v927
  %1760 = vmatmul.mubr.bf16.gmra.mrb[0].mxu0 %v926
  %v1761 = vpop.f32.mrb[0].mxu0
  %v1762 = vadd.f32 0.0, %v1761
  %v1763 = vpop.f32.mrb[0].mxu0
  %v1764 = vadd.f32 0.0, %v1763
  %v1765 = vpop.f32.mrb[0].mxu0
  %v1766 = vadd.f32 0.0, %v1765
  %v1767 = vpop.f32.mrb[0].mxu0
  %v1768 = vadd.f32 0.0, %v1767
  %1769 = vmatprep.mubr.bf16.mxu0 %v929
  %1770 = vmatmul.mubr.bf16.gmra.mrb[0].mxu0 %v928
  %v1771 = vpop.f32.mrb[0].mxu0
  %v1772 = vadd.f32 0.0, %v1771
  %v1773 = vpop.f32.mrb[0].mxu0
  %v1774 = vadd.f32 0.0, %v1773
  %v1775 = vpop.f32.mrb[0].mxu0
  %v1776 = vadd.f32 0.0, %v1775
  %v1777 = vpop.f32.mrb[0].mxu0
  %v1778 = vadd.f32 0.0, %v1777
  %1779 = vmatprep.mubr.bf16.mxu0 %v931
  %1780 = vmatmul.mubr.bf16.gmra.mrb[0].mxu0 %v930
  %v1781 = vpop.f32.mrb[0].mxu0
  %v1782 = vadd.f32 0.0, %v1781
  %v1783 = vpop.f32.mrb[0].mxu0
  %v1784 = vadd.f32 0.0, %v1783
  %v1785 = vpop.f32.mrb[0].mxu0
  %v1786 = vadd.f32 0.0, %v1785
  %v1787 = vpop.f32.mrb[0].mxu0
  %v1788 = vadd.f32 0.0, %v1787
  %1789 = vmatprep.mubr.bf16.mxu0 %v933
  %1790 = vmatmul.mubr.bf16.gmra.mrb[0].mxu0 %v932
  %v1791 = vpop.f32.mrb[0].mxu0
  %v1792 = vadd.f32 0.0, %v1791
  %v1793 = vpop.f32.mrb[0].mxu0
  %v1794 = vadd.f32 0.0, %v1793
  %v1795 = vpop.f32.mrb[0].mxu0
  %v1796 = vadd.f32 0.0, %v1795
  %v1797 = vpop.f32.mrb[0].mxu0
  %v1798 = vadd.f32 0.0, %v1797
  %1799 = vmatprep.mubr.bf16.mxu0 %v935
  %1800 = vmatmul.mubr.bf16.gmra.mrb[0].mxu0 %v934
  %v1801 = vpop.f32.mrb[0].mxu0
  %v1802 = vadd.f32 0.0, %v1801
  %v1803 = vpop.f32.mrb[0].mxu0
  %v1804 = vadd.f32 0.0, %v1803
  %v1805 = vpop.f32.mrb[0].mxu0
  %v1806 = vadd.f32 0.0, %v1805
  %v1807 = vpop.f32.mrb[0].mxu0
  %v1808 = vadd.f32 0.0, %v1807
  %1809 = vmatprep.mubr.bf16.mxu0 %v937
  %1810 = vmatmul.mubr.bf16.gmra.mrb[0].mxu0 %v936
  %v1811 = vpop.f32.mrb[0].mxu0
  %v1812 = vadd.f32 0.0, %v1811
  %v1813 = vpop.f32.mrb[0].mxu0
  %v1814 = vadd.f32 0.0, %v1813
  %v1815 = vpop.f32.mrb[0].mxu0
  %v1816 = vadd.f32 0.0, %v1815
  %v1817 = vpop.f32.mrb[0].mxu0
  %v1818 = vadd.f32 0.0, %v1817
  %1819 = vmatprep.mubr.bf16.mxu0 %v939
  %1820 = vmatmul.mubr.bf16.gmra.mrb[0].mxu0 %v938
  %v1821 = vpop.f32.mrb[0].mxu0
  %v1822 = vadd.f32 0.0, %v1821
  %v1823 = vpop.f32.mrb[0].mxu0
  %v1824 = vadd.f32 0.0, %v1823
  %v1825 = vpop.f32.mrb[0].mxu0
  %v1826 = vadd.f32 0.0, %v1825
  %v1827 = vpop.f32.mrb[0].mxu0
  %v1828 = vadd.f32 0.0, %v1827
  %1829 = vmatprep.mubr.bf16.mxu0 %v941
  %1830 = vmatmul.mubr.bf16.gmra.mrb[0].mxu0 %v940
  %v1831 = vpop.f32.mrb[0].mxu0
  %v1832 = vadd.f32 0.0, %v1831
  %v1833 = vpop.f32.mrb[0].mxu0
  %v1834 = vadd.f32 0.0, %v1833
  %v1835 = vpop.f32.mrb[0].mxu0
  %v1836 = vadd.f32 0.0, %v1835
  %v1837 = vpop.f32.mrb[0].mxu0
  %v1838 = vadd.f32 0.0, %v1837
  %1839 = vdwg.mxu0
  %v1840 = vadd.f32 %v942, %v1489
  %v1841 = vadd.f32 %v943, %v1491
  %v1842 = vadd.f32 %v944, %v1682
  %v1843 = vadd.f32 %v945, %v1684
  %v1844 = vadd.f32 %v946, %v1493
  %v1845 = vadd.f32 %v947, %v1495
  %v1846 = vadd.f32 %v948, %v1686
  %v1847 = vadd.f32 %v949, %v1688
  %v1848 = vadd.f32 %v950, %v1499
  %v1849 = vadd.f32 %v951, %v1501
  %v1850 = vadd.f32 %v952, %v1692
  %v1851 = vadd.f32 %v953, %v1694
  %v1852 = vadd.f32 %v954, %v1503
  %v1853 = vadd.f32 %v955, %v1505
  %v1854 = vadd.f32 %v956, %v1696
  %v1855 = vadd.f32 %v957, %v1698
  %v1856 = vadd.f32 %v958, %v1509
  %v1857 = vadd.f32 %v959, %v1511
  %v1858 = vadd.f32 %v960, %v1702
  %v1859 = vadd.f32 %v961, %v1704
  %v1860 = vadd.f32 %v962, %v1513
  %v1861 = vadd.f32 %v963, %v1515
  %v1862 = vadd.f32 %v964, %v1706
  %v1863 = vadd.f32 %v965, %v1708
  %v1864 = vadd.f32 %v966, %v1519
  %v1865 = vadd.f32 %v967, %v1521
  %v1866 = vadd.f32 %v968, %v1712
  %v1867 = vadd.f32 %v969, %v1714
  %v1868 = vadd.f32 %v970, %v1523
  %v1869 = vadd.f32 %v971, %v1525
  %v1870 = vadd.f32 %v972, %v1716
  %v1871 = vadd.f32 %v973, %v1718
  %v1872 = vadd.f32 %v974, %v1529
  %v1873 = vadd.f32 %v975, %v1531
  %v1874 = vadd.f32 %v976, %v1722
  %v1875 = vadd.f32 %v977, %v1724
  %v1876 = vadd.f32 %v978, %v1533
  %v1877 = vadd.f32 %v979, %v1535
  %v1878 = vadd.f32 %v980, %v1726
  %v1879 = vadd.f32 %v981, %v1728
  %v1880 = vadd.f32 %v982, %v1539
  %v1881 = vadd.f32 %v983, %v1541
  %v1882 = vadd.f32 %v984, %v1732
  %v1883 = vadd.f32 %v985, %v1734
  %v1884 = vadd.f32 %v986, %v1543
  %v1885 = vadd.f32 %v987, %v1545
  %v1886 = vadd.f32 %v988, %v1736
  %v1887 = vadd.f32 %v989, %v1738
  %v1888 = vadd.f32 %v990, %v1549
  %v1889 = vadd.f32 %v991, %v1551
  %v1890 = vadd.f32 %v992, %v1742
  %v1891 = vadd.f32 %v993, %v1744
  %v1892 = vadd.f32 %v994, %v1553
  %v1893 = vadd.f32 %v995, %v1555
  %v1894 = vadd.f32 %v996, %v1746
  %v1895 = vadd.f32 %v997, %v1748
  %v1896 = vadd.f32 %v998, %v1559
  %v1897 = vadd.f32 %v999, %v1561
  %v1898 = vadd.f32 %v1000, %v1752
  %v1899 = vadd.f32 %v1001, %v1754
  %v1900 = vadd.f32 %v1002, %v1563
  %v1901 = vadd.f32 %v1003, %v1565
  %v1902 = vadd.f32 %v1004, %v1756
  %v1903 = vadd.f32 %v1005, %v1758
  %v1904 = vadd.f32 %v1006, %v1569
  %v1905 = vadd.f32 %v1007, %v1571
  %v1906 = vadd.f32 %v1008, %v1762
  %v1907 = vadd.f32 %v1009, %v1764
  %v1908 = vadd.f32 %v1010, %v1573
  %v1909 = vadd.f32 %v1011, %v1575
  %v1910 = vadd.f32 %v1012, %v1766
  %v1911 = vadd.f32 %v1013, %v1768
  %v1912 = vadd.f32 %v1014, %v1579
  %v1913 = vadd.f32 %v1015, %v1581
  %v1914 = vadd.f32 %v1016, %v1772
  %v1915 = vadd.f32 %v1017, %v1774
  %v1916 = vadd.f32 %v1018, %v1583
  %v1917 = vadd.f32 %v1019, %v1585
  %v1918 = vadd.f32 %v1020, %v1776
  %v1919 = vadd.f32 %v1021, %v1778
  %v1920 = vadd.f32 %v1022, %v1589
  %v1921 = vadd.f32 %v1023, %v1591
  %v1922 = vadd.f32 %v1024, %v1782
  %v1923 = vadd.f32 %v1025, %v1784
  %v1924 = vadd.f32 %v1026, %v1593
  %v1925 = vadd.f32 %v1027, %v1595
  %v1926 = vadd.f32 %v1028, %v1786
  %v1927 = vadd.f32 %v1029, %v1788
  %v1928 = vadd.f32 %v1030, %v1599
  %v1929 = vadd.f32 %v1031, %v1601
  %v1930 = vadd.f32 %v1032, %v1792
  %v1931 = vadd.f32 %v1033, %v1794
  %v1932 = vadd.f32 %v1034, %v1603
  %v1933 = vadd.f32 %v1035, %v1605
  %v1934 = vadd.f32 %v1036, %v1796
  %v1935 = vadd.f32 %v1037, %v1798
  %v1936 = vadd.f32 %v1038, %v1609
  %v1937 = vadd.f32 %v1039, %v1611
  %v1938 = vadd.f32 %v1040, %v1802
  %v1939 = vadd.f32 %v1041, %v1804
  %v1940 = vadd.f32 %v1042, %v1613
  %v1941 = vadd.f32 %v1043, %v1615
  %v1942 = vadd.f32 %v1044, %v1806
  %v1943 = vadd.f32 %v1045, %v1808
  %v1944 = vadd.f32 %v1046, %v1619
  %v1945 = vadd.f32 %v1047, %v1621
  %v1946 = vadd.f32 %v1048, %v1812
  %v1947 = vadd.f32 %v1049, %v1814
  %v1948 = vadd.f32 %v1050, %v1623
  %v1949 = vadd.f32 %v1051, %v1625
  %v1950 = vadd.f32 %v1052, %v1816
  %v1951 = vadd.f32 %v1053, %v1818
  %v1952 = vadd.f32 %v1054, %v1629
  %v1953 = vadd.f32 %v1055, %v1631
  %v1954 = vadd.f32 %v1056, %v1822
  %v1955 = vadd.f32 %v1057, %v1824
  %v1956 = vadd.f32 %v1058, %v1633
  %v1957 = vadd.f32 %v1059, %v1635
  %v1958 = vadd.f32 %v1060, %v1826
  %v1959 = vadd.f32 %v1061, %v1828
  %v1960 = vadd.f32 %v1062, %v1639
  %v1961 = vadd.f32 %v1063, %v1641
  %v1962 = vadd.f32 %v1064, %v1832
  %v1963 = vadd.f32 %v1065, %v1834
  %v1964 = vadd.f32 %v1066, %v1643
  %v1965 = vadd.f32 %v1067, %v1645
  %v1966 = vadd.f32 %v1068, %v1836
  %v1967 = vadd.f32 %v1069, %v1838
  %1968 = vst [vmem:[#allocation2] sm:$0xff] %v1840
  %1969 = vst [vmem:[#allocation2 + $0x8] sm:$0xff] %v1841
  %1970 = vst [vmem:[#allocation2 + $0x10] sm:$0xff] %v1842
  %1971 = vst [vmem:[#allocation2 + $0x18] sm:$0xff] %v1843
  %1972 = vst [vmem:[#allocation2 + $0x20] sm:$0xff] %v1844
  %1973 = vst [vmem:[#allocation2 + $0x28] sm:$0xff] %v1845
  %1974 = vst [vmem:[#allocation2 + $0x30] sm:$0xff] %v1846
  %1975 = vst [vmem:[#allocation2 + $0x38] sm:$0xff] %v1847
  %1976 = vst [vmem:[#allocation2 + $0x40] sm:$0xff] %v1848
  %1977 = vst [vmem:[#allocation2 + $0x48] sm:$0xff] %v1849
  %1978 = vst [vmem:[#allocation2 + $0x50] sm:$0xff] %v1850
  %1979 = vst [vmem:[#allocation2 + $0x58] sm:$0xff] %v1851
  %1980 = vst [vmem:[#allocation2 + $0x60] sm:$0xff] %v1852
  %1981 = vst [vmem:[#allocation2 + $0x68] sm:$0xff] %v1853
  %1982 = vst [vmem:[#allocation2 + $0x70] sm:$0xff] %v1854
  %1983 = vst [vmem:[#allocation2 + $0x78] sm:$0xff] %v1855
  %1984 = vst [vmem:[#allocation2 + $0x80] sm:$0xff] %v1856
  %1985 = vst [vmem:[#allocation2 + $0x88] sm:$0xff] %v1857
  %1986 = vst [vmem:[#allocation2 + $0x90] sm:$0xff] %v1858
  %1987 = vst [vmem:[#allocation2 + $0x98] sm:$0xff] %v1859
  %1988 = vst [vmem:[#allocation2 + $0xa0] sm:$0xff] %v1860
  %1989 = vst [vmem:[#allocation2 + $0xa8] sm:$0xff] %v1861
  %1990 = vst [vmem:[#allocation2 + $0xb0] sm:$0xff] %v1862
  %1991 = vst [vmem:[#allocation2 + $0xb8] sm:$0xff] %v1863
  %1992 = vst [vmem:[#allocation2 + $0xc0] sm:$0xff] %v1864
  %1993 = vst [vmem:[#allocation2 + $0xc8] sm:$0xff] %v1865
  %1994 = vst [vmem:[#allocation2 + $0xd0] sm:$0xff] %v1866
  %1995 = vst [vmem:[#allocation2 + $0xd8] sm:$0xff] %v1867
  %1996 = vst [vmem:[#allocation2 + $0xe0] sm:$0xff] %v1868
  %1997 = vst [vmem:[#allocation2 + $0xe8] sm:$0xff] %v1869
  %1998 = vst [vmem:[#allocation2 + $0xf0] sm:$0xff] %v1870
  %1999 = vst [vmem:[#allocation2 + $0xf8] sm:$0xff] %v1871
  %2000 = vst [vmem:[#allocation2 + $0x100] sm:$0xff] %v1872
  %2001 = vst [vmem:[#allocation2 + $0x108] sm:$0xff] %v1873
  %2002 = vst [vmem:[#allocation2 + $0x110] sm:$0xff] %v1874
  %2003 = vst [vmem:[#allocation2 + $0x118] sm:$0xff] %v1875
  %2004 = vst [vmem:[#allocation2 + $0x120] sm:$0xff] %v1876
  %2005 = vst [vmem:[#allocation2 + $0x128] sm:$0xff] %v1877
  %2006 = vst [vmem:[#allocation2 + $0x130] sm:$0xff] %v1878
  %2007 = vst [vmem:[#allocation2 + $0x138] sm:$0xff] %v1879
  %2008 = vst [vmem:[#allocation2 + $0x140] sm:$0xff] %v1880
  %2009 = vst [vmem:[#allocation2 + $0x148] sm:$0xff] %v1881
  %2010 = vst [vmem:[#allocation2 + $0x150] sm:$0xff] %v1882
  %2011 = vst [vmem:[#allocation2 + $0x158] sm:$0xff] %v1883
  %2012 = vst [vmem:[#allocation2 + $0x160] sm:$0xff] %v1884
  %2013 = vst [vmem:[#allocation2 + $0x168] sm:$0xff] %v1885
  %2014 = vst [vmem:[#allocation2 + $0x170] sm:$0xff] %v1886
  %2015 = vst [vmem:[#allocation2 + $0x178] sm:$0xff] %v1887
  %2016 = vst [vmem:[#allocation2 + $0x180] sm:$0xff] %v1888
  %2017 = vst [vmem:[#allocation2 + $0x188] sm:$0xff] %v1889
  %2018 = vst [vmem:[#allocation2 + $0x190] sm:$0xff] %v1890
  %2019 = vst [vmem:[#allocation2 + $0x198] sm:$0xff] %v1891
  %2020 = vst [vmem:[#allocation2 + $0x1a0] sm:$0xff] %v1892
  %2021 = vst [vmem:[#allocation2 + $0x1a8] sm:$0xff] %v1893
  %2022 = vst [vmem:[#allocation2 + $0x1b0] sm:$0xff] %v1894
  %2023 = vst [vmem:[#allocation2 + $0x1b8] sm:$0xff] %v1895
  %2024 = vst [vmem:[#allocation2 + $0x1c0] sm:$0xff] %v1896
  %2025 = vst [vmem:[#allocation2 + $0x1c8] sm:$0xff] %v1897
  %2026 = vst [vmem:[#allocation2 + $0x1d0] sm:$0xff] %v1898
  %2027 = vst [vmem:[#allocation2 + $0x1d8] sm:$0xff] %v1899
  %2028 = vst [vmem:[#allocation2 + $0x1e0] sm:$0xff] %v1900
  %2029 = vst [vmem:[#allocation2 + $0x1e8] sm:$0xff] %v1901
  %2030 = vst [vmem:[#allocation2 + $0x1f0] sm:$0xff] %v1902
  %2031 = vst [vmem:[#allocation2 + $0x1f8] sm:$0xff] %v1903
  %2032 = vst [vmem:[#allocation2 + $0x200] sm:$0xff] %v1904
  %2033 = vst [vmem:[#allocation2 + $0x208] sm:$0xff] %v1905
  %2034 = vst [vmem:[#allocation2 + $0x210] sm:$0xff] %v1906
  %2035 = vst [vmem:[#allocation2 + $0x218] sm:$0xff] %v1907
  %2036 = vst [vmem:[#allocation2 + $0x220] sm:$0xff] %v1908
  %2037 = vst [vmem:[#allocation2 + $0x228] sm:$0xff] %v1909
  %2038 = vst [vmem:[#allocation2 + $0x230] sm:$0xff] %v1910
  %2039 = vst [vmem:[#allocation2 + $0x238] sm:$0xff] %v1911
  %2040 = vst [vmem:[#allocation2 + $0x240] sm:$0xff] %v1912
  %2041 = vst [vmem:[#allocation2 + $0x248] sm:$0xff] %v1913
  %2042 = vst [vmem:[#allocation2 + $0x250] sm:$0xff] %v1914
  %2043 = vst [vmem:[#allocation2 + $0x258] sm:$0xff] %v1915
  %2044 = vst [vmem:[#allocation2 + $0x260] sm:$0xff] %v1916
  %2045 = vst [vmem:[#allocation2 + $0x268] sm:$0xff] %v1917
  %2046 = vst [vmem:[#allocation2 + $0x270] sm:$0xff] %v1918
  %2047 = vst [vmem:[#allocation2 + $0x278] sm:$0xff] %v1919
  %2048 = vst [vmem:[#allocation2 + $0x280] sm:$0xff] %v1920
  %2049 = vst [vmem:[#allocation2 + $0x288] sm:$0xff] %v1921
  %2050 = vst [vmem:[#allocation2 + $0x290] sm:$0xff] %v1922
  %2051 = vst [vmem:[#allocation2 + $0x298] sm:$0xff] %v1923
  %2052 = vst [vmem:[#allocation2 + $0x2a0] sm:$0xff] %v1924
  %2053 = vst [vmem:[#allocation2 + $0x2a8] sm:$0xff] %v1925
  %2054 = vst [vmem:[#allocation2 + $0x2b0] sm:$0xff] %v1926
  %2055 = vst [vmem:[#allocation2 + $0x2b8] sm:$0xff] %v1927
  %2056 = vst [vmem:[#allocation2 + $0x2c0] sm:$0xff] %v1928
  %2057 = vst [vmem:[#allocation2 + $0x2c8] sm:$0xff] %v1929
  %2058 = vst [vmem:[#allocation2 + $0x2d0] sm:$0xff] %v1930
  %2059 = vst [vmem:[#allocation2 + $0x2d8] sm:$0xff] %v1931
  %2060 = vst [vmem:[#allocation2 + $0x2e0] sm:$0xff] %v1932
  %2061 = vst [vmem:[#allocation2 + $0x2e8] sm:$0xff] %v1933
  %2062 = vst [vmem:[#allocation2 + $0x2f0] sm:$0xff] %v1934
  %2063 = vst [vmem:[#allocation2 + $0x2f8] sm:$0xff] %v1935
  %2064 = vst [vmem:[#allocation2 + $0x300] sm:$0xff] %v1936
  %2065 = vst [vmem:[#allocation2 + $0x308] sm:$0xff] %v1937
  %2066 = vst [vmem:[#allocation2 + $0x310] sm:$0xff] %v1938
  %2067 = vst [vmem:[#allocation2 + $0x318] sm:$0xff] %v1939
  %2068 = vst [vmem:[#allocation2 + $0x320] sm:$0xff] %v1940
  %2069 = vst [vmem:[#allocation2 + $0x328] sm:$0xff] %v1941
  %2070 = vst [vmem:[#allocation2 + $0x330] sm:$0xff] %v1942
  %2071 = vst [vmem:[#allocation2 + $0x338] sm:$0xff] %v1943
  %2072 = vst [vmem:[#allocation2 + $0x340] sm:$0xff] %v1944
  %2073 = vst [vmem:[#allocation2 + $0x348] sm:$0xff] %v1945
  %2074 = vst [vmem:[#allocation2 + $0x350] sm:$0xff] %v1946
  %2075 = vst [vmem:[#allocation2 + $0x358] sm:$0xff] %v1947
  %2076 = vst [vmem:[#allocation2 + $0x360] sm:$0xff] %v1948
  %2077 = vst [vmem:[#allocation2 + $0x368] sm:$0xff] %v1949
  %2078 = vst [vmem:[#allocation2 + $0x370] sm:$0xff] %v1950
  %2079 = vst [vmem:[#allocation2 + $0x378] sm:$0xff] %v1951
  %2080 = vst [vmem:[#allocation2 + $0x380] sm:$0xff] %v1952
  %2081 = vst [vmem:[#allocation2 + $0x388] sm:$0xff] %v1953
  %2082 = vst [vmem:[#allocation2 + $0x390] sm:$0xff] %v1954
  %2083 = vst [vmem:[#allocation2 + $0x398] sm:$0xff] %v1955
  %2084 = vst [vmem:[#allocation2 + $0x3a0] sm:$0xff] %v1956
  %2085 = vst [vmem:[#allocation2 + $0x3a8] sm:$0xff] %v1957
  %2086 = vst [vmem:[#allocation2 + $0x3b0] sm:$0xff] %v1958
  %2087 = vst [vmem:[#allocation2 + $0x3b8] sm:$0xff] %v1959
  %2088 = vst [vmem:[#allocation2 + $0x3c0] sm:$0xff] %v1960
  %2089 = vst [vmem:[#allocation2 + $0x3c8] sm:$0xff] %v1961
  %2090 = vst [vmem:[#allocation2 + $0x3d0] sm:$0xff] %v1962
  %2091 = vst [vmem:[#allocation2 + $0x3d8] sm:$0xff] %v1963
  %2092 = vst [vmem:[#allocation2 + $0x3e0] sm:$0xff] %v1964
  %2093 = vst [vmem:[#allocation2 + $0x3e8] sm:$0xff] %v1965
  %2094 = vst [vmem:[#allocation2 + $0x3f0] sm:$0xff] %v1966
  %2095 = vst [vmem:[#allocation2 + $0x3f8] sm:$0xff] %v1967
  // Predicated region
  $region26: #{omics1_encoder_forward.6} parent=0 // pred_check
    %p2096 = pneg %p20
  $region27: #{omics1_encoder_forward.6} parent=0 // pred_check_branch
    %2098 = sbr.rel (%p2096) target = $region29
  $region28: #{omics1_encoder_forward.6} parent=0 // pred_region
    %v2099 = vld [vmem:[#allocation2] sm:$0xff]
    %v2100 = vld [vmem:[#allocation2 + $0x8] sm:$0xff]
    %v2101 = vld [vmem:[#allocation2 + $0x10] sm:$0xff]
    %v2102 = vld [vmem:[#allocation2 + $0x18] sm:$0xff]
    %v2103 = vld [vmem:[#allocation2 + $0x20] sm:$0xff]
    %v2104 = vld [vmem:[#allocation2 + $0x28] sm:$0xff]
    %v2105 = vld [vmem:[#allocation2 + $0x30] sm:$0xff]
    %v2106 = vld [vmem:[#allocation2 + $0x38] sm:$0xff]
    %v2107 = vld [vmem:[#allocation2 + $0x40] sm:$0xff]
    %v2108 = vld [vmem:[#allocation2 + $0x48] sm:$0xff]
    %v2109 = vld [vmem:[#allocation2 + $0x50] sm:$0xff]
    %v2110 = vld [vmem:[#allocation2 + $0x58] sm:$0xff]
    %v2111 = vld [vmem:[#allocation2 + $0x60] sm:$0xff]
    %v2112 = vld [vmem:[#allocation2 + $0x68] sm:$0xff]
    %v2113 = vld [vmem:[#allocation2 + $0x70] sm:$0xff]
    %v2114 = vld [vmem:[#allocation2 + $0x78] sm:$0xff]
    %v2115 = vld [vmem:[#allocation2 + $0x80] sm:$0xff]
    %v2116 = vld [vmem:[#allocation2 + $0x88] sm:$0xff]
    %v2117 = vld [vmem:[#allocation2 + $0x90] sm:$0xff]
    %v2118 = vld [vmem:[#allocation2 + $0x98] sm:$0xff]
    %v2119 = vld [vmem:[#allocation2 + $0xa0] sm:$0xff]
    %v2120 = vld [vmem:[#allocation2 + $0xa8] sm:$0xff]
    %v2121 = vld [vmem:[#allocation2 + $0xb0] sm:$0xff]
    %v2122 = vld [vmem:[#allocation2 + $0xb8] sm:$0xff]
    %v2123 = vld [vmem:[#allocation2 + $0xc0] sm:$0xff]
    %v2124 = vld [vmem:[#allocation2 + $0xc8] sm:$0xff]
    %v2125 = vld [vmem:[#allocation2 + $0xd0] sm:$0xff]
    %v2126 = vld [vmem:[#allocation2 + $0xd8] sm:$0xff]
    %v2127 = vld [vmem:[#allocation2 + $0xe0] sm:$0xff]
    %v2128 = vld [vmem:[#allocation2 + $0xe8] sm:$0xff]
    %v2129 = vld [vmem:[#allocation2 + $0xf0] sm:$0xff]
    %v2130 = vld [vmem:[#allocation2 + $0xf8] sm:$0xff]
    %v2131 = vld [vmem:[#allocation2 + $0x100] sm:$0xff]
    %v2132 = vld [vmem:[#allocation2 + $0x108] sm:$0xff]
    %v2133 = vld [vmem:[#allocation2 + $0x110] sm:$0xff]
    %v2134 = vld [vmem:[#allocation2 + $0x118] sm:$0xff]
    %v2135 = vld [vmem:[#allocation2 + $0x120] sm:$0xff]
    %v2136 = vld [vmem:[#allocation2 + $0x128] sm:$0xff]
    %v2137 = vld [vmem:[#allocation2 + $0x130] sm:$0xff]
    %v2138 = vld [vmem:[#allocation2 + $0x138] sm:$0xff]
    %v2139 = vld [vmem:[#allocation2 + $0x140] sm:$0xff]
    %v2140 = vld [vmem:[#allocation2 + $0x148] sm:$0xff]
    %v2141 = vld [vmem:[#allocation2 + $0x150] sm:$0xff]
    %v2142 = vld [vmem:[#allocation2 + $0x158] sm:$0xff]
    %v2143 = vld [vmem:[#allocation2 + $0x160] sm:$0xff]
    %v2144 = vld [vmem:[#allocation2 + $0x168] sm:$0xff]
    %v2145 = vld [vmem:[#allocation2 + $0x170] sm:$0xff]
    %v2146 = vld [vmem:[#allocation2 + $0x178] sm:$0xff]
    %v2147 = vld [vmem:[#allocation2 + $0x180] sm:$0xff]
    %v2148 = vld [vmem:[#allocation2 + $0x188] sm:$0xff]
    %v2149 = vld [vmem:[#allocation2 + $0x190] sm:$0xff]
    %v2150 = vld [vmem:[#allocation2 + $0x198] sm:$0xff]
    %v2151 = vld [vmem:[#allocation2 + $0x1a0] sm:$0xff]
    %v2152 = vld [vmem:[#allocation2 + $0x1a8] sm:$0xff]
    %v2153 = vld [vmem:[#allocation2 + $0x1b0] sm:$0xff]
    %v2154 = vld [vmem:[#allocation2 + $0x1b8] sm:$0xff]
    %v2155 = vld [vmem:[#allocation2 + $0x1c0] sm:$0xff]
    %v2156 = vld [vmem:[#allocation2 + $0x1c8] sm:$0xff]
    %v2157 = vld [vmem:[#allocation2 + $0x1d0] sm:$0xff]
    %v2158 = vld [vmem:[#allocation2 + $0x1d8] sm:$0xff]
    %v2159 = vld [vmem:[#allocation2 + $0x1e0] sm:$0xff]
    %v2160 = vld [vmem:[#allocation2 + $0x1e8] sm:$0xff]
    %v2161 = vld [vmem:[#allocation2 + $0x1f0] sm:$0xff]
    %v2162 = vld [vmem:[#allocation2 + $0x1f8] sm:$0xff]
    %v2163 = vld [vmem:[#allocation2 + $0x200] sm:$0xff]
    %v2164 = vld [vmem:[#allocation2 + $0x208] sm:$0xff]
    %v2165 = vld [vmem:[#allocation2 + $0x210] sm:$0xff]
    %v2166 = vld [vmem:[#allocation2 + $0x218] sm:$0xff]
    %v2167 = vld [vmem:[#allocation2 + $0x220] sm:$0xff]
    %v2168 = vld [vmem:[#allocation2 + $0x228] sm:$0xff]
    %v2169 = vld [vmem:[#allocation2 + $0x230] sm:$0xff]
    %v2170 = vld [vmem:[#allocation2 + $0x238] sm:$0xff]
    %v2171 = vld [vmem:[#allocation2 + $0x240] sm:$0xff]
    %v2172 = vld [vmem:[#allocation2 + $0x248] sm:$0xff]
    %v2173 = vld [vmem:[#allocation2 + $0x250] sm:$0xff]
    %v2174 = vld [vmem:[#allocation2 + $0x258] sm:$0xff]
    %v2175 = vld [vmem:[#allocation2 + $0x260] sm:$0xff]
    %v2176 = vld [vmem:[#allocation2 + $0x268] sm:$0xff]
    %v2177 = vld [vmem:[#allocation2 + $0x270] sm:$0xff]
    %v2178 = vld [vmem:[#allocation2 + $0x278] sm:$0xff]
    %v2179 = vld [vmem:[#allocation2 + $0x280] sm:$0xff]
    %v2180 = vld [vmem:[#allocation2 + $0x288] sm:$0xff]
    %v2181 = vld [vmem:[#allocation2 + $0x290] sm:$0xff]
    %v2182 = vld [vmem:[#allocation2 + $0x298] sm:$0xff]
    %v2183 = vld [vmem:[#allocation2 + $0x2a0] sm:$0xff]
    %v2184 = vld [vmem:[#allocation2 + $0x2a8] sm:$0xff]
    %v2185 = vld [vmem:[#allocation2 + $0x2b0] sm:$0xff]
    %v2186 = vld [vmem:[#allocation2 + $0x2b8] sm:$0xff]
    %v2187 = vld [vmem:[#allocation2 + $0x2c0] sm:$0xff]
    %v2188 = vld [vmem:[#allocation2 + $0x2c8] sm:$0xff]
    %v2189 = vld [vmem:[#allocation2 + $0x2d0] sm:$0xff]
    %v2190 = vld [vmem:[#allocation2 + $0x2d8] sm:$0xff]
    %v2191 = vld [vmem:[#allocation2 + $0x2e0] sm:$0xff]
    %v2192 = vld [vmem:[#allocation2 + $0x2e8] sm:$0xff]
    %v2193 = vld [vmem:[#allocation2 + $0x2f0] sm:$0xff]
    %v2194 = vld [vmem:[#allocation2 + $0x2f8] sm:$0xff]
    %v2195 = vld [vmem:[#allocation2 + $0x300] sm:$0xff]
    %v2196 = vld [vmem:[#allocation2 + $0x308] sm:$0xff]
    %v2197 = vld [vmem:[#allocation2 + $0x310] sm:$0xff]
    %v2198 = vld [vmem:[#allocation2 + $0x318] sm:$0xff]
    %v2199 = vld [vmem:[#allocation2 + $0x320] sm:$0xff]
    %v2200 = vld [vmem:[#allocation2 + $0x328] sm:$0xff]
    %v2201 = vld [vmem:[#allocation2 + $0x330] sm:$0xff]
    %v2202 = vld [vmem:[#allocation2 + $0x338] sm:$0xff]
    %v2203 = vld [vmem:[#allocation2 + $0x340] sm:$0xff]
    %v2204 = vld [vmem:[#allocation2 + $0x348] sm:$0xff]
    %v2205 = vld [vmem:[#allocation2 + $0x350] sm:$0xff]
    %v2206 = vld [vmem:[#allocation2 + $0x358] sm:$0xff]
    %v2207 = vld [vmem:[#allocation2 + $0x360] sm:$0xff]
    %v2208 = vld [vmem:[#allocation2 + $0x368] sm:$0xff]
    %v2209 = vld [vmem:[#allocation2 + $0x370] sm:$0xff]
    %v2210 = vld [vmem:[#allocation2 + $0x378] sm:$0xff]
    %v2211 = vld [vmem:[#allocation2 + $0x380] sm:$0xff]
    %v2212 = vld [vmem:[#allocation2 + $0x388] sm:$0xff]
    %v2213 = vld [vmem:[#allocation2 + $0x390] sm:$0xff]
    %v2214 = vld [vmem:[#allocation2 + $0x398] sm:$0xff]
    %v2215 = vld [vmem:[#allocation2 + $0x3a0] sm:$0xff]
    %v2216 = vld [vmem:[#allocation2 + $0x3a8] sm:$0xff]
    %v2217 = vld [vmem:[#allocation2 + $0x3b0] sm:$0xff]
    %v2218 = vld [vmem:[#allocation2 + $0x3b8] sm:$0xff]
    %v2219 = vld [vmem:[#allocation2 + $0x3c0] sm:$0xff]
    %v2220 = vld [vmem:[#allocation2 + $0x3c8] sm:$0xff]
    %v2221 = vld [vmem:[#allocation2 + $0x3d0] sm:$0xff]
    %v2222 = vld [vmem:[#allocation2 + $0x3d8] sm:$0xff]
    %v2223 = vld [vmem:[#allocation2 + $0x3e0] sm:$0xff]
    %v2224 = vld [vmem:[#allocation2 + $0x3e8] sm:$0xff]
    %v2225 = vld [vmem:[#allocation2 + $0x3f0] sm:$0xff]
    %v2226 = vld [vmem:[#allocation2 + $0x3f8] sm:$0xff]
    %v2227 = vld [vmem:[%s4] sm:$0xf]
    %v2229 = vlaneseq
    %v2230 = vshrl.u32 %v2229, 7
    %v2231 = vsub.s32 0, %v2230
    %v2232 = vrot.slane %v2227, %v2231
    %v2233 = vlaneseq
    %v2234 = vshrl.u32 %v2233, 7
    %v2235 = vsub.s32 1, %v2234
    %v2236 = vrot.slane %v2227, %v2235
    %v2237 = vlaneseq
    %v2238 = vshrl.u32 %v2237, 7
    %v2239 = vsub.s32 2, %v2238
    %v2240 = vrot.slane %v2227, %v2239
    %v2241 = vlaneseq
    %v2242 = vshrl.u32 %v2241, 7
    %v2243 = vsub.s32 3, %v2242
    %v2244 = vrot.slane %v2227, %v2243
    %v2249 = vadd.f32 %v2099, %v2232
    %v2250 = vadd.f32 %v2100, %v2236
    %v2251 = vadd.f32 %v2101, %v2240
    %v2252 = vadd.f32 %v2102, %v2244
    %v2253 = vadd.f32 %v2103, %v2232
    %v2254 = vadd.f32 %v2104, %v2236
    %v2255 = vadd.f32 %v2105, %v2240
    %v2256 = vadd.f32 %v2106, %v2244
    %v2257 = vadd.f32 %v2107, %v2232
    %v2258 = vadd.f32 %v2108, %v2236
    %v2259 = vadd.f32 %v2109, %v2240
    %v2260 = vadd.f32 %v2110, %v2244
    %v2261 = vadd.f32 %v2111, %v2232
    %v2262 = vadd.f32 %v2112, %v2236
    %v2263 = vadd.f32 %v2113, %v2240
    %v2264 = vadd.f32 %v2114, %v2244
    %v2265 = vadd.f32 %v2115, %v2232
    %v2266 = vadd.f32 %v2116, %v2236
    %v2267 = vadd.f32 %v2117, %v2240
    %v2268 = vadd.f32 %v2118, %v2244
    %v2269 = vadd.f32 %v2119, %v2232
    %v2270 = vadd.f32 %v2120, %v2236
    %v2271 = vadd.f32 %v2121, %v2240
    %v2272 = vadd.f32 %v2122, %v2244
    %v2273 = vadd.f32 %v2123, %v2232
    %v2274 = vadd.f32 %v2124, %v2236
    %v2275 = vadd.f32 %v2125, %v2240
    %v2276 = vadd.f32 %v2126, %v2244
    %v2277 = vadd.f32 %v2127, %v2232
    %v2278 = vadd.f32 %v2128, %v2236
    %v2279 = vadd.f32 %v2129, %v2240
    %v2280 = vadd.f32 %v2130, %v2244
    %v2281 = vadd.f32 %v2131, %v2232
    %v2282 = vadd.f32 %v2132, %v2236
    %v2283 = vadd.f32 %v2133, %v2240
    %v2284 = vadd.f32 %v2134, %v2244
    %v2285 = vadd.f32 %v2135, %v2232
    %v2286 = vadd.f32 %v2136, %v2236
    %v2287 = vadd.f32 %v2137, %v2240
    %v2288 = vadd.f32 %v2138, %v2244
    %v2289 = vadd.f32 %v2139, %v2232
    %v2290 = vadd.f32 %v2140, %v2236
    %v2291 = vadd.f32 %v2141, %v2240
    %v2292 = vadd.f32 %v2142, %v2244
    %v2293 = vadd.f32 %v2143, %v2232
    %v2294 = vadd.f32 %v2144, %v2236
    %v2295 = vadd.f32 %v2145, %v2240
    %v2296 = vadd.f32 %v2146, %v2244
    %v2297 = vadd.f32 %v2147, %v2232
    %v2298 = vadd.f32 %v2148, %v2236
    %v2299 = vadd.f32 %v2149, %v2240
    %v2300 = vadd.f32 %v2150, %v2244
    %v2301 = vadd.f32 %v2151, %v2232
    %v2302 = vadd.f32 %v2152, %v2236
    %v2303 = vadd.f32 %v2153, %v2240
    %v2304 = vadd.f32 %v2154, %v2244
    %v2305 = vadd.f32 %v2155, %v2232
    %v2306 = vadd.f32 %v2156, %v2236
    %v2307 = vadd.f32 %v2157, %v2240
    %v2308 = vadd.f32 %v2158, %v2244
    %v2309 = vadd.f32 %v2159, %v2232
    %v2310 = vadd.f32 %v2160, %v2236
    %v2311 = vadd.f32 %v2161, %v2240
    %v2312 = vadd.f32 %v2162, %v2244
    %v2313 = vadd.f32 %v2163, %v2232
    %v2314 = vadd.f32 %v2164, %v2236
    %v2315 = vadd.f32 %v2165, %v2240
    %v2316 = vadd.f32 %v2166, %v2244
    %v2317 = vadd.f32 %v2167, %v2232
    %v2318 = vadd.f32 %v2168, %v2236
    %v2319 = vadd.f32 %v2169, %v2240
    %v2320 = vadd.f32 %v2170, %v2244
    %v2321 = vadd.f32 %v2171, %v2232
    %v2322 = vadd.f32 %v2172, %v2236
    %v2323 = vadd.f32 %v2173, %v2240
    %v2324 = vadd.f32 %v2174, %v2244
    %v2325 = vadd.f32 %v2175, %v2232
    %v2326 = vadd.f32 %v2176, %v2236
    %v2327 = vadd.f32 %v2177, %v2240
    %v2328 = vadd.f32 %v2178, %v2244
    %v2329 = vadd.f32 %v2179, %v2232
    %v2330 = vadd.f32 %v2180, %v2236
    %v2331 = vadd.f32 %v2181, %v2240
    %v2332 = vadd.f32 %v2182, %v2244
    %v2333 = vadd.f32 %v2183, %v2232
    %v2334 = vadd.f32 %v2184, %v2236
    %v2335 = vadd.f32 %v2185, %v2240
    %v2336 = vadd.f32 %v2186, %v2244
    %v2337 = vadd.f32 %v2187, %v2232
    %v2338 = vadd.f32 %v2188, %v2236
    %v2339 = vadd.f32 %v2189, %v2240
    %v2340 = vadd.f32 %v2190, %v2244
    %v2341 = vadd.f32 %v2191, %v2232
    %v2342 = vadd.f32 %v2192, %v2236
    %v2343 = vadd.f32 %v2193, %v2240
    %v2344 = vadd.f32 %v2194, %v2244
    %v2345 = vadd.f32 %v2195, %v2232
    %v2346 = vadd.f32 %v2196, %v2236
    %v2347 = vadd.f32 %v2197, %v2240
    %v2348 = vadd.f32 %v2198, %v2244
    %v2349 = vadd.f32 %v2199, %v2232
    %v2350 = vadd.f32 %v2200, %v2236
    %v2351 = vadd.f32 %v2201, %v2240
    %v2352 = vadd.f32 %v2202, %v2244
    %v2353 = vadd.f32 %v2203, %v2232
    %v2354 = vadd.f32 %v2204, %v2236
    %v2355 = vadd.f32 %v2205, %v2240
    %v2356 = vadd.f32 %v2206, %v2244
    %v2357 = vadd.f32 %v2207, %v2232
    %v2358 = vadd.f32 %v2208, %v2236
    %v2359 = vadd.f32 %v2209, %v2240
    %v2360 = vadd.f32 %v2210, %v2244
    %v2361 = vadd.f32 %v2211, %v2232
    %v2362 = vadd.f32 %v2212, %v2236
    %v2363 = vadd.f32 %v2213, %v2240
    %v2364 = vadd.f32 %v2214, %v2244
    %v2365 = vadd.f32 %v2215, %v2232
    %v2366 = vadd.f32 %v2216, %v2236
    %v2367 = vadd.f32 %v2217, %v2240
    %v2368 = vadd.f32 %v2218, %v2244
    %v2369 = vadd.f32 %v2219, %v2232
    %v2370 = vadd.f32 %v2220, %v2236
    %v2371 = vadd.f32 %v2221, %v2240
    %v2372 = vadd.f32 %v2222, %v2244
    %v2373 = vadd.f32 %v2223, %v2232
    %v2374 = vadd.f32 %v2224, %v2236
    %v2375 = vadd.f32 %v2225, %v2240
    %v2376 = vadd.f32 %v2226, %v2244
    %v2377 = vmax.f32 %v2249, 0.0
    %v2378 = vmax.f32 %v2250, 0.0
    %v2379 = vmax.f32 %v2251, 0.0
    %v2380 = vmax.f32 %v2252, 0.0
    %v2381 = vmax.f32 %v2253, 0.0
    %v2382 = vmax.f32 %v2254, 0.0
    %v2383 = vmax.f32 %v2255, 0.0
    %v2384 = vmax.f32 %v2256, 0.0
    %v2385 = vmax.f32 %v2257, 0.0
    %v2386 = vmax.f32 %v2258, 0.0
    %v2387 = vmax.f32 %v2259, 0.0
    %v2388 = vmax.f32 %v2260, 0.0
    %v2389 = vmax.f32 %v2261, 0.0
    %v2390 = vmax.f32 %v2262, 0.0
    %v2391 = vmax.f32 %v2263, 0.0
    %v2392 = vmax.f32 %v2264, 0.0
    %v2393 = vmax.f32 %v2265, 0.0
    %v2394 = vmax.f32 %v2266, 0.0
    %v2395 = vmax.f32 %v2267, 0.0
    %v2396 = vmax.f32 %v2268, 0.0
    %v2397 = vmax.f32 %v2269, 0.0
    %v2398 = vmax.f32 %v2270, 0.0
    %v2399 = vmax.f32 %v2271, 0.0
    %v2400 = vmax.f32 %v2272, 0.0
    %v2401 = vmax.f32 %v2273, 0.0
    %v2402 = vmax.f32 %v2274, 0.0
    %v2403 = vmax.f32 %v2275, 0.0
    %v2404 = vmax.f32 %v2276, 0.0
    %v2405 = vmax.f32 %v2277, 0.0
    %v2406 = vmax.f32 %v2278, 0.0
    %v2407 = vmax.f32 %v2279, 0.0
    %v2408 = vmax.f32 %v2280, 0.0
    %v2409 = vmax.f32 %v2281, 0.0
    %v2410 = vmax.f32 %v2282, 0.0
    %v2411 = vmax.f32 %v2283, 0.0
    %v2412 = vmax.f32 %v2284, 0.0
    %v2413 = vmax.f32 %v2285, 0.0
    %v2414 = vmax.f32 %v2286, 0.0
    %v2415 = vmax.f32 %v2287, 0.0
    %v2416 = vmax.f32 %v2288, 0.0
    %v2417 = vmax.f32 %v2289, 0.0
    %v2418 = vmax.f32 %v2290, 0.0
    %v2419 = vmax.f32 %v2291, 0.0
    %v2420 = vmax.f32 %v2292, 0.0
    %v2421 = vmax.f32 %v2293, 0.0
    %v2422 = vmax.f32 %v2294, 0.0
    %v2423 = vmax.f32 %v2295, 0.0
    %v2424 = vmax.f32 %v2296, 0.0
    %v2425 = vmax.f32 %v2297, 0.0
    %v2426 = vmax.f32 %v2298, 0.0
    %v2427 = vmax.f32 %v2299, 0.0
    %v2428 = vmax.f32 %v2300, 0.0
    %v2429 = vmax.f32 %v2301, 0.0
    %v2430 = vmax.f32 %v2302, 0.0
    %v2431 = vmax.f32 %v2303, 0.0
    %v2432 = vmax.f32 %v2304, 0.0
    %v2433 = vmax.f32 %v2305, 0.0
    %v2434 = vmax.f32 %v2306, 0.0
    %v2435 = vmax.f32 %v2307, 0.0
    %v2436 = vmax.f32 %v2308, 0.0
    %v2437 = vmax.f32 %v2309, 0.0
    %v2438 = vmax.f32 %v2310, 0.0
    %v2439 = vmax.f32 %v2311, 0.0
    %v2440 = vmax.f32 %v2312, 0.0
    %v2441 = vmax.f32 %v2313, 0.0
    %v2442 = vmax.f32 %v2314, 0.0
    %v2443 = vmax.f32 %v2315, 0.0
    %v2444 = vmax.f32 %v2316, 0.0
    %v2445 = vmax.f32 %v2317, 0.0
    %v2446 = vmax.f32 %v2318, 0.0
    %v2447 = vmax.f32 %v2319, 0.0
    %v2448 = vmax.f32 %v2320, 0.0
    %v2449 = vmax.f32 %v2321, 0.0
    %v2450 = vmax.f32 %v2322, 0.0
    %v2451 = vmax.f32 %v2323, 0.0
    %v2452 = vmax.f32 %v2324, 0.0
    %v2453 = vmax.f32 %v2325, 0.0
    %v2454 = vmax.f32 %v2326, 0.0
    %v2455 = vmax.f32 %v2327, 0.0
    %v2456 = vmax.f32 %v2328, 0.0
    %v2457 = vmax.f32 %v2329, 0.0
    %v2458 = vmax.f32 %v2330, 0.0
    %v2459 = vmax.f32 %v2331, 0.0
    %v2460 = vmax.f32 %v2332, 0.0
    %v2461 = vmax.f32 %v2333, 0.0
    %v2462 = vmax.f32 %v2334, 0.0
    %v2463 = vmax.f32 %v2335, 0.0
    %v2464 = vmax.f32 %v2336, 0.0
    %v2465 = vmax.f32 %v2337, 0.0
    %v2466 = vmax.f32 %v2338, 0.0
    %v2467 = vmax.f32 %v2339, 0.0
    %v2468 = vmax.f32 %v2340, 0.0
    %v2469 = vmax.f32 %v2341, 0.0
    %v2470 = vmax.f32 %v2342, 0.0
    %v2471 = vmax.f32 %v2343, 0.0
    %v2472 = vmax.f32 %v2344, 0.0
    %v2473 = vmax.f32 %v2345, 0.0
    %v2474 = vmax.f32 %v2346, 0.0
    %v2475 = vmax.f32 %v2347, 0.0
    %v2476 = vmax.f32 %v2348, 0.0
    %v2477 = vmax.f32 %v2349, 0.0
    %v2478 = vmax.f32 %v2350, 0.0
    %v2479 = vmax.f32 %v2351, 0.0
    %v2480 = vmax.f32 %v2352, 0.0
    %v2481 = vmax.f32 %v2353, 0.0
    %v2482 = vmax.f32 %v2354, 0.0
    %v2483 = vmax.f32 %v2355, 0.0
    %v2484 = vmax.f32 %v2356, 0.0
    %v2485 = vmax.f32 %v2357, 0.0
    %v2486 = vmax.f32 %v2358, 0.0
    %v2487 = vmax.f32 %v2359, 0.0
    %v2488 = vmax.f32 %v2360, 0.0
    %v2489 = vmax.f32 %v2361, 0.0
    %v2490 = vmax.f32 %v2362, 0.0
    %v2491 = vmax.f32 %v2363, 0.0
    %v2492 = vmax.f32 %v2364, 0.0
    %v2493 = vmax.f32 %v2365, 0.0
    %v2494 = vmax.f32 %v2366, 0.0
    %v2495 = vmax.f32 %v2367, 0.0
    %v2496 = vmax.f32 %v2368, 0.0
    %v2497 = vmax.f32 %v2369, 0.0
    %v2498 = vmax.f32 %v2370, 0.0
    %v2499 = vmax.f32 %v2371, 0.0
    %v2500 = vmax.f32 %v2372, 0.0
    %v2501 = vmax.f32 %v2373, 0.0
    %v2502 = vmax.f32 %v2374, 0.0
    %v2503 = vmax.f32 %v2375, 0.0
    %v2504 = vmax.f32 %v2376, 0.0
    %v2505 = vpack.c.bf16 %v2381, %v2377
    %v2506 = vpack.c.bf16 %v2382, %v2378
    %v2507 = vpack.c.bf16 %v2383, %v2379
    %v2508 = vpack.c.bf16 %v2384, %v2380
    %v2509 = vpack.c.bf16 %v2389, %v2385
    %v2510 = vpack.c.bf16 %v2390, %v2386
    %v2511 = vpack.c.bf16 %v2391, %v2387
    %v2512 = vpack.c.bf16 %v2392, %v2388
    %v2513 = vpack.c.bf16 %v2397, %v2393
    %v2514 = vpack.c.bf16 %v2398, %v2394
    %v2515 = vpack.c.bf16 %v2399, %v2395
    %v2516 = vpack.c.bf16 %v2400, %v2396
    %v2517 = vpack.c.bf16 %v2405, %v2401
    %v2518 = vpack.c.bf16 %v2406, %v2402
    %v2519 = vpack.c.bf16 %v2407, %v2403
    %v2520 = vpack.c.bf16 %v2408, %v2404
    %v2521 = vpack.c.bf16 %v2413, %v2409
    %v2522 = vpack.c.bf16 %v2414, %v2410
    %v2523 = vpack.c.bf16 %v2415, %v2411
    %v2524 = vpack.c.bf16 %v2416, %v2412
    %v2525 = vpack.c.bf16 %v2421, %v2417
    %v2526 = vpack.c.bf16 %v2422, %v2418
    %v2527 = vpack.c.bf16 %v2423, %v2419
    %v2528 = vpack.c.bf16 %v2424, %v2420
    %v2529 = vpack.c.bf16 %v2429, %v2425
    %v2530 = vpack.c.bf16 %v2430, %v2426
    %v2531 = vpack.c.bf16 %v2431, %v2427
    %v2532 = vpack.c.bf16 %v2432, %v2428
    %v2533 = vpack.c.bf16 %v2437, %v2433
    %v2534 = vpack.c.bf16 %v2438, %v2434
    %v2535 = vpack.c.bf16 %v2439, %v2435
    %v2536 = vpack.c.bf16 %v2440, %v2436
    %v2537 = vpack.c.bf16 %v2445, %v2441
    %v2538 = vpack.c.bf16 %v2446, %v2442
    %v2539 = vpack.c.bf16 %v2447, %v2443
    %v2540 = vpack.c.bf16 %v2448, %v2444
    %v2541 = vpack.c.bf16 %v2453, %v2449
    %v2542 = vpack.c.bf16 %v2454, %v2450
    %v2543 = vpack.c.bf16 %v2455, %v2451
    %v2544 = vpack.c.bf16 %v2456, %v2452
    %v2545 = vpack.c.bf16 %v2461, %v2457
    %v2546 = vpack.c.bf16 %v2462, %v2458
    %v2547 = vpack.c.bf16 %v2463, %v2459
    %v2548 = vpack.c.bf16 %v2464, %v2460
    %v2549 = vpack.c.bf16 %v2469, %v2465
    %v2550 = vpack.c.bf16 %v2470, %v2466
    %v2551 = vpack.c.bf16 %v2471, %v2467
    %v2552 = vpack.c.bf16 %v2472, %v2468
    %v2553 = vpack.c.bf16 %v2477, %v2473
    %v2554 = vpack.c.bf16 %v2478, %v2474
    %v2555 = vpack.c.bf16 %v2479, %v2475
    %v2556 = vpack.c.bf16 %v2480, %v2476
    %v2557 = vpack.c.bf16 %v2485, %v2481
    %v2558 = vpack.c.bf16 %v2486, %v2482
    %v2559 = vpack.c.bf16 %v2487, %v2483
    %v2560 = vpack.c.bf16 %v2488, %v2484
    %v2561 = vpack.c.bf16 %v2493, %v2489
    %v2562 = vpack.c.bf16 %v2494, %v2490
    %v2563 = vpack.c.bf16 %v2495, %v2491
    %v2564 = vpack.c.bf16 %v2496, %v2492
    %v2565 = vpack.c.bf16 %v2501, %v2497
    %v2566 = vpack.c.bf16 %v2502, %v2498
    %v2567 = vpack.c.bf16 %v2503, %v2499
    %v2568 = vpack.c.bf16 %v2504, %v2500
    %v2633 = vunpack.c.l.b16 %v2505
    %v2634 = vunpack.c.l.b16 %v2506
    %v2635 = vunpack.c.l.b16 %v2507
    %v2636 = vunpack.c.l.b16 %v2508
    %v2637 = vunpack.c.h.b16 %v2505
    %v2638 = vunpack.c.h.b16 %v2506
    %v2639 = vunpack.c.h.b16 %v2507
    %v2640 = vunpack.c.h.b16 %v2508
    %v2641 = vunpack.c.l.b16 %v2509
    %v2642 = vunpack.c.l.b16 %v2510
    %v2643 = vunpack.c.l.b16 %v2511
    %v2644 = vunpack.c.l.b16 %v2512
    %v2645 = vunpack.c.h.b16 %v2509
    %v2646 = vunpack.c.h.b16 %v2510
    %v2647 = vunpack.c.h.b16 %v2511
    %v2648 = vunpack.c.h.b16 %v2512
    %v2649 = vunpack.c.l.b16 %v2513
    %v2650 = vunpack.c.l.b16 %v2514
    %v2651 = vunpack.c.l.b16 %v2515
    %v2652 = vunpack.c.l.b16 %v2516
    %v2653 = vunpack.c.h.b16 %v2513
    %v2654 = vunpack.c.h.b16 %v2514
    %v2655 = vunpack.c.h.b16 %v2515
    %v2656 = vunpack.c.h.b16 %v2516
    %v2657 = vunpack.c.l.b16 %v2517
    %v2658 = vunpack.c.l.b16 %v2518
    %v2659 = vunpack.c.l.b16 %v2519
    %v2660 = vunpack.c.l.b16 %v2520
    %v2661 = vunpack.c.h.b16 %v2517
    %v2662 = vunpack.c.h.b16 %v2518
    %v2663 = vunpack.c.h.b16 %v2519
    %v2664 = vunpack.c.h.b16 %v2520
    %v2665 = vunpack.c.l.b16 %v2521
    %v2666 = vunpack.c.l.b16 %v2522
    %v2667 = vunpack.c.l.b16 %v2523
    %v2668 = vunpack.c.l.b16 %v2524
    %v2669 = vunpack.c.h.b16 %v2521
    %v2670 = vunpack.c.h.b16 %v2522
    %v2671 = vunpack.c.h.b16 %v2523
    %v2672 = vunpack.c.h.b16 %v2524
    %v2673 = vunpack.c.l.b16 %v2525
    %v2674 = vunpack.c.l.b16 %v2526
    %v2675 = vunpack.c.l.b16 %v2527
    %v2676 = vunpack.c.l.b16 %v2528
    %v2677 = vunpack.c.h.b16 %v2525
    %v2678 = vunpack.c.h.b16 %v2526
    %v2679 = vunpack.c.h.b16 %v2527
    %v2680 = vunpack.c.h.b16 %v2528
    %v2681 = vunpack.c.l.b16 %v2529
    %v2682 = vunpack.c.l.b16 %v2530
    %v2683 = vunpack.c.l.b16 %v2531
    %v2684 = vunpack.c.l.b16 %v2532
    %v2685 = vunpack.c.h.b16 %v2529
    %v2686 = vunpack.c.h.b16 %v2530
    %v2687 = vunpack.c.h.b16 %v2531
    %v2688 = vunpack.c.h.b16 %v2532
    %v2689 = vunpack.c.l.b16 %v2533
    %v2690 = vunpack.c.l.b16 %v2534
    %v2691 = vunpack.c.l.b16 %v2535
    %v2692 = vunpack.c.l.b16 %v2536
    %v2693 = vunpack.c.h.b16 %v2533
    %v2694 = vunpack.c.h.b16 %v2534
    %v2695 = vunpack.c.h.b16 %v2535
    %v2696 = vunpack.c.h.b16 %v2536
    %v2697 = vunpack.c.l.b16 %v2537
    %v2698 = vunpack.c.l.b16 %v2538
    %v2699 = vunpack.c.l.b16 %v2539
    %v2700 = vunpack.c.l.b16 %v2540
    %v2701 = vunpack.c.h.b16 %v2537
    %v2702 = vunpack.c.h.b16 %v2538
    %v2703 = vunpack.c.h.b16 %v2539
    %v2704 = vunpack.c.h.b16 %v2540
    %v2705 = vunpack.c.l.b16 %v2541
    %v2706 = vunpack.c.l.b16 %v2542
    %v2707 = vunpack.c.l.b16 %v2543
    %v2708 = vunpack.c.l.b16 %v2544
    %v2709 = vunpack.c.h.b16 %v2541
    %v2710 = vunpack.c.h.b16 %v2542
    %v2711 = vunpack.c.h.b16 %v2543
    %v2712 = vunpack.c.h.b16 %v2544
    %v2713 = vunpack.c.l.b16 %v2545
    %v2714 = vunpack.c.l.b16 %v2546
    %v2715 = vunpack.c.l.b16 %v2547
    %v2716 = vunpack.c.l.b16 %v2548
    %v2717 = vunpack.c.h.b16 %v2545
    %v2718 = vunpack.c.h.b16 %v2546
    %v2719 = vunpack.c.h.b16 %v2547
    %v2720 = vunpack.c.h.b16 %v2548
    %v2721 = vunpack.c.l.b16 %v2549
    %v2722 = vunpack.c.l.b16 %v2550
    %v2723 = vunpack.c.l.b16 %v2551
    %v2724 = vunpack.c.l.b16 %v2552
    %v2725 = vunpack.c.h.b16 %v2549
    %v2726 = vunpack.c.h.b16 %v2550
    %v2727 = vunpack.c.h.b16 %v2551
    %v2728 = vunpack.c.h.b16 %v2552
    %v2729 = vunpack.c.l.b16 %v2553
    %v2730 = vunpack.c.l.b16 %v2554
    %v2731 = vunpack.c.l.b16 %v2555
    %v2732 = vunpack.c.l.b16 %v2556
    %v2733 = vunpack.c.h.b16 %v2553
    %v2734 = vunpack.c.h.b16 %v2554
    %v2735 = vunpack.c.h.b16 %v2555
    %v2736 = vunpack.c.h.b16 %v2556
    %v2737 = vunpack.c.l.b16 %v2557
    %v2738 = vunpack.c.l.b16 %v2558
    %v2739 = vunpack.c.l.b16 %v2559
    %v2740 = vunpack.c.l.b16 %v2560
    %v2741 = vunpack.c.h.b16 %v2557
    %v2742 = vunpack.c.h.b16 %v2558
    %v2743 = vunpack.c.h.b16 %v2559
    %v2744 = vunpack.c.h.b16 %v2560
    %v2745 = vunpack.c.l.b16 %v2561
    %v2746 = vunpack.c.l.b16 %v2562
    %v2747 = vunpack.c.l.b16 %v2563
    %v2748 = vunpack.c.l.b16 %v2564
    %v2749 = vunpack.c.h.b16 %v2561
    %v2750 = vunpack.c.h.b16 %v2562
    %v2751 = vunpack.c.h.b16 %v2563
    %v2752 = vunpack.c.h.b16 %v2564
    %v2753 = vunpack.c.l.b16 %v2565
    %v2754 = vunpack.c.l.b16 %v2566
    %v2755 = vunpack.c.l.b16 %v2567
    %v2756 = vunpack.c.l.b16 %v2568
    %v2757 = vunpack.c.h.b16 %v2565
    %v2758 = vunpack.c.h.b16 %v2566
    %v2759 = vunpack.c.h.b16 %v2567
    %v2760 = vunpack.c.h.b16 %v2568
    %v2761 = vpack.c.b16 %v2634, %v2633
    %v2762 = vpack.c.b16 %v2636, %v2635
    %v2763 = vpack.c.b16 %v2638, %v2637
    %v2764 = vpack.c.b16 %v2640, %v2639
    %v2765 = vpack.c.b16 %v2642, %v2641
    %v2766 = vpack.c.b16 %v2644, %v2643
    %v2767 = vpack.c.b16 %v2646, %v2645
    %v2768 = vpack.c.b16 %v2648, %v2647
    %v2769 = vpack.c.b16 %v2650, %v2649
    %v2770 = vpack.c.b16 %v2652, %v2651
    %v2771 = vpack.c.b16 %v2654, %v2653
    %v2772 = vpack.c.b16 %v2656, %v2655
    %v2773 = vpack.c.b16 %v2658, %v2657
    %v2774 = vpack.c.b16 %v2660, %v2659
    %v2775 = vpack.c.b16 %v2662, %v2661
    %v2776 = vpack.c.b16 %v2664, %v2663
    %v2777 = vpack.c.b16 %v2666, %v2665
    %v2778 = vpack.c.b16 %v2668, %v2667
    %v2779 = vpack.c.b16 %v2670, %v2669
    %v2780 = vpack.c.b16 %v2672, %v2671
    %v2781 = vpack.c.b16 %v2674, %v2673
    %v2782 = vpack.c.b16 %v2676, %v2675
    %v2783 = vpack.c.b16 %v2678, %v2677
    %v2784 = vpack.c.b16 %v2680, %v2679
    %v2785 = vpack.c.b16 %v2682, %v2681
    %v2786 = vpack.c.b16 %v2684, %v2683
    %v2787 = vpack.c.b16 %v2686, %v2685
    %v2788 = vpack.c.b16 %v2688, %v2687
    %v2789 = vpack.c.b16 %v2690, %v2689
    %v2790 = vpack.c.b16 %v2692, %v2691
    %v2791 = vpack.c.b16 %v2694, %v2693
    %v2792 = vpack.c.b16 %v2696, %v2695
    %v2793 = vpack.c.b16 %v2698, %v2697
    %v2794 = vpack.c.b16 %v2700, %v2699
    %v2795 = vpack.c.b16 %v2702, %v2701
    %v2796 = vpack.c.b16 %v2704, %v2703
    %v2797 = vpack.c.b16 %v2706, %v2705
    %v2798 = vpack.c.b16 %v2708, %v2707
    %v2799 = vpack.c.b16 %v2710, %v2709
    %v2800 = vpack.c.b16 %v2712, %v2711
    %v2801 = vpack.c.b16 %v2714, %v2713
    %v2802 = vpack.c.b16 %v2716, %v2715
    %v2803 = vpack.c.b16 %v2718, %v2717
    %v2804 = vpack.c.b16 %v2720, %v2719
    %v2805 = vpack.c.b16 %v2722, %v2721
    %v2806 = vpack.c.b16 %v2724, %v2723
    %v2807 = vpack.c.b16 %v2726, %v2725
    %v2808 = vpack.c.b16 %v2728, %v2727
    %v2809 = vpack.c.b16 %v2730, %v2729
    %v2810 = vpack.c.b16 %v2732, %v2731
    %v2811 = vpack.c.b16 %v2734, %v2733
    %v2812 = vpack.c.b16 %v2736, %v2735
    %v2813 = vpack.c.b16 %v2738, %v2737
    %v2814 = vpack.c.b16 %v2740, %v2739
    %v2815 = vpack.c.b16 %v2742, %v2741
    %v2816 = vpack.c.b16 %v2744, %v2743
    %v2817 = vpack.c.b16 %v2746, %v2745
    %v2818 = vpack.c.b16 %v2748, %v2747
    %v2819 = vpack.c.b16 %v2750, %v2749
    %v2820 = vpack.c.b16 %v2752, %v2751
    %v2821 = vpack.c.b16 %v2754, %v2753
    %v2822 = vpack.c.b16 %v2756, %v2755
    %v2823 = vpack.c.b16 %v2758, %v2757
    %v2824 = vpack.c.b16 %v2760, %v2759
    %2889 = vst [vmem:[%s5] sm:$0xff] %v2761
    %2890 = vst [vmem:[%s5 + $0x8] sm:$0xff] %v2762
    %2891 = vst [vmem:[%s5 + $0x10] sm:$0xff] %v2763
    %2892 = vst [vmem:[%s5 + $0x18] sm:$0xff] %v2764
    %2893 = vst [vmem:[%s5 + $0x20] sm:$0xff] %v2765
    %2894 = vst [vmem:[%s5 + $0x28] sm:$0xff] %v2766
    %2895 = vst [vmem:[%s5 + $0x30] sm:$0xff] %v2767
    %2896 = vst [vmem:[%s5 + $0x38] sm:$0xff] %v2768
    %2897 = vst [vmem:[%s5 + $0x40] sm:$0xff] %v2769
    %2898 = vst [vmem:[%s5 + $0x48] sm:$0xff] %v2770
    %2899 = vst [vmem:[%s5 + $0x50] sm:$0xff] %v2771
    %2900 = vst [vmem:[%s5 + $0x58] sm:$0xff] %v2772
    %2901 = vst [vmem:[%s5 + $0x60] sm:$0xff] %v2773
    %2902 = vst [vmem:[%s5 + $0x68] sm:$0xff] %v2774
    %2903 = vst [vmem:[%s5 + $0x70] sm:$0xff] %v2775
    %2904 = vst [vmem:[%s5 + $0x78] sm:$0xff] %v2776
    %2905 = vst [vmem:[%s5 + $0x80] sm:$0xff] %v2777
    %2906 = vst [vmem:[%s5 + $0x88] sm:$0xff] %v2778
    %2907 = vst [vmem:[%s5 + $0x90] sm:$0xff] %v2779
    %2908 = vst [vmem:[%s5 + $0x98] sm:$0xff] %v2780
    %2909 = vst [vmem:[%s5 + $0xa0] sm:$0xff] %v2781
    %2910 = vst [vmem:[%s5 + $0xa8] sm:$0xff] %v2782
    %2911 = vst [vmem:[%s5 + $0xb0] sm:$0xff] %v2783
    %2912 = vst [vmem:[%s5 + $0xb8] sm:$0xff] %v2784
    %2913 = vst [vmem:[%s5 + $0xc0] sm:$0xff] %v2785
    %2914 = vst [vmem:[%s5 + $0xc8] sm:$0xff] %v2786
    %2915 = vst [vmem:[%s5 + $0xd0] sm:$0xff] %v2787
    %2916 = vst [vmem:[%s5 + $0xd8] sm:$0xff] %v2788
    %2917 = vst [vmem:[%s5 + $0xe0] sm:$0xff] %v2789
    %2918 = vst [vmem:[%s5 + $0xe8] sm:$0xff] %v2790
    %2919 = vst [vmem:[%s5 + $0xf0] sm:$0xff] %v2791
    %2920 = vst [vmem:[%s5 + $0xf8] sm:$0xff] %v2792
    %2921 = vst [vmem:[%s5 + $0x100] sm:$0xff] %v2793
    %2922 = vst [vmem:[%s5 + $0x108] sm:$0xff] %v2794
    %2923 = vst [vmem:[%s5 + $0x110] sm:$0xff] %v2795
    %2924 = vst [vmem:[%s5 + $0x118] sm:$0xff] %v2796
    %2925 = vst [vmem:[%s5 + $0x120] sm:$0xff] %v2797
    %2926 = vst [vmem:[%s5 + $0x128] sm:$0xff] %v2798
    %2927 = vst [vmem:[%s5 + $0x130] sm:$0xff] %v2799
    %2928 = vst [vmem:[%s5 + $0x138] sm:$0xff] %v2800
    %2929 = vst [vmem:[%s5 + $0x140] sm:$0xff] %v2801
    %2930 = vst [vmem:[%s5 + $0x148] sm:$0xff] %v2802
    %2931 = vst [vmem:[%s5 + $0x150] sm:$0xff] %v2803
    %2932 = vst [vmem:[%s5 + $0x158] sm:$0xff] %v2804
    %2933 = vst [vmem:[%s5 + $0x160] sm:$0xff] %v2805
    %2934 = vst [vmem:[%s5 + $0x168] sm:$0xff] %v2806
    %2935 = vst [vmem:[%s5 + $0x170] sm:$0xff] %v2807
    %2936 = vst [vmem:[%s5 + $0x178] sm:$0xff] %v2808
    %2937 = vst [vmem:[%s5 + $0x180] sm:$0xff] %v2809
    %2938 = vst [vmem:[%s5 + $0x188] sm:$0xff] %v2810
    %2939 = vst [vmem:[%s5 + $0x190] sm:$0xff] %v2811
    %2940 = vst [vmem:[%s5 + $0x198] sm:$0xff] %v2812
    %2941 = vst [vmem:[%s5 + $0x1a0] sm:$0xff] %v2813
    %2942 = vst [vmem:[%s5 + $0x1a8] sm:$0xff] %v2814
    %2943 = vst [vmem:[%s5 + $0x1b0] sm:$0xff] %v2815
    %2944 = vst [vmem:[%s5 + $0x1b8] sm:$0xff] %v2816
    %2945 = vst [vmem:[%s5 + $0x1c0] sm:$0xff] %v2817
    %2946 = vst [vmem:[%s5 + $0x1c8] sm:$0xff] %v2818
    %2947 = vst [vmem:[%s5 + $0x1d0] sm:$0xff] %v2819
    %2948 = vst [vmem:[%s5 + $0x1d8] sm:$0xff] %v2820
    %2949 = vst [vmem:[%s5 + $0x1e0] sm:$0xff] %v2821
    %2950 = vst [vmem:[%s5 + $0x1e8] sm:$0xff] %v2822
    %2951 = vst [vmem:[%s5 + $0x1f0] sm:$0xff] %v2823
    %2952 = vst [vmem:[%s5 + $0x1f8] sm:$0xff] %v2824
  $region29: #{omics1_encoder_forward.6} parent=0 // pred_fallthru
    _
  // Predicated region
  $region30: #{omics1_encoder_forward.6} parent=0 // pred_check
    _
  $region31: #{omics1_encoder_forward.6} parent=0 // pred_check_branch
    %2954 = sbr.rel (0) target = $region33
  $region32: #{omics1_encoder_forward.6} parent=0 // pred_region
    _
  $region33: #{omics1_encoder_forward.6} parent=0 // pred_fallthru
    _
  // Predicated region
  $region34: #{omics1_encoder_forward.6} parent=0 // pred_check
    _
  $region35: #{omics1_encoder_forward.6} parent=0 // pred_check_branch
    %2956 = sbr.rel (0) target = $region37
  $region36: #{omics1_encoder_forward.6} parent=0 // pred_region
    _
  $region37: #{omics1_encoder_forward.6} parent=0 // pred_fallthru
    _

// kernel: omics1_encoder_forward.9
$region0: #{omics1_encoder_forward.9}
  #allocation0 [shape = 'u32[]', space=smem, size = 0x4, offset = 0x4, fixed_abs, tag = 'smem constant byte address 0x4 - core index']
  #allocation1 [shape = 'u32[144,128]{1,0:T(1,128)}', space=vmem, size = 0x12000, scoped, tag = 'internal scratch']
  #allocation2 [shape = 'f32[256,256]{1,0:T(8,128)}', space=vmem, size = 0x40000, scoped, tag = 'scratch operand']
  #allocation3 [shape = 'f32[256,1]{1,0:T(8,128)}', space=vmem, size = 0x20000, scoped, tag = 'scratch operand']
  #allocation4 [shape = 'f32[1]{0:T(128)S(6)}', space=smem, size = 0x200, scoped, tag = 'scoped memory for omics1_encoder_forward.9']
  %s0 = inlined_call_operand.vmem [shape: bf16[256,256], index: 0, kind: input, shape index: {}]
  %s1 = inlined_call_operand.vmem [shape: f32[256,256], index: 1, kind: input, shape index: {}, may-alias: {1,2}]
  %s2 = inlined_call_operand.vmem [shape: f32[256,256], index: 2, kind: input, shape index: {}, may-alias: {1,2}]
  %s3 = inlined_call_operand.vmem [shape: f32[128,128], index: 3, kind: input, shape index: {}]
  %s4 = inlined_call_operand.<no memory space> [shape: f32[1], index: 4, kind: input, shape index: {}]
  %s5 = inlined_call_operand.vmem [shape: f32[256,2], index: 5, kind: output, shape index: {0}]
  %s6 = inlined_call_operand.vmem [shape: f32[256,2], index: 6, kind: output, shape index: {1}]
  %7 = xla_tuple %s5, %s6
  %s8 = sld [smem:[#allocation0]]
  $region46: #{omics1_encoder_forward.9} parent=0
    _
  %s10 = ssub.s32 1, %s8
  %s11 = scalar_select 0, %s10, %s8
  %12 = sst [smem:[#allocation4]] %s4
  // Predicated region
  $region2: #{omics1_encoder_forward.9} parent=0 // pred_check
    _
  $region3: #{omics1_encoder_forward.9} parent=0 // pred_check_branch
    %14 = sbr.rel (0) target = $region5
  $region4: #{omics1_encoder_forward.9} parent=0 // pred_region
    _
  $region5: #{omics1_encoder_forward.9} parent=0 // pred_fallthru
    _
  // Predicated region
  $region6: #{omics1_encoder_forward.9} parent=0 // pred_check
    _
  $region7: #{omics1_encoder_forward.9} parent=0 // pred_check_branch
    %16 = sbr.rel (0) target = $region9
  $region8: #{omics1_encoder_forward.9} parent=0 // pred_region
    _
  $region9: #{omics1_encoder_forward.9} parent=0 // pred_fallthru
    _
  // Predicated region
  $region10: #{omics1_encoder_forward.9} parent=0 // pred_check
    _
  $region11: #{omics1_encoder_forward.9} parent=0 // pred_check_branch
    %18 = sbr.rel (0) target = $region13
  $region12: #{omics1_encoder_forward.9} parent=0 // pred_region
    _
  $region13: #{omics1_encoder_forward.9} parent=0 // pred_fallthru
    _
  // Predicated region
  $region14: #{omics1_encoder_forward.9} parent=0 // pred_check
    _
  $region15: #{omics1_encoder_forward.9} parent=0 // pred_check_branch
    %20 = sbr.rel (0) target = $region17
  $region16: #{omics1_encoder_forward.9} parent=0 // pred_region
    _
  $region17: #{omics1_encoder_forward.9} parent=0 // pred_fallthru
    _
  // Predicated region
  $region18: #{omics1_encoder_forward.9} parent=0 // pred_check
    _
  $region19: #{omics1_encoder_forward.9} parent=0 // pred_check_branch
    %22 = sbr.rel (0) target = $region21
  $region20: #{omics1_encoder_forward.9} parent=0 // pred_region
    _
  $region21: #{omics1_encoder_forward.9} parent=0 // pred_fallthru
    _
  %p23 = scmp.eq.s32.totalorder 0, 0
  // Predicated region
  $region22: #{omics1_encoder_forward.9} parent=0 // pred_check
    %p24 = pneg %p23
  $region23: #{omics1_encoder_forward.9} parent=0 // pred_check_branch
    %26 = sbr.rel (%p24) target = $region25
  $region24: #{omics1_encoder_forward.9} parent=0 // pred_region
    %27 = vst [vmem:[#allocation2] sm:$0xff] 0.0
    %28 = vst [vmem:[#allocation2 + $0x8] sm:$0xff] 0.0
    %29 = vst [vmem:[#allocation2 + $0x10] sm:$0xff] 0.0
    %30 = vst [vmem:[#allocation2 + $0x18] sm:$0xff] 0.0
    %31 = vst [vmem:[#allocation2 + $0x20] sm:$0xff] 0.0
    %32 = vst [vmem:[#allocation2 + $0x28] sm:$0xff] 0.0
    %33 = vst [vmem:[#allocation2 + $0x30] sm:$0xff] 0.0
    %34 = vst [vmem:[#allocation2 + $0x38] sm:$0xff] 0.0
    %35 = vst [vmem:[#allocation2 + $0x40] sm:$0xff] 0.0
    %36 = vst [vmem:[#allocation2 + $0x48] sm:$0xff] 0.0
    %37 = vst [vmem:[#allocation2 + $0x50] sm:$0xff] 0.0
    %38 = vst [vmem:[#allocation2 + $0x58] sm:$0xff] 0.0
    %39 = vst [vmem:[#allocation2 + $0x60] sm:$0xff] 0.0
    %40 = vst [vmem:[#allocation2 + $0x68] sm:$0xff] 0.0
    %41 = vst [vmem:[#allocation2 + $0x70] sm:$0xff] 0.0
    %42 = vst [vmem:[#allocation2 + $0x78] sm:$0xff] 0.0
    %43 = vst [vmem:[#allocation2 + $0x80] sm:$0xff] 0.0
    %44 = vst [vmem:[#allocation2 + $0x88] sm:$0xff] 0.0
    %45 = vst [vmem:[#allocation2 + $0x90] sm:$0xff] 0.0
    %46 = vst [vmem:[#allocation2 + $0x98] sm:$0xff] 0.0
    %47 = vst [vmem:[#allocation2 + $0xa0] sm:$0xff] 0.0
    %48 = vst [vmem:[#allocation2 + $0xa8] sm:$0xff] 0.0
    %49 = vst [vmem:[#allocation2 + $0xb0] sm:$0xff] 0.0
    %50 = vst [vmem:[#allocation2 + $0xb8] sm:$0xff] 0.0
    %51 = vst [vmem:[#allocation2 + $0xc0] sm:$0xff] 0.0
    %52 = vst [vmem:[#allocation2 + $0xc8] sm:$0xff] 0.0
    %53 = vst [vmem:[#allocation2 + $0xd0] sm:$0xff] 0.0
    %54 = vst [vmem:[#allocation2 + $0xd8] sm:$0xff] 0.0
    %55 = vst [vmem:[#allocation2 + $0xe0] sm:$0xff] 0.0
    %56 = vst [vmem:[#allocation2 + $0xe8] sm:$0xff] 0.0
    %57 = vst [vmem:[#allocation2 + $0xf0] sm:$0xff] 0.0
    %58 = vst [vmem:[#allocation2 + $0xf8] sm:$0xff] 0.0
    %59 = vst [vmem:[#allocation2 + $0x100] sm:$0xff] 0.0
    %60 = vst [vmem:[#allocation2 + $0x108] sm:$0xff] 0.0
    %61 = vst [vmem:[#allocation2 + $0x110] sm:$0xff] 0.0
    %62 = vst [vmem:[#allocation2 + $0x118] sm:$0xff] 0.0
    %63 = vst [vmem:[#allocation2 + $0x120] sm:$0xff] 0.0
    %64 = vst [vmem:[#allocation2 + $0x128] sm:$0xff] 0.0
    %65 = vst [vmem:[#allocation2 + $0x130] sm:$0xff] 0.0
    %66 = vst [vmem:[#allocation2 + $0x138] sm:$0xff] 0.0
    %67 = vst [vmem:[#allocation2 + $0x140] sm:$0xff] 0.0
    %68 = vst [vmem:[#allocation2 + $0x148] sm:$0xff] 0.0
    %69 = vst [vmem:[#allocation2 + $0x150] sm:$0xff] 0.0
    %70 = vst [vmem:[#allocation2 + $0x158] sm:$0xff] 0.0
    %71 = vst [vmem:[#allocation2 + $0x160] sm:$0xff] 0.0
    %72 = vst [vmem:[#allocation2 + $0x168] sm:$0xff] 0.0
    %73 = vst [vmem:[#allocation2 + $0x170] sm:$0xff] 0.0
    %74 = vst [vmem:[#allocation2 + $0x178] sm:$0xff] 0.0
    %75 = vst [vmem:[#allocation2 + $0x180] sm:$0xff] 0.0
    %76 = vst [vmem:[#allocation2 + $0x188] sm:$0xff] 0.0
    %77 = vst [vmem:[#allocation2 + $0x190] sm:$0xff] 0.0
    %78 = vst [vmem:[#allocation2 + $0x198] sm:$0xff] 0.0
    %79 = vst [vmem:[#allocation2 + $0x1a0] sm:$0xff] 0.0
    %80 = vst [vmem:[#allocation2 + $0x1a8] sm:$0xff] 0.0
    %81 = vst [vmem:[#allocation2 + $0x1b0] sm:$0xff] 0.0
    %82 = vst [vmem:[#allocation2 + $0x1b8] sm:$0xff] 0.0
    %83 = vst [vmem:[#allocation2 + $0x1c0] sm:$0xff] 0.0
    %84 = vst [vmem:[#allocation2 + $0x1c8] sm:$0xff] 0.0
    %85 = vst [vmem:[#allocation2 + $0x1d0] sm:$0xff] 0.0
    %86 = vst [vmem:[#allocation2 + $0x1d8] sm:$0xff] 0.0
    %87 = vst [vmem:[#allocation2 + $0x1e0] sm:$0xff] 0.0
    %88 = vst [vmem:[#allocation2 + $0x1e8] sm:$0xff] 0.0
    %89 = vst [vmem:[#allocation2 + $0x1f0] sm:$0xff] 0.0
    %90 = vst [vmem:[#allocation2 + $0x1f8] sm:$0xff] 0.0
    %vm91 = vcmask 7168
    %92 = vst.msk [vmem:[#allocation3] sm:$0xff] %vm91, 0.0
    %93 = vst.msk [vmem:[#allocation3 + $0x8] sm:$0xff] %vm91, 0.0
    %94 = vst.msk [vmem:[#allocation3 + $0x10] sm:$0xff] %vm91, 0.0
    %95 = vst.msk [vmem:[#allocation3 + $0x18] sm:$0xff] %vm91, 0.0
    %96 = vst.msk [vmem:[#allocation3 + $0x20] sm:$0xff] %vm91, 0.0
    %97 = vst.msk [vmem:[#allocation3 + $0x28] sm:$0xff] %vm91, 0.0
    %98 = vst.msk [vmem:[#allocation3 + $0x30] sm:$0xff] %vm91, 0.0
    %99 = vst.msk [vmem:[#allocation3 + $0x38] sm:$0xff] %vm91, 0.0
    %100 = vst.msk [vmem:[#allocation3 + $0x40] sm:$0xff] %vm91, 0.0
    %101 = vst.msk [vmem:[#allocation3 + $0x48] sm:$0xff] %vm91, 0.0
    %102 = vst.msk [vmem:[#allocation3 + $0x50] sm:$0xff] %vm91, 0.0
    %103 = vst.msk [vmem:[#allocation3 + $0x58] sm:$0xff] %vm91, 0.0
    %104 = vst.msk [vmem:[#allocation3 + $0x60] sm:$0xff] %vm91, 0.0
    %105 = vst.msk [vmem:[#allocation3 + $0x68] sm:$0xff] %vm91, 0.0
    %106 = vst.msk [vmem:[#allocation3 + $0x70] sm:$0xff] %vm91, 0.0
    %107 = vst.msk [vmem:[#allocation3 + $0x78] sm:$0xff] %vm91, 0.0
    %108 = vst.msk [vmem:[#allocation3 + $0x80] sm:$0xff] %vm91, 0.0
    %109 = vst.msk [vmem:[#allocation3 + $0x88] sm:$0xff] %vm91, 0.0
    %110 = vst.msk [vmem:[#allocation3 + $0x90] sm:$0xff] %vm91, 0.0
    %111 = vst.msk [vmem:[#allocation3 + $0x98] sm:$0xff] %vm91, 0.0
    %112 = vst.msk [vmem:[#allocation3 + $0xa0] sm:$0xff] %vm91, 0.0
    %113 = vst.msk [vmem:[#allocation3 + $0xa8] sm:$0xff] %vm91, 0.0
    %114 = vst.msk [vmem:[#allocation3 + $0xb0] sm:$0xff] %vm91, 0.0
    %115 = vst.msk [vmem:[#allocation3 + $0xb8] sm:$0xff] %vm91, 0.0
    %116 = vst.msk [vmem:[#allocation3 + $0xc0] sm:$0xff] %vm91, 0.0
    %117 = vst.msk [vmem:[#allocation3 + $0xc8] sm:$0xff] %vm91, 0.0
    %118 = vst.msk [vmem:[#allocation3 + $0xd0] sm:$0xff] %vm91, 0.0
    %119 = vst.msk [vmem:[#allocation3 + $0xd8] sm:$0xff] %vm91, 0.0
    %120 = vst.msk [vmem:[#allocation3 + $0xe0] sm:$0xff] %vm91, 0.0
    %121 = vst.msk [vmem:[#allocation3 + $0xe8] sm:$0xff] %vm91, 0.0
    %122 = vst.msk [vmem:[#allocation3 + $0xf0] sm:$0xff] %vm91, 0.0
    %123 = vst.msk [vmem:[#allocation3 + $0xf8] sm:$0xff] %vm91, 0.0
  $region25: #{omics1_encoder_forward.9} parent=0 // pred_fallthru
    _
  %v124 = vld [vmem:[%s0] sm:$0xff]
  %v125 = vld [vmem:[%s0 + $0x8] sm:$0xff]
  %v126 = vld [vmem:[%s0 + $0x10] sm:$0xff]
  %v127 = vld [vmem:[%s0 + $0x18] sm:$0xff]
  %v128 = vld [vmem:[%s0 + $0x20] sm:$0xff]
  %v129 = vld [vmem:[%s0 + $0x28] sm:$0xff]
  %v130 = vld [vmem:[%s0 + $0x30] sm:$0xff]
  %v131 = vld [vmem:[%s0 + $0x38] sm:$0xff]
  %v132 = vld [vmem:[%s0 + $0x40] sm:$0xff]
  %v133 = vld [vmem:[%s0 + $0x48] sm:$0xff]
  %v134 = vld [vmem:[%s0 + $0x50] sm:$0xff]
  %v135 = vld [vmem:[%s0 + $0x58] sm:$0xff]
  %v136 = vld [vmem:[%s0 + $0x60] sm:$0xff]
  %v137 = vld [vmem:[%s0 + $0x68] sm:$0xff]
  %v138 = vld [vmem:[%s0 + $0x70] sm:$0xff]
  %v139 = vld [vmem:[%s0 + $0x78] sm:$0xff]
  %v140 = vld [vmem:[%s0 + $0x80] sm:$0xff]
  %v141 = vld [vmem:[%s0 + $0x88] sm:$0xff]
  %v142 = vld [vmem:[%s0 + $0x90] sm:$0xff]
  %v143 = vld [vmem:[%s0 + $0x98] sm:$0xff]
  %v144 = vld [vmem:[%s0 + $0xa0] sm:$0xff]
  %v145 = vld [vmem:[%s0 + $0xa8] sm:$0xff]
  %v146 = vld [vmem:[%s0 + $0xb0] sm:$0xff]
  %v147 = vld [vmem:[%s0 + $0xb8] sm:$0xff]
  %v148 = vld [vmem:[%s0 + $0xc0] sm:$0xff]
  %v149 = vld [vmem:[%s0 + $0xc8] sm:$0xff]
  %v150 = vld [vmem:[%s0 + $0xd0] sm:$0xff]
  %v151 = vld [vmem:[%s0 + $0xd8] sm:$0xff]
  %v152 = vld [vmem:[%s0 + $0xe0] sm:$0xff]
  %v153 = vld [vmem:[%s0 + $0xe8] sm:$0xff]
  %v154 = vld [vmem:[%s0 + $0xf0] sm:$0xff]
  %v155 = vld [vmem:[%s0 + $0xf8] sm:$0xff]
  %v156 = vld [vmem:[#allocation2] sm:$0xff]
  %v157 = vld [vmem:[#allocation2 + $0x8] sm:$0xff]
  %v158 = vld [vmem:[#allocation2 + $0x10] sm:$0xff]
  %v159 = vld [vmem:[#allocation2 + $0x18] sm:$0xff]
  %v160 = vld [vmem:[#allocation2 + $0x20] sm:$0xff]
  %v161 = vld [vmem:[#allocation2 + $0x28] sm:$0xff]
  %v162 = vld [vmem:[#allocation2 + $0x30] sm:$0xff]
  %v163 = vld [vmem:[#allocation2 + $0x38] sm:$0xff]
  %v164 = vld [vmem:[#allocation2 + $0x40] sm:$0xff]
  %v165 = vld [vmem:[#allocation2 + $0x48] sm:$0xff]
  %v166 = vld [vmem:[#allocation2 + $0x50] sm:$0xff]
  %v167 = vld [vmem:[#allocation2 + $0x58] sm:$0xff]
  %v168 = vld [vmem:[#allocation2 + $0x60] sm:$0xff]
  %v169 = vld [vmem:[#allocation2 + $0x68] sm:$0xff]
  %v170 = vld [vmem:[#allocation2 + $0x70] sm:$0xff]
  %v171 = vld [vmem:[#allocation2 + $0x78] sm:$0xff]
  %v172 = vld [vmem:[#allocation2 + $0x80] sm:$0xff]
  %v173 = vld [vmem:[#allocation2 + $0x88] sm:$0xff]
  %v174 = vld [vmem:[#allocation2 + $0x90] sm:$0xff]
  %v175 = vld [vmem:[#allocation2 + $0x98] sm:$0xff]
  %v176 = vld [vmem:[#allocation2 + $0xa0] sm:$0xff]
  %v177 = vld [vmem:[#allocation2 + $0xa8] sm:$0xff]
  %v178 = vld [vmem:[#allocation2 + $0xb0] sm:$0xff]
  %v179 = vld [vmem:[#allocation2 + $0xb8] sm:$0xff]
  %v180 = vld [vmem:[#allocation2 + $0xc0] sm:$0xff]
  %v181 = vld [vmem:[#allocation2 + $0xc8] sm:$0xff]
  %v182 = vld [vmem:[#allocation2 + $0xd0] sm:$0xff]
  %v183 = vld [vmem:[#allocation2 + $0xd8] sm:$0xff]
  %v184 = vld [vmem:[#allocation2 + $0xe0] sm:$0xff]
  %v185 = vld [vmem:[#allocation2 + $0xe8] sm:$0xff]
  %v186 = vld [vmem:[#allocation2 + $0xf0] sm:$0xff]
  %v187 = vld [vmem:[#allocation2 + $0xf8] sm:$0xff]
  %v188 = vld [vmem:[#allocation2 + $0x100] sm:$0xff]
  %v189 = vld [vmem:[#allocation2 + $0x108] sm:$0xff]
  %v190 = vld [vmem:[#allocation2 + $0x110] sm:$0xff]
  %v191 = vld [vmem:[#allocation2 + $0x118] sm:$0xff]
  %v192 = vld [vmem:[#allocation2 + $0x120] sm:$0xff]
  %v193 = vld [vmem:[#allocation2 + $0x128] sm:$0xff]
  %v194 = vld [vmem:[#allocation2 + $0x130] sm:$0xff]
  %v195 = vld [vmem:[#allocation2 + $0x138] sm:$0xff]
  %v196 = vld [vmem:[#allocation2 + $0x140] sm:$0xff]
  %v197 = vld [vmem:[#allocation2 + $0x148] sm:$0xff]
  %v198 = vld [vmem:[#allocation2 + $0x150] sm:$0xff]
  %v199 = vld [vmem:[#allocation2 + $0x158] sm:$0xff]
  %v200 = vld [vmem:[#allocation2 + $0x160] sm:$0xff]
  %v201 = vld [vmem:[#allocation2 + $0x168] sm:$0xff]
  %v202 = vld [vmem:[#allocation2 + $0x170] sm:$0xff]
  %v203 = vld [vmem:[#allocation2 + $0x178] sm:$0xff]
  %v204 = vld [vmem:[#allocation2 + $0x180] sm:$0xff]
  %v205 = vld [vmem:[#allocation2 + $0x188] sm:$0xff]
  %v206 = vld [vmem:[#allocation2 + $0x190] sm:$0xff]
  %v207 = vld [vmem:[#allocation2 + $0x198] sm:$0xff]
  %v208 = vld [vmem:[#allocation2 + $0x1a0] sm:$0xff]
  %v209 = vld [vmem:[#allocation2 + $0x1a8] sm:$0xff]
  %v210 = vld [vmem:[#allocation2 + $0x1b0] sm:$0xff]
  %v211 = vld [vmem:[#allocation2 + $0x1b8] sm:$0xff]
  %v212 = vld [vmem:[#allocation2 + $0x1c0] sm:$0xff]
  %v213 = vld [vmem:[#allocation2 + $0x1c8] sm:$0xff]
  %v214 = vld [vmem:[#allocation2 + $0x1d0] sm:$0xff]
  %v215 = vld [vmem:[#allocation2 + $0x1d8] sm:$0xff]
  %v216 = vld [vmem:[#allocation2 + $0x1e0] sm:$0xff]
  %v217 = vld [vmem:[#allocation2 + $0x1e8] sm:$0xff]
  %v218 = vld [vmem:[#allocation2 + $0x1f0] sm:$0xff]
  %v219 = vld [vmem:[#allocation2 + $0x1f8] sm:$0xff]
  %v220 = vld [vmem:[%s1] sm:$0xff]
  %v221 = vld [vmem:[%s1 + $0x8] sm:$0xff]
  %v222 = vld [vmem:[%s1 + $0x10] sm:$0xff]
  %v223 = vld [vmem:[%s1 + $0x18] sm:$0xff]
  %v224 = vld [vmem:[%s1 + $0x20] sm:$0xff]
  %v225 = vld [vmem:[%s1 + $0x28] sm:$0xff]
  %v226 = vld [vmem:[%s1 + $0x30] sm:$0xff]
  %v227 = vld [vmem:[%s1 + $0x38] sm:$0xff]
  %v228 = vld [vmem:[%s1 + $0x40] sm:$0xff]
  %v229 = vld [vmem:[%s1 + $0x48] sm:$0xff]
  %v230 = vld [vmem:[%s1 + $0x50] sm:$0xff]
  %v231 = vld [vmem:[%s1 + $0x58] sm:$0xff]
  %v232 = vld [vmem:[%s1 + $0x60] sm:$0xff]
  %v233 = vld [vmem:[%s1 + $0x68] sm:$0xff]
  %v234 = vld [vmem:[%s1 + $0x70] sm:$0xff]
  %v235 = vld [vmem:[%s1 + $0x78] sm:$0xff]
  %v236 = vld [vmem:[%s1 + $0x80] sm:$0xff]
  %v237 = vld [vmem:[%s1 + $0x88] sm:$0xff]
  %v238 = vld [vmem:[%s1 + $0x90] sm:$0xff]
  %v239 = vld [vmem:[%s1 + $0x98] sm:$0xff]
  %v240 = vld [vmem:[%s1 + $0xa0] sm:$0xff]
  %v241 = vld [vmem:[%s1 + $0xa8] sm:$0xff]
  %v242 = vld [vmem:[%s1 + $0xb0] sm:$0xff]
  %v243 = vld [vmem:[%s1 + $0xb8] sm:$0xff]
  %v244 = vld [vmem:[%s1 + $0xc0] sm:$0xff]
  %v245 = vld [vmem:[%s1 + $0xc8] sm:$0xff]
  %v246 = vld [vmem:[%s1 + $0xd0] sm:$0xff]
  %v247 = vld [vmem:[%s1 + $0xd8] sm:$0xff]
  %v248 = vld [vmem:[%s1 + $0xe0] sm:$0xff]
  %v249 = vld [vmem:[%s1 + $0xe8] sm:$0xff]
  %v250 = vld [vmem:[%s1 + $0xf0] sm:$0xff]
  %v251 = vld [vmem:[%s1 + $0xf8] sm:$0xff]
  %v252 = vld [vmem:[%s1 + $0x100] sm:$0xff]
  %v253 = vld [vmem:[%s1 + $0x108] sm:$0xff]
  %v254 = vld [vmem:[%s1 + $0x110] sm:$0xff]
  %v255 = vld [vmem:[%s1 + $0x118] sm:$0xff]
  %v256 = vld [vmem:[%s1 + $0x120] sm:$0xff]
  %v257 = vld [vmem:[%s1 + $0x128] sm:$0xff]
  %v258 = vld [vmem:[%s1 + $0x130] sm:$0xff]
  %v259 = vld [vmem:[%s1 + $0x138] sm:$0xff]
  %v260 = vld [vmem:[%s1 + $0x140] sm:$0xff]
  %v261 = vld [vmem:[%s1 + $0x148] sm:$0xff]
  %v262 = vld [vmem:[%s1 + $0x150] sm:$0xff]
  %v263 = vld [vmem:[%s1 + $0x158] sm:$0xff]
  %v264 = vld [vmem:[%s1 + $0x160] sm:$0xff]
  %v265 = vld [vmem:[%s1 + $0x168] sm:$0xff]
  %v266 = vld [vmem:[%s1 + $0x170] sm:$0xff]
  %v267 = vld [vmem:[%s1 + $0x178] sm:$0xff]
  %v268 = vld [vmem:[%s1 + $0x180] sm:$0xff]
  %v269 = vld [vmem:[%s1 + $0x188] sm:$0xff]
  %v270 = vld [vmem:[%s1 + $0x190] sm:$0xff]
  %v271 = vld [vmem:[%s1 + $0x198] sm:$0xff]
  %v272 = vld [vmem:[%s1 + $0x1a0] sm:$0xff]
  %v273 = vld [vmem:[%s1 + $0x1a8] sm:$0xff]
  %v274 = vld [vmem:[%s1 + $0x1b0] sm:$0xff]
  %v275 = vld [vmem:[%s1 + $0x1b8] sm:$0xff]
  %v276 = vld [vmem:[%s1 + $0x1c0] sm:$0xff]
  %v277 = vld [vmem:[%s1 + $0x1c8] sm:$0xff]
  %v278 = vld [vmem:[%s1 + $0x1d0] sm:$0xff]
  %v279 = vld [vmem:[%s1 + $0x1d8] sm:$0xff]
  %v280 = vld [vmem:[%s1 + $0x1e0] sm:$0xff]
  %v281 = vld [vmem:[%s1 + $0x1e8] sm:$0xff]
  %v282 = vld [vmem:[%s1 + $0x1f0] sm:$0xff]
  %v283 = vld [vmem:[%s1 + $0x1f8] sm:$0xff]
  %v284 = vpack.c.bf16 %v222, %v220
  %v285 = vpack.c.bf16 %v223, %v221
  %v286 = vpack.c.bf16 %v226, %v224
  %v287 = vpack.c.bf16 %v227, %v225
  %v288 = vpack.c.bf16 %v230, %v228
  %v289 = vpack.c.bf16 %v231, %v229
  %v290 = vpack.c.bf16 %v234, %v232
  %v291 = vpack.c.bf16 %v235, %v233
  %v292 = vpack.c.bf16 %v238, %v236
  %v293 = vpack.c.bf16 %v239, %v237
  %v294 = vpack.c.bf16 %v242, %v240
  %v295 = vpack.c.bf16 %v243, %v241
  %v296 = vpack.c.bf16 %v246, %v244
  %v297 = vpack.c.bf16 %v247, %v245
  %v298 = vpack.c.bf16 %v250, %v248
  %v299 = vpack.c.bf16 %v251, %v249
  %v300 = vpack.c.bf16 %v254, %v252
  %v301 = vpack.c.bf16 %v255, %v253
  %v302 = vpack.c.bf16 %v258, %v256
  %v303 = vpack.c.bf16 %v259, %v257
  %v304 = vpack.c.bf16 %v262, %v260
  %v305 = vpack.c.bf16 %v263, %v261
  %v306 = vpack.c.bf16 %v266, %v264
  %v307 = vpack.c.bf16 %v267, %v265
  %v308 = vpack.c.bf16 %v270, %v268
  %v309 = vpack.c.bf16 %v271, %v269
  %v310 = vpack.c.bf16 %v274, %v272
  %v311 = vpack.c.bf16 %v275, %v273
  %v312 = vpack.c.bf16 %v278, %v276
  %v313 = vpack.c.bf16 %v279, %v277
  %v314 = vpack.c.bf16 %v282, %v280
  %v315 = vpack.c.bf16 %v283, %v281
  %v348 = vunpack.c.l.b16 %v124
  %v349 = vunpack.c.h.b16 %v124
  %v350 = vunpack.c.l.b16 %v125
  %v351 = vunpack.c.h.b16 %v125
  %v352 = vunpack.c.l.b16 %v126
  %v353 = vunpack.c.h.b16 %v126
  %v354 = vunpack.c.l.b16 %v127
  %v355 = vunpack.c.h.b16 %v127
  %v356 = vunpack.c.l.b16 %v128
  %v357 = vunpack.c.h.b16 %v128
  %v358 = vunpack.c.l.b16 %v129
  %v359 = vunpack.c.h.b16 %v129
  %v360 = vunpack.c.l.b16 %v130
  %v361 = vunpack.c.h.b16 %v130
  %v362 = vunpack.c.l.b16 %v131
  %v363 = vunpack.c.h.b16 %v131
  %v364 = vunpack.c.l.b16 %v132
  %v365 = vunpack.c.h.b16 %v132
  %v366 = vunpack.c.l.b16 %v133
  %v367 = vunpack.c.h.b16 %v133
  %v368 = vunpack.c.l.b16 %v134
  %v369 = vunpack.c.h.b16 %v134
  %v370 = vunpack.c.l.b16 %v135
  %v371 = vunpack.c.h.b16 %v135
  %v372 = vunpack.c.l.b16 %v136
  %v373 = vunpack.c.h.b16 %v136
  %v374 = vunpack.c.l.b16 %v137
  %v375 = vunpack.c.h.b16 %v137
  %v376 = vunpack.c.l.b16 %v138
  %v377 = vunpack.c.h.b16 %v138
  %v378 = vunpack.c.l.b16 %v139
  %v379 = vunpack.c.h.b16 %v139
  %v380 = vunpack.c.l.b16 %v140
  %v381 = vunpack.c.h.b16 %v140
  %v382 = vunpack.c.l.b16 %v141
  %v383 = vunpack.c.h.b16 %v141
  %v384 = vunpack.c.l.b16 %v142
  %v385 = vunpack.c.h.b16 %v142
  %v386 = vunpack.c.l.b16 %v143
  %v387 = vunpack.c.h.b16 %v143
  %v388 = vunpack.c.l.b16 %v144
  %v389 = vunpack.c.h.b16 %v144
  %v390 = vunpack.c.l.b16 %v145
  %v391 = vunpack.c.h.b16 %v145
  %v392 = vunpack.c.l.b16 %v146
  %v393 = vunpack.c.h.b16 %v146
  %v394 = vunpack.c.l.b16 %v147
  %v395 = vunpack.c.h.b16 %v147
  %v396 = vunpack.c.l.b16 %v148
  %v397 = vunpack.c.h.b16 %v148
  %v398 = vunpack.c.l.b16 %v149
  %v399 = vunpack.c.h.b16 %v149
  %v400 = vunpack.c.l.b16 %v150
  %v401 = vunpack.c.h.b16 %v150
  %v402 = vunpack.c.l.b16 %v151
  %v403 = vunpack.c.h.b16 %v151
  %v404 = vunpack.c.l.b16 %v152
  %v405 = vunpack.c.h.b16 %v152
  %v406 = vunpack.c.l.b16 %v153
  %v407 = vunpack.c.h.b16 %v153
  %v408 = vunpack.c.l.b16 %v154
  %v409 = vunpack.c.h.b16 %v154
  %v410 = vunpack.c.l.b16 %v155
  %v411 = vunpack.c.h.b16 %v155
  %v412 = vpack.c.b16 %v350, %v348
  %v413 = vpack.c.b16 %v351, %v349
  %v414 = vpack.c.b16 %v354, %v352
  %v415 = vpack.c.b16 %v355, %v353
  %v416 = vpack.c.b16 %v358, %v356
  %v417 = vpack.c.b16 %v359, %v357
  %v418 = vpack.c.b16 %v362, %v360
  %v419 = vpack.c.b16 %v363, %v361
  %v420 = vpack.c.b16 %v366, %v364
  %v421 = vpack.c.b16 %v367, %v365
  %v422 = vpack.c.b16 %v370, %v368
  %v423 = vpack.c.b16 %v371, %v369
  %v424 = vpack.c.b16 %v374, %v372
  %v425 = vpack.c.b16 %v375, %v373
  %v426 = vpack.c.b16 %v378, %v376
  %v427 = vpack.c.b16 %v379, %v377
  %v428 = vpack.c.b16 %v382, %v380
  %v429 = vpack.c.b16 %v383, %v381
  %v430 = vpack.c.b16 %v386, %v384
  %v431 = vpack.c.b16 %v387, %v385
  %v432 = vpack.c.b16 %v390, %v388
  %v433 = vpack.c.b16 %v391, %v389
  %v434 = vpack.c.b16 %v394, %v392
  %v435 = vpack.c.b16 %v395, %v393
  %v436 = vpack.c.b16 %v398, %v396
  %v437 = vpack.c.b16 %v399, %v397
  %v438 = vpack.c.b16 %v402, %v400
  %v439 = vpack.c.b16 %v403, %v401
  %v440 = vpack.c.b16 %v406, %v404
  %v441 = vpack.c.b16 %v407, %v405
  %v442 = vpack.c.b16 %v410, %v408
  %v443 = vpack.c.b16 %v411, %v409
  %476 = vmatprep.subr.bf16.mxu0 %v285
  %477 = vmatpush1.bf16.msra.mxu0 %v284
  %478 = vmatprep.subr.bf16.mxu0 %v287
  %479 = vmatpush1.bf16.msra.mxu0 %v286
  %480 = vmatprep.subr.bf16.mxu0 %v289
  %481 = vmatpush1.bf16.msra.mxu0 %v288
  %482 = vmatprep.subr.bf16.mxu0 %v291
  %483 = vmatpush1.bf16.msra.mxu0 %v290
  %484 = vmatprep.subr.bf16.mxu0 %v293
  %485 = vmatpush1.bf16.msra.mxu0 %v292
  %486 = vmatprep.subr.bf16.mxu0 %v295
  %487 = vmatpush1.bf16.msra.mxu0 %v294
  %488 = vmatprep.subr.bf16.mxu0 %v297
  %489 = vmatpush1.bf16.msra.mxu0 %v296
  %490 = vmatprep.subr.bf16.mxu0 %v299
  %491 = vmatpush1.bf16.msra.mxu0 %v298
  %492 = vmatprep.subr.bf16.mxu0 %v301
  %493 = vmatpush1.bf16.msra.mxu0 %v300
  %494 = vmatprep.subr.bf16.mxu0 %v303
  %495 = vmatpush1.bf16.msra.mxu0 %v302
  %496 = vmatprep.subr.bf16.mxu0 %v305
  %497 = vmatpush1.bf16.msra.mxu0 %v304
  %498 = vmatprep.subr.bf16.mxu0 %v307
  %499 = vmatpush1.bf16.msra.mxu0 %v306
  %500 = vmatprep.subr.bf16.mxu0 %v309
  %501 = vmatpush1.bf16.msra.mxu0 %v308
  %502 = vmatprep.subr.bf16.mxu0 %v311
  %503 = vmatpush1.bf16.msra.mxu0 %v310
  %504 = vmatprep.subr.bf16.mxu0 %v313
  %505 = vmatpush1.bf16.msra.mxu0 %v312
  %506 = vmatprep.subr.bf16.mxu0 %v315
  %507 = vmatpush1.bf16.msra.mxu0 %v314
  %508 = vmatprep.mubr.bf16.mxu0 %v413
  %509 = vmatmul.mubr.bf16.gmra.mrb[0].mxu0 %v412
  %v510 = vpop.f32.mrb[0].mxu0
  %v511 = vadd.f32 0.0, %v510
  %v512 = vpop.f32.mrb[0].mxu0
  %v513 = vadd.f32 0.0, %v512
  %v514 = vpop.f32.mrb[0].mxu0
  %v515 = vadd.f32 0.0, %v514
  %v516 = vpop.f32.mrb[0].mxu0
  %v517 = vadd.f32 0.0, %v516
  %518 = vmatprep.mubr.bf16.mxu0 %v415
  %519 = vmatmul.mubr.bf16.gmra.mrb[0].mxu0 %v414
  %v520 = vpop.f32.mrb[0].mxu0
  %v521 = vadd.f32 0.0, %v520
  %v522 = vpop.f32.mrb[0].mxu0
  %v523 = vadd.f32 0.0, %v522
  %v524 = vpop.f32.mrb[0].mxu0
  %v525 = vadd.f32 0.0, %v524
  %v526 = vpop.f32.mrb[0].mxu0
  %v527 = vadd.f32 0.0, %v526
  %528 = vmatprep.mubr.bf16.mxu0 %v417
  %529 = vmatmul.mubr.bf16.gmra.mrb[0].mxu0 %v416
  %v530 = vpop.f32.mrb[0].mxu0
  %v531 = vadd.f32 0.0, %v530
  %v532 = vpop.f32.mrb[0].mxu0
  %v533 = vadd.f32 0.0, %v532
  %v534 = vpop.f32.mrb[0].mxu0
  %v535 = vadd.f32 0.0, %v534
  %v536 = vpop.f32.mrb[0].mxu0
  %v537 = vadd.f32 0.0, %v536
  %538 = vmatprep.mubr.bf16.mxu0 %v419
  %539 = vmatmul.mubr.bf16.gmra.mrb[0].mxu0 %v418
  %v540 = vpop.f32.mrb[0].mxu0
  %v541 = vadd.f32 0.0, %v540
  %v542 = vpop.f32.mrb[0].mxu0
  %v543 = vadd.f32 0.0, %v542
  %v544 = vpop.f32.mrb[0].mxu0
  %v545 = vadd.f32 0.0, %v544
  %v546 = vpop.f32.mrb[0].mxu0
  %v547 = vadd.f32 0.0, %v546
  %548 = vmatprep.mubr.bf16.mxu0 %v421
  %549 = vmatmul.mubr.bf16.gmra.mrb[0].mxu0 %v420
  %v550 = vpop.f32.mrb[0].mxu0
  %v551 = vadd.f32 0.0, %v550
  %v552 = vpop.f32.mrb[0].mxu0
  %v553 = vadd.f32 0.0, %v552
  %v554 = vpop.f32.mrb[0].mxu0
  %v555 = vadd.f32 0.0, %v554
  %v556 = vpop.f32.mrb[0].mxu0
  %v557 = vadd.f32 0.0, %v556
  %558 = vmatprep.mubr.bf16.mxu0 %v423
  %559 = vmatmul.mubr.bf16.gmra.mrb[0].mxu0 %v422
  %v560 = vpop.f32.mrb[0].mxu0
  %v561 = vadd.f32 0.0, %v560
  %v562 = vpop.f32.mrb[0].mxu0
  %v563 = vadd.f32 0.0, %v562
  %v564 = vpop.f32.mrb[0].mxu0
  %v565 = vadd.f32 0.0, %v564
  %v566 = vpop.f32.mrb[0].mxu0
  %v567 = vadd.f32 0.0, %v566
  %568 = vmatprep.mubr.bf16.mxu0 %v425
  %569 = vmatmul.mubr.bf16.gmra.mrb[0].mxu0 %v424
  %v570 = vpop.f32.mrb[0].mxu0
  %v571 = vadd.f32 0.0, %v570
  %v572 = vpop.f32.mrb[0].mxu0
  %v573 = vadd.f32 0.0, %v572
  %v574 = vpop.f32.mrb[0].mxu0
  %v575 = vadd.f32 0.0, %v574
  %v576 = vpop.f32.mrb[0].mxu0
  %v577 = vadd.f32 0.0, %v576
  %578 = vmatprep.mubr.bf16.mxu0 %v427
  %579 = vmatmul.mubr.bf16.gmra.mrb[0].mxu0 %v426
  %v580 = vpop.f32.mrb[0].mxu0
  %v581 = vadd.f32 0.0, %v580
  %v582 = vpop.f32.mrb[0].mxu0
  %v583 = vadd.f32 0.0, %v582
  %v584 = vpop.f32.mrb[0].mxu0
  %v585 = vadd.f32 0.0, %v584
  %v586 = vpop.f32.mrb[0].mxu0
  %v587 = vadd.f32 0.0, %v586
  %588 = vmatprep.mubr.bf16.mxu0 %v429
  %589 = vmatmul.mubr.bf16.gmra.mrb[0].mxu0 %v428
  %v590 = vpop.f32.mrb[0].mxu0
  %v591 = vadd.f32 0.0, %v590
  %v592 = vpop.f32.mrb[0].mxu0
  %v593 = vadd.f32 0.0, %v592
  %v594 = vpop.f32.mrb[0].mxu0
  %v595 = vadd.f32 0.0, %v594
  %v596 = vpop.f32.mrb[0].mxu0
  %v597 = vadd.f32 0.0, %v596
  %598 = vmatprep.mubr.bf16.mxu0 %v431
  %599 = vmatmul.mubr.bf16.gmra.mrb[0].mxu0 %v430
  %v600 = vpop.f32.mrb[0].mxu0
  %v601 = vadd.f32 0.0, %v600
  %v602 = vpop.f32.mrb[0].mxu0
  %v603 = vadd.f32 0.0, %v602
  %v604 = vpop.f32.mrb[0].mxu0
  %v605 = vadd.f32 0.0, %v604
  %v606 = vpop.f32.mrb[0].mxu0
  %v607 = vadd.f32 0.0, %v606
  %608 = vmatprep.mubr.bf16.mxu0 %v433
  %609 = vmatmul.mubr.bf16.gmra.mrb[0].mxu0 %v432
  %v610 = vpop.f32.mrb[0].mxu0
  %v611 = vadd.f32 0.0, %v610
  %v612 = vpop.f32.mrb[0].mxu0
  %v613 = vadd.f32 0.0, %v612
  %v614 = vpop.f32.mrb[0].mxu0
  %v615 = vadd.f32 0.0, %v614
  %v616 = vpop.f32.mrb[0].mxu0
  %v617 = vadd.f32 0.0, %v616
  %618 = vmatprep.mubr.bf16.mxu0 %v435
  %619 = vmatmul.mubr.bf16.gmra.mrb[0].mxu0 %v434
  %v620 = vpop.f32.mrb[0].mxu0
  %v621 = vadd.f32 0.0, %v620
  %v622 = vpop.f32.mrb[0].mxu0
  %v623 = vadd.f32 0.0, %v622
  %v624 = vpop.f32.mrb[0].mxu0
  %v625 = vadd.f32 0.0, %v624
  %v626 = vpop.f32.mrb[0].mxu0
  %v627 = vadd.f32 0.0, %v626
  %628 = vmatprep.mubr.bf16.mxu0 %v437
  %629 = vmatmul.mubr.bf16.gmra.mrb[0].mxu0 %v436
  %v630 = vpop.f32.mrb[0].mxu0
  %v631 = vadd.f32 0.0, %v630
  %v632 = vpop.f32.mrb[0].mxu0
  %v633 = vadd.f32 0.0, %v632
  %v634 = vpop.f32.mrb[0].mxu0
  %v635 = vadd.f32 0.0, %v634
  %v636 = vpop.f32.mrb[0].mxu0
  %v637 = vadd.f32 0.0, %v636
  %638 = vmatprep.mubr.bf16.mxu0 %v439
  %639 = vmatmul.mubr.bf16.gmra.mrb[0].mxu0 %v438
  %v640 = vpop.f32.mrb[0].mxu0
  %v641 = vadd.f32 0.0, %v640
  %v642 = vpop.f32.mrb[0].mxu0
  %v643 = vadd.f32 0.0, %v642
  %v644 = vpop.f32.mrb[0].mxu0
  %v645 = vadd.f32 0.0, %v644
  %v646 = vpop.f32.mrb[0].mxu0
  %v647 = vadd.f32 0.0, %v646
  %648 = vmatprep.mubr.bf16.mxu0 %v441
  %649 = vmatmul.mubr.bf16.gmra.mrb[0].mxu0 %v440
  %v650 = vpop.f32.mrb[0].mxu0
  %v651 = vadd.f32 0.0, %v650
  %v652 = vpop.f32.mrb[0].mxu0
  %v653 = vadd.f32 0.0, %v652
  %v654 = vpop.f32.mrb[0].mxu0
  %v655 = vadd.f32 0.0, %v654
  %v656 = vpop.f32.mrb[0].mxu0
  %v657 = vadd.f32 0.0, %v656
  %658 = vmatprep.mubr.bf16.mxu0 %v443
  %659 = vmatmul.mubr.bf16.gmra.mrb[0].mxu0 %v442
  %v660 = vpop.f32.mrb[0].mxu0
  %v661 = vadd.f32 0.0, %v660
  %v662 = vpop.f32.mrb[0].mxu0
  %v663 = vadd.f32 0.0, %v662
  %v664 = vpop.f32.mrb[0].mxu0
  %v665 = vadd.f32 0.0, %v664
  %v666 = vpop.f32.mrb[0].mxu0
  %v667 = vadd.f32 0.0, %v666
  %668 = vdwg.mxu0
  %v669 = vadd.f32 %v156, %v511
  %v670 = vadd.f32 %v157, %v513
  %v671 = vadd.f32 %v158, %v515
  %v672 = vadd.f32 %v159, %v517
  %v673 = vadd.f32 %v160, %v521
  %v674 = vadd.f32 %v161, %v523
  %v675 = vadd.f32 %v162, %v525
  %v676 = vadd.f32 %v163, %v527
  %v677 = vadd.f32 %v164, %v531
  %v678 = vadd.f32 %v165, %v533
  %v679 = vadd.f32 %v166, %v535
  %v680 = vadd.f32 %v167, %v537
  %v681 = vadd.f32 %v168, %v541
  %v682 = vadd.f32 %v169, %v543
  %v683 = vadd.f32 %v170, %v545
  %v684 = vadd.f32 %v171, %v547
  %v685 = vadd.f32 %v172, %v551
  %v686 = vadd.f32 %v173, %v553
  %v687 = vadd.f32 %v174, %v555
  %v688 = vadd.f32 %v175, %v557
  %v689 = vadd.f32 %v176, %v561
  %v690 = vadd.f32 %v177, %v563
  %v691 = vadd.f32 %v178, %v565
  %v692 = vadd.f32 %v179, %v567
  %v693 = vadd.f32 %v180, %v571
  %v694 = vadd.f32 %v181, %v573
  %v695 = vadd.f32 %v182, %v575
  %v696 = vadd.f32 %v183, %v577
  %v697 = vadd.f32 %v184, %v581
  %v698 = vadd.f32 %v185, %v583
  %v699 = vadd.f32 %v186, %v585
  %v700 = vadd.f32 %v187, %v587
  %v701 = vadd.f32 %v188, %v591
  %v702 = vadd.f32 %v189, %v593
  %v703 = vadd.f32 %v190, %v595
  %v704 = vadd.f32 %v191, %v597
  %v705 = vadd.f32 %v192, %v601
  %v706 = vadd.f32 %v193, %v603
  %v707 = vadd.f32 %v194, %v605
  %v708 = vadd.f32 %v195, %v607
  %v709 = vadd.f32 %v196, %v611
  %v710 = vadd.f32 %v197, %v613
  %v711 = vadd.f32 %v198, %v615
  %v712 = vadd.f32 %v199, %v617
  %v713 = vadd.f32 %v200, %v621
  %v714 = vadd.f32 %v201, %v623
  %v715 = vadd.f32 %v202, %v625
  %v716 = vadd.f32 %v203, %v627
  %v717 = vadd.f32 %v204, %v631
  %v718 = vadd.f32 %v205, %v633
  %v719 = vadd.f32 %v206, %v635
  %v720 = vadd.f32 %v207, %v637
  %v721 = vadd.f32 %v208, %v641
  %v722 = vadd.f32 %v209, %v643
  %v723 = vadd.f32 %v210, %v645
  %v724 = vadd.f32 %v211, %v647
  %v725 = vadd.f32 %v212, %v651
  %v726 = vadd.f32 %v213, %v653
  %v727 = vadd.f32 %v214, %v655
  %v728 = vadd.f32 %v215, %v657
  %v729 = vadd.f32 %v216, %v661
  %v730 = vadd.f32 %v217, %v663
  %v731 = vadd.f32 %v218, %v665
  %v732 = vadd.f32 %v219, %v667
  %733 = vst [vmem:[#allocation2] sm:$0xff] %v669
  %734 = vst [vmem:[#allocation2 + $0x8] sm:$0xff] %v670
  %735 = vst [vmem:[#allocation2 + $0x10] sm:$0xff] %v671
  %736 = vst [vmem:[#allocation2 + $0x18] sm:$0xff] %v672
  %737 = vst [vmem:[#allocation2 + $0x20] sm:$0xff] %v673
  %738 = vst [vmem:[#allocation2 + $0x28] sm:$0xff] %v674
  %739 = vst [vmem:[#allocation2 + $0x30] sm:$0xff] %v675
  %740 = vst [vmem:[#allocation2 + $0x38] sm:$0xff] %v676
  %741 = vst [vmem:[#allocation2 + $0x40] sm:$0xff] %v677
  %742 = vst [vmem:[#allocation2 + $0x48] sm:$0xff] %v678
  %743 = vst [vmem:[#allocation2 + $0x50] sm:$0xff] %v679
  %744 = vst [vmem:[#allocation2 + $0x58] sm:$0xff] %v680
  %745 = vst [vmem:[#allocation2 + $0x60] sm:$0xff] %v681
  %746 = vst [vmem:[#allocation2 + $0x68] sm:$0xff] %v682
  %747 = vst [vmem:[#allocation2 + $0x70] sm:$0xff] %v683
  %748 = vst [vmem:[#allocation2 + $0x78] sm:$0xff] %v684
  %749 = vst [vmem:[#allocation2 + $0x80] sm:$0xff] %v685
  %750 = vst [vmem:[#allocation2 + $0x88] sm:$0xff] %v686
  %751 = vst [vmem:[#allocation2 + $0x90] sm:$0xff] %v687
  %752 = vst [vmem:[#allocation2 + $0x98] sm:$0xff] %v688
  %753 = vst [vmem:[#allocation2 + $0xa0] sm:$0xff] %v689
  %754 = vst [vmem:[#allocation2 + $0xa8] sm:$0xff] %v690
  %755 = vst [vmem:[#allocation2 + $0xb0] sm:$0xff] %v691
  %756 = vst [vmem:[#allocation2 + $0xb8] sm:$0xff] %v692
  %757 = vst [vmem:[#allocation2 + $0xc0] sm:$0xff] %v693
  %758 = vst [vmem:[#allocation2 + $0xc8] sm:$0xff] %v694
  %759 = vst [vmem:[#allocation2 + $0xd0] sm:$0xff] %v695
  %760 = vst [vmem:[#allocation2 + $0xd8] sm:$0xff] %v696
  %761 = vst [vmem:[#allocation2 + $0xe0] sm:$0xff] %v697
  %762 = vst [vmem:[#allocation2 + $0xe8] sm:$0xff] %v698
  %763 = vst [vmem:[#allocation2 + $0xf0] sm:$0xff] %v699
  %764 = vst [vmem:[#allocation2 + $0xf8] sm:$0xff] %v700
  %765 = vst [vmem:[#allocation2 + $0x100] sm:$0xff] %v701
  %766 = vst [vmem:[#allocation2 + $0x108] sm:$0xff] %v702
  %767 = vst [vmem:[#allocation2 + $0x110] sm:$0xff] %v703
  %768 = vst [vmem:[#allocation2 + $0x118] sm:$0xff] %v704
  %769 = vst [vmem:[#allocation2 + $0x120] sm:$0xff] %v705
  %770 = vst [vmem:[#allocation2 + $0x128] sm:$0xff] %v706
  %771 = vst [vmem:[#allocation2 + $0x130] sm:$0xff] %v707
  %772 = vst [vmem:[#allocation2 + $0x138] sm:$0xff] %v708
  %773 = vst [vmem:[#allocation2 + $0x140] sm:$0xff] %v709
  %774 = vst [vmem:[#allocation2 + $0x148] sm:$0xff] %v710
  %775 = vst [vmem:[#allocation2 + $0x150] sm:$0xff] %v711
  %776 = vst [vmem:[#allocation2 + $0x158] sm:$0xff] %v712
  %777 = vst [vmem:[#allocation2 + $0x160] sm:$0xff] %v713
  %778 = vst [vmem:[#allocation2 + $0x168] sm:$0xff] %v714
  %779 = vst [vmem:[#allocation2 + $0x170] sm:$0xff] %v715
  %780 = vst [vmem:[#allocation2 + $0x178] sm:$0xff] %v716
  %781 = vst [vmem:[#allocation2 + $0x180] sm:$0xff] %v717
  %782 = vst [vmem:[#allocation2 + $0x188] sm:$0xff] %v718
  %783 = vst [vmem:[#allocation2 + $0x190] sm:$0xff] %v719
  %784 = vst [vmem:[#allocation2 + $0x198] sm:$0xff] %v720
  %785 = vst [vmem:[#allocation2 + $0x1a0] sm:$0xff] %v721
  %786 = vst [vmem:[#allocation2 + $0x1a8] sm:$0xff] %v722
  %787 = vst [vmem:[#allocation2 + $0x1b0] sm:$0xff] %v723
  %788 = vst [vmem:[#allocation2 + $0x1b8] sm:$0xff] %v724
  %789 = vst [vmem:[#allocation2 + $0x1c0] sm:$0xff] %v725
  %790 = vst [vmem:[#allocation2 + $0x1c8] sm:$0xff] %v726
  %791 = vst [vmem:[#allocation2 + $0x1d0] sm:$0xff] %v727
  %792 = vst [vmem:[#allocation2 + $0x1d8] sm:$0xff] %v728
  %793 = vst [vmem:[#allocation2 + $0x1e0] sm:$0xff] %v729
  %794 = vst [vmem:[#allocation2 + $0x1e8] sm:$0xff] %v730
  %795 = vst [vmem:[#allocation2 + $0x1f0] sm:$0xff] %v731
  %796 = vst [vmem:[#allocation2 + $0x1f8] sm:$0xff] %v732
  %v797 = vld [vmem:[#allocation3] sm:$0xff]
  %v798 = vld [vmem:[#allocation3 + $0x8] sm:$0xff]
  %v799 = vld [vmem:[#allocation3 + $0x10] sm:$0xff]
  %v800 = vld [vmem:[#allocation3 + $0x18] sm:$0xff]
  %v801 = vld [vmem:[#allocation3 + $0x20] sm:$0xff]
  %v802 = vld [vmem:[#allocation3 + $0x28] sm:$0xff]
  %v803 = vld [vmem:[#allocation3 + $0x30] sm:$0xff]
  %v804 = vld [vmem:[#allocation3 + $0x38] sm:$0xff]
  %v805 = vld [vmem:[#allocation3 + $0x40] sm:$0xff]
  %v806 = vld [vmem:[#allocation3 + $0x48] sm:$0xff]
  %v807 = vld [vmem:[#allocation3 + $0x50] sm:$0xff]
  %v808 = vld [vmem:[#allocation3 + $0x58] sm:$0xff]
  %v809 = vld [vmem:[#allocation3 + $0x60] sm:$0xff]
  %v810 = vld [vmem:[#allocation3 + $0x68] sm:$0xff]
  %v811 = vld [vmem:[#allocation3 + $0x70] sm:$0xff]
  %v812 = vld [vmem:[#allocation3 + $0x78] sm:$0xff]
  %v813 = vld [vmem:[#allocation3 + $0x80] sm:$0xff]
  %v814 = vld [vmem:[#allocation3 + $0x88] sm:$0xff]
  %v815 = vld [vmem:[#allocation3 + $0x90] sm:$0xff]
  %v816 = vld [vmem:[#allocation3 + $0x98] sm:$0xff]
  %v817 = vld [vmem:[#allocation3 + $0xa0] sm:$0xff]
  %v818 = vld [vmem:[#allocation3 + $0xa8] sm:$0xff]
  %v819 = vld [vmem:[#allocation3 + $0xb0] sm:$0xff]
  %v820 = vld [vmem:[#allocation3 + $0xb8] sm:$0xff]
  %v821 = vld [vmem:[#allocation3 + $0xc0] sm:$0xff]
  %v822 = vld [vmem:[#allocation3 + $0xc8] sm:$0xff]
  %v823 = vld [vmem:[#allocation3 + $0xd0] sm:$0xff]
  %v824 = vld [vmem:[#allocation3 + $0xd8] sm:$0xff]
  %v825 = vld [vmem:[#allocation3 + $0xe0] sm:$0xff]
  %v826 = vld [vmem:[#allocation3 + $0xe8] sm:$0xff]
  %v827 = vld [vmem:[#allocation3 + $0xf0] sm:$0xff]
  %v828 = vld [vmem:[#allocation3 + $0xf8] sm:$0xff]
  %v829 = vunpack.c.l.bf16 %v124
  %v830 = vunpack.c.h.bf16 %v124
  %v831 = vunpack.c.l.bf16 %v125
  %v832 = vunpack.c.h.bf16 %v125
  %v833 = vunpack.c.l.bf16 %v126
  %v834 = vunpack.c.h.bf16 %v126
  %v835 = vunpack.c.l.bf16 %v127
  %v836 = vunpack.c.h.bf16 %v127
  %v837 = vunpack.c.l.bf16 %v128
  %v838 = vunpack.c.h.bf16 %v128
  %v839 = vunpack.c.l.bf16 %v129
  %v840 = vunpack.c.h.bf16 %v129
  %v841 = vunpack.c.l.bf16 %v130
  %v842 = vunpack.c.h.bf16 %v130
  %v843 = vunpack.c.l.bf16 %v131
  %v844 = vunpack.c.h.bf16 %v131
  %v845 = vunpack.c.l.bf16 %v132
  %v846 = vunpack.c.h.bf16 %v132
  %v847 = vunpack.c.l.bf16 %v133
  %v848 = vunpack.c.h.bf16 %v133
  %v849 = vunpack.c.l.bf16 %v134
  %v850 = vunpack.c.h.bf16 %v134
  %v851 = vunpack.c.l.bf16 %v135
  %v852 = vunpack.c.h.bf16 %v135
  %v853 = vunpack.c.l.bf16 %v136
  %v854 = vunpack.c.h.bf16 %v136
  %v855 = vunpack.c.l.bf16 %v137
  %v856 = vunpack.c.h.bf16 %v137
  %v857 = vunpack.c.l.bf16 %v138
  %v858 = vunpack.c.h.bf16 %v138
  %v859 = vunpack.c.l.bf16 %v139
  %v860 = vunpack.c.h.bf16 %v139
  %v861 = vunpack.c.l.bf16 %v140
  %v862 = vunpack.c.h.bf16 %v140
  %v863 = vunpack.c.l.bf16 %v141
  %v864 = vunpack.c.h.bf16 %v141
  %v865 = vunpack.c.l.bf16 %v142
  %v866 = vunpack.c.h.bf16 %v142
  %v867 = vunpack.c.l.bf16 %v143
  %v868 = vunpack.c.h.bf16 %v143
  %v869 = vunpack.c.l.bf16 %v144
  %v870 = vunpack.c.h.bf16 %v144
  %v871 = vunpack.c.l.bf16 %v145
  %v872 = vunpack.c.h.bf16 %v145
  %v873 = vunpack.c.l.bf16 %v146
  %v874 = vunpack.c.h.bf16 %v146
  %v875 = vunpack.c.l.bf16 %v147
  %v876 = vunpack.c.h.bf16 %v147
  %v877 = vunpack.c.l.bf16 %v148
  %v878 = vunpack.c.h.bf16 %v148
  %v879 = vunpack.c.l.bf16 %v149
  %v880 = vunpack.c.h.bf16 %v149
  %v881 = vunpack.c.l.bf16 %v150
  %v882 = vunpack.c.h.bf16 %v150
  %v883 = vunpack.c.l.bf16 %v151
  %v884 = vunpack.c.h.bf16 %v151
  %v885 = vunpack.c.l.bf16 %v152
  %v886 = vunpack.c.h.bf16 %v152
  %v887 = vunpack.c.l.bf16 %v153
  %v888 = vunpack.c.h.bf16 %v153
  %v889 = vunpack.c.l.bf16 %v154
  %v890 = vunpack.c.h.bf16 %v154
  %v891 = vunpack.c.l.bf16 %v155
  %v892 = vunpack.c.h.bf16 %v155
  %v893 = vadd.f32 %v829, %v830
  %894 = vadd.xlane.f32.xlu0 %v893
  %v895 = vpop.xlane.xlu0 %894
  %v896 = vadd.f32 %v831, %v832
  %897 = vadd.xlane.f32.xlu0 %v896
  %v898 = vpop.xlane.xlu0 %897
  %v899 = vadd.f32 %v833, %v834
  %900 = vadd.xlane.f32.xlu0 %v899
  %v901 = vpop.xlane.xlu0 %900
  %v902 = vadd.f32 %v835, %v836
  %903 = vadd.xlane.f32.xlu0 %v902
  %v904 = vpop.xlane.xlu0 %903
  %v905 = vadd.f32 %v837, %v838
  %906 = vadd.xlane.f32.xlu0 %v905
  %v907 = vpop.xlane.xlu0 %906
  %v908 = vadd.f32 %v839, %v840
  %909 = vadd.xlane.f32.xlu0 %v908
  %v910 = vpop.xlane.xlu0 %909
  %v911 = vadd.f32 %v841, %v842
  %912 = vadd.xlane.f32.xlu0 %v911
  %v913 = vpop.xlane.xlu0 %912
  %v914 = vadd.f32 %v843, %v844
  %915 = vadd.xlane.f32.xlu0 %v914
  %v916 = vpop.xlane.xlu0 %915
  %v917 = vadd.f32 %v845, %v846
  %918 = vadd.xlane.f32.xlu0 %v917
  %v919 = vpop.xlane.xlu0 %918
  %v920 = vadd.f32 %v847, %v848
  %921 = vadd.xlane.f32.xlu0 %v920
  %v922 = vpop.xlane.xlu0 %921
  %v923 = vadd.f32 %v849, %v850
  %924 = vadd.xlane.f32.xlu0 %v923
  %v925 = vpop.xlane.xlu0 %924
  %v926 = vadd.f32 %v851, %v852
  %927 = vadd.xlane.f32.xlu0 %v926
  %v928 = vpop.xlane.xlu0 %927
  %v929 = vadd.f32 %v853, %v854
  %930 = vadd.xlane.f32.xlu0 %v929
  %v931 = vpop.xlane.xlu0 %930
  %v932 = vadd.f32 %v855, %v856
  %933 = vadd.xlane.f32.xlu0 %v932
  %v934 = vpop.xlane.xlu0 %933
  %v935 = vadd.f32 %v857, %v858
  %936 = vadd.xlane.f32.xlu0 %v935
  %v937 = vpop.xlane.xlu0 %936
  %v938 = vadd.f32 %v859, %v860
  %939 = vadd.xlane.f32.xlu0 %v938
  %v940 = vpop.xlane.xlu0 %939
  %v941 = vadd.f32 %v861, %v862
  %942 = vadd.xlane.f32.xlu0 %v941
  %v943 = vpop.xlane.xlu0 %942
  %v944 = vadd.f32 %v863, %v864
  %945 = vadd.xlane.f32.xlu0 %v944
  %v946 = vpop.xlane.xlu0 %945
  %v947 = vadd.f32 %v865, %v866
  %948 = vadd.xlane.f32.xlu0 %v947
  %v949 = vpop.xlane.xlu0 %948
  %v950 = vadd.f32 %v867, %v868
  %951 = vadd.xlane.f32.xlu0 %v950
  %v952 = vpop.xlane.xlu0 %951
  %v953 = vadd.f32 %v869, %v870
  %954 = vadd.xlane.f32.xlu0 %v953
  %v955 = vpop.xlane.xlu0 %954
  %v956 = vadd.f32 %v871, %v872
  %957 = vadd.xlane.f32.xlu0 %v956
  %v958 = vpop.xlane.xlu0 %957
  %v959 = vadd.f32 %v873, %v874
  %960 = vadd.xlane.f32.xlu0 %v959
  %v961 = vpop.xlane.xlu0 %960
  %v962 = vadd.f32 %v875, %v876
  %963 = vadd.xlane.f32.xlu0 %v962
  %v964 = vpop.xlane.xlu0 %963
  %v965 = vadd.f32 %v877, %v878
  %966 = vadd.xlane.f32.xlu0 %v965
  %v967 = vpop.xlane.xlu0 %966
  %v968 = vadd.f32 %v879, %v880
  %969 = vadd.xlane.f32.xlu0 %v968
  %v970 = vpop.xlane.xlu0 %969
  %v971 = vadd.f32 %v881, %v882
  %972 = vadd.xlane.f32.xlu0 %v971
  %v973 = vpop.xlane.xlu0 %972
  %v974 = vadd.f32 %v883, %v884
  %975 = vadd.xlane.f32.xlu0 %v974
  %v976 = vpop.xlane.xlu0 %975
  %v977 = vadd.f32 %v885, %v886
  %978 = vadd.xlane.f32.xlu0 %v977
  %v979 = vpop.xlane.xlu0 %978
  %v980 = vadd.f32 %v887, %v888
  %981 = vadd.xlane.f32.xlu0 %v980
  %v982 = vpop.xlane.xlu0 %981
  %v983 = vadd.f32 %v889, %v890
  %984 = vadd.xlane.f32.xlu0 %v983
  %v985 = vpop.xlane.xlu0 %984
  %v986 = vadd.f32 %v891, %v892
  %987 = vadd.xlane.f32.xlu0 %v986
  %v988 = vpop.xlane.xlu0 %987
  %v989 = vadd.f32 %v797, %v895
  %v990 = vadd.f32 %v798, %v898
  %v991 = vadd.f32 %v799, %v901
  %v992 = vadd.f32 %v800, %v904
  %v993 = vadd.f32 %v801, %v907
  %v994 = vadd.f32 %v802, %v910
  %v995 = vadd.f32 %v803, %v913
  %v996 = vadd.f32 %v804, %v916
  %v997 = vadd.f32 %v805, %v919
  %v998 = vadd.f32 %v806, %v922
  %v999 = vadd.f32 %v807, %v925
  %v1000 = vadd.f32 %v808, %v928
  %v1001 = vadd.f32 %v809, %v931
  %v1002 = vadd.f32 %v810, %v934
  %v1003 = vadd.f32 %v811, %v937
  %v1004 = vadd.f32 %v812, %v940
  %v1005 = vadd.f32 %v813, %v943
  %v1006 = vadd.f32 %v814, %v946
  %v1007 = vadd.f32 %v815, %v949
  %v1008 = vadd.f32 %v816, %v952
  %v1009 = vadd.f32 %v817, %v955
  %v1010 = vadd.f32 %v818, %v958
  %v1011 = vadd.f32 %v819, %v961
  %v1012 = vadd.f32 %v820, %v964
  %v1013 = vadd.f32 %v821, %v967
  %v1014 = vadd.f32 %v822, %v970
  %v1015 = vadd.f32 %v823, %v973
  %v1016 = vadd.f32 %v824, %v976
  %v1017 = vadd.f32 %v825, %v979
  %v1018 = vadd.f32 %v826, %v982
  %v1019 = vadd.f32 %v827, %v985
  %v1020 = vadd.f32 %v828, %v988
  %vm1021 = vcmask 7168
  %1022 = vst.msk [vmem:[#allocation3] sm:$0xff] %vm1021, %v989
  %1023 = vst.msk [vmem:[#allocation3 + $0x8] sm:$0xff] %vm1021, %v990
  %1024 = vst.msk [vmem:[#allocation3 + $0x10] sm:$0xff] %vm1021, %v991
  %1025 = vst.msk [vmem:[#allocation3 + $0x18] sm:$0xff] %vm1021, %v992
  %1026 = vst.msk [vmem:[#allocation3 + $0x20] sm:$0xff] %vm1021, %v993
  %1027 = vst.msk [vmem:[#allocation3 + $0x28] sm:$0xff] %vm1021, %v994
  %1028 = vst.msk [vmem:[#allocation3 + $0x30] sm:$0xff] %vm1021, %v995
  %1029 = vst.msk [vmem:[#allocation3 + $0x38] sm:$0xff] %vm1021, %v996
  %1030 = vst.msk [vmem:[#allocation3 + $0x40] sm:$0xff] %vm1021, %v997
  %1031 = vst.msk [vmem:[#allocation3 + $0x48] sm:$0xff] %vm1021, %v998
  %1032 = vst.msk [vmem:[#allocation3 + $0x50] sm:$0xff] %vm1021, %v999
  %1033 = vst.msk [vmem:[#allocation3 + $0x58] sm:$0xff] %vm1021, %v1000
  %1034 = vst.msk [vmem:[#allocation3 + $0x60] sm:$0xff] %vm1021, %v1001
  %1035 = vst.msk [vmem:[#allocation3 + $0x68] sm:$0xff] %vm1021, %v1002
  %1036 = vst.msk [vmem:[#allocation3 + $0x70] sm:$0xff] %vm1021, %v1003
  %1037 = vst.msk [vmem:[#allocation3 + $0x78] sm:$0xff] %vm1021, %v1004
  %1038 = vst.msk [vmem:[#allocation3 + $0x80] sm:$0xff] %vm1021, %v1005
  %1039 = vst.msk [vmem:[#allocation3 + $0x88] sm:$0xff] %vm1021, %v1006
  %1040 = vst.msk [vmem:[#allocation3 + $0x90] sm:$0xff] %vm1021, %v1007
  %1041 = vst.msk [vmem:[#allocation3 + $0x98] sm:$0xff] %vm1021, %v1008
  %1042 = vst.msk [vmem:[#allocation3 + $0xa0] sm:$0xff] %vm1021, %v1009
  %1043 = vst.msk [vmem:[#allocation3 + $0xa8] sm:$0xff] %vm1021, %v1010
  %1044 = vst.msk [vmem:[#allocation3 + $0xb0] sm:$0xff] %vm1021, %v1011
  %1045 = vst.msk [vmem:[#allocation3 + $0xb8] sm:$0xff] %vm1021, %v1012
  %1046 = vst.msk [vmem:[#allocation3 + $0xc0] sm:$0xff] %vm1021, %v1013
  %1047 = vst.msk [vmem:[#allocation3 + $0xc8] sm:$0xff] %vm1021, %v1014
  %1048 = vst.msk [vmem:[#allocation3 + $0xd0] sm:$0xff] %vm1021, %v1015
  %1049 = vst.msk [vmem:[#allocation3 + $0xd8] sm:$0xff] %vm1021, %v1016
  %1050 = vst.msk [vmem:[#allocation3 + $0xe0] sm:$0xff] %vm1021, %v1017
  %1051 = vst.msk [vmem:[#allocation3 + $0xe8] sm:$0xff] %vm1021, %v1018
  %1052 = vst.msk [vmem:[#allocation3 + $0xf0] sm:$0xff] %vm1021, %v1019
  %1053 = vst.msk [vmem:[#allocation3 + $0xf8] sm:$0xff] %vm1021, %v1020
  // Predicated region
  $region26: #{omics1_encoder_forward.9} parent=0 // pred_check
    %p1054 = pneg %p23
  $region27: #{omics1_encoder_forward.9} parent=0 // pred_check_branch
    %1056 = sbr.rel (%p1054) target = $region29
  $region28: #{omics1_encoder_forward.9} parent=0 // pred_region
    %v1057 = vld [vmem:[#allocation3] sm:$0xff]
    %v1058 = vld [vmem:[#allocation3 + $0x8] sm:$0xff]
    %v1059 = vld [vmem:[#allocation3 + $0x10] sm:$0xff]
    %v1060 = vld [vmem:[#allocation3 + $0x18] sm:$0xff]
    %v1061 = vld [vmem:[#allocation3 + $0x20] sm:$0xff]
    %v1062 = vld [vmem:[#allocation3 + $0x28] sm:$0xff]
    %v1063 = vld [vmem:[#allocation3 + $0x30] sm:$0xff]
    %v1064 = vld [vmem:[#allocation3 + $0x38] sm:$0xff]
    %v1065 = vld [vmem:[#allocation3 + $0x40] sm:$0xff]
    %v1066 = vld [vmem:[#allocation3 + $0x48] sm:$0xff]
    %v1067 = vld [vmem:[#allocation3 + $0x50] sm:$0xff]
    %v1068 = vld [vmem:[#allocation3 + $0x58] sm:$0xff]
    %v1069 = vld [vmem:[#allocation3 + $0x60] sm:$0xff]
    %v1070 = vld [vmem:[#allocation3 + $0x68] sm:$0xff]
    %v1071 = vld [vmem:[#allocation3 + $0x70] sm:$0xff]
    %v1072 = vld [vmem:[#allocation3 + $0x78] sm:$0xff]
    %v1073 = vld [vmem:[#allocation3 + $0x80] sm:$0xff]
    %v1074 = vld [vmem:[#allocation3 + $0x88] sm:$0xff]
    %v1075 = vld [vmem:[#allocation3 + $0x90] sm:$0xff]
    %v1076 = vld [vmem:[#allocation3 + $0x98] sm:$0xff]
    %v1077 = vld [vmem:[#allocation3 + $0xa0] sm:$0xff]
    %v1078 = vld [vmem:[#allocation3 + $0xa8] sm:$0xff]
    %v1079 = vld [vmem:[#allocation3 + $0xb0] sm:$0xff]
    %v1080 = vld [vmem:[#allocation3 + $0xb8] sm:$0xff]
    %v1081 = vld [vmem:[#allocation3 + $0xc0] sm:$0xff]
    %v1082 = vld [vmem:[#allocation3 + $0xc8] sm:$0xff]
    %v1083 = vld [vmem:[#allocation3 + $0xd0] sm:$0xff]
    %v1084 = vld [vmem:[#allocation3 + $0xd8] sm:$0xff]
    %v1085 = vld [vmem:[#allocation3 + $0xe0] sm:$0xff]
    %v1086 = vld [vmem:[#allocation3 + $0xe8] sm:$0xff]
    %v1087 = vld [vmem:[#allocation3 + $0xf0] sm:$0xff]
    %v1088 = vld [vmem:[#allocation3 + $0xf8] sm:$0xff]
    %v1089 = vmax.f32 %v1057, 1e-30
    %v1090 = vmax.f32 %v1058, 1e-30
    %v1091 = vmax.f32 %v1059, 1e-30
    %v1092 = vmax.f32 %v1060, 1e-30
    %v1093 = vmax.f32 %v1061, 1e-30
    %v1094 = vmax.f32 %v1062, 1e-30
    %v1095 = vmax.f32 %v1063, 1e-30
    %v1096 = vmax.f32 %v1064, 1e-30
    %v1097 = vmax.f32 %v1065, 1e-30
    %v1098 = vmax.f32 %v1066, 1e-30
    %v1099 = vmax.f32 %v1067, 1e-30
    %v1100 = vmax.f32 %v1068, 1e-30
    %v1101 = vmax.f32 %v1069, 1e-30
    %v1102 = vmax.f32 %v1070, 1e-30
    %v1103 = vmax.f32 %v1071, 1e-30
    %v1104 = vmax.f32 %v1072, 1e-30
    %v1105 = vmax.f32 %v1073, 1e-30
    %v1106 = vmax.f32 %v1074, 1e-30
    %v1107 = vmax.f32 %v1075, 1e-30
    %v1108 = vmax.f32 %v1076, 1e-30
    %v1109 = vmax.f32 %v1077, 1e-30
    %v1110 = vmax.f32 %v1078, 1e-30
    %v1111 = vmax.f32 %v1079, 1e-30
    %v1112 = vmax.f32 %v1080, 1e-30
    %v1113 = vmax.f32 %v1081, 1e-30
    %v1114 = vmax.f32 %v1082, 1e-30
    %v1115 = vmax.f32 %v1083, 1e-30
    %v1116 = vmax.f32 %v1084, 1e-30
    %v1117 = vmax.f32 %v1085, 1e-30
    %v1118 = vmax.f32 %v1086, 1e-30
    %v1119 = vmax.f32 %v1087, 1e-30
    %v1120 = vmax.f32 %v1088, 1e-30
    %v1121 = vrcp.pop %v1089
    %v1122 = vrcp.pop %v1090
    %v1123 = vrcp.pop %v1091
    %v1124 = vrcp.pop %v1092
    %v1125 = vrcp.pop %v1093
    %v1126 = vrcp.pop %v1094
    %v1127 = vrcp.pop %v1095
    %v1128 = vrcp.pop %v1096
    %v1129 = vrcp.pop %v1097
    %v1130 = vrcp.pop %v1098
    %v1131 = vrcp.pop %v1099
    %v1132 = vrcp.pop %v1100
    %v1133 = vrcp.pop %v1101
    %v1134 = vrcp.pop %v1102
    %v1135 = vrcp.pop %v1103
    %v1136 = vrcp.pop %v1104
    %v1137 = vrcp.pop %v1105
    %v1138 = vrcp.pop %v1106
    %v1139 = vrcp.pop %v1107
    %v1140 = vrcp.pop %v1108
    %v1141 = vrcp.pop %v1109
    %v1142 = vrcp.pop %v1110
    %v1143 = vrcp.pop %v1111
    %v1144 = vrcp.pop %v1112
    %v1145 = vrcp.pop %v1113
    %v1146 = vrcp.pop %v1114
    %v1147 = vrcp.pop %v1115
    %v1148 = vrcp.pop %v1116
    %v1149 = vrcp.pop %v1117
    %v1150 = vrcp.pop %v1118
    %v1151 = vrcp.pop %v1119
    %v1152 = vrcp.pop %v1120
    %v1153 = vld [vmem:[#allocation2] sm:$0xff]
    %v1154 = vld [vmem:[#allocation2 + $0x8] sm:$0xff]
    %v1155 = vld [vmem:[#allocation2 + $0x10] sm:$0xff]
    %v1156 = vld [vmem:[#allocation2 + $0x18] sm:$0xff]
    %v1157 = vld [vmem:[#allocation2 + $0x20] sm:$0xff]
    %v1158 = vld [vmem:[#allocation2 + $0x28] sm:$0xff]
    %v1159 = vld [vmem:[#allocation2 + $0x30] sm:$0xff]
    %v1160 = vld [vmem:[#allocation2 + $0x38] sm:$0xff]
    %v1161 = vld [vmem:[#allocation2 + $0x40] sm:$0xff]
    %v1162 = vld [vmem:[#allocation2 + $0x48] sm:$0xff]
    %v1163 = vld [vmem:[#allocation2 + $0x50] sm:$0xff]
    %v1164 = vld [vmem:[#allocation2 + $0x58] sm:$0xff]
    %v1165 = vld [vmem:[#allocation2 + $0x60] sm:$0xff]
    %v1166 = vld [vmem:[#allocation2 + $0x68] sm:$0xff]
    %v1167 = vld [vmem:[#allocation2 + $0x70] sm:$0xff]
    %v1168 = vld [vmem:[#allocation2 + $0x78] sm:$0xff]
    %v1169 = vld [vmem:[#allocation2 + $0x80] sm:$0xff]
    %v1170 = vld [vmem:[#allocation2 + $0x88] sm:$0xff]
    %v1171 = vld [vmem:[#allocation2 + $0x90] sm:$0xff]
    %v1172 = vld [vmem:[#allocation2 + $0x98] sm:$0xff]
    %v1173 = vld [vmem:[#allocation2 + $0xa0] sm:$0xff]
    %v1174 = vld [vmem:[#allocation2 + $0xa8] sm:$0xff]
    %v1175 = vld [vmem:[#allocation2 + $0xb0] sm:$0xff]
    %v1176 = vld [vmem:[#allocation2 + $0xb8] sm:$0xff]
    %v1177 = vld [vmem:[#allocation2 + $0xc0] sm:$0xff]
    %v1178 = vld [vmem:[#allocation2 + $0xc8] sm:$0xff]
    %v1179 = vld [vmem:[#allocation2 + $0xd0] sm:$0xff]
    %v1180 = vld [vmem:[#allocation2 + $0xd8] sm:$0xff]
    %v1181 = vld [vmem:[#allocation2 + $0xe0] sm:$0xff]
    %v1182 = vld [vmem:[#allocation2 + $0xe8] sm:$0xff]
    %v1183 = vld [vmem:[#allocation2 + $0xf0] sm:$0xff]
    %v1184 = vld [vmem:[#allocation2 + $0xf8] sm:$0xff]
    %v1185 = vld [vmem:[#allocation2 + $0x100] sm:$0xff]
    %v1186 = vld [vmem:[#allocation2 + $0x108] sm:$0xff]
    %v1187 = vld [vmem:[#allocation2 + $0x110] sm:$0xff]
    %v1188 = vld [vmem:[#allocation2 + $0x118] sm:$0xff]
    %v1189 = vld [vmem:[#allocation2 + $0x120] sm:$0xff]
    %v1190 = vld [vmem:[#allocation2 + $0x128] sm:$0xff]
    %v1191 = vld [vmem:[#allocation2 + $0x130] sm:$0xff]
    %v1192 = vld [vmem:[#allocation2 + $0x138] sm:$0xff]
    %v1193 = vld [vmem:[#allocation2 + $0x140] sm:$0xff]
    %v1194 = vld [vmem:[#allocation2 + $0x148] sm:$0xff]
    %v1195 = vld [vmem:[#allocation2 + $0x150] sm:$0xff]
    %v1196 = vld [vmem:[#allocation2 + $0x158] sm:$0xff]
    %v1197 = vld [vmem:[#allocation2 + $0x160] sm:$0xff]
    %v1198 = vld [vmem:[#allocation2 + $0x168] sm:$0xff]
    %v1199 = vld [vmem:[#allocation2 + $0x170] sm:$0xff]
    %v1200 = vld [vmem:[#allocation2 + $0x178] sm:$0xff]
    %v1201 = vld [vmem:[#allocation2 + $0x180] sm:$0xff]
    %v1202 = vld [vmem:[#allocation2 + $0x188] sm:$0xff]
    %v1203 = vld [vmem:[#allocation2 + $0x190] sm:$0xff]
    %v1204 = vld [vmem:[#allocation2 + $0x198] sm:$0xff]
    %v1205 = vld [vmem:[#allocation2 + $0x1a0] sm:$0xff]
    %v1206 = vld [vmem:[#allocation2 + $0x1a8] sm:$0xff]
    %v1207 = vld [vmem:[#allocation2 + $0x1b0] sm:$0xff]
    %v1208 = vld [vmem:[#allocation2 + $0x1b8] sm:$0xff]
    %v1209 = vld [vmem:[#allocation2 + $0x1c0] sm:$0xff]
    %v1210 = vld [vmem:[#allocation2 + $0x1c8] sm:$0xff]
    %v1211 = vld [vmem:[#allocation2 + $0x1d0] sm:$0xff]
    %v1212 = vld [vmem:[#allocation2 + $0x1d8] sm:$0xff]
    %v1213 = vld [vmem:[#allocation2 + $0x1e0] sm:$0xff]
    %v1214 = vld [vmem:[#allocation2 + $0x1e8] sm:$0xff]
    %v1215 = vld [vmem:[#allocation2 + $0x1f0] sm:$0xff]
    %v1216 = vld [vmem:[#allocation2 + $0x1f8] sm:$0xff]
    %1218 = vset.pattern.permute.xlu0 0
    %1219 = vperm.xlu0 %1218, %v1121
    %v1220 = vpop.permute.xlu0 %1219
    %1223 = vset.pattern.permute.xlu0 0
    %1224 = vperm.xlu0 %1223, %v1122
    %v1225 = vpop.permute.xlu0 %1224
    %1228 = vset.pattern.permute.xlu0 0
    %1229 = vperm.xlu0 %1228, %v1123
    %v1230 = vpop.permute.xlu0 %1229
    %1233 = vset.pattern.permute.xlu0 0
    %1234 = vperm.xlu0 %1233, %v1124
    %v1235 = vpop.permute.xlu0 %1234
    %1238 = vset.pattern.permute.xlu0 0
    %1239 = vperm.xlu0 %1238, %v1125
    %v1240 = vpop.permute.xlu0 %1239
    %1243 = vset.pattern.permute.xlu0 0
    %1244 = vperm.xlu0 %1243, %v1126
    %v1245 = vpop.permute.xlu0 %1244
    %1248 = vset.pattern.permute.xlu0 0
    %1249 = vperm.xlu0 %1248, %v1127
    %v1250 = vpop.permute.xlu0 %1249
    %1253 = vset.pattern.permute.xlu0 0
    %1254 = vperm.xlu0 %1253, %v1128
    %v1255 = vpop.permute.xlu0 %1254
    %1258 = vset.pattern.permute.xlu0 0
    %1259 = vperm.xlu0 %1258, %v1129
    %v1260 = vpop.permute.xlu0 %1259
    %1263 = vset.pattern.permute.xlu0 0
    %1264 = vperm.xlu0 %1263, %v1130
    %v1265 = vpop.permute.xlu0 %1264
    %1268 = vset.pattern.permute.xlu0 0
    %1269 = vperm.xlu0 %1268, %v1131
    %v1270 = vpop.permute.xlu0 %1269
    %1273 = vset.pattern.permute.xlu0 0
    %1274 = vperm.xlu0 %1273, %v1132
    %v1275 = vpop.permute.xlu0 %1274
    %1278 = vset.pattern.permute.xlu0 0
    %1279 = vperm.xlu0 %1278, %v1133
    %v1280 = vpop.permute.xlu0 %1279
    %1283 = vset.pattern.permute.xlu0 0
    %1284 = vperm.xlu0 %1283, %v1134
    %v1285 = vpop.permute.xlu0 %1284
    %1288 = vset.pattern.permute.xlu0 0
    %1289 = vperm.xlu0 %1288, %v1135
    %v1290 = vpop.permute.xlu0 %1289
    %1293 = vset.pattern.permute.xlu0 0
    %1294 = vperm.xlu0 %1293, %v1136
    %v1295 = vpop.permute.xlu0 %1294
    %1298 = vset.pattern.permute.xlu0 0
    %1299 = vperm.xlu0 %1298, %v1137
    %v1300 = vpop.permute.xlu0 %1299
    %1303 = vset.pattern.permute.xlu0 0
    %1304 = vperm.xlu0 %1303, %v1138
    %v1305 = vpop.permute.xlu0 %1304
    %1308 = vset.pattern.permute.xlu0 0
    %1309 = vperm.xlu0 %1308, %v1139
    %v1310 = vpop.permute.xlu0 %1309
    %1313 = vset.pattern.permute.xlu0 0
    %1314 = vperm.xlu0 %1313, %v1140
    %v1315 = vpop.permute.xlu0 %1314
    %1318 = vset.pattern.permute.xlu0 0
    %1319 = vperm.xlu0 %1318, %v1141
    %v1320 = vpop.permute.xlu0 %1319
    %1323 = vset.pattern.permute.xlu0 0
    %1324 = vperm.xlu0 %1323, %v1142
    %v1325 = vpop.permute.xlu0 %1324
    %1328 = vset.pattern.permute.xlu0 0
    %1329 = vperm.xlu0 %1328, %v1143
    %v1330 = vpop.permute.xlu0 %1329
    %1333 = vset.pattern.permute.xlu0 0
    %1334 = vperm.xlu0 %1333, %v1144
    %v1335 = vpop.permute.xlu0 %1334
    %1338 = vset.pattern.permute.xlu0 0
    %1339 = vperm.xlu0 %1338, %v1145
    %v1340 = vpop.permute.xlu0 %1339
    %1343 = vset.pattern.permute.xlu0 0
    %1344 = vperm.xlu0 %1343, %v1146
    %v1345 = vpop.permute.xlu0 %1344
    %1348 = vset.pattern.permute.xlu0 0
    %1349 = vperm.xlu0 %1348, %v1147
    %v1350 = vpop.permute.xlu0 %1349
    %1353 = vset.pattern.permute.xlu0 0
    %1354 = vperm.xlu0 %1353, %v1148
    %v1355 = vpop.permute.xlu0 %1354
    %1358 = vset.pattern.permute.xlu0 0
    %1359 = vperm.xlu0 %1358, %v1149
    %v1360 = vpop.permute.xlu0 %1359
    %1363 = vset.pattern.permute.xlu0 0
    %1364 = vperm.xlu0 %1363, %v1150
    %v1365 = vpop.permute.xlu0 %1364
    %1368 = vset.pattern.permute.xlu0 0
    %1369 = vperm.xlu0 %1368, %v1151
    %v1370 = vpop.permute.xlu0 %1369
    %1373 = vset.pattern.permute.xlu0 0
    %1374 = vperm.xlu0 %1373, %v1152
    %v1375 = vpop.permute.xlu0 %1374
    %v1377 = vmul.f32 %v1153, %v1220
    %v1378 = vmul.f32 %v1154, %v1220
    %v1379 = vmul.f32 %v1155, %v1225
    %v1380 = vmul.f32 %v1156, %v1225
    %v1381 = vmul.f32 %v1157, %v1230
    %v1382 = vmul.f32 %v1158, %v1230
    %v1383 = vmul.f32 %v1159, %v1235
    %v1384 = vmul.f32 %v1160, %v1235
    %v1385 = vmul.f32 %v1161, %v1240
    %v1386 = vmul.f32 %v1162, %v1240
    %v1387 = vmul.f32 %v1163, %v1245
    %v1388 = vmul.f32 %v1164, %v1245
    %v1389 = vmul.f32 %v1165, %v1250
    %v1390 = vmul.f32 %v1166, %v1250
    %v1391 = vmul.f32 %v1167, %v1255
    %v1392 = vmul.f32 %v1168, %v1255
    %v1393 = vmul.f32 %v1169, %v1260
    %v1394 = vmul.f32 %v1170, %v1260
    %v1395 = vmul.f32 %v1171, %v1265
    %v1396 = vmul.f32 %v1172, %v1265
    %v1397 = vmul.f32 %v1173, %v1270
    %v1398 = vmul.f32 %v1174, %v1270
    %v1399 = vmul.f32 %v1175, %v1275
    %v1400 = vmul.f32 %v1176, %v1275
    %v1401 = vmul.f32 %v1177, %v1280
    %v1402 = vmul.f32 %v1178, %v1280
    %v1403 = vmul.f32 %v1179, %v1285
    %v1404 = vmul.f32 %v1180, %v1285
    %v1405 = vmul.f32 %v1181, %v1290
    %v1406 = vmul.f32 %v1182, %v1290
    %v1407 = vmul.f32 %v1183, %v1295
    %v1408 = vmul.f32 %v1184, %v1295
    %v1409 = vmul.f32 %v1185, %v1300
    %v1410 = vmul.f32 %v1186, %v1300
    %v1411 = vmul.f32 %v1187, %v1305
    %v1412 = vmul.f32 %v1188, %v1305
    %v1413 = vmul.f32 %v1189, %v1310
    %v1414 = vmul.f32 %v1190, %v1310
    %v1415 = vmul.f32 %v1191, %v1315
    %v1416 = vmul.f32 %v1192, %v1315
    %v1417 = vmul.f32 %v1193, %v1320
    %v1418 = vmul.f32 %v1194, %v1320
    %v1419 = vmul.f32 %v1195, %v1325
    %v1420 = vmul.f32 %v1196, %v1325
    %v1421 = vmul.f32 %v1197, %v1330
    %v1422 = vmul.f32 %v1198, %v1330
    %v1423 = vmul.f32 %v1199, %v1335
    %v1424 = vmul.f32 %v1200, %v1335
    %v1425 = vmul.f32 %v1201, %v1340
    %v1426 = vmul.f32 %v1202, %v1340
    %v1427 = vmul.f32 %v1203, %v1345
    %v1428 = vmul.f32 %v1204, %v1345
    %v1429 = vmul.f32 %v1205, %v1350
    %v1430 = vmul.f32 %v1206, %v1350
    %v1431 = vmul.f32 %v1207, %v1355
    %v1432 = vmul.f32 %v1208, %v1355
    %v1433 = vmul.f32 %v1209, %v1360
    %v1434 = vmul.f32 %v1210, %v1360
    %v1435 = vmul.f32 %v1211, %v1365
    %v1436 = vmul.f32 %v1212, %v1365
    %v1437 = vmul.f32 %v1213, %v1370
    %v1438 = vmul.f32 %v1214, %v1370
    %v1439 = vmul.f32 %v1215, %v1375
    %v1440 = vmul.f32 %v1216, %v1375
    %v1441 = vmul.f32 %v1377, %v1377
    %v1442 = vmul.f32 %v1379, %v1379
    %v1443 = vmul.f32 %v1381, %v1381
    %v1444 = vmul.f32 %v1383, %v1383
    %v1445 = vmul.f32 %v1385, %v1385
    %v1446 = vmul.f32 %v1387, %v1387
    %v1447 = vmul.f32 %v1389, %v1389
    %v1448 = vmul.f32 %v1391, %v1391
    %v1449 = vmul.f32 %v1393, %v1393
    %v1450 = vmul.f32 %v1395, %v1395
    %v1451 = vmul.f32 %v1397, %v1397
    %v1452 = vmul.f32 %v1399, %v1399
    %v1453 = vmul.f32 %v1401, %v1401
    %v1454 = vmul.f32 %v1403, %v1403
    %v1455 = vmul.f32 %v1405, %v1405
    %v1456 = vmul.f32 %v1407, %v1407
    %v1457 = vmul.f32 %v1409, %v1409
    %v1458 = vmul.f32 %v1411, %v1411
    %v1459 = vmul.f32 %v1413, %v1413
    %v1460 = vmul.f32 %v1415, %v1415
    %v1461 = vmul.f32 %v1417, %v1417
    %v1462 = vmul.f32 %v1419, %v1419
    %v1463 = vmul.f32 %v1421, %v1421
    %v1464 = vmul.f32 %v1423, %v1423
    %v1465 = vmul.f32 %v1425, %v1425
    %v1466 = vmul.f32 %v1427, %v1427
    %v1467 = vmul.f32 %v1429, %v1429
    %v1468 = vmul.f32 %v1431, %v1431
    %v1469 = vmul.f32 %v1433, %v1433
    %v1470 = vmul.f32 %v1435, %v1435
    %v1471 = vmul.f32 %v1437, %v1437
    %v1472 = vmul.f32 %v1439, %v1439
    %1473 = vadd.xlane.f32.xlu0 %v1441
    %v1474 = vpop.xlane.xlu0 %1473
    %1475 = vadd.xlane.f32.xlu0 %v1442
    %v1476 = vpop.xlane.xlu0 %1475
    %1477 = vadd.xlane.f32.xlu0 %v1443
    %v1478 = vpop.xlane.xlu0 %1477
    %1479 = vadd.xlane.f32.xlu0 %v1444
    %v1480 = vpop.xlane.xlu0 %1479
    %1481 = vadd.xlane.f32.xlu0 %v1445
    %v1482 = vpop.xlane.xlu0 %1481
    %1483 = vadd.xlane.f32.xlu0 %v1446
    %v1484 = vpop.xlane.xlu0 %1483
    %1485 = vadd.xlane.f32.xlu0 %v1447
    %v1486 = vpop.xlane.xlu0 %1485
    %1487 = vadd.xlane.f32.xlu0 %v1448
    %v1488 = vpop.xlane.xlu0 %1487
    %1489 = vadd.xlane.f32.xlu0 %v1449
    %v1490 = vpop.xlane.xlu0 %1489
    %1491 = vadd.xlane.f32.xlu0 %v1450
    %v1492 = vpop.xlane.xlu0 %1491
    %1493 = vadd.xlane.f32.xlu0 %v1451
    %v1494 = vpop.xlane.xlu0 %1493
    %1495 = vadd.xlane.f32.xlu0 %v1452
    %v1496 = vpop.xlane.xlu0 %1495
    %1497 = vadd.xlane.f32.xlu0 %v1453
    %v1498 = vpop.xlane.xlu0 %1497
    %1499 = vadd.xlane.f32.xlu0 %v1454
    %v1500 = vpop.xlane.xlu0 %1499
    %1501 = vadd.xlane.f32.xlu0 %v1455
    %v1502 = vpop.xlane.xlu0 %1501
    %1503 = vadd.xlane.f32.xlu0 %v1456
    %v1504 = vpop.xlane.xlu0 %1503
    %1505 = vadd.xlane.f32.xlu0 %v1457
    %v1506 = vpop.xlane.xlu0 %1505
    %1507 = vadd.xlane.f32.xlu0 %v1458
    %v1508 = vpop.xlane.xlu0 %1507
    %1509 = vadd.xlane.f32.xlu0 %v1459
    %v1510 = vpop.xlane.xlu0 %1509
    %1511 = vadd.xlane.f32.xlu0 %v1460
    %v1512 = vpop.xlane.xlu0 %1511
    %1513 = vadd.xlane.f32.xlu0 %v1461
    %v1514 = vpop.xlane.xlu0 %1513
    %1515 = vadd.xlane.f32.xlu0 %v1462
    %v1516 = vpop.xlane.xlu0 %1515
    %1517 = vadd.xlane.f32.xlu0 %v1463
    %v1518 = vpop.xlane.xlu0 %1517
    %1519 = vadd.xlane.f32.xlu0 %v1464
    %v1520 = vpop.xlane.xlu0 %1519
    %1521 = vadd.xlane.f32.xlu0 %v1465
    %v1522 = vpop.xlane.xlu0 %1521
    %1523 = vadd.xlane.f32.xlu0 %v1466
    %v1524 = vpop.xlane.xlu0 %1523
    %1525 = vadd.xlane.f32.xlu0 %v1467
    %v1526 = vpop.xlane.xlu0 %1525
    %1527 = vadd.xlane.f32.xlu0 %v1468
    %v1528 = vpop.xlane.xlu0 %1527
    %1529 = vadd.xlane.f32.xlu0 %v1469
    %v1530 = vpop.xlane.xlu0 %1529
    %1531 = vadd.xlane.f32.xlu0 %v1470
    %v1532 = vpop.xlane.xlu0 %1531
    %1533 = vadd.xlane.f32.xlu0 %v1471
    %v1534 = vpop.xlane.xlu0 %1533
    %1535 = vadd.xlane.f32.xlu0 %v1472
    %v1536 = vpop.xlane.xlu0 %1535
    %v1537 = vrsqrt.pop %v1474
    %v1538 = vrsqrt.pop %v1476
    %v1539 = vrsqrt.pop %v1478
    %v1540 = vrsqrt.pop %v1480
    %v1541 = vrsqrt.pop %v1482
    %v1542 = vrsqrt.pop %v1484
    %v1543 = vrsqrt.pop %v1486
    %v1544 = vrsqrt.pop %v1488
    %v1545 = vrsqrt.pop %v1490
    %v1546 = vrsqrt.pop %v1492
    %v1547 = vrsqrt.pop %v1494
    %v1548 = vrsqrt.pop %v1496
    %v1549 = vrsqrt.pop %v1498
    %v1550 = vrsqrt.pop %v1500
    %v1551 = vrsqrt.pop %v1502
    %v1552 = vrsqrt.pop %v1504
    %v1553 = vrsqrt.pop %v1506
    %v1554 = vrsqrt.pop %v1508
    %v1555 = vrsqrt.pop %v1510
    %v1556 = vrsqrt.pop %v1512
    %v1557 = vrsqrt.pop %v1514
    %v1558 = vrsqrt.pop %v1516
    %v1559 = vrsqrt.pop %v1518
    %v1560 = vrsqrt.pop %v1520
    %v1561 = vrsqrt.pop %v1522
    %v1562 = vrsqrt.pop %v1524
    %v1563 = vrsqrt.pop %v1526
    %v1564 = vrsqrt.pop %v1528
    %v1565 = vrsqrt.pop %v1530
    %v1566 = vrsqrt.pop %v1532
    %v1567 = vrsqrt.pop %v1534
    %v1568 = vrsqrt.pop %v1536
    %v1569 = vmin.f32 %v1537, 1e+12
    %v1570 = vmin.f32 %v1538, 1e+12
    %v1571 = vmin.f32 %v1539, 1e+12
    %v1572 = vmin.f32 %v1540, 1e+12
    %v1573 = vmin.f32 %v1541, 1e+12
    %v1574 = vmin.f32 %v1542, 1e+12
    %v1575 = vmin.f32 %v1543, 1e+12
    %v1576 = vmin.f32 %v1544, 1e+12
    %v1577 = vmin.f32 %v1545, 1e+12
    %v1578 = vmin.f32 %v1546, 1e+12
    %v1579 = vmin.f32 %v1547, 1e+12
    %v1580 = vmin.f32 %v1548, 1e+12
    %v1581 = vmin.f32 %v1549, 1e+12
    %v1582 = vmin.f32 %v1550, 1e+12
    %v1583 = vmin.f32 %v1551, 1e+12
    %v1584 = vmin.f32 %v1552, 1e+12
    %v1585 = vmin.f32 %v1553, 1e+12
    %v1586 = vmin.f32 %v1554, 1e+12
    %v1587 = vmin.f32 %v1555, 1e+12
    %v1588 = vmin.f32 %v1556, 1e+12
    %v1589 = vmin.f32 %v1557, 1e+12
    %v1590 = vmin.f32 %v1558, 1e+12
    %v1591 = vmin.f32 %v1559, 1e+12
    %v1592 = vmin.f32 %v1560, 1e+12
    %v1593 = vmin.f32 %v1561, 1e+12
    %v1594 = vmin.f32 %v1562, 1e+12
    %v1595 = vmin.f32 %v1563, 1e+12
    %v1596 = vmin.f32 %v1564, 1e+12
    %v1597 = vmin.f32 %v1565, 1e+12
    %v1598 = vmin.f32 %v1566, 1e+12
    %v1599 = vmin.f32 %v1567, 1e+12
    %v1600 = vmin.f32 %v1568, 1e+12
    %v1601 = vmul.f32 %v1377, %v1569
    %v1602 = vmul.f32 %v1379, %v1570
    %v1603 = vmul.f32 %v1381, %v1571
    %v1604 = vmul.f32 %v1383, %v1572
    %v1605 = vmul.f32 %v1385, %v1573
    %v1606 = vmul.f32 %v1387, %v1574
    %v1607 = vmul.f32 %v1389, %v1575
    %v1608 = vmul.f32 %v1391, %v1576
    %v1609 = vmul.f32 %v1393, %v1577
    %v1610 = vmul.f32 %v1395, %v1578
    %v1611 = vmul.f32 %v1397, %v1579
    %v1612 = vmul.f32 %v1399, %v1580
    %v1613 = vmul.f32 %v1401, %v1581
    %v1614 = vmul.f32 %v1403, %v1582
    %v1615 = vmul.f32 %v1405, %v1583
    %v1616 = vmul.f32 %v1407, %v1584
    %v1617 = vmul.f32 %v1409, %v1585
    %v1618 = vmul.f32 %v1411, %v1586
    %v1619 = vmul.f32 %v1413, %v1587
    %v1620 = vmul.f32 %v1415, %v1588
    %v1621 = vmul.f32 %v1417, %v1589
    %v1622 = vmul.f32 %v1419, %v1590
    %v1623 = vmul.f32 %v1421, %v1591
    %v1624 = vmul.f32 %v1423, %v1592
    %v1625 = vmul.f32 %v1425, %v1593
    %v1626 = vmul.f32 %v1427, %v1594
    %v1627 = vmul.f32 %v1429, %v1595
    %v1628 = vmul.f32 %v1431, %v1596
    %v1629 = vmul.f32 %v1433, %v1597
    %v1630 = vmul.f32 %v1435, %v1598
    %v1631 = vmul.f32 %v1437, %v1599
    %v1632 = vmul.f32 %v1439, %v1600
    %v1633 = vxor.u32 %v1601, 2147483648
    %v1634 = vxor.u32 %v1602, 2147483648
    %v1635 = vxor.u32 %v1603, 2147483648
    %v1636 = vxor.u32 %v1604, 2147483648
    %v1637 = vxor.u32 %v1605, 2147483648
    %v1638 = vxor.u32 %v1606, 2147483648
    %v1639 = vxor.u32 %v1607, 2147483648
    %v1640 = vxor.u32 %v1608, 2147483648
    %v1641 = vxor.u32 %v1609, 2147483648
    %v1642 = vxor.u32 %v1610, 2147483648
    %v1643 = vxor.u32 %v1611, 2147483648
    %v1644 = vxor.u32 %v1612, 2147483648
    %v1645 = vxor.u32 %v1613, 2147483648
    %v1646 = vxor.u32 %v1614, 2147483648
    %v1647 = vxor.u32 %v1615, 2147483648
    %v1648 = vxor.u32 %v1616, 2147483648
    %v1649 = vxor.u32 %v1617, 2147483648
    %v1650 = vxor.u32 %v1618, 2147483648
    %v1651 = vxor.u32 %v1619, 2147483648
    %v1652 = vxor.u32 %v1620, 2147483648
    %v1653 = vxor.u32 %v1621, 2147483648
    %v1654 = vxor.u32 %v1622, 2147483648
    %v1655 = vxor.u32 %v1623, 2147483648
    %v1656 = vxor.u32 %v1624, 2147483648
    %v1657 = vxor.u32 %v1625, 2147483648
    %v1658 = vxor.u32 %v1626, 2147483648
    %v1659 = vxor.u32 %v1627, 2147483648
    %v1660 = vxor.u32 %v1628, 2147483648
    %v1661 = vxor.u32 %v1629, 2147483648
    %v1662 = vxor.u32 %v1630, 2147483648
    %v1663 = vxor.u32 %v1631, 2147483648
    %v1664 = vxor.u32 %v1632, 2147483648
    %v1665 = vmul.f32 %v1633, 1.442695
    %v1666 = vpow.pop %v1665
    %v1667 = vmul.f32 %v1634, 1.442695
    %v1668 = vpow.pop %v1667
    %v1669 = vmul.f32 %v1635, 1.442695
    %v1670 = vpow.pop %v1669
    %v1671 = vmul.f32 %v1636, 1.442695
    %v1672 = vpow.pop %v1671
    %v1673 = vmul.f32 %v1637, 1.442695
    %v1674 = vpow.pop %v1673
    %v1675 = vmul.f32 %v1638, 1.442695
    %v1676 = vpow.pop %v1675
    %v1677 = vmul.f32 %v1639, 1.442695
    %v1678 = vpow.pop %v1677
    %v1679 = vmul.f32 %v1640, 1.442695
    %v1680 = vpow.pop %v1679
    %v1681 = vmul.f32 %v1641, 1.442695
    %v1682 = vpow.pop %v1681
    %v1683 = vmul.f32 %v1642, 1.442695
    %v1684 = vpow.pop %v1683
    %v1685 = vmul.f32 %v1643, 1.442695
    %v1686 = vpow.pop %v1685
    %v1687 = vmul.f32 %v1644, 1.442695
    %v1688 = vpow.pop %v1687
    %v1689 = vmul.f32 %v1645, 1.442695
    %v1690 = vpow.pop %v1689
    %v1691 = vmul.f32 %v1646, 1.442695
    %v1692 = vpow.pop %v1691
    %v1693 = vmul.f32 %v1647, 1.442695
    %v1694 = vpow.pop %v1693
    %v1695 = vmul.f32 %v1648, 1.442695
    %v1696 = vpow.pop %v1695
    %v1697 = vmul.f32 %v1649, 1.442695
    %v1698 = vpow.pop %v1697
    %v1699 = vmul.f32 %v1650, 1.442695
    %v1700 = vpow.pop %v1699
    %v1701 = vmul.f32 %v1651, 1.442695
    %v1702 = vpow.pop %v1701
    %v1703 = vmul.f32 %v1652, 1.442695
    %v1704 = vpow.pop %v1703
    %v1705 = vmul.f32 %v1653, 1.442695
    %v1706 = vpow.pop %v1705
    %v1707 = vmul.f32 %v1654, 1.442695
    %v1708 = vpow.pop %v1707
    %v1709 = vmul.f32 %v1655, 1.442695
    %v1710 = vpow.pop %v1709
    %v1711 = vmul.f32 %v1656, 1.442695
    %v1712 = vpow.pop %v1711
    %v1713 = vmul.f32 %v1657, 1.442695
    %v1714 = vpow.pop %v1713
    %v1715 = vmul.f32 %v1658, 1.442695
    %v1716 = vpow.pop %v1715
    %v1717 = vmul.f32 %v1659, 1.442695
    %v1718 = vpow.pop %v1717
    %v1719 = vmul.f32 %v1660, 1.442695
    %v1720 = vpow.pop %v1719
    %v1721 = vmul.f32 %v1661, 1.442695
    %v1722 = vpow.pop %v1721
    %v1723 = vmul.f32 %v1662, 1.442695
    %v1724 = vpow.pop %v1723
    %v1725 = vmul.f32 %v1663, 1.442695
    %v1726 = vpow.pop %v1725
    %v1727 = vmul.f32 %v1664, 1.442695
    %v1728 = vpow.pop %v1727
    %v1729 = vadd.f32 %v1666, 1.0
    %v1730 = vadd.f32 %v1668, 1.0
    %v1731 = vadd.f32 %v1670, 1.0
    %v1732 = vadd.f32 %v1672, 1.0
    %v1733 = vadd.f32 %v1674, 1.0
    %v1734 = vadd.f32 %v1676, 1.0
    %v1735 = vadd.f32 %v1678, 1.0
    %v1736 = vadd.f32 %v1680, 1.0
    %v1737 = vadd.f32 %v1682, 1.0
    %v1738 = vadd.f32 %v1684, 1.0
    %v1739 = vadd.f32 %v1686, 1.0
    %v1740 = vadd.f32 %v1688, 1.0
    %v1741 = vadd.f32 %v1690, 1.0
    %v1742 = vadd.f32 %v1692, 1.0
    %v1743 = vadd.f32 %v1694, 1.0
    %v1744 = vadd.f32 %v1696, 1.0
    %v1745 = vadd.f32 %v1698, 1.0
    %v1746 = vadd.f32 %v1700, 1.0
    %v1747 = vadd.f32 %v1702, 1.0
    %v1748 = vadd.f32 %v1704, 1.0
    %v1749 = vadd.f32 %v1706, 1.0
    %v1750 = vadd.f32 %v1708, 1.0
    %v1751 = vadd.f32 %v1710, 1.0
    %v1752 = vadd.f32 %v1712, 1.0
    %v1753 = vadd.f32 %v1714, 1.0
    %v1754 = vadd.f32 %v1716, 1.0
    %v1755 = vadd.f32 %v1718, 1.0
    %v1756 = vadd.f32 %v1720, 1.0
    %v1757 = vadd.f32 %v1722, 1.0
    %v1758 = vadd.f32 %v1724, 1.0
    %v1759 = vadd.f32 %v1726, 1.0
    %v1760 = vadd.f32 %v1728, 1.0
    %v1761 = vrcp.pop %v1729
    %v1762 = vmul.f32 1.0, %v1761
    %v1763 = vrcp.pop %v1730
    %v1764 = vmul.f32 1.0, %v1763
    %v1765 = vrcp.pop %v1731
    %v1766 = vmul.f32 1.0, %v1765
    %v1767 = vrcp.pop %v1732
    %v1768 = vmul.f32 1.0, %v1767
    %v1769 = vrcp.pop %v1733
    %v1770 = vmul.f32 1.0, %v1769
    %v1771 = vrcp.pop %v1734
    %v1772 = vmul.f32 1.0, %v1771
    %v1773 = vrcp.pop %v1735
    %v1774 = vmul.f32 1.0, %v1773
    %v1775 = vrcp.pop %v1736
    %v1776 = vmul.f32 1.0, %v1775
    %v1777 = vrcp.pop %v1737
    %v1778 = vmul.f32 1.0, %v1777
    %v1779 = vrcp.pop %v1738
    %v1780 = vmul.f32 1.0, %v1779
    %v1781 = vrcp.pop %v1739
    %v1782 = vmul.f32 1.0, %v1781
    %v1783 = vrcp.pop %v1740
    %v1784 = vmul.f32 1.0, %v1783
    %v1785 = vrcp.pop %v1741
    %v1786 = vmul.f32 1.0, %v1785
    %v1787 = vrcp.pop %v1742
    %v1788 = vmul.f32 1.0, %v1787
    %v1789 = vrcp.pop %v1743
    %v1790 = vmul.f32 1.0, %v1789
    %v1791 = vrcp.pop %v1744
    %v1792 = vmul.f32 1.0, %v1791
    %v1793 = vrcp.pop %v1745
    %v1794 = vmul.f32 1.0, %v1793
    %v1795 = vrcp.pop %v1746
    %v1796 = vmul.f32 1.0, %v1795
    %v1797 = vrcp.pop %v1747
    %v1798 = vmul.f32 1.0, %v1797
    %v1799 = vrcp.pop %v1748
    %v1800 = vmul.f32 1.0, %v1799
    %v1801 = vrcp.pop %v1749
    %v1802 = vmul.f32 1.0, %v1801
    %v1803 = vrcp.pop %v1750
    %v1804 = vmul.f32 1.0, %v1803
    %v1805 = vrcp.pop %v1751
    %v1806 = vmul.f32 1.0, %v1805
    %v1807 = vrcp.pop %v1752
    %v1808 = vmul.f32 1.0, %v1807
    %v1809 = vrcp.pop %v1753
    %v1810 = vmul.f32 1.0, %v1809
    %v1811 = vrcp.pop %v1754
    %v1812 = vmul.f32 1.0, %v1811
    %v1813 = vrcp.pop %v1755
    %v1814 = vmul.f32 1.0, %v1813
    %v1815 = vrcp.pop %v1756
    %v1816 = vmul.f32 1.0, %v1815
    %v1817 = vrcp.pop %v1757
    %v1818 = vmul.f32 1.0, %v1817
    %v1819 = vrcp.pop %v1758
    %v1820 = vmul.f32 1.0, %v1819
    %v1821 = vrcp.pop %v1759
    %v1822 = vmul.f32 1.0, %v1821
    %v1823 = vrcp.pop %v1760
    %v1824 = vmul.f32 1.0, %v1823
    %v1825 = vmul.f32 %v1378, %v1378
    %v1826 = vmul.f32 %v1380, %v1380
    %v1827 = vmul.f32 %v1382, %v1382
    %v1828 = vmul.f32 %v1384, %v1384
    %v1829 = vmul.f32 %v1386, %v1386
    %v1830 = vmul.f32 %v1388, %v1388
    %v1831 = vmul.f32 %v1390, %v1390
    %v1832 = vmul.f32 %v1392, %v1392
    %v1833 = vmul.f32 %v1394, %v1394
    %v1834 = vmul.f32 %v1396, %v1396
    %v1835 = vmul.f32 %v1398, %v1398
    %v1836 = vmul.f32 %v1400, %v1400
    %v1837 = vmul.f32 %v1402, %v1402
    %v1838 = vmul.f32 %v1404, %v1404
    %v1839 = vmul.f32 %v1406, %v1406
    %v1840 = vmul.f32 %v1408, %v1408
    %v1841 = vmul.f32 %v1410, %v1410
    %v1842 = vmul.f32 %v1412, %v1412
    %v1843 = vmul.f32 %v1414, %v1414
    %v1844 = vmul.f32 %v1416, %v1416
    %v1845 = vmul.f32 %v1418, %v1418
    %v1846 = vmul.f32 %v1420, %v1420
    %v1847 = vmul.f32 %v1422, %v1422
    %v1848 = vmul.f32 %v1424, %v1424
    %v1849 = vmul.f32 %v1426, %v1426
    %v1850 = vmul.f32 %v1428, %v1428
    %v1851 = vmul.f32 %v1430, %v1430
    %v1852 = vmul.f32 %v1432, %v1432
    %v1853 = vmul.f32 %v1434, %v1434
    %v1854 = vmul.f32 %v1436, %v1436
    %v1855 = vmul.f32 %v1438, %v1438
    %v1856 = vmul.f32 %v1440, %v1440
    %1857 = vadd.xlane.f32.xlu0 %v1825
    %v1858 = vpop.xlane.xlu0 %1857
    %1859 = vadd.xlane.f32.xlu0 %v1826
    %v1860 = vpop.xlane.xlu0 %1859
    %1861 = vadd.xlane.f32.xlu0 %v1827
    %v1862 = vpop.xlane.xlu0 %1861
    %1863 = vadd.xlane.f32.xlu0 %v1828
    %v1864 = vpop.xlane.xlu0 %1863
    %1865 = vadd.xlane.f32.xlu0 %v1829
    %v1866 = vpop.xlane.xlu0 %1865
    %1867 = vadd.xlane.f32.xlu0 %v1830
    %v1868 = vpop.xlane.xlu0 %1867
    %1869 = vadd.xlane.f32.xlu0 %v1831
    %v1870 = vpop.xlane.xlu0 %1869
    %1871 = vadd.xlane.f32.xlu0 %v1832
    %v1872 = vpop.xlane.xlu0 %1871
    %1873 = vadd.xlane.f32.xlu0 %v1833
    %v1874 = vpop.xlane.xlu0 %1873
    %1875 = vadd.xlane.f32.xlu0 %v1834
    %v1876 = vpop.xlane.xlu0 %1875
    %1877 = vadd.xlane.f32.xlu0 %v1835
    %v1878 = vpop.xlane.xlu0 %1877
    %1879 = vadd.xlane.f32.xlu0 %v1836
    %v1880 = vpop.xlane.xlu0 %1879
    %1881 = vadd.xlane.f32.xlu0 %v1837
    %v1882 = vpop.xlane.xlu0 %1881
    %1883 = vadd.xlane.f32.xlu0 %v1838
    %v1884 = vpop.xlane.xlu0 %1883
    %1885 = vadd.xlane.f32.xlu0 %v1839
    %v1886 = vpop.xlane.xlu0 %1885
    %1887 = vadd.xlane.f32.xlu0 %v1840
    %v1888 = vpop.xlane.xlu0 %1887
    %1889 = vadd.xlane.f32.xlu0 %v1841
    %v1890 = vpop.xlane.xlu0 %1889
    %1891 = vadd.xlane.f32.xlu0 %v1842
    %v1892 = vpop.xlane.xlu0 %1891
    %1893 = vadd.xlane.f32.xlu0 %v1843
    %v1894 = vpop.xlane.xlu0 %1893
    %1895 = vadd.xlane.f32.xlu0 %v1844
    %v1896 = vpop.xlane.xlu0 %1895
    %1897 = vadd.xlane.f32.xlu0 %v1845
    %v1898 = vpop.xlane.xlu0 %1897
    %1899 = vadd.xlane.f32.xlu0 %v1846
    %v1900 = vpop.xlane.xlu0 %1899
    %1901 = vadd.xlane.f32.xlu0 %v1847
    %v1902 = vpop.xlane.xlu0 %1901
    %1903 = vadd.xlane.f32.xlu0 %v1848
    %v1904 = vpop.xlane.xlu0 %1903
    %1905 = vadd.xlane.f32.xlu0 %v1849
    %v1906 = vpop.xlane.xlu0 %1905
    %1907 = vadd.xlane.f32.xlu0 %v1850
    %v1908 = vpop.xlane.xlu0 %1907
    %1909 = vadd.xlane.f32.xlu0 %v1851
    %v1910 = vpop.xlane.xlu0 %1909
    %1911 = vadd.xlane.f32.xlu0 %v1852
    %v1912 = vpop.xlane.xlu0 %1911
    %1913 = vadd.xlane.f32.xlu0 %v1853
    %v1914 = vpop.xlane.xlu0 %1913
    %1915 = vadd.xlane.f32.xlu0 %v1854
    %v1916 = vpop.xlane.xlu0 %1915
    %1917 = vadd.xlane.f32.xlu0 %v1855
    %v1918 = vpop.xlane.xlu0 %1917
    %1919 = vadd.xlane.f32.xlu0 %v1856
    %v1920 = vpop.xlane.xlu0 %1919
    %v1921 = vrsqrt.pop %v1858
    %v1922 = vrsqrt.pop %v1860
    %v1923 = vrsqrt.pop %v1862
    %v1924 = vrsqrt.pop %v1864
    %v1925 = vrsqrt.pop %v1866
    %v1926 = vrsqrt.pop %v1868
    %v1927 = vrsqrt.pop %v1870
    %v1928 = vrsqrt.pop %v1872
    %v1929 = vrsqrt.pop %v1874
    %v1930 = vrsqrt.pop %v1876
    %v1931 = vrsqrt.pop %v1878
    %v1932 = vrsqrt.pop %v1880
    %v1933 = vrsqrt.pop %v1882
    %v1934 = vrsqrt.pop %v1884
    %v1935 = vrsqrt.pop %v1886
    %v1936 = vrsqrt.pop %v1888
    %v1937 = vrsqrt.pop %v1890
    %v1938 = vrsqrt.pop %v1892
    %v1939 = vrsqrt.pop %v1894
    %v1940 = vrsqrt.pop %v1896
    %v1941 = vrsqrt.pop %v1898
    %v1942 = vrsqrt.pop %v1900
    %v1943 = vrsqrt.pop %v1902
    %v1944 = vrsqrt.pop %v1904
    %v1945 = vrsqrt.pop %v1906
    %v1946 = vrsqrt.pop %v1908
    %v1947 = vrsqrt.pop %v1910
    %v1948 = vrsqrt.pop %v1912
    %v1949 = vrsqrt.pop %v1914
    %v1950 = vrsqrt.pop %v1916
    %v1951 = vrsqrt.pop %v1918
    %v1952 = vrsqrt.pop %v1920
    %v1953 = vmin.f32 %v1921, 1e+12
    %v1954 = vmin.f32 %v1922, 1e+12
    %v1955 = vmin.f32 %v1923, 1e+12
    %v1956 = vmin.f32 %v1924, 1e+12
    %v1957 = vmin.f32 %v1925, 1e+12
    %v1958 = vmin.f32 %v1926, 1e+12
    %v1959 = vmin.f32 %v1927, 1e+12
    %v1960 = vmin.f32 %v1928, 1e+12
    %v1961 = vmin.f32 %v1929, 1e+12
    %v1962 = vmin.f32 %v1930, 1e+12
    %v1963 = vmin.f32 %v1931, 1e+12
    %v1964 = vmin.f32 %v1932, 1e+12
    %v1965 = vmin.f32 %v1933, 1e+12
    %v1966 = vmin.f32 %v1934, 1e+12
    %v1967 = vmin.f32 %v1935, 1e+12
    %v1968 = vmin.f32 %v1936, 1e+12
    %v1969 = vmin.f32 %v1937, 1e+12
    %v1970 = vmin.f32 %v1938, 1e+12
    %v1971 = vmin.f32 %v1939, 1e+12
    %v1972 = vmin.f32 %v1940, 1e+12
    %v1973 = vmin.f32 %v1941, 1e+12
    %v1974 = vmin.f32 %v1942, 1e+12
    %v1975 = vmin.f32 %v1943, 1e+12
    %v1976 = vmin.f32 %v1944, 1e+12
    %v1977 = vmin.f32 %v1945, 1e+12
    %v1978 = vmin.f32 %v1946, 1e+12
    %v1979 = vmin.f32 %v1947, 1e+12
    %v1980 = vmin.f32 %v1948, 1e+12
    %v1981 = vmin.f32 %v1949, 1e+12
    %v1982 = vmin.f32 %v1950, 1e+12
    %v1983 = vmin.f32 %v1951, 1e+12
    %v1984 = vmin.f32 %v1952, 1e+12
    %v1985 = vmul.f32 %v1378, %v1953
    %v1986 = vmul.f32 %v1380, %v1954
    %v1987 = vmul.f32 %v1382, %v1955
    %v1988 = vmul.f32 %v1384, %v1956
    %v1989 = vmul.f32 %v1386, %v1957
    %v1990 = vmul.f32 %v1388, %v1958
    %v1991 = vmul.f32 %v1390, %v1959
    %v1992 = vmul.f32 %v1392, %v1960
    %v1993 = vmul.f32 %v1394, %v1961
    %v1994 = vmul.f32 %v1396, %v1962
    %v1995 = vmul.f32 %v1398, %v1963
    %v1996 = vmul.f32 %v1400, %v1964
    %v1997 = vmul.f32 %v1402, %v1965
    %v1998 = vmul.f32 %v1404, %v1966
    %v1999 = vmul.f32 %v1406, %v1967
    %v2000 = vmul.f32 %v1408, %v1968
    %v2001 = vmul.f32 %v1410, %v1969
    %v2002 = vmul.f32 %v1412, %v1970
    %v2003 = vmul.f32 %v1414, %v1971
    %v2004 = vmul.f32 %v1416, %v1972
    %v2005 = vmul.f32 %v1418, %v1973
    %v2006 = vmul.f32 %v1420, %v1974
    %v2007 = vmul.f32 %v1422, %v1975
    %v2008 = vmul.f32 %v1424, %v1976
    %v2009 = vmul.f32 %v1426, %v1977
    %v2010 = vmul.f32 %v1428, %v1978
    %v2011 = vmul.f32 %v1430, %v1979
    %v2012 = vmul.f32 %v1432, %v1980
    %v2013 = vmul.f32 %v1434, %v1981
    %v2014 = vmul.f32 %v1436, %v1982
    %v2015 = vmul.f32 %v1438, %v1983
    %v2016 = vmul.f32 %v1440, %v1984
    %v2017 = vxor.u32 %v1985, 2147483648
    %v2018 = vxor.u32 %v1986, 2147483648
    %v2019 = vxor.u32 %v1987, 2147483648
    %v2020 = vxor.u32 %v1988, 2147483648
    %v2021 = vxor.u32 %v1989, 2147483648
    %v2022 = vxor.u32 %v1990, 2147483648
    %v2023 = vxor.u32 %v1991, 2147483648
    %v2024 = vxor.u32 %v1992, 2147483648
    %v2025 = vxor.u32 %v1993, 2147483648
    %v2026 = vxor.u32 %v1994, 2147483648
    %v2027 = vxor.u32 %v1995, 2147483648
    %v2028 = vxor.u32 %v1996, 2147483648
    %v2029 = vxor.u32 %v1997, 2147483648
    %v2030 = vxor.u32 %v1998, 2147483648
    %v2031 = vxor.u32 %v1999, 2147483648
    %v2032 = vxor.u32 %v2000, 2147483648
    %v2033 = vxor.u32 %v2001, 2147483648
    %v2034 = vxor.u32 %v2002, 2147483648
    %v2035 = vxor.u32 %v2003, 2147483648
    %v2036 = vxor.u32 %v2004, 2147483648
    %v2037 = vxor.u32 %v2005, 2147483648
    %v2038 = vxor.u32 %v2006, 2147483648
    %v2039 = vxor.u32 %v2007, 2147483648
    %v2040 = vxor.u32 %v2008, 2147483648
    %v2041 = vxor.u32 %v2009, 2147483648
    %v2042 = vxor.u32 %v2010, 2147483648
    %v2043 = vxor.u32 %v2011, 2147483648
    %v2044 = vxor.u32 %v2012, 2147483648
    %v2045 = vxor.u32 %v2013, 2147483648
    %v2046 = vxor.u32 %v2014, 2147483648
    %v2047 = vxor.u32 %v2015, 2147483648
    %v2048 = vxor.u32 %v2016, 2147483648
    %v2049 = vmul.f32 %v2017, 1.442695
    %v2050 = vpow.pop %v2049
    %v2051 = vmul.f32 %v2018, 1.442695
    %v2052 = vpow.pop %v2051
    %v2053 = vmul.f32 %v2019, 1.442695
    %v2054 = vpow.pop %v2053
    %v2055 = vmul.f32 %v2020, 1.442695
    %v2056 = vpow.pop %v2055
    %v2057 = vmul.f32 %v2021, 1.442695
    %v2058 = vpow.pop %v2057
    %v2059 = vmul.f32 %v2022, 1.442695
    %v2060 = vpow.pop %v2059
    %v2061 = vmul.f32 %v2023, 1.442695
    %v2062 = vpow.pop %v2061
    %v2063 = vmul.f32 %v2024, 1.442695
    %v2064 = vpow.pop %v2063
    %v2065 = vmul.f32 %v2025, 1.442695
    %v2066 = vpow.pop %v2065
    %v2067 = vmul.f32 %v2026, 1.442695
    %v2068 = vpow.pop %v2067
    %v2069 = vmul.f32 %v2027, 1.442695
    %v2070 = vpow.pop %v2069
    %v2071 = vmul.f32 %v2028, 1.442695
    %v2072 = vpow.pop %v2071
    %v2073 = vmul.f32 %v2029, 1.442695
    %v2074 = vpow.pop %v2073
    %v2075 = vmul.f32 %v2030, 1.442695
    %v2076 = vpow.pop %v2075
    %v2077 = vmul.f32 %v2031, 1.442695
    %v2078 = vpow.pop %v2077
    %v2079 = vmul.f32 %v2032, 1.442695
    %v2080 = vpow.pop %v2079
    %v2081 = vmul.f32 %v2033, 1.442695
    %v2082 = vpow.pop %v2081
    %v2083 = vmul.f32 %v2034, 1.442695
    %v2084 = vpow.pop %v2083
    %v2085 = vmul.f32 %v2035, 1.442695
    %v2086 = vpow.pop %v2085
    %v2087 = vmul.f32 %v2036, 1.442695
    %v2088 = vpow.pop %v2087
    %v2089 = vmul.f32 %v2037, 1.442695
    %v2090 = vpow.pop %v2089
    %v2091 = vmul.f32 %v2038, 1.442695
    %v2092 = vpow.pop %v2091
    %v2093 = vmul.f32 %v2039, 1.442695
    %v2094 = vpow.pop %v2093
    %v2095 = vmul.f32 %v2040, 1.442695
    %v2096 = vpow.pop %v2095
    %v2097 = vmul.f32 %v2041, 1.442695
    %v2098 = vpow.pop %v2097
    %v2099 = vmul.f32 %v2042, 1.442695
    %v2100 = vpow.pop %v2099
    %v2101 = vmul.f32 %v2043, 1.442695
    %v2102 = vpow.pop %v2101
    %v2103 = vmul.f32 %v2044, 1.442695
    %v2104 = vpow.pop %v2103
    %v2105 = vmul.f32 %v2045, 1.442695
    %v2106 = vpow.pop %v2105
    %v2107 = vmul.f32 %v2046, 1.442695
    %v2108 = vpow.pop %v2107
    %v2109 = vmul.f32 %v2047, 1.442695
    %v2110 = vpow.pop %v2109
    %v2111 = vmul.f32 %v2048, 1.442695
    %v2112 = vpow.pop %v2111
    %v2113 = vadd.f32 %v2050, 1.0
    %v2114 = vadd.f32 %v2052, 1.0
    %v2115 = vadd.f32 %v2054, 1.0
    %v2116 = vadd.f32 %v2056, 1.0
    %v2117 = vadd.f32 %v2058, 1.0
    %v2118 = vadd.f32 %v2060, 1.0
    %v2119 = vadd.f32 %v2062, 1.0
    %v2120 = vadd.f32 %v2064, 1.0
    %v2121 = vadd.f32 %v2066, 1.0
    %v2122 = vadd.f32 %v2068, 1.0
    %v2123 = vadd.f32 %v2070, 1.0
    %v2124 = vadd.f32 %v2072, 1.0
    %v2125 = vadd.f32 %v2074, 1.0
    %v2126 = vadd.f32 %v2076, 1.0
    %v2127 = vadd.f32 %v2078, 1.0
    %v2128 = vadd.f32 %v2080, 1.0
    %v2129 = vadd.f32 %v2082, 1.0
    %v2130 = vadd.f32 %v2084, 1.0
    %v2131 = vadd.f32 %v2086, 1.0
    %v2132 = vadd.f32 %v2088, 1.0
    %v2133 = vadd.f32 %v2090, 1.0
    %v2134 = vadd.f32 %v2092, 1.0
    %v2135 = vadd.f32 %v2094, 1.0
    %v2136 = vadd.f32 %v2096, 1.0
    %v2137 = vadd.f32 %v2098, 1.0
    %v2138 = vadd.f32 %v2100, 1.0
    %v2139 = vadd.f32 %v2102, 1.0
    %v2140 = vadd.f32 %v2104, 1.0
    %v2141 = vadd.f32 %v2106, 1.0
    %v2142 = vadd.f32 %v2108, 1.0
    %v2143 = vadd.f32 %v2110, 1.0
    %v2144 = vadd.f32 %v2112, 1.0
    %v2145 = vrcp.pop %v2113
    %v2146 = vmul.f32 1.0, %v2145
    %v2147 = vrcp.pop %v2114
    %v2148 = vmul.f32 1.0, %v2147
    %v2149 = vrcp.pop %v2115
    %v2150 = vmul.f32 1.0, %v2149
    %v2151 = vrcp.pop %v2116
    %v2152 = vmul.f32 1.0, %v2151
    %v2153 = vrcp.pop %v2117
    %v2154 = vmul.f32 1.0, %v2153
    %v2155 = vrcp.pop %v2118
    %v2156 = vmul.f32 1.0, %v2155
    %v2157 = vrcp.pop %v2119
    %v2158 = vmul.f32 1.0, %v2157
    %v2159 = vrcp.pop %v2120
    %v2160 = vmul.f32 1.0, %v2159
    %v2161 = vrcp.pop %v2121
    %v2162 = vmul.f32 1.0, %v2161
    %v2163 = vrcp.pop %v2122
    %v2164 = vmul.f32 1.0, %v2163
    %v2165 = vrcp.pop %v2123
    %v2166 = vmul.f32 1.0, %v2165
    %v2167 = vrcp.pop %v2124
    %v2168 = vmul.f32 1.0, %v2167
    %v2169 = vrcp.pop %v2125
    %v2170 = vmul.f32 1.0, %v2169
    %v2171 = vrcp.pop %v2126
    %v2172 = vmul.f32 1.0, %v2171
    %v2173 = vrcp.pop %v2127
    %v2174 = vmul.f32 1.0, %v2173
    %v2175 = vrcp.pop %v2128
    %v2176 = vmul.f32 1.0, %v2175
    %v2177 = vrcp.pop %v2129
    %v2178 = vmul.f32 1.0, %v2177
    %v2179 = vrcp.pop %v2130
    %v2180 = vmul.f32 1.0, %v2179
    %v2181 = vrcp.pop %v2131
    %v2182 = vmul.f32 1.0, %v2181
    %v2183 = vrcp.pop %v2132
    %v2184 = vmul.f32 1.0, %v2183
    %v2185 = vrcp.pop %v2133
    %v2186 = vmul.f32 1.0, %v2185
    %v2187 = vrcp.pop %v2134
    %v2188 = vmul.f32 1.0, %v2187
    %v2189 = vrcp.pop %v2135
    %v2190 = vmul.f32 1.0, %v2189
    %v2191 = vrcp.pop %v2136
    %v2192 = vmul.f32 1.0, %v2191
    %v2193 = vrcp.pop %v2137
    %v2194 = vmul.f32 1.0, %v2193
    %v2195 = vrcp.pop %v2138
    %v2196 = vmul.f32 1.0, %v2195
    %v2197 = vrcp.pop %v2139
    %v2198 = vmul.f32 1.0, %v2197
    %v2199 = vrcp.pop %v2140
    %v2200 = vmul.f32 1.0, %v2199
    %v2201 = vrcp.pop %v2141
    %v2202 = vmul.f32 1.0, %v2201
    %v2203 = vrcp.pop %v2142
    %v2204 = vmul.f32 1.0, %v2203
    %v2205 = vrcp.pop %v2143
    %v2206 = vmul.f32 1.0, %v2205
    %v2207 = vrcp.pop %v2144
    %v2208 = vmul.f32 1.0, %v2207
    %v2209 = vld [vmem:[%s2] sm:$0xff]
    %v2210 = vld [vmem:[%s2 + $0x10] sm:$0xff]
    %v2211 = vld [vmem:[%s2 + $0x20] sm:$0xff]
    %v2212 = vld [vmem:[%s2 + $0x30] sm:$0xff]
    %v2213 = vld [vmem:[%s2 + $0x40] sm:$0xff]
    %v2214 = vld [vmem:[%s2 + $0x50] sm:$0xff]
    %v2215 = vld [vmem:[%s2 + $0x60] sm:$0xff]
    %v2216 = vld [vmem:[%s2 + $0x70] sm:$0xff]
    %v2217 = vld [vmem:[%s2 + $0x80] sm:$0xff]
    %v2218 = vld [vmem:[%s2 + $0x90] sm:$0xff]
    %v2219 = vld [vmem:[%s2 + $0xa0] sm:$0xff]
    %v2220 = vld [vmem:[%s2 + $0xb0] sm:$0xff]
    %v2221 = vld [vmem:[%s2 + $0xc0] sm:$0xff]
    %v2222 = vld [vmem:[%s2 + $0xd0] sm:$0xff]
    %v2223 = vld [vmem:[%s2 + $0xe0] sm:$0xff]
    %v2224 = vld [vmem:[%s2 + $0xf0] sm:$0xff]
    %v2225 = vld [vmem:[%s2 + $0x100] sm:$0xff]
    %v2226 = vld [vmem:[%s2 + $0x110] sm:$0xff]
    %v2227 = vld [vmem:[%s2 + $0x120] sm:$0xff]
    %v2228 = vld [vmem:[%s2 + $0x130] sm:$0xff]
    %v2229 = vld [vmem:[%s2 + $0x140] sm:$0xff]
    %v2230 = vld [vmem:[%s2 + $0x150] sm:$0xff]
    %v2231 = vld [vmem:[%s2 + $0x160] sm:$0xff]
    %v2232 = vld [vmem:[%s2 + $0x170] sm:$0xff]
    %v2233 = vld [vmem:[%s2 + $0x180] sm:$0xff]
    %v2234 = vld [vmem:[%s2 + $0x190] sm:$0xff]
    %v2235 = vld [vmem:[%s2 + $0x1a0] sm:$0xff]
    %v2236 = vld [vmem:[%s2 + $0x1b0] sm:$0xff]
    %v2237 = vld [vmem:[%s2 + $0x1c0] sm:$0xff]
    %v2238 = vld [vmem:[%s2 + $0x1d0] sm:$0xff]
    %v2239 = vld [vmem:[%s2 + $0x1e0] sm:$0xff]
    %v2240 = vld [vmem:[%s2 + $0x1f0] sm:$0xff]
    %v2241 = vld [vmem:[%s2 + $0x8] sm:$0xff]
    %v2242 = vld [vmem:[%s2 + $0x18] sm:$0xff]
    %v2243 = vld [vmem:[%s2 + $0x28] sm:$0xff]
    %v2244 = vld [vmem:[%s2 + $0x38] sm:$0xff]
    %v2245 = vld [vmem:[%s2 + $0x48] sm:$0xff]
    %v2246 = vld [vmem:[%s2 + $0x58] sm:$0xff]
    %v2247 = vld [vmem:[%s2 + $0x68] sm:$0xff]
    %v2248 = vld [vmem:[%s2 + $0x78] sm:$0xff]
    %v2249 = vld [vmem:[%s2 + $0x88] sm:$0xff]
    %v2250 = vld [vmem:[%s2 + $0x98] sm:$0xff]
    %v2251 = vld [vmem:[%s2 + $0xa8] sm:$0xff]
    %v2252 = vld [vmem:[%s2 + $0xb8] sm:$0xff]
    %v2253 = vld [vmem:[%s2 + $0xc8] sm:$0xff]
    %v2254 = vld [vmem:[%s2 + $0xd8] sm:$0xff]
    %v2255 = vld [vmem:[%s2 + $0xe8] sm:$0xff]
    %v2256 = vld [vmem:[%s2 + $0xf8] sm:$0xff]
    %v2257 = vld [vmem:[%s2 + $0x108] sm:$0xff]
    %v2258 = vld [vmem:[%s2 + $0x118] sm:$0xff]
    %v2259 = vld [vmem:[%s2 + $0x128] sm:$0xff]
    %v2260 = vld [vmem:[%s2 + $0x138] sm:$0xff]
    %v2261 = vld [vmem:[%s2 + $0x148] sm:$0xff]
    %v2262 = vld [vmem:[%s2 + $0x158] sm:$0xff]
    %v2263 = vld [vmem:[%s2 + $0x168] sm:$0xff]
    %v2264 = vld [vmem:[%s2 + $0x178] sm:$0xff]
    %v2265 = vld [vmem:[%s2 + $0x188] sm:$0xff]
    %v2266 = vld [vmem:[%s2 + $0x198] sm:$0xff]
    %v2267 = vld [vmem:[%s2 + $0x1a8] sm:$0xff]
    %v2268 = vld [vmem:[%s2 + $0x1b8] sm:$0xff]
    %v2269 = vld [vmem:[%s2 + $0x1c8] sm:$0xff]
    %v2270 = vld [vmem:[%s2 + $0x1d8] sm:$0xff]
    %v2271 = vld [vmem:[%s2 + $0x1e8] sm:$0xff]
    %v2272 = vld [vmem:[%s2 + $0x1f8] sm:$0xff]
    %v2273 = vld [vmem:[%s3] sm:$0xff]
    %v2274 = vld [vmem:[%s3 + $0x8] sm:$0xff]
    %v2275 = vld [vmem:[%s3 + $0x10] sm:$0xff]
    %v2276 = vld [vmem:[%s3 + $0x18] sm:$0xff]
    %v2277 = vld [vmem:[%s3 + $0x20] sm:$0xff]
    %v2278 = vld [vmem:[%s3 + $0x28] sm:$0xff]
    %v2279 = vld [vmem:[%s3 + $0x30] sm:$0xff]
    %v2280 = vld [vmem:[%s3 + $0x38] sm:$0xff]
    %v2281 = vld [vmem:[%s3 + $0x40] sm:$0xff]
    %v2282 = vld [vmem:[%s3 + $0x48] sm:$0xff]
    %v2283 = vld [vmem:[%s3 + $0x50] sm:$0xff]
    %v2284 = vld [vmem:[%s3 + $0x58] sm:$0xff]
    %v2285 = vld [vmem:[%s3 + $0x60] sm:$0xff]
    %v2286 = vld [vmem:[%s3 + $0x68] sm:$0xff]
    %v2287 = vld [vmem:[%s3 + $0x70] sm:$0xff]
    %v2288 = vld [vmem:[%s3 + $0x78] sm:$0xff]
    %s2289 = sld [smem:[#allocation4]]
    %2290 = vmatprep.subr.mxu0 0.0
    %2291 = vmatpush1.msra.mxu0 %v2273
    %2292 = vmatprep.subr.mxu0 0.0
    %2293 = vmatpush1.msra.mxu0 %v2274
    %2294 = vmatprep.subr.mxu0 0.0
    %2295 = vmatpush1.msra.mxu0 %v2275
    %2296 = vmatprep.subr.mxu0 0.0
    %2297 = vmatpush1.msra.mxu0 %v2276
    %2298 = vmatprep.subr.mxu0 0.0
    %2299 = vmatpush1.msra.mxu0 %v2277
    %2300 = vmatprep.subr.mxu0 0.0
    %2301 = vmatpush1.msra.mxu0 %v2278
    %2302 = vmatprep.subr.mxu0 0.0
    %2303 = vmatpush1.msra.mxu0 %v2279
    %2304 = vmatprep.subr.mxu0 0.0
    %2305 = vmatpush1.msra.mxu0 %v2280
    %2306 = vmatprep.subr.mxu0 0.0
    %2307 = vmatpush1.msra.mxu0 %v2281
    %2308 = vmatprep.subr.mxu0 0.0
    %2309 = vmatpush1.msra.mxu0 %v2282
    %2310 = vmatprep.subr.mxu0 0.0
    %2311 = vmatpush1.msra.mxu0 %v2283
    %2312 = vmatprep.subr.mxu0 0.0
    %2313 = vmatpush1.msra.mxu0 %v2284
    %2314 = vmatprep.subr.mxu0 0.0
    %2315 = vmatpush1.msra.mxu0 %v2285
    %2316 = vmatprep.subr.mxu0 0.0
    %2317 = vmatpush1.msra.mxu0 %v2286
    %2318 = vmatprep.subr.mxu0 0.0
    %2319 = vmatpush1.msra.mxu0 %v2287
    %2320 = vmatprep.subr.mxu0 0.0
    %2321 = vmatpush1.msra.mxu0 %v2288
    %2322 = vmatprep.subr.mxu0 0.0
    %2323 = vmatpush1.msra.mxu0 0.0
    %2324 = vmatprep.subr.mxu0 0.0
    %2325 = vmatpush1.msra.mxu0 0.0
    %2326 = vmatprep.subr.mxu0 0.0
    %2327 = vmatpush1.msra.mxu0 0.0
    %2328 = vmatprep.subr.mxu0 0.0
    %2329 = vmatpush1.msra.mxu0 0.0
    %2330 = vmatprep.subr.mxu0 0.0
    %2331 = vmatpush1.msra.mxu0 0.0
    %2332 = vmatprep.subr.mxu0 0.0
    %2333 = vmatpush1.msra.mxu0 0.0
    %2334 = vmatprep.subr.mxu0 0.0
    %2335 = vmatpush1.msra.mxu0 0.0
    %2336 = vmatprep.subr.mxu0 0.0
    %2337 = vmatpush1.msra.mxu0 0.0
    %2338 = vmatprep.subr.mxu0 0.0
    %2339 = vmatpush1.msra.mxu0 0.0
    %2340 = vmatprep.subr.mxu0 0.0
    %2341 = vmatpush1.msra.mxu0 0.0
    %2342 = vmatprep.subr.mxu0 0.0
    %2343 = vmatpush1.msra.mxu0 0.0
    %2344 = vmatprep.subr.mxu0 0.0
    %2345 = vmatpush1.msra.mxu0 0.0
    %2346 = vmatprep.subr.mxu0 0.0
    %2347 = vmatpush1.msra.mxu0 0.0
    %2348 = vmatprep.subr.mxu0 0.0
    %2349 = vmatpush1.msra.mxu0 0.0
    %2350 = vmatprep.subr.mxu0 0.0
    %2351 = vmatpush1.msra.mxu0 0.0
    %2352 = vmatprep.subr.mxu0 0.0
    %2353 = vmatpush1.msra.mxu0 0.0
    %2354 = vmatprep.mubr.f32.mxu0 0.0
    %2355 = vmatmul.mubr.f32.gmra.mrb[0].mxu0 %v2209
    %v2356 = vpop.f32.mrb[0].mxu0
    %v2357 = vadd.f32 0.0, %v2356
    %v2358 = vpop.f32.mrb[0].mxu0
    %2359 = vmatprep.mubr.f32.mxu0 0.0
    %2360 = vmatmul.mubr.f32.gmra.mrb[0].mxu0 %v2210
    %v2361 = vpop.f32.mrb[0].mxu0
    %v2362 = vadd.f32 0.0, %v2361
    %v2363 = vpop.f32.mrb[0].mxu0
    %2364 = vmatprep.mubr.f32.mxu0 0.0
    %2365 = vmatmul.mubr.f32.gmra.mrb[0].mxu0 %v2211
    %v2366 = vpop.f32.mrb[0].mxu0
    %v2367 = vadd.f32 0.0, %v2366
    %v2368 = vpop.f32.mrb[0].mxu0
    %2369 = vmatprep.mubr.f32.mxu0 0.0
    %2370 = vmatmul.mubr.f32.gmra.mrb[0].mxu0 %v2212
    %v2371 = vpop.f32.mrb[0].mxu0
    %v2372 = vadd.f32 0.0, %v2371
    %v2373 = vpop.f32.mrb[0].mxu0
    %2374 = vmatprep.mubr.f32.mxu0 0.0
    %2375 = vmatmul.mubr.f32.gmra.mrb[0].mxu0 %v2213
    %v2376 = vpop.f32.mrb[0].mxu0
    %v2377 = vadd.f32 0.0, %v2376
    %v2378 = vpop.f32.mrb[0].mxu0
    %2379 = vmatprep.mubr.f32.mxu0 0.0
    %2380 = vmatmul.mubr.f32.gmra.mrb[0].mxu0 %v2214
    %v2381 = vpop.f32.mrb[0].mxu0
    %v2382 = vadd.f32 0.0, %v2381
    %v2383 = vpop.f32.mrb[0].mxu0
    %2384 = vmatprep.mubr.f32.mxu0 0.0
    %2385 = vmatmul.mubr.f32.gmra.mrb[0].mxu0 %v2215
    %v2386 = vpop.f32.mrb[0].mxu0
    %v2387 = vadd.f32 0.0, %v2386
    %v2388 = vpop.f32.mrb[0].mxu0
    %2389 = vmatprep.mubr.f32.mxu0 0.0
    %2390 = vmatmul.mubr.f32.gmra.mrb[0].mxu0 %v2216
    %v2391 = vpop.f32.mrb[0].mxu0
    %v2392 = vadd.f32 0.0, %v2391
    %v2393 = vpop.f32.mrb[0].mxu0
    %2394 = vmatprep.mubr.f32.mxu0 0.0
    %2395 = vmatmul.mubr.f32.gmra.mrb[0].mxu0 %v2217
    %v2396 = vpop.f32.mrb[0].mxu0
    %v2397 = vadd.f32 0.0, %v2396
    %v2398 = vpop.f32.mrb[0].mxu0
    %2399 = vmatprep.mubr.f32.mxu0 0.0
    %2400 = vmatmul.mubr.f32.gmra.mrb[0].mxu0 %v2218
    %v2401 = vpop.f32.mrb[0].mxu0
    %v2402 = vadd.f32 0.0, %v2401
    %v2403 = vpop.f32.mrb[0].mxu0
    %2404 = vmatprep.mubr.f32.mxu0 0.0
    %2405 = vmatmul.mubr.f32.gmra.mrb[0].mxu0 %v2219
    %v2406 = vpop.f32.mrb[0].mxu0
    %v2407 = vadd.f32 0.0, %v2406
    %v2408 = vpop.f32.mrb[0].mxu0
    %2409 = vmatprep.mubr.f32.mxu0 0.0
    %2410 = vmatmul.mubr.f32.gmra.mrb[0].mxu0 %v2220
    %v2411 = vpop.f32.mrb[0].mxu0
    %v2412 = vadd.f32 0.0, %v2411
    %v2413 = vpop.f32.mrb[0].mxu0
    %2414 = vmatprep.mubr.f32.mxu0 0.0
    %2415 = vmatmul.mubr.f32.gmra.mrb[0].mxu0 %v2221
    %v2416 = vpop.f32.mrb[0].mxu0
    %v2417 = vadd.f32 0.0, %v2416
    %v2418 = vpop.f32.mrb[0].mxu0
    %2419 = vmatprep.mubr.f32.mxu0 0.0
    %2420 = vmatmul.mubr.f32.gmra.mrb[0].mxu0 %v2222
    %v2421 = vpop.f32.mrb[0].mxu0
    %v2422 = vadd.f32 0.0, %v2421
    %v2423 = vpop.f32.mrb[0].mxu0
    %2424 = vmatprep.mubr.f32.mxu0 0.0
    %2425 = vmatmul.mubr.f32.gmra.mrb[0].mxu0 %v2223
    %v2426 = vpop.f32.mrb[0].mxu0
    %v2427 = vadd.f32 0.0, %v2426
    %v2428 = vpop.f32.mrb[0].mxu0
    %2429 = vmatprep.mubr.f32.mxu0 0.0
    %2430 = vmatmul.mubr.f32.gmra.mrb[0].mxu0 %v2224
    %v2431 = vpop.f32.mrb[0].mxu0
    %v2432 = vadd.f32 0.0, %v2431
    %v2433 = vpop.f32.mrb[0].mxu0
    %2434 = vmatprep.mubr.f32.mxu0 0.0
    %2435 = vmatmul.mubr.f32.gmra.mrb[0].mxu0 %v2225
    %v2436 = vpop.f32.mrb[0].mxu0
    %v2437 = vadd.f32 0.0, %v2436
    %v2438 = vpop.f32.mrb[0].mxu0
    %2439 = vmatprep.mubr.f32.mxu0 0.0
    %2440 = vmatmul.mubr.f32.gmra.mrb[0].mxu0 %v2226
    %v2441 = vpop.f32.mrb[0].mxu0
    %v2442 = vadd.f32 0.0, %v2441
    %v2443 = vpop.f32.mrb[0].mxu0
    %2444 = vmatprep.mubr.f32.mxu0 0.0
    %2445 = vmatmul.mubr.f32.gmra.mrb[0].mxu0 %v2227
    %v2446 = vpop.f32.mrb[0].mxu0
    %v2447 = vadd.f32 0.0, %v2446
    %v2448 = vpop.f32.mrb[0].mxu0
    %2449 = vmatprep.mubr.f32.mxu0 0.0
    %2450 = vmatmul.mubr.f32.gmra.mrb[0].mxu0 %v2228
    %v2451 = vpop.f32.mrb[0].mxu0
    %v2452 = vadd.f32 0.0, %v2451
    %v2453 = vpop.f32.mrb[0].mxu0
    %2454 = vmatprep.mubr.f32.mxu0 0.0
    %2455 = vmatmul.mubr.f32.gmra.mrb[0].mxu0 %v2229
    %v2456 = vpop.f32.mrb[0].mxu0
    %v2457 = vadd.f32 0.0, %v2456
    %v2458 = vpop.f32.mrb[0].mxu0
    %2459 = vmatprep.mubr.f32.mxu0 0.0
    %2460 = vmatmul.mubr.f32.gmra.mrb[0].mxu0 %v2230
    %v2461 = vpop.f32.mrb[0].mxu0
    %v2462 = vadd.f32 0.0, %v2461
    %v2463 = vpop.f32.mrb[0].mxu0
    %2464 = vmatprep.mubr.f32.mxu0 0.0
    %2465 = vmatmul.mubr.f32.gmra.mrb[0].mxu0 %v2231
    %v2466 = vpop.f32.mrb[0].mxu0
    %v2467 = vadd.f32 0.0, %v2466
    %v2468 = vpop.f32.mrb[0].mxu0
    %2469 = vmatprep.mubr.f32.mxu0 0.0
    %2470 = vmatmul.mubr.f32.gmra.mrb[0].mxu0 %v2232
    %v2471 = vpop.f32.mrb[0].mxu0
    %v2472 = vadd.f32 0.0, %v2471
    %v2473 = vpop.f32.mrb[0].mxu0
    %2474 = vmatprep.mubr.f32.mxu0 0.0
    %2475 = vmatmul.mubr.f32.gmra.mrb[0].mxu0 %v2233
    %v2476 = vpop.f32.mrb[0].mxu0
    %v2477 = vadd.f32 0.0, %v2476
    %v2478 = vpop.f32.mrb[0].mxu0
    %2479 = vmatprep.mubr.f32.mxu0 0.0
    %2480 = vmatmul.mubr.f32.gmra.mrb[0].mxu0 %v2234
    %v2481 = vpop.f32.mrb[0].mxu0
    %v2482 = vadd.f32 0.0, %v2481
    %v2483 = vpop.f32.mrb[0].mxu0
    %2484 = vmatprep.mubr.f32.mxu0 0.0
    %2485 = vmatmul.mubr.f32.gmra.mrb[0].mxu0 %v2235
    %v2486 = vpop.f32.mrb[0].mxu0
    %v2487 = vadd.f32 0.0, %v2486
    %v2488 = vpop.f32.mrb[0].mxu0
    %2489 = vmatprep.mubr.f32.mxu0 0.0
    %2490 = vmatmul.mubr.f32.gmra.mrb[0].mxu0 %v2236
    %v2491 = vpop.f32.mrb[0].mxu0
    %v2492 = vadd.f32 0.0, %v2491
    %v2493 = vpop.f32.mrb[0].mxu0
    %2494 = vmatprep.mubr.f32.mxu0 0.0
    %2495 = vmatmul.mubr.f32.gmra.mrb[0].mxu0 %v2237
    %v2496 = vpop.f32.mrb[0].mxu0
    %v2497 = vadd.f32 0.0, %v2496
    %v2498 = vpop.f32.mrb[0].mxu0
    %2499 = vmatprep.mubr.f32.mxu0 0.0
    %2500 = vmatmul.mubr.f32.gmra.mrb[0].mxu0 %v2238
    %v2501 = vpop.f32.mrb[0].mxu0
    %v2502 = vadd.f32 0.0, %v2501
    %v2503 = vpop.f32.mrb[0].mxu0
    %2504 = vmatprep.mubr.f32.mxu0 0.0
    %2505 = vmatmul.mubr.f32.gmra.mrb[0].mxu0 %v2239
    %v2506 = vpop.f32.mrb[0].mxu0
    %v2507 = vadd.f32 0.0, %v2506
    %v2508 = vpop.f32.mrb[0].mxu0
    %2509 = vmatprep.mubr.f32.mxu0 0.0
    %2510 = vmatmul.mubr.f32.gmra.mrb[0].mxu0 %v2240
    %v2511 = vpop.f32.mrb[0].mxu0
    %v2512 = vadd.f32 0.0, %v2511
    %v2513 = vpop.f32.mrb[0].mxu0
    %2514 = vdwg.mxu0
    %2515 = vmatprep.subr.mxu0 0.0
    %2516 = vmatpush1.msra.mxu0 %v2273
    %2517 = vmatprep.subr.mxu0 0.0
    %2518 = vmatpush1.msra.mxu0 %v2274
    %2519 = vmatprep.subr.mxu0 0.0
    %2520 = vmatpush1.msra.mxu0 %v2275
    %2521 = vmatprep.subr.mxu0 0.0
    %2522 = vmatpush1.msra.mxu0 %v2276
    %2523 = vmatprep.subr.mxu0 0.0
    %2524 = vmatpush1.msra.mxu0 %v2277
    %2525 = vmatprep.subr.mxu0 0.0
    %2526 = vmatpush1.msra.mxu0 %v2278
    %2527 = vmatprep.subr.mxu0 0.0
    %2528 = vmatpush1.msra.mxu0 %v2279
    %2529 = vmatprep.subr.mxu0 0.0
    %2530 = vmatpush1.msra.mxu0 %v2280
    %2531 = vmatprep.subr.mxu0 0.0
    %2532 = vmatpush1.msra.mxu0 %v2281
    %2533 = vmatprep.subr.mxu0 0.0
    %2534 = vmatpush1.msra.mxu0 %v2282
    %2535 = vmatprep.subr.mxu0 0.0
    %2536 = vmatpush1.msra.mxu0 %v2283
    %2537 = vmatprep.subr.mxu0 0.0
    %2538 = vmatpush1.msra.mxu0 %v2284
    %2539 = vmatprep.subr.mxu0 0.0
    %2540 = vmatpush1.msra.mxu0 %v2285
    %2541 = vmatprep.subr.mxu0 0.0
    %2542 = vmatpush1.msra.mxu0 %v2286
    %2543 = vmatprep.subr.mxu0 0.0
    %2544 = vmatpush1.msra.mxu0 %v2287
    %2545 = vmatprep.subr.mxu0 0.0
    %2546 = vmatpush1.msra.mxu0 %v2288
    %2547 = vmatprep.subr.mxu0 0.0
    %2548 = vmatpush1.msra.mxu0 0.0
    %2549 = vmatprep.subr.mxu0 0.0
    %2550 = vmatpush1.msra.mxu0 0.0
    %2551 = vmatprep.subr.mxu0 0.0
    %2552 = vmatpush1.msra.mxu0 0.0
    %2553 = vmatprep.subr.mxu0 0.0
    %2554 = vmatpush1.msra.mxu0 0.0
    %2555 = vmatprep.subr.mxu0 0.0
    %2556 = vmatpush1.msra.mxu0 0.0
    %2557 = vmatprep.subr.mxu0 0.0
    %2558 = vmatpush1.msra.mxu0 0.0
    %2559 = vmatprep.subr.mxu0 0.0
    %2560 = vmatpush1.msra.mxu0 0.0
    %2561 = vmatprep.subr.mxu0 0.0
    %2562 = vmatpush1.msra.mxu0 0.0
    %2563 = vmatprep.subr.mxu0 0.0
    %2564 = vmatpush1.msra.mxu0 0.0
    %2565 = vmatprep.subr.mxu0 0.0
    %2566 = vmatpush1.msra.mxu0 0.0
    %2567 = vmatprep.subr.mxu0 0.0
    %2568 = vmatpush1.msra.mxu0 0.0
    %2569 = vmatprep.subr.mxu0 0.0
    %2570 = vmatpush1.msra.mxu0 0.0
    %2571 = vmatprep.subr.mxu0 0.0
    %2572 = vmatpush1.msra.mxu0 0.0
    %2573 = vmatprep.subr.mxu0 0.0
    %2574 = vmatpush1.msra.mxu0 0.0
    %2575 = vmatprep.subr.mxu0 0.0
    %2576 = vmatpush1.msra.mxu0 0.0
    %2577 = vmatprep.subr.mxu0 0.0
    %2578 = vmatpush1.msra.mxu0 0.0
    %2579 = vmatprep.mubr.f32.mxu0 0.0
    %2580 = vmatmul.mubr.f32.gmra.mrb[0].mxu0 %v2241
    %v2581 = vpop.f32.mrb[0].mxu0
    %v2582 = vadd.f32 0.0, %v2581
    %v2583 = vpop.f32.mrb[0].mxu0
    %2584 = vmatprep.mubr.f32.mxu0 0.0
    %2585 = vmatmul.mubr.f32.gmra.mrb[0].mxu0 %v2242
    %v2586 = vpop.f32.mrb[0].mxu0
    %v2587 = vadd.f32 0.0, %v2586
    %v2588 = vpop.f32.mrb[0].mxu0
    %2589 = vmatprep.mubr.f32.mxu0 0.0
    %2590 = vmatmul.mubr.f32.gmra.mrb[0].mxu0 %v2243
    %v2591 = vpop.f32.mrb[0].mxu0
    %v2592 = vadd.f32 0.0, %v2591
    %v2593 = vpop.f32.mrb[0].mxu0
    %2594 = vmatprep.mubr.f32.mxu0 0.0
    %2595 = vmatmul.mubr.f32.gmra.mrb[0].mxu0 %v2244
    %v2596 = vpop.f32.mrb[0].mxu0
    %v2597 = vadd.f32 0.0, %v2596
    %v2598 = vpop.f32.mrb[0].mxu0
    %2599 = vmatprep.mubr.f32.mxu0 0.0
    %2600 = vmatmul.mubr.f32.gmra.mrb[0].mxu0 %v2245
    %v2601 = vpop.f32.mrb[0].mxu0
    %v2602 = vadd.f32 0.0, %v2601
    %v2603 = vpop.f32.mrb[0].mxu0
    %2604 = vmatprep.mubr.f32.mxu0 0.0
    %2605 = vmatmul.mubr.f32.gmra.mrb[0].mxu0 %v2246
    %v2606 = vpop.f32.mrb[0].mxu0
    %v2607 = vadd.f32 0.0, %v2606
    %v2608 = vpop.f32.mrb[0].mxu0
    %2609 = vmatprep.mubr.f32.mxu0 0.0
    %2610 = vmatmul.mubr.f32.gmra.mrb[0].mxu0 %v2247
    %v2611 = vpop.f32.mrb[0].mxu0
    %v2612 = vadd.f32 0.0, %v2611
    %v2613 = vpop.f32.mrb[0].mxu0
    %2614 = vmatprep.mubr.f32.mxu0 0.0
    %2615 = vmatmul.mubr.f32.gmra.mrb[0].mxu0 %v2248
    %v2616 = vpop.f32.mrb[0].mxu0
    %v2617 = vadd.f32 0.0, %v2616
    %v2618 = vpop.f32.mrb[0].mxu0
    %2619 = vmatprep.mubr.f32.mxu0 0.0
    %2620 = vmatmul.mubr.f32.gmra.mrb[0].mxu0 %v2249
    %v2621 = vpop.f32.mrb[0].mxu0
    %v2622 = vadd.f32 0.0, %v2621
    %v2623 = vpop.f32.mrb[0].mxu0
    %2624 = vmatprep.mubr.f32.mxu0 0.0
    %2625 = vmatmul.mubr.f32.gmra.mrb[0].mxu0 %v2250
    %v2626 = vpop.f32.mrb[0].mxu0
    %v2627 = vadd.f32 0.0, %v2626
    %v2628 = vpop.f32.mrb[0].mxu0
    %2629 = vmatprep.mubr.f32.mxu0 0.0
    %2630 = vmatmul.mubr.f32.gmra.mrb[0].mxu0 %v2251
    %v2631 = vpop.f32.mrb[0].mxu0
    %v2632 = vadd.f32 0.0, %v2631
    %v2633 = vpop.f32.mrb[0].mxu0
    %2634 = vmatprep.mubr.f32.mxu0 0.0
    %2635 = vmatmul.mubr.f32.gmra.mrb[0].mxu0 %v2252
    %v2636 = vpop.f32.mrb[0].mxu0
    %v2637 = vadd.f32 0.0, %v2636
    %v2638 = vpop.f32.mrb[0].mxu0
    %2639 = vmatprep.mubr.f32.mxu0 0.0
    %2640 = vmatmul.mubr.f32.gmra.mrb[0].mxu0 %v2253
    %v2641 = vpop.f32.mrb[0].mxu0
    %v2642 = vadd.f32 0.0, %v2641
    %v2643 = vpop.f32.mrb[0].mxu0
    %2644 = vmatprep.mubr.f32.mxu0 0.0
    %2645 = vmatmul.mubr.f32.gmra.mrb[0].mxu0 %v2254
    %v2646 = vpop.f32.mrb[0].mxu0
    %v2647 = vadd.f32 0.0, %v2646
    %v2648 = vpop.f32.mrb[0].mxu0
    %2649 = vmatprep.mubr.f32.mxu0 0.0
    %2650 = vmatmul.mubr.f32.gmra.mrb[0].mxu0 %v2255
    %v2651 = vpop.f32.mrb[0].mxu0
    %v2652 = vadd.f32 0.0, %v2651
    %v2653 = vpop.f32.mrb[0].mxu0
    %2654 = vmatprep.mubr.f32.mxu0 0.0
    %2655 = vmatmul.mubr.f32.gmra.mrb[0].mxu0 %v2256
    %v2656 = vpop.f32.mrb[0].mxu0
    %v2657 = vadd.f32 0.0, %v2656
    %v2658 = vpop.f32.mrb[0].mxu0
    %2659 = vmatprep.mubr.f32.mxu0 0.0
    %2660 = vmatmul.mubr.f32.gmra.mrb[0].mxu0 %v2257
    %v2661 = vpop.f32.mrb[0].mxu0
    %v2662 = vadd.f32 0.0, %v2661
    %v2663 = vpop.f32.mrb[0].mxu0
    %2664 = vmatprep.mubr.f32.mxu0 0.0
    %2665 = vmatmul.mubr.f32.gmra.mrb[0].mxu0 %v2258
    %v2666 = vpop.f32.mrb[0].mxu0
    %v2667 = vadd.f32 0.0, %v2666
    %v2668 = vpop.f32.mrb[0].mxu0
    %2669 = vmatprep.mubr.f32.mxu0 0.0
    %2670 = vmatmul.mubr.f32.gmra.mrb[0].mxu0 %v2259
    %v2671 = vpop.f32.mrb[0].mxu0
    %v2672 = vadd.f32 0.0, %v2671
    %v2673 = vpop.f32.mrb[0].mxu0
    %2674 = vmatprep.mubr.f32.mxu0 0.0
    %2675 = vmatmul.mubr.f32.gmra.mrb[0].mxu0 %v2260
    %v2676 = vpop.f32.mrb[0].mxu0
    %v2677 = vadd.f32 0.0, %v2676
    %v2678 = vpop.f32.mrb[0].mxu0
    %2679 = vmatprep.mubr.f32.mxu0 0.0
    %2680 = vmatmul.mubr.f32.gmra.mrb[0].mxu0 %v2261
    %v2681 = vpop.f32.mrb[0].mxu0
    %v2682 = vadd.f32 0.0, %v2681
    %v2683 = vpop.f32.mrb[0].mxu0
    %2684 = vmatprep.mubr.f32.mxu0 0.0
    %2685 = vmatmul.mubr.f32.gmra.mrb[0].mxu0 %v2262
    %v2686 = vpop.f32.mrb[0].mxu0
    %v2687 = vadd.f32 0.0, %v2686
    %v2688 = vpop.f32.mrb[0].mxu0
    %2689 = vmatprep.mubr.f32.mxu0 0.0
    %2690 = vmatmul.mubr.f32.gmra.mrb[0].mxu0 %v2263
    %v2691 = vpop.f32.mrb[0].mxu0
    %v2692 = vadd.f32 0.0, %v2691
    %v2693 = vpop.f32.mrb[0].mxu0
    %2694 = vmatprep.mubr.f32.mxu0 0.0
    %2695 = vmatmul.mubr.f32.gmra.mrb[0].mxu0 %v2264
    %v2696 = vpop.f32.mrb[0].mxu0
    %v2697 = vadd.f32 0.0, %v2696
    %v2698 = vpop.f32.mrb[0].mxu0
    %2699 = vmatprep.mubr.f32.mxu0 0.0
    %2700 = vmatmul.mubr.f32.gmra.mrb[0].mxu0 %v2265
    %v2701 = vpop.f32.mrb[0].mxu0
    %v2702 = vadd.f32 0.0, %v2701
    %v2703 = vpop.f32.mrb[0].mxu0
    %2704 = vmatprep.mubr.f32.mxu0 0.0
    %2705 = vmatmul.mubr.f32.gmra.mrb[0].mxu0 %v2266
    %v2706 = vpop.f32.mrb[0].mxu0
    %v2707 = vadd.f32 0.0, %v2706
    %v2708 = vpop.f32.mrb[0].mxu0
    %2709 = vmatprep.mubr.f32.mxu0 0.0
    %2710 = vmatmul.mubr.f32.gmra.mrb[0].mxu0 %v2267
    %v2711 = vpop.f32.mrb[0].mxu0
    %v2712 = vadd.f32 0.0, %v2711
    %v2713 = vpop.f32.mrb[0].mxu0
    %2714 = vmatprep.mubr.f32.mxu0 0.0
    %2715 = vmatmul.mubr.f32.gmra.mrb[0].mxu0 %v2268
    %v2716 = vpop.f32.mrb[0].mxu0
    %v2717 = vadd.f32 0.0, %v2716
    %v2718 = vpop.f32.mrb[0].mxu0
    %2719 = vmatprep.mubr.f32.mxu0 0.0
    %2720 = vmatmul.mubr.f32.gmra.mrb[0].mxu0 %v2269
    %v2721 = vpop.f32.mrb[0].mxu0
    %v2722 = vadd.f32 0.0, %v2721
    %v2723 = vpop.f32.mrb[0].mxu0
    %2724 = vmatprep.mubr.f32.mxu0 0.0
    %2725 = vmatmul.mubr.f32.gmra.mrb[0].mxu0 %v2270
    %v2726 = vpop.f32.mrb[0].mxu0
    %v2727 = vadd.f32 0.0, %v2726
    %v2728 = vpop.f32.mrb[0].mxu0
    %2729 = vmatprep.mubr.f32.mxu0 0.0
    %2730 = vmatmul.mubr.f32.gmra.mrb[0].mxu0 %v2271
    %v2731 = vpop.f32.mrb[0].mxu0
    %v2732 = vadd.f32 0.0, %v2731
    %v2733 = vpop.f32.mrb[0].mxu0
    %2734 = vmatprep.mubr.f32.mxu0 0.0
    %2735 = vmatmul.mubr.f32.gmra.mrb[0].mxu0 %v2272
    %v2736 = vpop.f32.mrb[0].mxu0
    %v2737 = vadd.f32 0.0, %v2736
    %v2738 = vpop.f32.mrb[0].mxu0
    %2739 = vdwg.mxu0
    %v2740 = vmul.f32 %v2357, %v1762
    %v2741 = vmul.f32 %v2362, %v1764
    %v2742 = vmul.f32 %v2367, %v1766
    %v2743 = vmul.f32 %v2372, %v1768
    %v2744 = vmul.f32 %v2377, %v1770
    %v2745 = vmul.f32 %v2382, %v1772
    %v2746 = vmul.f32 %v2387, %v1774
    %v2747 = vmul.f32 %v2392, %v1776
    %v2748 = vmul.f32 %v2397, %v1778
    %v2749 = vmul.f32 %v2402, %v1780
    %v2750 = vmul.f32 %v2407, %v1782
    %v2751 = vmul.f32 %v2412, %v1784
    %v2752 = vmul.f32 %v2417, %v1786
    %v2753 = vmul.f32 %v2422, %v1788
    %v2754 = vmul.f32 %v2427, %v1790
    %v2755 = vmul.f32 %v2432, %v1792
    %v2756 = vmul.f32 %v2437, %v1794
    %v2757 = vmul.f32 %v2442, %v1796
    %v2758 = vmul.f32 %v2447, %v1798
    %v2759 = vmul.f32 %v2452, %v1800
    %v2760 = vmul.f32 %v2457, %v1802
    %v2761 = vmul.f32 %v2462, %v1804
    %v2762 = vmul.f32 %v2467, %v1806
    %v2763 = vmul.f32 %v2472, %v1808
    %v2764 = vmul.f32 %v2477, %v1810
    %v2765 = vmul.f32 %v2482, %v1812
    %v2766 = vmul.f32 %v2487, %v1814
    %v2767 = vmul.f32 %v2492, %v1816
    %v2768 = vmul.f32 %v2497, %v1818
    %v2769 = vmul.f32 %v2502, %v1820
    %v2770 = vmul.f32 %v2507, %v1822
    %v2771 = vmul.f32 %v2512, %v1824
    %2772 = vadd.xlane.f32.xlu0 %v2740
    %v2773 = vpop.xlane.xlu0 %2772
    %2774 = vadd.xlane.f32.xlu0 %v2741
    %v2775 = vpop.xlane.xlu0 %2774
    %2776 = vadd.xlane.f32.xlu0 %v2742
    %v2777 = vpop.xlane.xlu0 %2776
    %2778 = vadd.xlane.f32.xlu0 %v2743
    %v2779 = vpop.xlane.xlu0 %2778
    %2780 = vadd.xlane.f32.xlu0 %v2744
    %v2781 = vpop.xlane.xlu0 %2780
    %2782 = vadd.xlane.f32.xlu0 %v2745
    %v2783 = vpop.xlane.xlu0 %2782
    %2784 = vadd.xlane.f32.xlu0 %v2746
    %v2785 = vpop.xlane.xlu0 %2784
    %2786 = vadd.xlane.f32.xlu0 %v2747
    %v2787 = vpop.xlane.xlu0 %2786
    %2788 = vadd.xlane.f32.xlu0 %v2748
    %v2789 = vpop.xlane.xlu0 %2788
    %2790 = vadd.xlane.f32.xlu0 %v2749
    %v2791 = vpop.xlane.xlu0 %2790
    %2792 = vadd.xlane.f32.xlu0 %v2750
    %v2793 = vpop.xlane.xlu0 %2792
    %2794 = vadd.xlane.f32.xlu0 %v2751
    %v2795 = vpop.xlane.xlu0 %2794
    %2796 = vadd.xlane.f32.xlu0 %v2752
    %v2797 = vpop.xlane.xlu0 %2796
    %2798 = vadd.xlane.f32.xlu0 %v2753
    %v2799 = vpop.xlane.xlu0 %2798
    %2800 = vadd.xlane.f32.xlu0 %v2754
    %v2801 = vpop.xlane.xlu0 %2800
    %2802 = vadd.xlane.f32.xlu0 %v2755
    %v2803 = vpop.xlane.xlu0 %2802
    %2804 = vadd.xlane.f32.xlu0 %v2756
    %v2805 = vpop.xlane.xlu0 %2804
    %2806 = vadd.xlane.f32.xlu0 %v2757
    %v2807 = vpop.xlane.xlu0 %2806
    %2808 = vadd.xlane.f32.xlu0 %v2758
    %v2809 = vpop.xlane.xlu0 %2808
    %2810 = vadd.xlane.f32.xlu0 %v2759
    %v2811 = vpop.xlane.xlu0 %2810
    %2812 = vadd.xlane.f32.xlu0 %v2760
    %v2813 = vpop.xlane.xlu0 %2812
    %2814 = vadd.xlane.f32.xlu0 %v2761
    %v2815 = vpop.xlane.xlu0 %2814
    %2816 = vadd.xlane.f32.xlu0 %v2762
    %v2817 = vpop.xlane.xlu0 %2816
    %2818 = vadd.xlane.f32.xlu0 %v2763
    %v2819 = vpop.xlane.xlu0 %2818
    %2820 = vadd.xlane.f32.xlu0 %v2764
    %v2821 = vpop.xlane.xlu0 %2820
    %2822 = vadd.xlane.f32.xlu0 %v2765
    %v2823 = vpop.xlane.xlu0 %2822
    %2824 = vadd.xlane.f32.xlu0 %v2766
    %v2825 = vpop.xlane.xlu0 %2824
    %2826 = vadd.xlane.f32.xlu0 %v2767
    %v2827 = vpop.xlane.xlu0 %2826
    %2828 = vadd.xlane.f32.xlu0 %v2768
    %v2829 = vpop.xlane.xlu0 %2828
    %2830 = vadd.xlane.f32.xlu0 %v2769
    %v2831 = vpop.xlane.xlu0 %2830
    %2832 = vadd.xlane.f32.xlu0 %v2770
    %v2833 = vpop.xlane.xlu0 %2832
    %2834 = vadd.xlane.f32.xlu0 %v2771
    %v2835 = vpop.xlane.xlu0 %2834
    %v2836 = vstv %s2289
    %v2837 = vadd.f32 %v2773, %v2836
    %v2838 = vadd.f32 %v2775, %v2836
    %v2839 = vadd.f32 %v2777, %v2836
    %v2840 = vadd.f32 %v2779, %v2836
    %v2841 = vadd.f32 %v2781, %v2836
    %v2842 = vadd.f32 %v2783, %v2836
    %v2843 = vadd.f32 %v2785, %v2836
    %v2844 = vadd.f32 %v2787, %v2836
    %v2845 = vadd.f32 %v2789, %v2836
    %v2846 = vadd.f32 %v2791, %v2836
    %v2847 = vadd.f32 %v2793, %v2836
    %v2848 = vadd.f32 %v2795, %v2836
    %v2849 = vadd.f32 %v2797, %v2836
    %v2850 = vadd.f32 %v2799, %v2836
    %v2851 = vadd.f32 %v2801, %v2836
    %v2852 = vadd.f32 %v2803, %v2836
    %v2853 = vadd.f32 %v2805, %v2836
    %v2854 = vadd.f32 %v2807, %v2836
    %v2855 = vadd.f32 %v2809, %v2836
    %v2856 = vadd.f32 %v2811, %v2836
    %v2857 = vadd.f32 %v2813, %v2836
    %v2858 = vadd.f32 %v2815, %v2836
    %v2859 = vadd.f32 %v2817, %v2836
    %v2860 = vadd.f32 %v2819, %v2836
    %v2861 = vadd.f32 %v2821, %v2836
    %v2862 = vadd.f32 %v2823, %v2836
    %v2863 = vadd.f32 %v2825, %v2836
    %v2864 = vadd.f32 %v2827, %v2836
    %v2865 = vadd.f32 %v2829, %v2836
    %v2866 = vadd.f32 %v2831, %v2836
    %v2867 = vadd.f32 %v2833, %v2836
    %v2868 = vadd.f32 %v2835, %v2836
    %v2869 = vmul.f32 %v2582, %v1762
    %v2870 = vmul.f32 %v2587, %v1764
    %v2871 = vmul.f32 %v2592, %v1766
    %v2872 = vmul.f32 %v2597, %v1768
    %v2873 = vmul.f32 %v2602, %v1770
    %v2874 = vmul.f32 %v2607, %v1772
    %v2875 = vmul.f32 %v2612, %v1774
    %v2876 = vmul.f32 %v2617, %v1776
    %v2877 = vmul.f32 %v2622, %v1778
    %v2878 = vmul.f32 %v2627, %v1780
    %v2879 = vmul.f32 %v2632, %v1782
    %v2880 = vmul.f32 %v2637, %v1784
    %v2881 = vmul.f32 %v2642, %v1786
    %v2882 = vmul.f32 %v2647, %v1788
    %v2883 = vmul.f32 %v2652, %v1790
    %v2884 = vmul.f32 %v2657, %v1792
    %v2885 = vmul.f32 %v2662, %v1794
    %v2886 = vmul.f32 %v2667, %v1796
    %v2887 = vmul.f32 %v2672, %v1798
    %v2888 = vmul.f32 %v2677, %v1800
    %v2889 = vmul.f32 %v2682, %v1802
    %v2890 = vmul.f32 %v2687, %v1804
    %v2891 = vmul.f32 %v2692, %v1806
    %v2892 = vmul.f32 %v2697, %v1808
    %v2893 = vmul.f32 %v2702, %v1810
    %v2894 = vmul.f32 %v2707, %v1812
    %v2895 = vmul.f32 %v2712, %v1814
    %v2896 = vmul.f32 %v2717, %v1816
    %v2897 = vmul.f32 %v2722, %v1818
    %v2898 = vmul.f32 %v2727, %v1820
    %v2899 = vmul.f32 %v2732, %v1822
    %v2900 = vmul.f32 %v2737, %v1824
    %2901 = vadd.xlane.f32.xlu0 %v2869
    %v2902 = vpop.xlane.xlu0 %2901
    %2903 = vadd.xlane.f32.xlu0 %v2870
    %v2904 = vpop.xlane.xlu0 %2903
    %2905 = vadd.xlane.f32.xlu0 %v2871
    %v2906 = vpop.xlane.xlu0 %2905
    %2907 = vadd.xlane.f32.xlu0 %v2872
    %v2908 = vpop.xlane.xlu0 %2907
    %2909 = vadd.xlane.f32.xlu0 %v2873
    %v2910 = vpop.xlane.xlu0 %2909
    %2911 = vadd.xlane.f32.xlu0 %v2874
    %v2912 = vpop.xlane.xlu0 %2911
    %2913 = vadd.xlane.f32.xlu0 %v2875
    %v2914 = vpop.xlane.xlu0 %2913
    %2915 = vadd.xlane.f32.xlu0 %v2876
    %v2916 = vpop.xlane.xlu0 %2915
    %2917 = vadd.xlane.f32.xlu0 %v2877
    %v2918 = vpop.xlane.xlu0 %2917
    %2919 = vadd.xlane.f32.xlu0 %v2878
    %v2920 = vpop.xlane.xlu0 %2919
    %2921 = vadd.xlane.f32.xlu0 %v2879
    %v2922 = vpop.xlane.xlu0 %2921
    %2923 = vadd.xlane.f32.xlu0 %v2880
    %v2924 = vpop.xlane.xlu0 %2923
    %2925 = vadd.xlane.f32.xlu0 %v2881
    %v2926 = vpop.xlane.xlu0 %2925
    %2927 = vadd.xlane.f32.xlu0 %v2882
    %v2928 = vpop.xlane.xlu0 %2927
    %2929 = vadd.xlane.f32.xlu0 %v2883
    %v2930 = vpop.xlane.xlu0 %2929
    %2931 = vadd.xlane.f32.xlu0 %v2884
    %v2932 = vpop.xlane.xlu0 %2931
    %2933 = vadd.xlane.f32.xlu0 %v2885
    %v2934 = vpop.xlane.xlu0 %2933
    %2935 = vadd.xlane.f32.xlu0 %v2886
    %v2936 = vpop.xlane.xlu0 %2935
    %2937 = vadd.xlane.f32.xlu0 %v2887
    %v2938 = vpop.xlane.xlu0 %2937
    %2939 = vadd.xlane.f32.xlu0 %v2888
    %v2940 = vpop.xlane.xlu0 %2939
    %2941 = vadd.xlane.f32.xlu0 %v2889
    %v2942 = vpop.xlane.xlu0 %2941
    %2943 = vadd.xlane.f32.xlu0 %v2890
    %v2944 = vpop.xlane.xlu0 %2943
    %2945 = vadd.xlane.f32.xlu0 %v2891
    %v2946 = vpop.xlane.xlu0 %2945
    %2947 = vadd.xlane.f32.xlu0 %v2892
    %v2948 = vpop.xlane.xlu0 %2947
    %2949 = vadd.xlane.f32.xlu0 %v2893
    %v2950 = vpop.xlane.xlu0 %2949
    %2951 = vadd.xlane.f32.xlu0 %v2894
    %v2952 = vpop.xlane.xlu0 %2951
    %2953 = vadd.xlane.f32.xlu0 %v2895
    %v2954 = vpop.xlane.xlu0 %2953
    %2955 = vadd.xlane.f32.xlu0 %v2896
    %v2956 = vpop.xlane.xlu0 %2955
    %2957 = vadd.xlane.f32.xlu0 %v2897
    %v2958 = vpop.xlane.xlu0 %2957
    %2959 = vadd.xlane.f32.xlu0 %v2898
    %v2960 = vpop.xlane.xlu0 %2959
    %2961 = vadd.xlane.f32.xlu0 %v2899
    %v2962 = vpop.xlane.xlu0 %2961
    %2963 = vadd.xlane.f32.xlu0 %v2900
    %v2964 = vpop.xlane.xlu0 %2963
    %v2965 = vadd.f32 %v2902, %v2836
    %v2966 = vadd.f32 %v2904, %v2836
    %v2967 = vadd.f32 %v2906, %v2836
    %v2968 = vadd.f32 %v2908, %v2836
    %v2969 = vadd.f32 %v2910, %v2836
    %v2970 = vadd.f32 %v2912, %v2836
    %v2971 = vadd.f32 %v2914, %v2836
    %v2972 = vadd.f32 %v2916, %v2836
    %v2973 = vadd.f32 %v2918, %v2836
    %v2974 = vadd.f32 %v2920, %v2836
    %v2975 = vadd.f32 %v2922, %v2836
    %v2976 = vadd.f32 %v2924, %v2836
    %v2977 = vadd.f32 %v2926, %v2836
    %v2978 = vadd.f32 %v2928, %v2836
    %v2979 = vadd.f32 %v2930, %v2836
    %v2980 = vadd.f32 %v2932, %v2836
    %v2981 = vadd.f32 %v2934, %v2836
    %v2982 = vadd.f32 %v2936, %v2836
    %v2983 = vadd.f32 %v2938, %v2836
    %v2984 = vadd.f32 %v2940, %v2836
    %v2985 = vadd.f32 %v2942, %v2836
    %v2986 = vadd.f32 %v2944, %v2836
    %v2987 = vadd.f32 %v2946, %v2836
    %v2988 = vadd.f32 %v2948, %v2836
    %v2989 = vadd.f32 %v2950, %v2836
    %v2990 = vadd.f32 %v2952, %v2836
    %v2991 = vadd.f32 %v2954, %v2836
    %v2992 = vadd.f32 %v2956, %v2836
    %v2993 = vadd.f32 %v2958, %v2836
    %v2994 = vadd.f32 %v2960, %v2836
    %v2995 = vadd.f32 %v2962, %v2836
    %v2996 = vadd.f32 %v2964, %v2836
    %v2997 = vmul.f32 %v2582, %v2146
    %v2998 = vmul.f32 %v2587, %v2148
    %v2999 = vmul.f32 %v2592, %v2150
    %v3000 = vmul.f32 %v2597, %v2152
    %v3001 = vmul.f32 %v2602, %v2154
    %v3002 = vmul.f32 %v2607, %v2156
    %v3003 = vmul.f32 %v2612, %v2158
    %v3004 = vmul.f32 %v2617, %v2160
    %v3005 = vmul.f32 %v2622, %v2162
    %v3006 = vmul.f32 %v2627, %v2164
    %v3007 = vmul.f32 %v2632, %v2166
    %v3008 = vmul.f32 %v2637, %v2168
    %v3009 = vmul.f32 %v2642, %v2170
    %v3010 = vmul.f32 %v2647, %v2172
    %v3011 = vmul.f32 %v2652, %v2174
    %v3012 = vmul.f32 %v2657, %v2176
    %v3013 = vmul.f32 %v2662, %v2178
    %v3014 = vmul.f32 %v2667, %v2180
    %v3015 = vmul.f32 %v2672, %v2182
    %v3016 = vmul.f32 %v2677, %v2184
    %v3017 = vmul.f32 %v2682, %v2186
    %v3018 = vmul.f32 %v2687, %v2188
    %v3019 = vmul.f32 %v2692, %v2190
    %v3020 = vmul.f32 %v2697, %v2192
    %v3021 = vmul.f32 %v2702, %v2194
    %v3022 = vmul.f32 %v2707, %v2196
    %v3023 = vmul.f32 %v2712, %v2198
    %v3024 = vmul.f32 %v2717, %v2200
    %v3025 = vmul.f32 %v2722, %v2202
    %v3026 = vmul.f32 %v2727, %v2204
    %v3027 = vmul.f32 %v2732, %v2206
    %v3028 = vmul.f32 %v2737, %v2208
    %3029 = vadd.xlane.f32.xlu0 %v2997
    %v3030 = vpop.xlane.xlu0 %3029
    %3031 = vadd.xlane.f32.xlu0 %v2998
    %v3032 = vpop.xlane.xlu0 %3031
    %3033 = vadd.xlane.f32.xlu0 %v2999
    %v3034 = vpop.xlane.xlu0 %3033
    %3035 = vadd.xlane.f32.xlu0 %v3000
    %v3036 = vpop.xlane.xlu0 %3035
    %3037 = vadd.xlane.f32.xlu0 %v3001
    %v3038 = vpop.xlane.xlu0 %3037
    %3039 = vadd.xlane.f32.xlu0 %v3002
    %v3040 = vpop.xlane.xlu0 %3039
    %3041 = vadd.xlane.f32.xlu0 %v3003
    %v3042 = vpop.xlane.xlu0 %3041
    %3043 = vadd.xlane.f32.xlu0 %v3004
    %v3044 = vpop.xlane.xlu0 %3043
    %3045 = vadd.xlane.f32.xlu0 %v3005
    %v3046 = vpop.xlane.xlu0 %3045
    %3047 = vadd.xlane.f32.xlu0 %v3006
    %v3048 = vpop.xlane.xlu0 %3047
    %3049 = vadd.xlane.f32.xlu0 %v3007
    %v3050 = vpop.xlane.xlu0 %3049
    %3051 = vadd.xlane.f32.xlu0 %v3008
    %v3052 = vpop.xlane.xlu0 %3051
    %3053 = vadd.xlane.f32.xlu0 %v3009
    %v3054 = vpop.xlane.xlu0 %3053
    %3055 = vadd.xlane.f32.xlu0 %v3010
    %v3056 = vpop.xlane.xlu0 %3055
    %3057 = vadd.xlane.f32.xlu0 %v3011
    %v3058 = vpop.xlane.xlu0 %3057
    %3059 = vadd.xlane.f32.xlu0 %v3012
    %v3060 = vpop.xlane.xlu0 %3059
    %3061 = vadd.xlane.f32.xlu0 %v3013
    %v3062 = vpop.xlane.xlu0 %3061
    %3063 = vadd.xlane.f32.xlu0 %v3014
    %v3064 = vpop.xlane.xlu0 %3063
    %3065 = vadd.xlane.f32.xlu0 %v3015
    %v3066 = vpop.xlane.xlu0 %3065
    %3067 = vadd.xlane.f32.xlu0 %v3016
    %v3068 = vpop.xlane.xlu0 %3067
    %3069 = vadd.xlane.f32.xlu0 %v3017
    %v3070 = vpop.xlane.xlu0 %3069
    %3071 = vadd.xlane.f32.xlu0 %v3018
    %v3072 = vpop.xlane.xlu0 %3071
    %3073 = vadd.xlane.f32.xlu0 %v3019
    %v3074 = vpop.xlane.xlu0 %3073
    %3075 = vadd.xlane.f32.xlu0 %v3020
    %v3076 = vpop.xlane.xlu0 %3075
    %3077 = vadd.xlane.f32.xlu0 %v3021
    %v3078 = vpop.xlane.xlu0 %3077
    %3079 = vadd.xlane.f32.xlu0 %v3022
    %v3080 = vpop.xlane.xlu0 %3079
    %3081 = vadd.xlane.f32.xlu0 %v3023
    %v3082 = vpop.xlane.xlu0 %3081
    %3083 = vadd.xlane.f32.xlu0 %v3024
    %v3084 = vpop.xlane.xlu0 %3083
    %3085 = vadd.xlane.f32.xlu0 %v3025
    %v3086 = vpop.xlane.xlu0 %3085
    %3087 = vadd.xlane.f32.xlu0 %v3026
    %v3088 = vpop.xlane.xlu0 %3087
    %3089 = vadd.xlane.f32.xlu0 %v3027
    %v3090 = vpop.xlane.xlu0 %3089
    %3091 = vadd.xlane.f32.xlu0 %v3028
    %v3092 = vpop.xlane.xlu0 %3091
    %v3093 = vadd.f32 %v3030, %v2836
    %v3094 = vadd.f32 %v3032, %v2836
    %v3095 = vadd.f32 %v3034, %v2836
    %v3096 = vadd.f32 %v3036, %v2836
    %v3097 = vadd.f32 %v3038, %v2836
    %v3098 = vadd.f32 %v3040, %v2836
    %v3099 = vadd.f32 %v3042, %v2836
    %v3100 = vadd.f32 %v3044, %v2836
    %v3101 = vadd.f32 %v3046, %v2836
    %v3102 = vadd.f32 %v3048, %v2836
    %v3103 = vadd.f32 %v3050, %v2836
    %v3104 = vadd.f32 %v3052, %v2836
    %v3105 = vadd.f32 %v3054, %v2836
    %v3106 = vadd.f32 %v3056, %v2836
    %v3107 = vadd.f32 %v3058, %v2836
    %v3108 = vadd.f32 %v3060, %v2836
    %v3109 = vadd.f32 %v3062, %v2836
    %v3110 = vadd.f32 %v3064, %v2836
    %v3111 = vadd.f32 %v3066, %v2836
    %v3112 = vadd.f32 %v3068, %v2836
    %v3113 = vadd.f32 %v3070, %v2836
    %v3114 = vadd.f32 %v3072, %v2836
    %v3115 = vadd.f32 %v3074, %v2836
    %v3116 = vadd.f32 %v3076, %v2836
    %v3117 = vadd.f32 %v3078, %v2836
    %v3118 = vadd.f32 %v3080, %v2836
    %v3119 = vadd.f32 %v3082, %v2836
    %v3120 = vadd.f32 %v3084, %v2836
    %v3121 = vadd.f32 %v3086, %v2836
    %v3122 = vadd.f32 %v3088, %v2836
    %v3123 = vadd.f32 %v3090, %v2836
    %v3124 = vadd.f32 %v3092, %v2836
    %v3125 = vmul.f32 %v2357, %v2146
    %v3126 = vmul.f32 %v2362, %v2148
    %v3127 = vmul.f32 %v2367, %v2150
    %v3128 = vmul.f32 %v2372, %v2152
    %v3129 = vmul.f32 %v2377, %v2154
    %v3130 = vmul.f32 %v2382, %v2156
    %v3131 = vmul.f32 %v2387, %v2158
    %v3132 = vmul.f32 %v2392, %v2160
    %v3133 = vmul.f32 %v2397, %v2162
    %v3134 = vmul.f32 %v2402, %v2164
    %v3135 = vmul.f32 %v2407, %v2166
    %v3136 = vmul.f32 %v2412, %v2168
    %v3137 = vmul.f32 %v2417, %v2170
    %v3138 = vmul.f32 %v2422, %v2172
    %v3139 = vmul.f32 %v2427, %v2174
    %v3140 = vmul.f32 %v2432, %v2176
    %v3141 = vmul.f32 %v2437, %v2178
    %v3142 = vmul.f32 %v2442, %v2180
    %v3143 = vmul.f32 %v2447, %v2182
    %v3144 = vmul.f32 %v2452, %v2184
    %v3145 = vmul.f32 %v2457, %v2186
    %v3146 = vmul.f32 %v2462, %v2188
    %v3147 = vmul.f32 %v2467, %v2190
    %v3148 = vmul.f32 %v2472, %v2192
    %v3149 = vmul.f32 %v2477, %v2194
    %v3150 = vmul.f32 %v2482, %v2196
    %v3151 = vmul.f32 %v2487, %v2198
    %v3152 = vmul.f32 %v2492, %v2200
    %v3153 = vmul.f32 %v2497, %v2202
    %v3154 = vmul.f32 %v2502, %v2204
    %v3155 = vmul.f32 %v2507, %v2206
    %v3156 = vmul.f32 %v2512, %v2208
    %3157 = vadd.xlane.f32.xlu0 %v3125
    %v3158 = vpop.xlane.xlu0 %3157
    %3159 = vadd.xlane.f32.xlu0 %v3126
    %v3160 = vpop.xlane.xlu0 %3159
    %3161 = vadd.xlane.f32.xlu0 %v3127
    %v3162 = vpop.xlane.xlu0 %3161
    %3163 = vadd.xlane.f32.xlu0 %v3128
    %v3164 = vpop.xlane.xlu0 %3163
    %3165 = vadd.xlane.f32.xlu0 %v3129
    %v3166 = vpop.xlane.xlu0 %3165
    %3167 = vadd.xlane.f32.xlu0 %v3130
    %v3168 = vpop.xlane.xlu0 %3167
    %3169 = vadd.xlane.f32.xlu0 %v3131
    %v3170 = vpop.xlane.xlu0 %3169
    %3171 = vadd.xlane.f32.xlu0 %v3132
    %v3172 = vpop.xlane.xlu0 %3171
    %3173 = vadd.xlane.f32.xlu0 %v3133
    %v3174 = vpop.xlane.xlu0 %3173
    %3175 = vadd.xlane.f32.xlu0 %v3134
    %v3176 = vpop.xlane.xlu0 %3175
    %3177 = vadd.xlane.f32.xlu0 %v3135
    %v3178 = vpop.xlane.xlu0 %3177
    %3179 = vadd.xlane.f32.xlu0 %v3136
    %v3180 = vpop.xlane.xlu0 %3179
    %3181 = vadd.xlane.f32.xlu0 %v3137
    %v3182 = vpop.xlane.xlu0 %3181
    %3183 = vadd.xlane.f32.xlu0 %v3138
    %v3184 = vpop.xlane.xlu0 %3183
    %3185 = vadd.xlane.f32.xlu0 %v3139
    %v3186 = vpop.xlane.xlu0 %3185
    %3187 = vadd.xlane.f32.xlu0 %v3140
    %v3188 = vpop.xlane.xlu0 %3187
    %3189 = vadd.xlane.f32.xlu0 %v3141
    %v3190 = vpop.xlane.xlu0 %3189
    %3191 = vadd.xlane.f32.xlu0 %v3142
    %v3192 = vpop.xlane.xlu0 %3191
    %3193 = vadd.xlane.f32.xlu0 %v3143
    %v3194 = vpop.xlane.xlu0 %3193
    %3195 = vadd.xlane.f32.xlu0 %v3144
    %v3196 = vpop.xlane.xlu0 %3195
    %3197 = vadd.xlane.f32.xlu0 %v3145
    %v3198 = vpop.xlane.xlu0 %3197
    %3199 = vadd.xlane.f32.xlu0 %v3146
    %v3200 = vpop.xlane.xlu0 %3199
    %3201 = vadd.xlane.f32.xlu0 %v3147
    %v3202 = vpop.xlane.xlu0 %3201
    %3203 = vadd.xlane.f32.xlu0 %v3148
    %v3204 = vpop.xlane.xlu0 %3203
    %3205 = vadd.xlane.f32.xlu0 %v3149
    %v3206 = vpop.xlane.xlu0 %3205
    %3207 = vadd.xlane.f32.xlu0 %v3150
    %v3208 = vpop.xlane.xlu0 %3207
    %3209 = vadd.xlane.f32.xlu0 %v3151
    %v3210 = vpop.xlane.xlu0 %3209
    %3211 = vadd.xlane.f32.xlu0 %v3152
    %v3212 = vpop.xlane.xlu0 %3211
    %3213 = vadd.xlane.f32.xlu0 %v3153
    %v3214 = vpop.xlane.xlu0 %3213
    %3215 = vadd.xlane.f32.xlu0 %v3154
    %v3216 = vpop.xlane.xlu0 %3215
    %3217 = vadd.xlane.f32.xlu0 %v3155
    %v3218 = vpop.xlane.xlu0 %3217
    %3219 = vadd.xlane.f32.xlu0 %v3156
    %v3220 = vpop.xlane.xlu0 %3219
    %v3221 = vadd.f32 %v3158, %v2836
    %v3222 = vadd.f32 %v3160, %v2836
    %v3223 = vadd.f32 %v3162, %v2836
    %v3224 = vadd.f32 %v3164, %v2836
    %v3225 = vadd.f32 %v3166, %v2836
    %v3226 = vadd.f32 %v3168, %v2836
    %v3227 = vadd.f32 %v3170, %v2836
    %v3228 = vadd.f32 %v3172, %v2836
    %v3229 = vadd.f32 %v3174, %v2836
    %v3230 = vadd.f32 %v3176, %v2836
    %v3231 = vadd.f32 %v3178, %v2836
    %v3232 = vadd.f32 %v3180, %v2836
    %v3233 = vadd.f32 %v3182, %v2836
    %v3234 = vadd.f32 %v3184, %v2836
    %v3235 = vadd.f32 %v3186, %v2836
    %v3236 = vadd.f32 %v3188, %v2836
    %v3237 = vadd.f32 %v3190, %v2836
    %v3238 = vadd.f32 %v3192, %v2836
    %v3239 = vadd.f32 %v3194, %v2836
    %v3240 = vadd.f32 %v3196, %v2836
    %v3241 = vadd.f32 %v3198, %v2836
    %v3242 = vadd.f32 %v3200, %v2836
    %v3243 = vadd.f32 %v3202, %v2836
    %v3244 = vadd.f32 %v3204, %v2836
    %v3245 = vadd.f32 %v3206, %v2836
    %v3246 = vadd.f32 %v3208, %v2836
    %v3247 = vadd.f32 %v3210, %v2836
    %v3248 = vadd.f32 %v3212, %v2836
    %v3249 = vadd.f32 %v3214, %v2836
    %v3250 = vadd.f32 %v3216, %v2836
    %v3251 = vadd.f32 %v3218, %v2836
    %v3252 = vadd.f32 %v3220, %v2836
    %v3253 = vlaneseq
    %v3254 = vand.u32 %v3253, 127
    %vm3255 = vcmp.eq.s32.totalorder %v3254, 0
    %v3256 = vsel %vm3255, %v2837, %v2965
    %v3257 = vsel %vm3255, %v2838, %v2966
    %v3258 = vsel %vm3255, %v2839, %v2967
    %v3259 = vsel %vm3255, %v2840, %v2968
    %v3260 = vsel %vm3255, %v2841, %v2969
    %v3261 = vsel %vm3255, %v2842, %v2970
    %v3262 = vsel %vm3255, %v2843, %v2971
    %v3263 = vsel %vm3255, %v2844, %v2972
    %v3264 = vsel %vm3255, %v2845, %v2973
    %v3265 = vsel %vm3255, %v2846, %v2974
    %v3266 = vsel %vm3255, %v2847, %v2975
    %v3267 = vsel %vm3255, %v2848, %v2976
    %v3268 = vsel %vm3255, %v2849, %v2977
    %v3269 = vsel %vm3255, %v2850, %v2978
    %v3270 = vsel %vm3255, %v2851, %v2979
    %v3271 = vsel %vm3255, %v2852, %v2980
    %v3272 = vsel %vm3255, %v2853, %v2981
    %v3273 = vsel %vm3255, %v2854, %v2982
    %v3274 = vsel %vm3255, %v2855, %v2983
    %v3275 = vsel %vm3255, %v2856, %v2984
    %v3276 = vsel %vm3255, %v2857, %v2985
    %v3277 = vsel %vm3255, %v2858, %v2986
    %v3278 = vsel %vm3255, %v2859, %v2987
    %v3279 = vsel %vm3255, %v2860, %v2988
    %v3280 = vsel %vm3255, %v2861, %v2989
    %v3281 = vsel %vm3255, %v2862, %v2990
    %v3282 = vsel %vm3255, %v2863, %v2991
    %v3283 = vsel %vm3255, %v2864, %v2992
    %v3284 = vsel %vm3255, %v2865, %v2993
    %v3285 = vsel %vm3255, %v2866, %v2994
    %v3286 = vsel %vm3255, %v2867, %v2995
    %v3287 = vsel %vm3255, %v2868, %v2996
    %vm3288 = vcmask 15360
    %3289 = vst.msk [vmem:[%s5] sm:$0xff] %vm3288, %v3256
    %3290 = vst.msk [vmem:[%s5 + $0x8] sm:$0xff] %vm3288, %v3257
    %3291 = vst.msk [vmem:[%s5 + $0x10] sm:$0xff] %vm3288, %v3258
    %3292 = vst.msk [vmem:[%s5 + $0x18] sm:$0xff] %vm3288, %v3259
    %3293 = vst.msk [vmem:[%s5 + $0x20] sm:$0xff] %vm3288, %v3260
    %3294 = vst.msk [vmem:[%s5 + $0x28] sm:$0xff] %vm3288, %v3261
    %3295 = vst.msk [vmem:[%s5 + $0x30] sm:$0xff] %vm3288, %v3262
    %3296 = vst.msk [vmem:[%s5 + $0x38] sm:$0xff] %vm3288, %v3263
    %3297 = vst.msk [vmem:[%s5 + $0x40] sm:$0xff] %vm3288, %v3264
    %3298 = vst.msk [vmem:[%s5 + $0x48] sm:$0xff] %vm3288, %v3265
    %3299 = vst.msk [vmem:[%s5 + $0x50] sm:$0xff] %vm3288, %v3266
    %3300 = vst.msk [vmem:[%s5 + $0x58] sm:$0xff] %vm3288, %v3267
    %3301 = vst.msk [vmem:[%s5 + $0x60] sm:$0xff] %vm3288, %v3268
    %3302 = vst.msk [vmem:[%s5 + $0x68] sm:$0xff] %vm3288, %v3269
    %3303 = vst.msk [vmem:[%s5 + $0x70] sm:$0xff] %vm3288, %v3270
    %3304 = vst.msk [vmem:[%s5 + $0x78] sm:$0xff] %vm3288, %v3271
    %3305 = vst.msk [vmem:[%s5 + $0x80] sm:$0xff] %vm3288, %v3272
    %3306 = vst.msk [vmem:[%s5 + $0x88] sm:$0xff] %vm3288, %v3273
    %3307 = vst.msk [vmem:[%s5 + $0x90] sm:$0xff] %vm3288, %v3274
    %3308 = vst.msk [vmem:[%s5 + $0x98] sm:$0xff] %vm3288, %v3275
    %3309 = vst.msk [vmem:[%s5 + $0xa0] sm:$0xff] %vm3288, %v3276
    %3310 = vst.msk [vmem:[%s5 + $0xa8] sm:$0xff] %vm3288, %v3277
    %3311 = vst.msk [vmem:[%s5 + $0xb0] sm:$0xff] %vm3288, %v3278
    %3312 = vst.msk [vmem:[%s5 + $0xb8] sm:$0xff] %vm3288, %v3279
    %3313 = vst.msk [vmem:[%s5 + $0xc0] sm:$0xff] %vm3288, %v3280
    %3314 = vst.msk [vmem:[%s5 + $0xc8] sm:$0xff] %vm3288, %v3281
    %3315 = vst.msk [vmem:[%s5 + $0xd0] sm:$0xff] %vm3288, %v3282
    %3316 = vst.msk [vmem:[%s5 + $0xd8] sm:$0xff] %vm3288, %v3283
    %3317 = vst.msk [vmem:[%s5 + $0xe0] sm:$0xff] %vm3288, %v3284
    %3318 = vst.msk [vmem:[%s5 + $0xe8] sm:$0xff] %vm3288, %v3285
    %3319 = vst.msk [vmem:[%s5 + $0xf0] sm:$0xff] %vm3288, %v3286
    %3320 = vst.msk [vmem:[%s5 + $0xf8] sm:$0xff] %vm3288, %v3287
    %v3321 = vsel %vm3255, %v3093, %v3221
    %v3322 = vsel %vm3255, %v3094, %v3222
    %v3323 = vsel %vm3255, %v3095, %v3223
    %v3324 = vsel %vm3255, %v3096, %v3224
    %v3325 = vsel %vm3255, %v3097, %v3225
    %v3326 = vsel %vm3255, %v3098, %v3226
    %v3327 = vsel %vm3255, %v3099, %v3227
    %v3328 = vsel %vm3255, %v3100, %v3228
    %v3329 = vsel %vm3255, %v3101, %v3229
    %v3330 = vsel %vm3255, %v3102, %v3230
    %v3331 = vsel %vm3255, %v3103, %v3231
    %v3332 = vsel %vm3255, %v3104, %v3232
    %v3333 = vsel %vm3255, %v3105, %v3233
    %v3334 = vsel %vm3255, %v3106, %v3234
    %v3335 = vsel %vm3255, %v3107, %v3235
    %v3336 = vsel %vm3255, %v3108, %v3236
    %v3337 = vsel %vm3255, %v3109, %v3237
    %v3338 = vsel %vm3255, %v3110, %v3238
    %v3339 = vsel %vm3255, %v3111, %v3239
    %v3340 = vsel %vm3255, %v3112, %v3240
    %v3341 = vsel %vm3255, %v3113, %v3241
    %v3342 = vsel %vm3255, %v3114, %v3242
    %v3343 = vsel %vm3255, %v3115, %v3243
    %v3344 = vsel %vm3255, %v3116, %v3244
    %v3345 = vsel %vm3255, %v3117, %v3245
    %v3346 = vsel %vm3255, %v3118, %v3246
    %v3347 = vsel %vm3255, %v3119, %v3247
    %v3348 = vsel %vm3255, %v3120, %v3248
    %v3349 = vsel %vm3255, %v3121, %v3249
    %v3350 = vsel %vm3255, %v3122, %v3250
    %v3351 = vsel %vm3255, %v3123, %v3251
    %v3352 = vsel %vm3255, %v3124, %v3252
    %3353 = vst.msk [vmem:[%s6] sm:$0xff] %vm3288, %v3321
    %3354 = vst.msk [vmem:[%s6 + $0x8] sm:$0xff] %vm3288, %v3322
    %3355 = vst.msk [vmem:[%s6 + $0x10] sm:$0xff] %vm3288, %v3323
    %3356 = vst.msk [vmem:[%s6 + $0x18] sm:$0xff] %vm3288, %v3324
    %3357 = vst.msk [vmem:[%s6 + $0x20] sm:$0xff] %vm3288, %v3325
    %3358 = vst.msk [vmem:[%s6 + $0x28] sm:$0xff] %vm3288, %v3326
    %3359 = vst.msk [vmem:[%s6 + $0x30] sm:$0xff] %vm3288, %v3327
    %3360 = vst.msk [vmem:[%s6 + $0x38] sm:$0xff] %vm3288, %v3328
    %3361 = vst.msk [vmem:[%s6 + $0x40] sm:$0xff] %vm3288, %v3329
    %3362 = vst.msk [vmem:[%s6 + $0x48] sm:$0xff] %vm3288, %v3330
    %3363 = vst.msk [vmem:[%s6 + $0x50] sm:$0xff] %vm3288, %v3331
    %3364 = vst.msk [vmem:[%s6 + $0x58] sm:$0xff] %vm3288, %v3332
    %3365 = vst.msk [vmem:[%s6 + $0x60] sm:$0xff] %vm3288, %v3333
    %3366 = vst.msk [vmem:[%s6 + $0x68] sm:$0xff] %vm3288, %v3334
    %3367 = vst.msk [vmem:[%s6 + $0x70] sm:$0xff] %vm3288, %v3335
    %3368 = vst.msk [vmem:[%s6 + $0x78] sm:$0xff] %vm3288, %v3336
    %3369 = vst.msk [vmem:[%s6 + $0x80] sm:$0xff] %vm3288, %v3337
    %3370 = vst.msk [vmem:[%s6 + $0x88] sm:$0xff] %vm3288, %v3338
    %3371 = vst.msk [vmem:[%s6 + $0x90] sm:$0xff] %vm3288, %v3339
    %3372 = vst.msk [vmem:[%s6 + $0x98] sm:$0xff] %vm3288, %v3340
    %3373 = vst.msk [vmem:[%s6 + $0xa0] sm:$0xff] %vm3288, %v3341
    %3374 = vst.msk [vmem:[%s6 + $0xa8] sm:$0xff] %vm3288, %v3342
    %3375 = vst.msk [vmem:[%s6 + $0xb0] sm:$0xff] %vm3288, %v3343
    %3376 = vst.msk [vmem:[%s6 + $0xb8] sm:$0xff] %vm3288, %v3344
    %3377 = vst.msk [vmem:[%s6 + $0xc0] sm:$0xff] %vm3288, %v3345
    %3378 = vst.msk [vmem:[%s6 + $0xc8] sm:$0xff] %vm3288, %v3346
    %3379 = vst.msk [vmem:[%s6 + $0xd0] sm:$0xff] %vm3288, %v3347
    %3380 = vst.msk [vmem:[%s6 + $0xd8] sm:$0xff] %vm3288, %v3348
    %3381 = vst.msk [vmem:[%s6 + $0xe0] sm:$0xff] %vm3288, %v3349
    %3382 = vst.msk [vmem:[%s6 + $0xe8] sm:$0xff] %vm3288, %v3350
    %3383 = vst.msk [vmem:[%s6 + $0xf0] sm:$0xff] %vm3288, %v3351
    %3384 = vst.msk [vmem:[%s6 + $0xf8] sm:$0xff] %vm3288, %v3352
  $region29: #{omics1_encoder_forward.9} parent=0 // pred_fallthru
    _
  // Predicated region
  $region30: #{omics1_encoder_forward.9} parent=0 // pred_check
    _
  $region31: #{omics1_encoder_forward.9} parent=0 // pred_check_branch
    %3386 = sbr.rel (0) target = $region33
  $region32: #{omics1_encoder_forward.9} parent=0 // pred_region
    _
  $region33: #{omics1_encoder_forward.9} parent=0 // pred_fallthru
    _
  // Predicated region
  $region34: #{omics1_encoder_forward.9} parent=0 // pred_check
    _
  $region35: #{omics1_encoder_forward.9} parent=0 // pred_check_branch
    %3388 = sbr.rel (0) target = $region37
  $region36: #{omics1_encoder_forward.9} parent=0 // pred_region
    _
  $region37: #{omics1_encoder_forward.9} parent=0 // pred_fallthru
    _
  // Predicated region
  $region38: #{omics1_encoder_forward.9} parent=0 // pred_check
    _
  $region39: #{omics1_encoder_forward.9} parent=0 // pred_check_branch
    %3390 = sbr.rel (0) target = $region41
  $region40: #{omics1_encoder_forward.9} parent=0 // pred_region
    _
  $region41: #{omics1_encoder_forward.9} parent=0 // pred_fallthru
    _
  // Predicated region
  $region42: #{omics1_encoder_forward.9} parent=0 // pred_check
    _
  $region43: #{omics1_encoder_forward.9} parent=0 // pred_check_branch
    %3392 = sbr.rel (0) target = $region45
  $region44: #{omics1_encoder_forward.9} parent=0 // pred_region
    _
  $region45: #{omics1_encoder_forward.9} parent=0 // pred_fallthru
    _

</llo_original>
